<compile_context>
chip_gen: v7x
topology: tpu7x:2x2x1
jax: 0.10.0
libtpu: 0.0.40
codegen_flags: <defaults>
</compile_context>

<pallas_src>
import jax
import jax.numpy as jnp
from jax import lax
from jax.experimental import pallas as pl
from jax.experimental.pallas import tpu as pltpu


def _sigmoid(z):
    # 1/(1+e^-z) with the divide moved to the EUP (approx reciprocal); the
    # 1e-2 comparison tolerance easily covers the approximation.
    return pl.reciprocal(1.0 + jnp.exp(-z), approx=True)


# ------------------------------------------------------------------ kernel --

def _net_kernel(x0_ref, x1_ref, x2_ref, x3_ref,
                w1_ref, b1_ref, t2_ref, b2_ref, w3_ref, b3_ref,
                fc1w_ref, fc1b_ref, fc2w_ref, fc2b_ref, o_ref):
    tn = x0_ref.shape[0]                 # batch tile (small, static)
    kh1 = w1_ref.shape[0]                # 7
    rows = w3_ref.shape[0]               # 7 == pooled-twice row count (== KH3)

    xs = (x0_ref[...], x1_ref[...], x2_ref[...], x3_ref[...])
    w1 = w1_ref[...]                     # (7, W*C1) lane-dense conv1 taps
    b1 = b1_ref[...]                     # (1, W*C1)

    # conv1 (7x1, Cin=1): pure VPU FMAs in the (w,c)-flattened 312-lane layout.
    # Phase r produces conv1-output rows h = 4t + r, so pool1 and pool2 become
    # elementwise maximums (no tiled-dim reshapes, no strided slices).
    def conv1_phase(r):
        acc = xs[r % 4][:, r // 4:r // 4 + rows, :] * w1[0:1]
        for kh in range(1, kh1):
            a = r + kh
            acc = acc + xs[a % 4][:, a // 4:a // 4 + rows, :] * w1[kh:kh + 1]
        return acc

    o0, o1, o2, o3 = (conv1_phase(r) for r in range(4))
    # pool1 (2,1) fused: max(sigmoid(a), sigmoid(b)) == sigmoid(max(a, b)).
    p_top = _sigmoid(jnp.maximum(o0, o1) + b1)        # pool1 rows 2t
    p_bot = _sigmoid(jnp.maximum(o2, o3) + b1)        # pool1 rows 2t+1

    t2 = t2_ref[...]                     # (W*C1, W2o*C2) block-Toeplitz conv2
    b2 = b2_ref[...]
    w3 = w3_ref[...]                     # (KH3, KW3*C2, C3)
    b3 = b3_ref[...]
    fc1w = fc1w_ref[...]; fc1b = fc1b_ref[...]
    fc2w = fc2w_ref[...]; fc2b = fc2b_ref[...]

    for n in range(tn):                  # tn is small; grid handles large N
        # conv2 (1x7): ONE dense K=312 matmul per pool1 half, pool2 fused.
        a2t = _sigmoid(jnp.dot(p_top[n], t2,
                               preferred_element_type=jnp.float32) + b2)
        a2b = _sigmoid(jnp.dot(p_bot[n], t2,
                               preferred_element_type=jnp.float32) + b2)
        q2 = jnp.maximum(a2t, a2b)                    # (7, W2o*C2) == p2
        # conv3 (7x7 -> 1x1): 7 plain 2-D matmuls, K = 336 each, bias in init.
        acc3 = b3
        for t in range(rows):
            acc3 = acc3 + jnp.dot(q2[t:t + 1, :], w3[t],
                                  preferred_element_type=jnp.float32)
        a3 = _sigmoid(acc3)                           # (1, C3) == flatten
        # MLP head: plain 2-D dots, fused relu / softmax.
        h = jnp.maximum(
            jnp.dot(a3, fc1w, preferred_element_type=jnp.float32) + fc1b, 0.0)
        logits = jnp.dot(h, fc2w, preferred_element_type=jnp.float32) + fc2b
        logits = logits - jnp.max(logits, axis=-1, keepdims=True)
        e = jnp.exp(logits)
        inv = pl.reciprocal(jnp.sum(e, axis=-1, keepdims=True), approx=True)
        o_ref[n] = (e * inv).astype(o_ref.dtype)


# ------------------------------------------------------------------ wrapper --

def _const_spec(shape):
    nd = len(shape)
    return pl.BlockSpec(shape, lambda i, _nd=nd: (0,) * _nd)


@jax.jit
def net_forward(x_nchw, kp):
    N, C, H, W = x_nchw.shape
    assert C == 1, "grayscale model (self.colored == False)"
    kh1, wc1 = kp["w1"].shape                    # (7, W*C1)
    c1 = wc1 // W
    rows = kp["w3"].shape[0]                     # 7
    assert H - kh1 + 1 == 4 * rows, "conv/pool geometry must reduce H to 7"
    assert kp["t2"].shape == (wc1, kp["w3"].shape[1])
    assert kp["fc1_w"].shape[0] == kp["w3"].shape[2]
    Do = kp["fc2_w"].shape[1]

    # Lane-dense input prep (cheap XLA ops, once per call): channel-repeat to
    # the (w, c)-flattened layout, then split rows by h%4 so both max-pools are
    # elementwise inside the kernel.
    xw = jnp.repeat(x_nchw[:, 0], c1, axis=-1)   # (N, H, W*C1)
    phases = [xw[:, s::4] for s in range(4)]

    tn = N if N <= 4 else 4                      # small static batch tile
    assert N % tn == 0, "demo wrapper expects the batch tile to divide N"
    grid = (N // tn,)

    phase_specs = [pl.BlockSpec((tn,) + p.shape[1:], lambda i: (i, 0, 0))
                   for p in phases]
    weight_names = ["w1", "b1", "t2", "b2", "w3", "b3",
                    "fc1_w", "fc1_b", "fc2_w", "fc2_b"]
    weight_specs = [_const_spec(kp[k].shape) for k in weight_names]

    out = pl.pallas_call(
        _net_kernel,
        out_shape=jax.ShapeDtypeStruct((N, 1, Do), jnp.float32),
        grid=grid,
        in_specs=phase_specs + weight_specs,
        out_specs=pl.BlockSpec((tn, 1, Do), lambda i: (i, 0, 0)),
        compiler_params=pltpu.CompilerParams(
            # Batch axis is independent -> "parallel" (uses both TCs on v7x).
            dimension_semantics=("parallel",),
        ),
    )(*phases, *[kp[k] for k in weight_names])
    return out.reshape(N, Do)


# ------------------------------------------------------------------- params --

def init_params(key):
    # PyTorch-default-style uniform(-1/sqrt(fan_in), 1/sqrt(fan_in)) params in
    # torch layouts.
    # TODO(synk): the reference nn.Module recreates m1/m2 (nn.Linear) with
    # fresh random weights inside every forward(); that has no stateless
    # kernel equivalent, so fixed fc1/fc2 parameters are used instead.
    def uniform(k, shape, fan_in):
        bound = 1.0 / jnp.sqrt(jnp.float32(fan_in))
        return jax.random.uniform(k, shape, jnp.float32, -bound, bound)

    ks = jax.random.split(key, 10)
    return {
        "conv1_w": uniform(ks[0], (24, 1, 7, 1), 1 * 7 * 1),
        "conv1_b": uniform(ks[1], (24,), 1 * 7 * 1),
        "conv2_w": uniform(ks[2], (48, 24, 1, 7), 24 * 1 * 7),
        "conv2_b": uniform(ks[3], (48,), 24 * 1 * 7),
        "conv3_w": uniform(ks[4], (96, 48, 7, 7), 48 * 7 * 7),
        "conv3_b": uniform(ks[5], (96,), 48 * 7 * 7),
        "fc1_w":   uniform(ks[6], (96, 100), 96),
        "fc1_b":   uniform(ks[7], (100,), 96),
        "fc2_w":   uniform(ks[8], (100, 2), 100),
        "fc2_b":   uniform(ks[9], (2,), 100),
    }


def prepare_kernel_params(p, W=13):
    # One-time host-side weight re-layout for the fused lane-dense kernel.
    c1, _, kh1, _ = p["conv1_w"].shape           # (24, 1, 7, 1)
    c2, _, _, kw2 = p["conv2_w"].shape           # (48, 24, 1, 7)
    c3, _, kh3, kw3 = p["conv3_w"].shape         # (96, 48, 7, 7)
    w2o = W - kw2 + 1                            # 7

    # conv1: (c1,1,kh1,1) -> (kh1, W*c1), tiled over w to match the repeated
    # (w, c)-flattened input lanes.
    w1_wide = jnp.tile(p["conv1_w"][:, 0, :, 0].T, (1, W))        # (kh1, W*c1)
    b1_wide = jnp.tile(p["conv1_b"], W).reshape(1, -1)

    # conv2: (c2,c1,1,kw2) -> block-Toeplitz (W*c1, w2o*c2) so every output
    # column of the 1x7 conv comes out of ONE dense K = W*c1 matmul.
    w2 = p["conv2_w"][:, :, 0, :]                                 # (c2,c1,kw2)
    t2 = jnp.zeros((W * c1, w2o * c2), jnp.float32)
    for w_out in range(w2o):
        for kw in range(kw2):
            t2 = t2.at[(w_out + kw) * c1:(w_out + kw + 1) * c1,
                       w_out * c2:(w_out + 1) * c2].set(w2[:, :, kw].T)
    b2_wide = jnp.tile(p["conv2_b"], w2o).reshape(1, -1)

    # conv3: (c3,c2,kh3,kw3) -> (kh3, kw3*c2, c3), (kw, ci)-major so it matches
    # the conv2 output lane layout (w*c2 + ci).
    w3 = jnp.transpose(p["conv3_w"], (2, 3, 1, 0)).reshape(kh3, kw3 * c2, c3)

    return {
        "w1": w1_wide, "b1": b1_wide,
        "t2": t2, "b2": b2_wide,
        "w3": w3, "b3": p["conv3_b"].reshape(1, -1),
        "fc1_w": p["fc1_w"], "fc1_b": p["fc1_b"].reshape(1, -1),
        "fc2_w": p["fc2_w"], "fc2_b": p["fc2_b"].reshape(1, -1),
    }


# ---------------------------------------------------------------- reference --

def _reference_forward(x_nchw, p):
    hp = lax.Precision.HIGHEST
    dn = ("NCHW", "OIHW", "NCHW")
    y = lax.conv_general_dilated(x_nchw, p["conv1_w"], (1, 1), "VALID",
                                 dimension_numbers=dn, precision=hp)
    y = jax.nn.sigmoid(y + p["conv1_b"][None, :, None, None])
    y = lax.reduce_window(y, -jnp.inf, lax.max, (1, 1, 2, 1), (1, 1, 2, 1), "VALID")
    y = lax.conv_general_dilated(y, p["conv2_w"], (1, 1), "VALID",
                                 dimension_numbers=dn, precision=hp)
    y = jax.nn.sigmoid(y + p["conv2_b"][None, :, None, None])
    y = lax.reduce_window(y, -jnp.inf, lax.max, (1, 1, 2, 1), (1, 1, 2, 1), "VALID")
    y = lax.conv_general_dilated(y, p["conv3_w"], (1, 1), "VALID",
                                 dimension_numbers=dn, precision=hp)
    y = jax.nn.sigmoid(y + p["conv3_b"][None, :, None, None])
    flat = y.reshape(y.shape[0], -1)
    h = jnp.maximum(jnp.dot(flat, p["fc1_w"], precision=hp) + p["fc1_b"], 0.0)
    logits = jnp.dot(h, p["fc2_w"], precision=hp) + p["fc2_b"]
    return jax.nn.softmax(logits, axis=1)


# --------------------------------------------------------------------- main --

if __name__ == "__main__":
    key = jax.random.PRNGKey(0)
    k_x, k_p = jax.random.split(key)
    # (N=8, C=1, H=34, W=13):
    #   conv1(7,1): 28x13 -> pool(2,1): 14x13 -> conv2(1,7): 14x7 -> pool: 7x7
    #   -> conv3(7,7): 1x1 x 96 -> flatten 96 -> fc 100 -> fc 2 -> softmax
    # N=8 with batch tile 4 exercises the batched ("parallel") grid axis.
    x = jax.random.normal(k_x, (8, 1, 34, 13), dtype=jnp.float32)
    params = init_params(k_p)
    kparams = prepare_kernel_params(params, W=x.shape[3])

    out = jax.block_until_ready(net_forward(x, kparams))

    assert out.shape == (8, 2), out.shape
    assert bool(jnp.all(jnp.isfinite(out)))
    assert bool(jnp.all(jnp.abs(jnp.sum(out, axis=1) - 1.0) < 1e-2))

    ref = _reference_forward(x, params)
    max_err = float(jnp.max(jnp.abs(out - ref)))
    assert max_err < 1e-2, f"kernel deviates from reference: {max_err}"

    print("KERNEL_OK")
</pallas_src>

<mosaic_0001>
module attributes {stable_mosaic.version = 11 : i64} {
  func.func @_net_kernel(%arg0: i32, %arg1: memref<4x9x312xf32, #tpu.memory_space<vmem>>, %arg2: memref<4x9x312xf32, #tpu.memory_space<vmem>>, %arg3: memref<4x8x312xf32, #tpu.memory_space<vmem>>, %arg4: memref<4x8x312xf32, #tpu.memory_space<vmem>>, %arg5: memref<7x312xf32, #tpu.memory_space<vmem>>, %arg6: memref<1x312xf32, #tpu.memory_space<vmem>>, %arg7: memref<312x336xf32, #tpu.memory_space<vmem>>, %arg8: memref<1x336xf32, #tpu.memory_space<vmem>>, %arg9: memref<7x336x96xf32, #tpu.memory_space<vmem>>, %arg10: memref<1x96xf32, #tpu.memory_space<vmem>>, %arg11: memref<96x100xf32, #tpu.memory_space<vmem>>, %arg12: memref<1x100xf32, #tpu.memory_space<vmem>>, %arg13: memref<100x2xf32, #tpu.memory_space<vmem>>, %arg14: memref<1x2xf32, #tpu.memory_space<vmem>>, %arg15: memref<4x1x2xf32, #tpu.memory_space<vmem>>) attributes {dimension_semantics = [#tpu.dimension_semantics<parallel>], iteration_bounds = array<i64: 2>, scalar_prefetch = 0 : i64, scratch_operands = 0 : i64, tpu.core_type = #tpu.core_type<tc>, window_params = [{transform_indices = @transform_0, window_bounds = array<i64: 4, 9, 312>}, {transform_indices = @transform_1, window_bounds = array<i64: 4, 9, 312>}, {transform_indices = @transform_2, window_bounds = array<i64: 4, 8, 312>}, {transform_indices = @transform_3, window_bounds = array<i64: 4, 8, 312>}, {pipeline_mode = #tpu.pipeline_mode<synchronous>, transform_indices = @transform_4, window_bounds = array<i64: 7, 312>}, {pipeline_mode = #tpu.pipeline_mode<synchronous>, transform_indices = @transform_5, window_bounds = array<i64: 1, 312>}, {pipeline_mode = #tpu.pipeline_mode<synchronous>, transform_indices = @transform_6, window_bounds = array<i64: 312, 336>}, {pipeline_mode = #tpu.pipeline_mode<synchronous>, transform_indices = @transform_7, window_bounds = array<i64: 1, 336>}, {pipeline_mode = #tpu.pipeline_mode<synchronous>, transform_indices = @transform_8, window_bounds = array<i64: 7, 336, 96>}, {pipeline_mode = #tpu.pipeline_mode<synchronous>, transform_indices = @transform_9, window_bounds = array<i64: 1, 96>}, {pipeline_mode = #tpu.pipeline_mode<synchronous>, transform_indices = @transform_10, window_bounds = array<i64: 96, 100>}, {pipeline_mode = #tpu.pipeline_mode<synchronous>, transform_indices = @transform_11, window_bounds = array<i64: 1, 100>}, {pipeline_mode = #tpu.pipeline_mode<synchronous>, transform_indices = @transform_12, window_bounds = array<i64: 100, 2>}, {pipeline_mode = #tpu.pipeline_mode<synchronous>, transform_indices = @transform_13, window_bounds = array<i64: 1, 2>}, {transform_indices = @transform_14, window_bounds = array<i64: 4, 1, 2>}]} {
    %c0 = arith.constant 0 : index
    %c0_0 = arith.constant 0 : index
    %c0_1 = arith.constant 0 : index
    %0 = vector.load %arg1[%c0, %c0_0, %c0_1] : memref<4x9x312xf32, #tpu.memory_space<vmem>>, vector<4x9x312xf32>
    %c0_2 = arith.constant 0 : index
    %c0_3 = arith.constant 0 : index
    %c0_4 = arith.constant 0 : index
    %1 = vector.load %arg2[%c0_2, %c0_3, %c0_4] : memref<4x9x312xf32, #tpu.memory_space<vmem>>, vector<4x9x312xf32>
    %c0_5 = arith.constant 0 : index
    %c0_6 = arith.constant 0 : index
    %c0_7 = arith.constant 0 : index
    %2 = vector.load %arg3[%c0_5, %c0_6, %c0_7] : memref<4x8x312xf32, #tpu.memory_space<vmem>>, vector<4x8x312xf32>
    %c0_8 = arith.constant 0 : index
    %c0_9 = arith.constant 0 : index
    %c0_10 = arith.constant 0 : index
    %3 = vector.load %arg4[%c0_8, %c0_9, %c0_10] : memref<4x8x312xf32, #tpu.memory_space<vmem>>, vector<4x8x312xf32>
    %c0_11 = arith.constant 0 : index
    %c0_12 = arith.constant 0 : index
    %4 = vector.load %arg5[%c0_11, %c0_12] : memref<7x312xf32, #tpu.memory_space<vmem>>, vector<7x312xf32>
    %c0_13 = arith.constant 0 : index
    %c0_14 = arith.constant 0 : index
    %5 = vector.load %arg6[%c0_13, %c0_14] : memref<1x312xf32, #tpu.memory_space<vmem>>, vector<1x312xf32>
    %6 = vector.extract_strided_slice %0 {offsets = [0, 0, 0], sizes = [4, 7, 312], strides = [1, 1, 1]} : vector<4x9x312xf32> to vector<4x7x312xf32>
    %7 = vector.extract_strided_slice %4 {offsets = [0, 0], sizes = [1, 312], strides = [1, 1]} : vector<7x312xf32> to vector<1x312xf32>
    %8 = vector.shape_cast %7 : vector<1x312xf32> to vector<1x1x312xf32>
    %9 = vector.broadcast %8 : vector<1x1x312xf32> to vector<4x7x312xf32>
    %10 = arith.mulf %6, %9 : vector<4x7x312xf32>
    %11 = vector.extract_strided_slice %1 {offsets = [0, 0, 0], sizes = [4, 7, 312], strides = [1, 1, 1]} : vector<4x9x312xf32> to vector<4x7x312xf32>
    %12 = vector.extract_strided_slice %4 {offsets = [1, 0], sizes = [1, 312], strides = [1, 1]} : vector<7x312xf32> to vector<1x312xf32>
    %13 = vector.shape_cast %12 : vector<1x312xf32> to vector<1x1x312xf32>
    %14 = vector.broadcast %13 : vector<1x1x312xf32> to vector<4x7x312xf32>
    %15 = arith.mulf %11, %14 : vector<4x7x312xf32>
    %16 = arith.addf %10, %15 : vector<4x7x312xf32>
    %17 = vector.extract_strided_slice %2 {offsets = [0, 0, 0], sizes = [4, 7, 312], strides = [1, 1, 1]} : vector<4x8x312xf32> to vector<4x7x312xf32>
    %18 = vector.extract_strided_slice %4 {offsets = [2, 0], sizes = [1, 312], strides = [1, 1]} : vector<7x312xf32> to vector<1x312xf32>
    %19 = vector.shape_cast %18 : vector<1x312xf32> to vector<1x1x312xf32>
    %20 = vector.broadcast %19 : vector<1x1x312xf32> to vector<4x7x312xf32>
    %21 = arith.mulf %17, %20 : vector<4x7x312xf32>
    %22 = arith.addf %16, %21 : vector<4x7x312xf32>
    %23 = vector.extract_strided_slice %3 {offsets = [0, 0, 0], sizes = [4, 7, 312], strides = [1, 1, 1]} : vector<4x8x312xf32> to vector<4x7x312xf32>
    %24 = vector.extract_strided_slice %4 {offsets = [3, 0], sizes = [1, 312], strides = [1, 1]} : vector<7x312xf32> to vector<1x312xf32>
    %25 = vector.shape_cast %24 : vector<1x312xf32> to vector<1x1x312xf32>
    %26 = vector.broadcast %25 : vector<1x1x312xf32> to vector<4x7x312xf32>
    %27 = arith.mulf %23, %26 : vector<4x7x312xf32>
    %28 = arith.addf %22, %27 : vector<4x7x312xf32>
    %29 = vector.extract_strided_slice %0 {offsets = [0, 1, 0], sizes = [4, 7, 312], strides = [1, 1, 1]} : vector<4x9x312xf32> to vector<4x7x312xf32>
    %30 = vector.extract_strided_slice %4 {offsets = [4, 0], sizes = [1, 312], strides = [1, 1]} : vector<7x312xf32> to vector<1x312xf32>
    %31 = vector.shape_cast %30 : vector<1x312xf32> to vector<1x1x312xf32>
    %32 = vector.broadcast %31 : vector<1x1x312xf32> to vector<4x7x312xf32>
    %33 = arith.mulf %29, %32 : vector<4x7x312xf32>
    %34 = arith.addf %28, %33 : vector<4x7x312xf32>
    %35 = vector.extract_strided_slice %1 {offsets = [0, 1, 0], sizes = [4, 7, 312], strides = [1, 1, 1]} : vector<4x9x312xf32> to vector<4x7x312xf32>
    %36 = vector.extract_strided_slice %4 {offsets = [5, 0], sizes = [1, 312], strides = [1, 1]} : vector<7x312xf32> to vector<1x312xf32>
    %37 = vector.shape_cast %36 : vector<1x312xf32> to vector<1x1x312xf32>
    %38 = vector.broadcast %37 : vector<1x1x312xf32> to vector<4x7x312xf32>
    %39 = arith.mulf %35, %38 : vector<4x7x312xf32>
    %40 = arith.addf %34, %39 : vector<4x7x312xf32>
    %41 = vector.extract_strided_slice %2 {offsets = [0, 1, 0], sizes = [4, 7, 312], strides = [1, 1, 1]} : vector<4x8x312xf32> to vector<4x7x312xf32>
    %42 = vector.extract_strided_slice %4 {offsets = [6, 0], sizes = [1, 312], strides = [1, 1]} : vector<7x312xf32> to vector<1x312xf32>
    %43 = vector.shape_cast %42 : vector<1x312xf32> to vector<1x1x312xf32>
    %44 = vector.broadcast %43 : vector<1x1x312xf32> to vector<4x7x312xf32>
    %45 = arith.mulf %41, %44 : vector<4x7x312xf32>
    %46 = arith.addf %40, %45 : vector<4x7x312xf32>
    %47 = vector.extract_strided_slice %1 {offsets = [0, 0, 0], sizes = [4, 7, 312], strides = [1, 1, 1]} : vector<4x9x312xf32> to vector<4x7x312xf32>
    %48 = vector.extract_strided_slice %4 {offsets = [0, 0], sizes = [1, 312], strides = [1, 1]} : vector<7x312xf32> to vector<1x312xf32>
    %49 = vector.shape_cast %48 : vector<1x312xf32> to vector<1x1x312xf32>
    %50 = vector.broadcast %49 : vector<1x1x312xf32> to vector<4x7x312xf32>
    %51 = arith.mulf %47, %50 : vector<4x7x312xf32>
    %52 = vector.extract_strided_slice %2 {offsets = [0, 0, 0], sizes = [4, 7, 312], strides = [1, 1, 1]} : vector<4x8x312xf32> to vector<4x7x312xf32>
    %53 = vector.extract_strided_slice %4 {offsets = [1, 0], sizes = [1, 312], strides = [1, 1]} : vector<7x312xf32> to vector<1x312xf32>
    %54 = vector.shape_cast %53 : vector<1x312xf32> to vector<1x1x312xf32>
    %55 = vector.broadcast %54 : vector<1x1x312xf32> to vector<4x7x312xf32>
    %56 = arith.mulf %52, %55 : vector<4x7x312xf32>
    %57 = arith.addf %51, %56 : vector<4x7x312xf32>
    %58 = vector.extract_strided_slice %3 {offsets = [0, 0, 0], sizes = [4, 7, 312], strides = [1, 1, 1]} : vector<4x8x312xf32> to vector<4x7x312xf32>
    %59 = vector.extract_strided_slice %4 {offsets = [2, 0], sizes = [1, 312], strides = [1, 1]} : vector<7x312xf32> to vector<1x312xf32>
    %60 = vector.shape_cast %59 : vector<1x312xf32> to vector<1x1x312xf32>
    %61 = vector.broadcast %60 : vector<1x1x312xf32> to vector<4x7x312xf32>
    %62 = arith.mulf %58, %61 : vector<4x7x312xf32>
    %63 = arith.addf %57, %62 : vector<4x7x312xf32>
    %64 = vector.extract_strided_slice %0 {offsets = [0, 1, 0], sizes = [4, 7, 312], strides = [1, 1, 1]} : vector<4x9x312xf32> to vector<4x7x312xf32>
    %65 = vector.extract_strided_slice %4 {offsets = [3, 0], sizes = [1, 312], strides = [1, 1]} : vector<7x312xf32> to vector<1x312xf32>
    %66 = vector.shape_cast %65 : vector<1x312xf32> to vector<1x1x312xf32>
    %67 = vector.broadcast %66 : vector<1x1x312xf32> to vector<4x7x312xf32>
    %68 = arith.mulf %64, %67 : vector<4x7x312xf32>
    %69 = arith.addf %63, %68 : vector<4x7x312xf32>
    %70 = vector.extract_strided_slice %1 {offsets = [0, 1, 0], sizes = [4, 7, 312], strides = [1, 1, 1]} : vector<4x9x312xf32> to vector<4x7x312xf32>
    %71 = vector.extract_strided_slice %4 {offsets = [4, 0], sizes = [1, 312], strides = [1, 1]} : vector<7x312xf32> to vector<1x312xf32>
    %72 = vector.shape_cast %71 : vector<1x312xf32> to vector<1x1x312xf32>
    %73 = vector.broadcast %72 : vector<1x1x312xf32> to vector<4x7x312xf32>
    %74 = arith.mulf %70, %73 : vector<4x7x312xf32>
    %75 = arith.addf %69, %74 : vector<4x7x312xf32>
    %76 = vector.extract_strided_slice %2 {offsets = [0, 1, 0], sizes = [4, 7, 312], strides = [1, 1, 1]} : vector<4x8x312xf32> to vector<4x7x312xf32>
    %77 = vector.extract_strided_slice %4 {offsets = [5, 0], sizes = [1, 312], strides = [1, 1]} : vector<7x312xf32> to vector<1x312xf32>
    %78 = vector.shape_cast %77 : vector<1x312xf32> to vector<1x1x312xf32>
    %79 = vector.broadcast %78 : vector<1x1x312xf32> to vector<4x7x312xf32>
    %80 = arith.mulf %76, %79 : vector<4x7x312xf32>
    %81 = arith.addf %75, %80 : vector<4x7x312xf32>
    %82 = vector.extract_strided_slice %3 {offsets = [0, 1, 0], sizes = [4, 7, 312], strides = [1, 1, 1]} : vector<4x8x312xf32> to vector<4x7x312xf32>
    %83 = vector.extract_strided_slice %4 {offsets = [6, 0], sizes = [1, 312], strides = [1, 1]} : vector<7x312xf32> to vector<1x312xf32>
    %84 = vector.shape_cast %83 : vector<1x312xf32> to vector<1x1x312xf32>
    %85 = vector.broadcast %84 : vector<1x1x312xf32> to vector<4x7x312xf32>
    %86 = arith.mulf %82, %85 : vector<4x7x312xf32>
    %87 = arith.addf %81, %86 : vector<4x7x312xf32>
    %88 = vector.extract_strided_slice %2 {offsets = [0, 0, 0], sizes = [4, 7, 312], strides = [1, 1, 1]} : vector<4x8x312xf32> to vector<4x7x312xf32>
    %89 = vector.extract_strided_slice %4 {offsets = [0, 0], sizes = [1, 312], strides = [1, 1]} : vector<7x312xf32> to vector<1x312xf32>
    %90 = vector.shape_cast %89 : vector<1x312xf32> to vector<1x1x312xf32>
    %91 = vector.broadcast %90 : vector<1x1x312xf32> to vector<4x7x312xf32>
    %92 = arith.mulf %88, %91 : vector<4x7x312xf32>
    %93 = vector.extract_strided_slice %3 {offsets = [0, 0, 0], sizes = [4, 7, 312], strides = [1, 1, 1]} : vector<4x8x312xf32> to vector<4x7x312xf32>
    %94 = vector.extract_strided_slice %4 {offsets = [1, 0], sizes = [1, 312], strides = [1, 1]} : vector<7x312xf32> to vector<1x312xf32>
    %95 = vector.shape_cast %94 : vector<1x312xf32> to vector<1x1x312xf32>
    %96 = vector.broadcast %95 : vector<1x1x312xf32> to vector<4x7x312xf32>
    %97 = arith.mulf %93, %96 : vector<4x7x312xf32>
    %98 = arith.addf %92, %97 : vector<4x7x312xf32>
    %99 = vector.extract_strided_slice %0 {offsets = [0, 1, 0], sizes = [4, 7, 312], strides = [1, 1, 1]} : vector<4x9x312xf32> to vector<4x7x312xf32>
    %100 = vector.extract_strided_slice %4 {offsets = [2, 0], sizes = [1, 312], strides = [1, 1]} : vector<7x312xf32> to vector<1x312xf32>
    %101 = vector.shape_cast %100 : vector<1x312xf32> to vector<1x1x312xf32>
    %102 = vector.broadcast %101 : vector<1x1x312xf32> to vector<4x7x312xf32>
    %103 = arith.mulf %99, %102 : vector<4x7x312xf32>
    %104 = arith.addf %98, %103 : vector<4x7x312xf32>
    %105 = vector.extract_strided_slice %1 {offsets = [0, 1, 0], sizes = [4, 7, 312], strides = [1, 1, 1]} : vector<4x9x312xf32> to vector<4x7x312xf32>
    %106 = vector.extract_strided_slice %4 {offsets = [3, 0], sizes = [1, 312], strides = [1, 1]} : vector<7x312xf32> to vector<1x312xf32>
    %107 = vector.shape_cast %106 : vector<1x312xf32> to vector<1x1x312xf32>
    %108 = vector.broadcast %107 : vector<1x1x312xf32> to vector<4x7x312xf32>
    %109 = arith.mulf %105, %108 : vector<4x7x312xf32>
    %110 = arith.addf %104, %109 : vector<4x7x312xf32>
    %111 = vector.extract_strided_slice %2 {offsets = [0, 1, 0], sizes = [4, 7, 312], strides = [1, 1, 1]} : vector<4x8x312xf32> to vector<4x7x312xf32>
    %112 = vector.extract_strided_slice %4 {offsets = [4, 0], sizes = [1, 312], strides = [1, 1]} : vector<7x312xf32> to vector<1x312xf32>
    %113 = vector.shape_cast %112 : vector<1x312xf32> to vector<1x1x312xf32>
    %114 = vector.broadcast %113 : vector<1x1x312xf32> to vector<4x7x312xf32>
    %115 = arith.mulf %111, %114 : vector<4x7x312xf32>
    %116 = arith.addf %110, %115 : vector<4x7x312xf32>
    %117 = vector.extract_strided_slice %3 {offsets = [0, 1, 0], sizes = [4, 7, 312], strides = [1, 1, 1]} : vector<4x8x312xf32> to vector<4x7x312xf32>
    %118 = vector.extract_strided_slice %4 {offsets = [5, 0], sizes = [1, 312], strides = [1, 1]} : vector<7x312xf32> to vector<1x312xf32>
    %119 = vector.shape_cast %118 : vector<1x312xf32> to vector<1x1x312xf32>
    %120 = vector.broadcast %119 : vector<1x1x312xf32> to vector<4x7x312xf32>
    %121 = arith.mulf %117, %120 : vector<4x7x312xf32>
    %122 = arith.addf %116, %121 : vector<4x7x312xf32>
    %123 = vector.extract_strided_slice %0 {offsets = [0, 2, 0], sizes = [4, 7, 312], strides = [1, 1, 1]} : vector<4x9x312xf32> to vector<4x7x312xf32>
    %124 = vector.extract_strided_slice %4 {offsets = [6, 0], sizes = [1, 312], strides = [1, 1]} : vector<7x312xf32> to vector<1x312xf32>
    %125 = vector.shape_cast %124 : vector<1x312xf32> to vector<1x1x312xf32>
    %126 = vector.broadcast %125 : vector<1x1x312xf32> to vector<4x7x312xf32>
    %127 = arith.mulf %123, %126 : vector<4x7x312xf32>
    %128 = arith.addf %122, %127 : vector<4x7x312xf32>
    %129 = vector.extract_strided_slice %3 {offsets = [0, 0, 0], sizes = [4, 7, 312], strides = [1, 1, 1]} : vector<4x8x312xf32> to vector<4x7x312xf32>
    %130 = vector.extract_strided_slice %4 {offsets = [0, 0], sizes = [1, 312], strides = [1, 1]} : vector<7x312xf32> to vector<1x312xf32>
    %131 = vector.shape_cast %130 : vector<1x312xf32> to vector<1x1x312xf32>
    %132 = vector.broadcast %131 : vector<1x1x312xf32> to vector<4x7x312xf32>
    %133 = arith.mulf %129, %132 : vector<4x7x312xf32>
    %134 = vector.extract_strided_slice %0 {offsets = [0, 1, 0], sizes = [4, 7, 312], strides = [1, 1, 1]} : vector<4x9x312xf32> to vector<4x7x312xf32>
    %135 = vector.extract_strided_slice %4 {offsets = [1, 0], sizes = [1, 312], strides = [1, 1]} : vector<7x312xf32> to vector<1x312xf32>
    %136 = vector.shape_cast %135 : vector<1x312xf32> to vector<1x1x312xf32>
    %137 = vector.broadcast %136 : vector<1x1x312xf32> to vector<4x7x312xf32>
    %138 = arith.mulf %134, %137 : vector<4x7x312xf32>
    %139 = arith.addf %133, %138 : vector<4x7x312xf32>
    %140 = vector.extract_strided_slice %1 {offsets = [0, 1, 0], sizes = [4, 7, 312], strides = [1, 1, 1]} : vector<4x9x312xf32> to vector<4x7x312xf32>
    %141 = vector.extract_strided_slice %4 {offsets = [2, 0], sizes = [1, 312], strides = [1, 1]} : vector<7x312xf32> to vector<1x312xf32>
    %142 = vector.shape_cast %141 : vector<1x312xf32> to vector<1x1x312xf32>
    %143 = vector.broadcast %142 : vector<1x1x312xf32> to vector<4x7x312xf32>
    %144 = arith.mulf %140, %143 : vector<4x7x312xf32>
    %145 = arith.addf %139, %144 : vector<4x7x312xf32>
    %146 = vector.extract_strided_slice %2 {offsets = [0, 1, 0], sizes = [4, 7, 312], strides = [1, 1, 1]} : vector<4x8x312xf32> to vector<4x7x312xf32>
    %147 = vector.extract_strided_slice %4 {offsets = [3, 0], sizes = [1, 312], strides = [1, 1]} : vector<7x312xf32> to vector<1x312xf32>
    %148 = vector.shape_cast %147 : vector<1x312xf32> to vector<1x1x312xf32>
    %149 = vector.broadcast %148 : vector<1x1x312xf32> to vector<4x7x312xf32>
    %150 = arith.mulf %146, %149 : vector<4x7x312xf32>
    %151 = arith.addf %145, %150 : vector<4x7x312xf32>
    %152 = vector.extract_strided_slice %3 {offsets = [0, 1, 0], sizes = [4, 7, 312], strides = [1, 1, 1]} : vector<4x8x312xf32> to vector<4x7x312xf32>
    %153 = vector.extract_strided_slice %4 {offsets = [4, 0], sizes = [1, 312], strides = [1, 1]} : vector<7x312xf32> to vector<1x312xf32>
    %154 = vector.shape_cast %153 : vector<1x312xf32> to vector<1x1x312xf32>
    %155 = vector.broadcast %154 : vector<1x1x312xf32> to vector<4x7x312xf32>
    %156 = arith.mulf %152, %155 : vector<4x7x312xf32>
    %157 = arith.addf %151, %156 : vector<4x7x312xf32>
    %158 = vector.extract_strided_slice %0 {offsets = [0, 2, 0], sizes = [4, 7, 312], strides = [1, 1, 1]} : vector<4x9x312xf32> to vector<4x7x312xf32>
    %159 = vector.extract_strided_slice %4 {offsets = [5, 0], sizes = [1, 312], strides = [1, 1]} : vector<7x312xf32> to vector<1x312xf32>
    %160 = vector.shape_cast %159 : vector<1x312xf32> to vector<1x1x312xf32>
    %161 = vector.broadcast %160 : vector<1x1x312xf32> to vector<4x7x312xf32>
    %162 = arith.mulf %158, %161 : vector<4x7x312xf32>
    %163 = arith.addf %157, %162 : vector<4x7x312xf32>
    %164 = vector.extract_strided_slice %1 {offsets = [0, 2, 0], sizes = [4, 7, 312], strides = [1, 1, 1]} : vector<4x9x312xf32> to vector<4x7x312xf32>
    %165 = vector.extract_strided_slice %4 {offsets = [6, 0], sizes = [1, 312], strides = [1, 1]} : vector<7x312xf32> to vector<1x312xf32>
    %166 = vector.shape_cast %165 : vector<1x312xf32> to vector<1x1x312xf32>
    %167 = vector.broadcast %166 : vector<1x1x312xf32> to vector<4x7x312xf32>
    %168 = arith.mulf %164, %167 : vector<4x7x312xf32>
    %169 = arith.addf %163, %168 : vector<4x7x312xf32>
    %170 = arith.maximumf %46, %87 : vector<4x7x312xf32>
    %171 = vector.shape_cast %5 : vector<1x312xf32> to vector<1x1x312xf32>
    %172 = vector.broadcast %171 : vector<1x1x312xf32> to vector<4x7x312xf32>
    %173 = arith.addf %170, %172 : vector<4x7x312xf32>
    %cst = arith.constant 0.000000e+00 : f32
    %174 = vector.broadcast %cst : f32 to vector<4x7x312xf32>
    %175 = arith.subf %174, %173 : vector<4x7x312xf32>
    %176 = math.exp %175 : vector<4x7x312xf32>
    %cst_15 = arith.constant 1.000000e+00 : f32
    %177 = vector.broadcast %cst_15 : f32 to vector<4x7x312xf32>
    %178 = arith.addf %177, %176 : vector<4x7x312xf32>
    %179 = tpu.reciprocal %178 {approx = true} : vector<4x7x312xf32> -> vector<4x7x312xf32>
    %180 = arith.maximumf %128, %169 : vector<4x7x312xf32>
    %181 = vector.shape_cast %5 : vector<1x312xf32> to vector<1x1x312xf32>
    %182 = vector.broadcast %181 : vector<1x1x312xf32> to vector<4x7x312xf32>
    %183 = arith.addf %180, %182 : vector<4x7x312xf32>
    %cst_16 = arith.constant 0.000000e+00 : f32
    %184 = vector.broadcast %cst_16 : f32 to vector<4x7x312xf32>
    %185 = arith.subf %184, %183 : vector<4x7x312xf32>
    %186 = math.exp %185 : vector<4x7x312xf32>
    %cst_17 = arith.constant 1.000000e+00 : f32
    %187 = vector.broadcast %cst_17 : f32 to vector<4x7x312xf32>
    %188 = arith.addf %187, %186 : vector<4x7x312xf32>
    %189 = tpu.reciprocal %188 {approx = true} : vector<4x7x312xf32> -> vector<4x7x312xf32>
    %c0_18 = arith.constant 0 : index
    %c0_19 = arith.constant 0 : index
    %190 = vector.load %arg7[%c0_18, %c0_19] : memref<312x336xf32, #tpu.memory_space<vmem>>, vector<312x336xf32>
    %c0_20 = arith.constant 0 : index
    %c0_21 = arith.constant 0 : index
    %191 = vector.load %arg8[%c0_20, %c0_21] : memref<1x336xf32, #tpu.memory_space<vmem>>, vector<1x336xf32>
    %c0_22 = arith.constant 0 : index
    %c0_23 = arith.constant 0 : index
    %c0_24 = arith.constant 0 : index
    %192 = vector.load %arg9[%c0_22, %c0_23, %c0_24] : memref<7x336x96xf32, #tpu.memory_space<vmem>>, vector<7x336x96xf32>
    %c0_25 = arith.constant 0 : index
    %c0_26 = arith.constant 0 : index
    %193 = vector.load %arg10[%c0_25, %c0_26] : memref<1x96xf32, #tpu.memory_space<vmem>>, vector<1x96xf32>
    %c0_27 = arith.constant 0 : index
    %c0_28 = arith.constant 0 : index
    %194 = vector.load %arg11[%c0_27, %c0_28] : memref<96x100xf32, #tpu.memory_space<vmem>>, vector<96x100xf32>
    %c0_29 = arith.constant 0 : index
    %c0_30 = arith.constant 0 : index
    %195 = vector.load %arg12[%c0_29, %c0_30] : memref<1x100xf32, #tpu.memory_space<vmem>>, vector<1x100xf32>
    %c0_31 = arith.constant 0 : index
    %c0_32 = arith.constant 0 : index
    %196 = vector.load %arg13[%c0_31, %c0_32] : memref<100x2xf32, #tpu.memory_space<vmem>>, vector<100x2xf32>
    %c0_33 = arith.constant 0 : index
    %c0_34 = arith.constant 0 : index
    %197 = vector.load %arg14[%c0_33, %c0_34] : memref<1x2xf32, #tpu.memory_space<vmem>>, vector<1x2xf32>
    %198 = vector.extract_strided_slice %179 {offsets = [0, 0, 0], sizes = [1, 7, 312], strides = [1, 1, 1]} : vector<4x7x312xf32> to vector<1x7x312xf32>
    %199 = vector.shape_cast %198 : vector<1x7x312xf32> to vector<7x312xf32>
    %cst_35 = arith.constant dense<0.000000e+00> : vector<7x336xf32>
    %200 = tpu.matmul %199, %190, %cst_35 {dimension_numbers = #tpu.dot_dimension_numbers<[1], [0], [0], [1], [0, 0, 1, 1], [], []>} : vector<7x312xf32>, vector<312x336xf32>, vector<7x336xf32> -> vector<7x336xf32>
    %201 = vector.broadcast %191 : vector<1x336xf32> to vector<7x336xf32>
    %202 = arith.addf %200, %201 : vector<7x336xf32>
    %cst_36 = arith.constant 0.000000e+00 : f32
    %203 = vector.broadcast %cst_36 : f32 to vector<7x336xf32>
    %204 = arith.subf %203, %202 : vector<7x336xf32>
    %205 = math.exp %204 : vector<7x336xf32>
    %cst_37 = arith.constant 1.000000e+00 : f32
    %206 = vector.broadcast %cst_37 : f32 to vector<7x336xf32>
    %207 = arith.addf %206, %205 : vector<7x336xf32>
    %208 = tpu.reciprocal %207 {approx = true} : vector<7x336xf32> -> vector<7x336xf32>
    %209 = vector.extract_strided_slice %189 {offsets = [0, 0, 0], sizes = [1, 7, 312], strides = [1, 1, 1]} : vector<4x7x312xf32> to vector<1x7x312xf32>
    %210 = vector.shape_cast %209 : vector<1x7x312xf32> to vector<7x312xf32>
    %cst_38 = arith.constant dense<0.000000e+00> : vector<7x336xf32>
    %211 = tpu.matmul %210, %190, %cst_38 {dimension_numbers = #tpu.dot_dimension_numbers<[1], [0], [0], [1], [0, 0, 1, 1], [], []>} : vector<7x312xf32>, vector<312x336xf32>, vector<7x336xf32> -> vector<7x336xf32>
    %212 = vector.broadcast %191 : vector<1x336xf32> to vector<7x336xf32>
    %213 = arith.addf %211, %212 : vector<7x336xf32>
    %cst_39 = arith.constant 0.000000e+00 : f32
    %214 = vector.broadcast %cst_39 : f32 to vector<7x336xf32>
    %215 = arith.subf %214, %213 : vector<7x336xf32>
    %216 = math.exp %215 : vector<7x336xf32>
    %cst_40 = arith.constant 1.000000e+00 : f32
    %217 = vector.broadcast %cst_40 : f32 to vector<7x336xf32>
    %218 = arith.addf %217, %216 : vector<7x336xf32>
    %219 = tpu.reciprocal %218 {approx = true} : vector<7x336xf32> -> vector<7x336xf32>
    %220 = arith.maximumf %208, %219 : vector<7x336xf32>
    %221 = vector.extract_strided_slice %220 {offsets = [0, 0], sizes = [1, 336], strides = [1, 1]} : vector<7x336xf32> to vector<1x336xf32>
    %222 = vector.extract_strided_slice %192 {offsets = [0, 0, 0], sizes = [1, 336, 96], strides = [1, 1, 1]} : vector<7x336x96xf32> to vector<1x336x96xf32>
    %223 = vector.shape_cast %222 : vector<1x336x96xf32> to vector<336x96xf32>
    %cst_41 = arith.constant dense<0.000000e+00> : vector<1x96xf32>
    %224 = tpu.matmul %221, %223, %cst_41 {dimension_numbers = #tpu.dot_dimension_numbers<[1], [0], [0], [1], [0, 0, 1, 1], [], []>} : vector<1x336xf32>, vector<336x96xf32>, vector<1x96xf32> -> vector<1x96xf32>
    %225 = arith.addf %193, %224 : vector<1x96xf32>
    %226 = vector.extract_strided_slice %220 {offsets = [1, 0], sizes = [1, 336], strides = [1, 1]} : vector<7x336xf32> to vector<1x336xf32>
    %227 = vector.extract_strided_slice %192 {offsets = [1, 0, 0], sizes = [1, 336, 96], strides = [1, 1, 1]} : vector<7x336x96xf32> to vector<1x336x96xf32>
    %228 = vector.shape_cast %227 : vector<1x336x96xf32> to vector<336x96xf32>
    %cst_42 = arith.constant dense<0.000000e+00> : vector<1x96xf32>
    %229 = tpu.matmul %226, %228, %cst_42 {dimension_numbers = #tpu.dot_dimension_numbers<[1], [0], [0], [1], [0, 0, 1, 1], [], []>} : vector<1x336xf32>, vector<336x96xf32>, vector<1x96xf32> -> vector<1x96xf32>
    %230 = arith.addf %225, %229 : vector<1x96xf32>
    %231 = vector.extract_strided_slice %220 {offsets = [2, 0], sizes = [1, 336], strides = [1, 1]} : vector<7x336xf32> to vector<1x336xf32>
    %232 = vector.extract_strided_slice %192 {offsets = [2, 0, 0], sizes = [1, 336, 96], strides = [1, 1, 1]} : vector<7x336x96xf32> to vector<1x336x96xf32>
    %233 = vector.shape_cast %232 : vector<1x336x96xf32> to vector<336x96xf32>
    %cst_43 = arith.constant dense<0.000000e+00> : vector<1x96xf32>
    %234 = tpu.matmul %231, %233, %cst_43 {dimension_numbers = #tpu.dot_dimension_numbers<[1], [0], [0], [1], [0, 0, 1, 1], [], []>} : vector<1x336xf32>, vector<336x96xf32>, vector<1x96xf32> -> vector<1x96xf32>
    %235 = arith.addf %230, %234 : vector<1x96xf32>
    %236 = vector.extract_strided_slice %220 {offsets = [3, 0], sizes = [1, 336], strides = [1, 1]} : vector<7x336xf32> to vector<1x336xf32>
    %237 = vector.extract_strided_slice %192 {offsets = [3, 0, 0], sizes = [1, 336, 96], strides = [1, 1, 1]} : vector<7x336x96xf32> to vector<1x336x96xf32>
    %238 = vector.shape_cast %237 : vector<1x336x96xf32> to vector<336x96xf32>
    %cst_44 = arith.constant dense<0.000000e+00> : vector<1x96xf32>
    %239 = tpu.matmul %236, %238, %cst_44 {dimension_numbers = #tpu.dot_dimension_numbers<[1], [0], [0], [1], [0, 0, 1, 1], [], []>} : vector<1x336xf32>, vector<336x96xf32>, vector<1x96xf32> -> vector<1x96xf32>
    %240 = arith.addf %235, %239 : vector<1x96xf32>
    %241 = vector.extract_strided_slice %220 {offsets = [4, 0], sizes = [1, 336], strides = [1, 1]} : vector<7x336xf32> to vector<1x336xf32>
    %242 = vector.extract_strided_slice %192 {offsets = [4, 0, 0], sizes = [1, 336, 96], strides = [1, 1, 1]} : vector<7x336x96xf32> to vector<1x336x96xf32>
    %243 = vector.shape_cast %242 : vector<1x336x96xf32> to vector<336x96xf32>
    %cst_45 = arith.constant dense<0.000000e+00> : vector<1x96xf32>
    %244 = tpu.matmul %241, %243, %cst_45 {dimension_numbers = #tpu.dot_dimension_numbers<[1], [0], [0], [1], [0, 0, 1, 1], [], []>} : vector<1x336xf32>, vector<336x96xf32>, vector<1x96xf32> -> vector<1x96xf32>
    %245 = arith.addf %240, %244 : vector<1x96xf32>
    %246 = vector.extract_strided_slice %220 {offsets = [5, 0], sizes = [1, 336], strides = [1, 1]} : vector<7x336xf32> to vector<1x336xf32>
    %247 = vector.extract_strided_slice %192 {offsets = [5, 0, 0], sizes = [1, 336, 96], strides = [1, 1, 1]} : vector<7x336x96xf32> to vector<1x336x96xf32>
    %248 = vector.shape_cast %247 : vector<1x336x96xf32> to vector<336x96xf32>
    %cst_46 = arith.constant dense<0.000000e+00> : vector<1x96xf32>
    %249 = tpu.matmul %246, %248, %cst_46 {dimension_numbers = #tpu.dot_dimension_numbers<[1], [0], [0], [1], [0, 0, 1, 1], [], []>} : vector<1x336xf32>, vector<336x96xf32>, vector<1x96xf32> -> vector<1x96xf32>
    %250 = arith.addf %245, %249 : vector<1x96xf32>
    %251 = vector.extract_strided_slice %220 {offsets = [6, 0], sizes = [1, 336], strides = [1, 1]} : vector<7x336xf32> to vector<1x336xf32>
    %252 = vector.extract_strided_slice %192 {offsets = [6, 0, 0], sizes = [1, 336, 96], strides = [1, 1, 1]} : vector<7x336x96xf32> to vector<1x336x96xf32>
    %253 = vector.shape_cast %252 : vector<1x336x96xf32> to vector<336x96xf32>
    %cst_47 = arith.constant dense<0.000000e+00> : vector<1x96xf32>
    %254 = tpu.matmul %251, %253, %cst_47 {dimension_numbers = #tpu.dot_dimension_numbers<[1], [0], [0], [1], [0, 0, 1, 1], [], []>} : vector<1x336xf32>, vector<336x96xf32>, vector<1x96xf32> -> vector<1x96xf32>
    %255 = arith.addf %250, %254 : vector<1x96xf32>
    %cst_48 = arith.constant 0.000000e+00 : f32
    %256 = vector.broadcast %cst_48 : f32 to vector<1x96xf32>
    %257 = arith.subf %256, %255 : vector<1x96xf32>
    %258 = math.exp %257 : vector<1x96xf32>
    %cst_49 = arith.constant 1.000000e+00 : f32
    %259 = vector.broadcast %cst_49 : f32 to vector<1x96xf32>
    %260 = arith.addf %259, %258 : vector<1x96xf32>
    %261 = tpu.reciprocal %260 {approx = true} : vector<1x96xf32> -> vector<1x96xf32>
    %cst_50 = arith.constant dense<0.000000e+00> : vector<1x100xf32>
    %262 = tpu.matmul %261, %194, %cst_50 {dimension_numbers = #tpu.dot_dimension_numbers<[1], [0], [0], [1], [0, 0, 1, 1], [], []>} : vector<1x96xf32>, vector<96x100xf32>, vector<1x100xf32> -> vector<1x100xf32>
    %263 = arith.addf %262, %195 : vector<1x100xf32>
    %cst_51 = arith.constant 0.000000e+00 : f32
    %264 = vector.broadcast %cst_51 : f32 to vector<1x100xf32>
    %265 = arith.maximumf %263, %264 : vector<1x100xf32>
    %cst_52 = arith.constant dense<0.000000e+00> : vector<1x2xf32>
    %266 = tpu.matmul %265, %196, %cst_52 {dimension_numbers = #tpu.dot_dimension_numbers<[1], [0], [0], [1], [0, 0, 1, 1], [], []>} : vector<1x100xf32>, vector<100x2xf32>, vector<1x2xf32> -> vector<1x2xf32>
    %267 = arith.addf %266, %197 : vector<1x2xf32>
    %cst_53 = arith.constant dense<0xFF800000> : vector<1xf32>
    %268 = vector.multi_reduction <maximumf>, %267, %cst_53 [1] : vector<1x2xf32> to vector<1xf32>
    %269 = vector.shape_cast %268 : vector<1xf32> to vector<1x1xf32>
    %270 = vector.broadcast %269 : vector<1x1xf32> to vector<1x2xf32>
    %271 = arith.subf %267, %270 : vector<1x2xf32>
    %272 = math.exp %271 : vector<1x2xf32>
    %cst_54 = arith.constant dense<0.000000e+00> : vector<1xf32>
    %273 = vector.multi_reduction <add>, %272, %cst_54 [1] : vector<1x2xf32> to vector<1xf32>
    %274 = vector.shape_cast %273 : vector<1xf32> to vector<1x1xf32>
    %275 = tpu.reciprocal %274 {approx = true} : vector<1x1xf32> -> vector<1x1xf32>
    %276 = vector.broadcast %275 : vector<1x1xf32> to vector<1x2xf32>
    %277 = arith.mulf %272, %276 : vector<1x2xf32>
    %c0_55 = arith.constant 0 : index
    %c0_56 = arith.constant 0 : index
    %c0_57 = arith.constant 0 : index
    %278 = vector.load %arg15[%c0_55, %c0_56, %c0_57] : memref<4x1x2xf32, #tpu.memory_space<vmem>>, vector<1x1x2xf32>
    %279 = vector.shape_cast %278 : vector<1x1x2xf32> to vector<1x2xf32>
    %280 = vector.shape_cast %277 : vector<1x2xf32> to vector<1x1x2xf32>
    tpu.vector_store %arg15[%c0_55, %c0_56, %c0_57], %280 {strides = array<i32>} : memref<4x1x2xf32, #tpu.memory_space<vmem>>, vector<1x1x2xf32>,
    %281 = vector.extract_strided_slice %179 {offsets = [1, 0, 0], sizes = [1, 7, 312], strides = [1, 1, 1]} : vector<4x7x312xf32> to vector<1x7x312xf32>
    %282 = vector.shape_cast %281 : vector<1x7x312xf32> to vector<7x312xf32>
    %cst_58 = arith.constant dense<0.000000e+00> : vector<7x336xf32>
    %283 = tpu.matmul %282, %190, %cst_58 {dimension_numbers = #tpu.dot_dimension_numbers<[1], [0], [0], [1], [0, 0, 1, 1], [], []>} : vector<7x312xf32>, vector<312x336xf32>, vector<7x336xf32> -> vector<7x336xf32>
    %284 = vector.broadcast %191 : vector<1x336xf32> to vector<7x336xf32>
    %285 = arith.addf %283, %284 : vector<7x336xf32>
    %cst_59 = arith.constant 0.000000e+00 : f32
    %286 = vector.broadcast %cst_59 : f32 to vector<7x336xf32>
    %287 = arith.subf %286, %285 : vector<7x336xf32>
    %288 = math.exp %287 : vector<7x336xf32>
    %cst_60 = arith.constant 1.000000e+00 : f32
    %289 = vector.broadcast %cst_60 : f32 to vector<7x336xf32>
    %290 = arith.addf %289, %288 : vector<7x336xf32>
    %291 = tpu.reciprocal %290 {approx = true} : vector<7x336xf32> -> vector<7x336xf32>
    %292 = vector.extract_strided_slice %189 {offsets = [1, 0, 0], sizes = [1, 7, 312], strides = [1, 1, 1]} : vector<4x7x312xf32> to vector<1x7x312xf32>
    %293 = vector.shape_cast %292 : vector<1x7x312xf32> to vector<7x312xf32>
    %cst_61 = arith.constant dense<0.000000e+00> : vector<7x336xf32>
    %294 = tpu.matmul %293, %190, %cst_61 {dimension_numbers = #tpu.dot_dimension_numbers<[1], [0], [0], [1], [0, 0, 1, 1], [], []>} : vector<7x312xf32>, vector<312x336xf32>, vector<7x336xf32> -> vector<7x336xf32>
    %295 = vector.broadcast %191 : vector<1x336xf32> to vector<7x336xf32>
    %296 = arith.addf %294, %295 : vector<7x336xf32>
    %cst_62 = arith.constant 0.000000e+00 : f32
    %297 = vector.broadcast %cst_62 : f32 to vector<7x336xf32>
    %298 = arith.subf %297, %296 : vector<7x336xf32>
    %299 = math.exp %298 : vector<7x336xf32>
    %cst_63 = arith.constant 1.000000e+00 : f32
    %300 = vector.broadcast %cst_63 : f32 to vector<7x336xf32>
    %301 = arith.addf %300, %299 : vector<7x336xf32>
    %302 = tpu.reciprocal %301 {approx = true} : vector<7x336xf32> -> vector<7x336xf32>
    %303 = arith.maximumf %291, %302 : vector<7x336xf32>
    %304 = vector.extract_strided_slice %303 {offsets = [0, 0], sizes = [1, 336], strides = [1, 1]} : vector<7x336xf32> to vector<1x336xf32>
    %305 = vector.extract_strided_slice %192 {offsets = [0, 0, 0], sizes = [1, 336, 96], strides = [1, 1, 1]} : vector<7x336x96xf32> to vector<1x336x96xf32>
    %306 = vector.shape_cast %305 : vector<1x336x96xf32> to vector<336x96xf32>
    %cst_64 = arith.constant dense<0.000000e+00> : vector<1x96xf32>
    %307 = tpu.matmul %304, %306, %cst_64 {dimension_numbers = #tpu.dot_dimension_numbers<[1], [0], [0], [1], [0, 0, 1, 1], [], []>} : vector<1x336xf32>, vector<336x96xf32>, vector<1x96xf32> -> vector<1x96xf32>
    %308 = arith.addf %193, %307 : vector<1x96xf32>
    %309 = vector.extract_strided_slice %303 {offsets = [1, 0], sizes = [1, 336], strides = [1, 1]} : vector<7x336xf32> to vector<1x336xf32>
    %310 = vector.extract_strided_slice %192 {offsets = [1, 0, 0], sizes = [1, 336, 96], strides = [1, 1, 1]} : vector<7x336x96xf32> to vector<1x336x96xf32>
    %311 = vector.shape_cast %310 : vector<1x336x96xf32> to vector<336x96xf32>
    %cst_65 = arith.constant dense<0.000000e+00> : vector<1x96xf32>
    %312 = tpu.matmul %309, %311, %cst_65 {dimension_numbers = #tpu.dot_dimension_numbers<[1], [0], [0], [1], [0, 0, 1, 1], [], []>} : vector<1x336xf32>, vector<336x96xf32>, vector<1x96xf32> -> vector<1x96xf32>
    %313 = arith.addf %308, %312 : vector<1x96xf32>
    %314 = vector.extract_strided_slice %303 {offsets = [2, 0], sizes = [1, 336], strides = [1, 1]} : vector<7x336xf32> to vector<1x336xf32>
    %315 = vector.extract_strided_slice %192 {offsets = [2, 0, 0], sizes = [1, 336, 96], strides = [1, 1, 1]} : vector<7x336x96xf32> to vector<1x336x96xf32>
    %316 = vector.shape_cast %315 : vector<1x336x96xf32> to vector<336x96xf32>
    %cst_66 = arith.constant dense<0.000000e+00> : vector<1x96xf32>
    %317 = tpu.matmul %314, %316, %cst_66 {dimension_numbers = #tpu.dot_dimension_numbers<[1], [0], [0], [1], [0, 0, 1, 1], [], []>} : vector<1x336xf32>, vector<336x96xf32>, vector<1x96xf32> -> vector<1x96xf32>
    %318 = arith.addf %313, %317 : vector<1x96xf32>
    %319 = vector.extract_strided_slice %303 {offsets = [3, 0], sizes = [1, 336], strides = [1, 1]} : vector<7x336xf32> to vector<1x336xf32>
    %320 = vector.extract_strided_slice %192 {offsets = [3, 0, 0], sizes = [1, 336, 96], strides = [1, 1, 1]} : vector<7x336x96xf32> to vector<1x336x96xf32>
    %321 = vector.shape_cast %320 : vector<1x336x96xf32> to vector<336x96xf32>
    %cst_67 = arith.constant dense<0.000000e+00> : vector<1x96xf32>
    %322 = tpu.matmul %319, %321, %cst_67 {dimension_numbers = #tpu.dot_dimension_numbers<[1], [0], [0], [1], [0, 0, 1, 1], [], []>} : vector<1x336xf32>, vector<336x96xf32>, vector<1x96xf32> -> vector<1x96xf32>
    %323 = arith.addf %318, %322 : vector<1x96xf32>
    %324 = vector.extract_strided_slice %303 {offsets = [4, 0], sizes = [1, 336], strides = [1, 1]} : vector<7x336xf32> to vector<1x336xf32>
    %325 = vector.extract_strided_slice %192 {offsets = [4, 0, 0], sizes = [1, 336, 96], strides = [1, 1, 1]} : vector<7x336x96xf32> to vector<1x336x96xf32>
    %326 = vector.shape_cast %325 : vector<1x336x96xf32> to vector<336x96xf32>
    %cst_68 = arith.constant dense<0.000000e+00> : vector<1x96xf32>
    %327 = tpu.matmul %324, %326, %cst_68 {dimension_numbers = #tpu.dot_dimension_numbers<[1], [0], [0], [1], [0, 0, 1, 1], [], []>} : vector<1x336xf32>, vector<336x96xf32>, vector<1x96xf32> -> vector<1x96xf32>
    %328 = arith.addf %323, %327 : vector<1x96xf32>
    %329 = vector.extract_strided_slice %303 {offsets = [5, 0], sizes = [1, 336], strides = [1, 1]} : vector<7x336xf32> to vector<1x336xf32>
    %330 = vector.extract_strided_slice %192 {offsets = [5, 0, 0], sizes = [1, 336, 96], strides = [1, 1, 1]} : vector<7x336x96xf32> to vector<1x336x96xf32>
    %331 = vector.shape_cast %330 : vector<1x336x96xf32> to vector<336x96xf32>
    %cst_69 = arith.constant dense<0.000000e+00> : vector<1x96xf32>
    %332 = tpu.matmul %329, %331, %cst_69 {dimension_numbers = #tpu.dot_dimension_numbers<[1], [0], [0], [1], [0, 0, 1, 1], [], []>} : vector<1x336xf32>, vector<336x96xf32>, vector<1x96xf32> -> vector<1x96xf32>
    %333 = arith.addf %328, %332 : vector<1x96xf32>
    %334 = vector.extract_strided_slice %303 {offsets = [6, 0], sizes = [1, 336], strides = [1, 1]} : vector<7x336xf32> to vector<1x336xf32>
    %335 = vector.extract_strided_slice %192 {offsets = [6, 0, 0], sizes = [1, 336, 96], strides = [1, 1, 1]} : vector<7x336x96xf32> to vector<1x336x96xf32>
    %336 = vector.shape_cast %335 : vector<1x336x96xf32> to vector<336x96xf32>
    %cst_70 = arith.constant dense<0.000000e+00> : vector<1x96xf32>
    %337 = tpu.matmul %334, %336, %cst_70 {dimension_numbers = #tpu.dot_dimension_numbers<[1], [0], [0], [1], [0, 0, 1, 1], [], []>} : vector<1x336xf32>, vector<336x96xf32>, vector<1x96xf32> -> vector<1x96xf32>
    %338 = arith.addf %333, %337 : vector<1x96xf32>
    %cst_71 = arith.constant 0.000000e+00 : f32
    %339 = vector.broadcast %cst_71 : f32 to vector<1x96xf32>
    %340 = arith.subf %339, %338 : vector<1x96xf32>
    %341 = math.exp %340 : vector<1x96xf32>
    %cst_72 = arith.constant 1.000000e+00 : f32
    %342 = vector.broadcast %cst_72 : f32 to vector<1x96xf32>
    %343 = arith.addf %342, %341 : vector<1x96xf32>
    %344 = tpu.reciprocal %343 {approx = true} : vector<1x96xf32> -> vector<1x96xf32>
    %cst_73 = arith.constant dense<0.000000e+00> : vector<1x100xf32>
    %345 = tpu.matmul %344, %194, %cst_73 {dimension_numbers = #tpu.dot_dimension_numbers<[1], [0], [0], [1], [0, 0, 1, 1], [], []>} : vector<1x96xf32>, vector<96x100xf32>, vector<1x100xf32> -> vector<1x100xf32>
    %346 = arith.addf %345, %195 : vector<1x100xf32>
    %cst_74 = arith.constant 0.000000e+00 : f32
    %347 = vector.broadcast %cst_74 : f32 to vector<1x100xf32>
    %348 = arith.maximumf %346, %347 : vector<1x100xf32>
    %cst_75 = arith.constant dense<0.000000e+00> : vector<1x2xf32>
    %349 = tpu.matmul %348, %196, %cst_75 {dimension_numbers = #tpu.dot_dimension_numbers<[1], [0], [0], [1], [0, 0, 1, 1], [], []>} : vector<1x100xf32>, vector<100x2xf32>, vector<1x2xf32> -> vector<1x2xf32>
    %350 = arith.addf %349, %197 : vector<1x2xf32>
    %cst_76 = arith.constant dense<0xFF800000> : vector<1xf32>
    %351 = vector.multi_reduction <maximumf>, %350, %cst_76 [1] : vector<1x2xf32> to vector<1xf32>
    %352 = vector.shape_cast %351 : vector<1xf32> to vector<1x1xf32>
    %353 = vector.broadcast %352 : vector<1x1xf32> to vector<1x2xf32>
    %354 = arith.subf %350, %353 : vector<1x2xf32>
    %355 = math.exp %354 : vector<1x2xf32>
    %cst_77 = arith.constant dense<0.000000e+00> : vector<1xf32>
    %356 = vector.multi_reduction <add>, %355, %cst_77 [1] : vector<1x2xf32> to vector<1xf32>
    %357 = vector.shape_cast %356 : vector<1xf32> to vector<1x1xf32>
    %358 = tpu.reciprocal %357 {approx = true} : vector<1x1xf32> -> vector<1x1xf32>
    %359 = vector.broadcast %358 : vector<1x1xf32> to vector<1x2xf32>
    %360 = arith.mulf %355, %359 : vector<1x2xf32>
    %c1 = arith.constant 1 : index
    %c0_78 = arith.constant 0 : index
    %c0_79 = arith.constant 0 : index
    %361 = vector.load %arg15[%c1, %c0_78, %c0_79] : memref<4x1x2xf32, #tpu.memory_space<vmem>>, vector<1x1x2xf32>
    %362 = vector.shape_cast %361 : vector<1x1x2xf32> to vector<1x2xf32>
    %363 = vector.shape_cast %360 : vector<1x2xf32> to vector<1x1x2xf32>
    tpu.vector_store %arg15[%c1, %c0_78, %c0_79], %363 {strides = array<i32>} : memref<4x1x2xf32, #tpu.memory_space<vmem>>, vector<1x1x2xf32>,
    %364 = vector.extract_strided_slice %179 {offsets = [2, 0, 0], sizes = [1, 7, 312], strides = [1, 1, 1]} : vector<4x7x312xf32> to vector<1x7x312xf32>
    %365 = vector.shape_cast %364 : vector<1x7x312xf32> to vector<7x312xf32>
    %cst_80 = arith.constant dense<0.000000e+00> : vector<7x336xf32>
    %366 = tpu.matmul %365, %190, %cst_80 {dimension_numbers = #tpu.dot_dimension_numbers<[1], [0], [0], [1], [0, 0, 1, 1], [], []>} : vector<7x312xf32>, vector<312x336xf32>, vector<7x336xf32> -> vector<7x336xf32>
    %367 = vector.broadcast %191 : vector<1x336xf32> to vector<7x336xf32>
    %368 = arith.addf %366, %367 : vector<7x336xf32>
    %cst_81 = arith.constant 0.000000e+00 : f32
    %369 = vector.broadcast %cst_81 : f32 to vector<7x336xf32>
    %370 = arith.subf %369, %368 : vector<7x336xf32>
    %371 = math.exp %370 : vector<7x336xf32>
    %cst_82 = arith.constant 1.000000e+00 : f32
    %372 = vector.broadcast %cst_82 : f32 to vector<7x336xf32>
    %373 = arith.addf %372, %371 : vector<7x336xf32>
    %374 = tpu.reciprocal %373 {approx = true} : vector<7x336xf32> -> vector<7x336xf32>
    %375 = vector.extract_strided_slice %189 {offsets = [2, 0, 0], sizes = [1, 7, 312], strides = [1, 1, 1]} : vector<4x7x312xf32> to vector<1x7x312xf32>
    %376 = vector.shape_cast %375 : vector<1x7x312xf32> to vector<7x312xf32>
    %cst_83 = arith.constant dense<0.000000e+00> : vector<7x336xf32>
    %377 = tpu.matmul %376, %190, %cst_83 {dimension_numbers = #tpu.dot_dimension_numbers<[1], [0], [0], [1], [0, 0, 1, 1], [], []>} : vector<7x312xf32>, vector<312x336xf32>, vector<7x336xf32> -> vector<7x336xf32>
    %378 = vector.broadcast %191 : vector<1x336xf32> to vector<7x336xf32>
    %379 = arith.addf %377, %378 : vector<7x336xf32>
    %cst_84 = arith.constant 0.000000e+00 : f32
    %380 = vector.broadcast %cst_84 : f32 to vector<7x336xf32>
    %381 = arith.subf %380, %379 : vector<7x336xf32>
    %382 = math.exp %381 : vector<7x336xf32>
    %cst_85 = arith.constant 1.000000e+00 : f32
    %383 = vector.broadcast %cst_85 : f32 to vector<7x336xf32>
    %384 = arith.addf %383, %382 : vector<7x336xf32>
    %385 = tpu.reciprocal %384 {approx = true} : vector<7x336xf32> -> vector<7x336xf32>
    %386 = arith.maximumf %374, %385 : vector<7x336xf32>
    %387 = vector.extract_strided_slice %386 {offsets = [0, 0], sizes = [1, 336], strides = [1, 1]} : vector<7x336xf32> to vector<1x336xf32>
    %388 = vector.extract_strided_slice %192 {offsets = [0, 0, 0], sizes = [1, 336, 96], strides = [1, 1, 1]} : vector<7x336x96xf32> to vector<1x336x96xf32>
    %389 = vector.shape_cast %388 : vector<1x336x96xf32> to vector<336x96xf32>
    %cst_86 = arith.constant dense<0.000000e+00> : vector<1x96xf32>
    %390 = tpu.matmul %387, %389, %cst_86 {dimension_numbers = #tpu.dot_dimension_numbers<[1], [0], [0], [1], [0, 0, 1, 1], [], []>} : vector<1x336xf32>, vector<336x96xf32>, vector<1x96xf32> -> vector<1x96xf32>
    %391 = arith.addf %193, %390 : vector<1x96xf32>
    %392 = vector.extract_strided_slice %386 {offsets = [1, 0], sizes = [1, 336], strides = [1, 1]} : vector<7x336xf32> to vector<1x336xf32>
    %393 = vector.extract_strided_slice %192 {offsets = [1, 0, 0], sizes = [1, 336, 96], strides = [1, 1, 1]} : vector<7x336x96xf32> to vector<1x336x96xf32>
    %394 = vector.shape_cast %393 : vector<1x336x96xf32> to vector<336x96xf32>
    %cst_87 = arith.constant dense<0.000000e+00> : vector<1x96xf32>
    %395 = tpu.matmul %392, %394, %cst_87 {dimension_numbers = #tpu.dot_dimension_numbers<[1], [0], [0], [1], [0, 0, 1, 1], [], []>} : vector<1x336xf32>, vector<336x96xf32>, vector<1x96xf32> -> vector<1x96xf32>
    %396 = arith.addf %391, %395 : vector<1x96xf32>
    %397 = vector.extract_strided_slice %386 {offsets = [2, 0], sizes = [1, 336], strides = [1, 1]} : vector<7x336xf32> to vector<1x336xf32>
    %398 = vector.extract_strided_slice %192 {offsets = [2, 0, 0], sizes = [1, 336, 96], strides = [1, 1, 1]} : vector<7x336x96xf32> to vector<1x336x96xf32>
    %399 = vector.shape_cast %398 : vector<1x336x96xf32> to vector<336x96xf32>
    %cst_88 = arith.constant dense<0.000000e+00> : vector<1x96xf32>
    %400 = tpu.matmul %397, %399, %cst_88 {dimension_numbers = #tpu.dot_dimension_numbers<[1], [0], [0], [1], [0, 0, 1, 1], [], []>} : vector<1x336xf32>, vector<336x96xf32>, vector<1x96xf32> -> vector<1x96xf32>
    %401 = arith.addf %396, %400 : vector<1x96xf32>
    %402 = vector.extract_strided_slice %386 {offsets = [3, 0], sizes = [1, 336], strides = [1, 1]} : vector<7x336xf32> to vector<1x336xf32>
    %403 = vector.extract_strided_slice %192 {offsets = [3, 0, 0], sizes = [1, 336, 96], strides = [1, 1, 1]} : vector<7x336x96xf32> to vector<1x336x96xf32>
    %404 = vector.shape_cast %403 : vector<1x336x96xf32> to vector<336x96xf32>
    %cst_89 = arith.constant dense<0.000000e+00> : vector<1x96xf32>
    %405 = tpu.matmul %402, %404, %cst_89 {dimension_numbers = #tpu.dot_dimension_numbers<[1], [0], [0], [1], [0, 0, 1, 1], [], []>} : vector<1x336xf32>, vector<336x96xf32>, vector<1x96xf32> -> vector<1x96xf32>
    %406 = arith.addf %401, %405 : vector<1x96xf32>
    %407 = vector.extract_strided_slice %386 {offsets = [4, 0], sizes = [1, 336], strides = [1, 1]} : vector<7x336xf32> to vector<1x336xf32>
    %408 = vector.extract_strided_slice %192 {offsets = [4, 0, 0], sizes = [1, 336, 96], strides = [1, 1, 1]} : vector<7x336x96xf32> to vector<1x336x96xf32>
    %409 = vector.shape_cast %408 : vector<1x336x96xf32> to vector<336x96xf32>
    %cst_90 = arith.constant dense<0.000000e+00> : vector<1x96xf32>
    %410 = tpu.matmul %407, %409, %cst_90 {dimension_numbers = #tpu.dot_dimension_numbers<[1], [0], [0], [1], [0, 0, 1, 1], [], []>} : vector<1x336xf32>, vector<336x96xf32>, vector<1x96xf32> -> vector<1x96xf32>
    %411 = arith.addf %406, %410 : vector<1x96xf32>
    %412 = vector.extract_strided_slice %386 {offsets = [5, 0], sizes = [1, 336], strides = [1, 1]} : vector<7x336xf32> to vector<1x336xf32>
    %413 = vector.extract_strided_slice %192 {offsets = [5, 0, 0], sizes = [1, 336, 96], strides = [1, 1, 1]} : vector<7x336x96xf32> to vector<1x336x96xf32>
    %414 = vector.shape_cast %413 : vector<1x336x96xf32> to vector<336x96xf32>
    %cst_91 = arith.constant dense<0.000000e+00> : vector<1x96xf32>
    %415 = tpu.matmul %412, %414, %cst_91 {dimension_numbers = #tpu.dot_dimension_numbers<[1], [0], [0], [1], [0, 0, 1, 1], [], []>} : vector<1x336xf32>, vector<336x96xf32>, vector<1x96xf32> -> vector<1x96xf32>
    %416 = arith.addf %411, %415 : vector<1x96xf32>
    %417 = vector.extract_strided_slice %386 {offsets = [6, 0], sizes = [1, 336], strides = [1, 1]} : vector<7x336xf32> to vector<1x336xf32>
    %418 = vector.extract_strided_slice %192 {offsets = [6, 0, 0], sizes = [1, 336, 96], strides = [1, 1, 1]} : vector<7x336x96xf32> to vector<1x336x96xf32>
    %419 = vector.shape_cast %418 : vector<1x336x96xf32> to vector<336x96xf32>
    %cst_92 = arith.constant dense<0.000000e+00> : vector<1x96xf32>
    %420 = tpu.matmul %417, %419, %cst_92 {dimension_numbers = #tpu.dot_dimension_numbers<[1], [0], [0], [1], [0, 0, 1, 1], [], []>} : vector<1x336xf32>, vector<336x96xf32>, vector<1x96xf32> -> vector<1x96xf32>
    %421 = arith.addf %416, %420 : vector<1x96xf32>
    %cst_93 = arith.constant 0.000000e+00 : f32
    %422 = vector.broadcast %cst_93 : f32 to vector<1x96xf32>
    %423 = arith.subf %422, %421 : vector<1x96xf32>
    %424 = math.exp %423 : vector<1x96xf32>
    %cst_94 = arith.constant 1.000000e+00 : f32
    %425 = vector.broadcast %cst_94 : f32 to vector<1x96xf32>
    %426 = arith.addf %425, %424 : vector<1x96xf32>
    %427 = tpu.reciprocal %426 {approx = true} : vector<1x96xf32> -> vector<1x96xf32>
    %cst_95 = arith.constant dense<0.000000e+00> : vector<1x100xf32>
    %428 = tpu.matmul %427, %194, %cst_95 {dimension_numbers = #tpu.dot_dimension_numbers<[1], [0], [0], [1], [0, 0, 1, 1], [], []>} : vector<1x96xf32>, vector<96x100xf32>, vector<1x100xf32> -> vector<1x100xf32>
    %429 = arith.addf %428, %195 : vector<1x100xf32>
    %cst_96 = arith.constant 0.000000e+00 : f32
    %430 = vector.broadcast %cst_96 : f32 to vector<1x100xf32>
    %431 = arith.maximumf %429, %430 : vector<1x100xf32>
    %cst_97 = arith.constant dense<0.000000e+00> : vector<1x2xf32>
    %432 = tpu.matmul %431, %196, %cst_97 {dimension_numbers = #tpu.dot_dimension_numbers<[1], [0], [0], [1], [0, 0, 1, 1], [], []>} : vector<1x100xf32>, vector<100x2xf32>, vector<1x2xf32> -> vector<1x2xf32>
    %433 = arith.addf %432, %197 : vector<1x2xf32>
    %cst_98 = arith.constant dense<0xFF800000> : vector<1xf32>
    %434 = vector.multi_reduction <maximumf>, %433, %cst_98 [1] : vector<1x2xf32> to vector<1xf32>
    %435 = vector.shape_cast %434 : vector<1xf32> to vector<1x1xf32>
    %436 = vector.broadcast %435 : vector<1x1xf32> to vector<1x2xf32>
    %437 = arith.subf %433, %436 : vector<1x2xf32>
    %438 = math.exp %437 : vector<1x2xf32>
    %cst_99 = arith.constant dense<0.000000e+00> : vector<1xf32>
    %439 = vector.multi_reduction <add>, %438, %cst_99 [1] : vector<1x2xf32> to vector<1xf32>
    %440 = vector.shape_cast %439 : vector<1xf32> to vector<1x1xf32>
    %441 = tpu.reciprocal %440 {approx = true} : vector<1x1xf32> -> vector<1x1xf32>
    %442 = vector.broadcast %441 : vector<1x1xf32> to vector<1x2xf32>
    %443 = arith.mulf %438, %442 : vector<1x2xf32>
    %c2 = arith.constant 2 : index
    %c0_100 = arith.constant 0 : index
    %c0_101 = arith.constant 0 : index
    %444 = vector.load %arg15[%c2, %c0_100, %c0_101] : memref<4x1x2xf32, #tpu.memory_space<vmem>>, vector<1x1x2xf32>
    %445 = vector.shape_cast %444 : vector<1x1x2xf32> to vector<1x2xf32>
    %446 = vector.shape_cast %443 : vector<1x2xf32> to vector<1x1x2xf32>
    tpu.vector_store %arg15[%c2, %c0_100, %c0_101], %446 {strides = array<i32>} : memref<4x1x2xf32, #tpu.memory_space<vmem>>, vector<1x1x2xf32>,
    %447 = vector.extract_strided_slice %179 {offsets = [3, 0, 0], sizes = [1, 7, 312], strides = [1, 1, 1]} : vector<4x7x312xf32> to vector<1x7x312xf32>
    %448 = vector.shape_cast %447 : vector<1x7x312xf32> to vector<7x312xf32>
    %cst_102 = arith.constant dense<0.000000e+00> : vector<7x336xf32>
    %449 = tpu.matmul %448, %190, %cst_102 {dimension_numbers = #tpu.dot_dimension_numbers<[1], [0], [0], [1], [0, 0, 1, 1], [], []>} : vector<7x312xf32>, vector<312x336xf32>, vector<7x336xf32> -> vector<7x336xf32>
    %450 = vector.broadcast %191 : vector<1x336xf32> to vector<7x336xf32>
    %451 = arith.addf %449, %450 : vector<7x336xf32>
    %cst_103 = arith.constant 0.000000e+00 : f32
    %452 = vector.broadcast %cst_103 : f32 to vector<7x336xf32>
    %453 = arith.subf %452, %451 : vector<7x336xf32>
    %454 = math.exp %453 : vector<7x336xf32>
    %cst_104 = arith.constant 1.000000e+00 : f32
    %455 = vector.broadcast %cst_104 : f32 to vector<7x336xf32>
    %456 = arith.addf %455, %454 : vector<7x336xf32>
    %457 = tpu.reciprocal %456 {approx = true} : vector<7x336xf32> -> vector<7x336xf32>
    %458 = vector.extract_strided_slice %189 {offsets = [3, 0, 0], sizes = [1, 7, 312], strides = [1, 1, 1]} : vector<4x7x312xf32> to vector<1x7x312xf32>
    %459 = vector.shape_cast %458 : vector<1x7x312xf32> to vector<7x312xf32>
    %cst_105 = arith.constant dense<0.000000e+00> : vector<7x336xf32>
    %460 = tpu.matmul %459, %190, %cst_105 {dimension_numbers = #tpu.dot_dimension_numbers<[1], [0], [0], [1], [0, 0, 1, 1], [], []>} : vector<7x312xf32>, vector<312x336xf32>, vector<7x336xf32> -> vector<7x336xf32>
    %461 = vector.broadcast %191 : vector<1x336xf32> to vector<7x336xf32>
    %462 = arith.addf %460, %461 : vector<7x336xf32>
    %cst_106 = arith.constant 0.000000e+00 : f32
    %463 = vector.broadcast %cst_106 : f32 to vector<7x336xf32>
    %464 = arith.subf %463, %462 : vector<7x336xf32>
    %465 = math.exp %464 : vector<7x336xf32>
    %cst_107 = arith.constant 1.000000e+00 : f32
    %466 = vector.broadcast %cst_107 : f32 to vector<7x336xf32>
    %467 = arith.addf %466, %465 : vector<7x336xf32>
    %468 = tpu.reciprocal %467 {approx = true} : vector<7x336xf32> -> vector<7x336xf32>
    %469 = arith.maximumf %457, %468 : vector<7x336xf32>
    %470 = vector.extract_strided_slice %469 {offsets = [0, 0], sizes = [1, 336], strides = [1, 1]} : vector<7x336xf32> to vector<1x336xf32>
    %471 = vector.extract_strided_slice %192 {offsets = [0, 0, 0], sizes = [1, 336, 96], strides = [1, 1, 1]} : vector<7x336x96xf32> to vector<1x336x96xf32>
    %472 = vector.shape_cast %471 : vector<1x336x96xf32> to vector<336x96xf32>
    %cst_108 = arith.constant dense<0.000000e+00> : vector<1x96xf32>
    %473 = tpu.matmul %470, %472, %cst_108 {dimension_numbers = #tpu.dot_dimension_numbers<[1], [0], [0], [1], [0, 0, 1, 1], [], []>} : vector<1x336xf32>, vector<336x96xf32>, vector<1x96xf32> -> vector<1x96xf32>
    %474 = arith.addf %193, %473 : vector<1x96xf32>
    %475 = vector.extract_strided_slice %469 {offsets = [1, 0], sizes = [1, 336], strides = [1, 1]} : vector<7x336xf32> to vector<1x336xf32>
    %476 = vector.extract_strided_slice %192 {offsets = [1, 0, 0], sizes = [1, 336, 96], strides = [1, 1, 1]} : vector<7x336x96xf32> to vector<1x336x96xf32>
    %477 = vector.shape_cast %476 : vector<1x336x96xf32> to vector<336x96xf32>
    %cst_109 = arith.constant dense<0.000000e+00> : vector<1x96xf32>
    %478 = tpu.matmul %475, %477, %cst_109 {dimension_numbers = #tpu.dot_dimension_numbers<[1], [0], [0], [1], [0, 0, 1, 1], [], []>} : vector<1x336xf32>, vector<336x96xf32>, vector<1x96xf32> -> vector<1x96xf32>
    %479 = arith.addf %474, %478 : vector<1x96xf32>
    %480 = vector.extract_strided_slice %469 {offsets = [2, 0], sizes = [1, 336], strides = [1, 1]} : vector<7x336xf32> to vector<1x336xf32>
    %481 = vector.extract_strided_slice %192 {offsets = [2, 0, 0], sizes = [1, 336, 96], strides = [1, 1, 1]} : vector<7x336x96xf32> to vector<1x336x96xf32>
    %482 = vector.shape_cast %481 : vector<1x336x96xf32> to vector<336x96xf32>
    %cst_110 = arith.constant dense<0.000000e+00> : vector<1x96xf32>
    %483 = tpu.matmul %480, %482, %cst_110 {dimension_numbers = #tpu.dot_dimension_numbers<[1], [0], [0], [1], [0, 0, 1, 1], [], []>} : vector<1x336xf32>, vector<336x96xf32>, vector<1x96xf32> -> vector<1x96xf32>
    %484 = arith.addf %479, %483 : vector<1x96xf32>
    %485 = vector.extract_strided_slice %469 {offsets = [3, 0], sizes = [1, 336], strides = [1, 1]} : vector<7x336xf32> to vector<1x336xf32>
    %486 = vector.extract_strided_slice %192 {offsets = [3, 0, 0], sizes = [1, 336, 96], strides = [1, 1, 1]} : vector<7x336x96xf32> to vector<1x336x96xf32>
    %487 = vector.shape_cast %486 : vector<1x336x96xf32> to vector<336x96xf32>
    %cst_111 = arith.constant dense<0.000000e+00> : vector<1x96xf32>
    %488 = tpu.matmul %485, %487, %cst_111 {dimension_numbers = #tpu.dot_dimension_numbers<[1], [0], [0], [1], [0, 0, 1, 1], [], []>} : vector<1x336xf32>, vector<336x96xf32>, vector<1x96xf32> -> vector<1x96xf32>
    %489 = arith.addf %484, %488 : vector<1x96xf32>
    %490 = vector.extract_strided_slice %469 {offsets = [4, 0], sizes = [1, 336], strides = [1, 1]} : vector<7x336xf32> to vector<1x336xf32>
    %491 = vector.extract_strided_slice %192 {offsets = [4, 0, 0], sizes = [1, 336, 96], strides = [1, 1, 1]} : vector<7x336x96xf32> to vector<1x336x96xf32>
    %492 = vector.shape_cast %491 : vector<1x336x96xf32> to vector<336x96xf32>
    %cst_112 = arith.constant dense<0.000000e+00> : vector<1x96xf32>
    %493 = tpu.matmul %490, %492, %cst_112 {dimension_numbers = #tpu.dot_dimension_numbers<[1], [0], [0], [1], [0, 0, 1, 1], [], []>} : vector<1x336xf32>, vector<336x96xf32>, vector<1x96xf32> -> vector<1x96xf32>
    %494 = arith.addf %489, %493 : vector<1x96xf32>
    %495 = vector.extract_strided_slice %469 {offsets = [5, 0], sizes = [1, 336], strides = [1, 1]} : vector<7x336xf32> to vector<1x336xf32>
    %496 = vector.extract_strided_slice %192 {offsets = [5, 0, 0], sizes = [1, 336, 96], strides = [1, 1, 1]} : vector<7x336x96xf32> to vector<1x336x96xf32>
    %497 = vector.shape_cast %496 : vector<1x336x96xf32> to vector<336x96xf32>
    %cst_113 = arith.constant dense<0.000000e+00> : vector<1x96xf32>
    %498 = tpu.matmul %495, %497, %cst_113 {dimension_numbers = #tpu.dot_dimension_numbers<[1], [0], [0], [1], [0, 0, 1, 1], [], []>} : vector<1x336xf32>, vector<336x96xf32>, vector<1x96xf32> -> vector<1x96xf32>
    %499 = arith.addf %494, %498 : vector<1x96xf32>
    %500 = vector.extract_strided_slice %469 {offsets = [6, 0], sizes = [1, 336], strides = [1, 1]} : vector<7x336xf32> to vector<1x336xf32>
    %501 = vector.extract_strided_slice %192 {offsets = [6, 0, 0], sizes = [1, 336, 96], strides = [1, 1, 1]} : vector<7x336x96xf32> to vector<1x336x96xf32>
    %502 = vector.shape_cast %501 : vector<1x336x96xf32> to vector<336x96xf32>
    %cst_114 = arith.constant dense<0.000000e+00> : vector<1x96xf32>
    %503 = tpu.matmul %500, %502, %cst_114 {dimension_numbers = #tpu.dot_dimension_numbers<[1], [0], [0], [1], [0, 0, 1, 1], [], []>} : vector<1x336xf32>, vector<336x96xf32>, vector<1x96xf32> -> vector<1x96xf32>
    %504 = arith.addf %499, %503 : vector<1x96xf32>
    %cst_115 = arith.constant 0.000000e+00 : f32
    %505 = vector.broadcast %cst_115 : f32 to vector<1x96xf32>
    %506 = arith.subf %505, %504 : vector<1x96xf32>
    %507 = math.exp %506 : vector<1x96xf32>
    %cst_116 = arith.constant 1.000000e+00 : f32
    %508 = vector.broadcast %cst_116 : f32 to vector<1x96xf32>
    %509 = arith.addf %508, %507 : vector<1x96xf32>
    %510 = tpu.reciprocal %509 {approx = true} : vector<1x96xf32> -> vector<1x96xf32>
    %cst_117 = arith.constant dense<0.000000e+00> : vector<1x100xf32>
    %511 = tpu.matmul %510, %194, %cst_117 {dimension_numbers = #tpu.dot_dimension_numbers<[1], [0], [0], [1], [0, 0, 1, 1], [], []>} : vector<1x96xf32>, vector<96x100xf32>, vector<1x100xf32> -> vector<1x100xf32>
    %512 = arith.addf %511, %195 : vector<1x100xf32>
    %cst_118 = arith.constant 0.000000e+00 : f32
    %513 = vector.broadcast %cst_118 : f32 to vector<1x100xf32>
    %514 = arith.maximumf %512, %513 : vector<1x100xf32>
    %cst_119 = arith.constant dense<0.000000e+00> : vector<1x2xf32>
    %515 = tpu.matmul %514, %196, %cst_119 {dimension_numbers = #tpu.dot_dimension_numbers<[1], [0], [0], [1], [0, 0, 1, 1], [], []>} : vector<1x100xf32>, vector<100x2xf32>, vector<1x2xf32> -> vector<1x2xf32>
    %516 = arith.addf %515, %197 : vector<1x2xf32>
    %cst_120 = arith.constant dense<0xFF800000> : vector<1xf32>
    %517 = vector.multi_reduction <maximumf>, %516, %cst_120 [1] : vector<1x2xf32> to vector<1xf32>
    %518 = vector.shape_cast %517 : vector<1xf32> to vector<1x1xf32>
    %519 = vector.broadcast %518 : vector<1x1xf32> to vector<1x2xf32>
    %520 = arith.subf %516, %519 : vector<1x2xf32>
    %521 = math.exp %520 : vector<1x2xf32>
    %cst_121 = arith.constant dense<0.000000e+00> : vector<1xf32>
    %522 = vector.multi_reduction <add>, %521, %cst_121 [1] : vector<1x2xf32> to vector<1xf32>
    %523 = vector.shape_cast %522 : vector<1xf32> to vector<1x1xf32>
    %524 = tpu.reciprocal %523 {approx = true} : vector<1x1xf32> -> vector<1x1xf32>
    %525 = vector.broadcast %524 : vector<1x1xf32> to vector<1x2xf32>
    %526 = arith.mulf %521, %525 : vector<1x2xf32>
    %c3 = arith.constant 3 : index
    %c0_122 = arith.constant 0 : index
    %c0_123 = arith.constant 0 : index
    %527 = vector.load %arg15[%c3, %c0_122, %c0_123] : memref<4x1x2xf32, #tpu.memory_space<vmem>>, vector<1x1x2xf32>
    %528 = vector.shape_cast %527 : vector<1x1x2xf32> to vector<1x2xf32>
    %529 = vector.shape_cast %526 : vector<1x2xf32> to vector<1x1x2xf32>
    tpu.vector_store %arg15[%c3, %c0_122, %c0_123], %529 {strides = array<i32>} : memref<4x1x2xf32, #tpu.memory_space<vmem>>, vector<1x1x2xf32>,
    return
  }
  func.func @transform_0(%arg0: i32) -> (i32, i32, i32) {
    %c0_i32 = arith.constant 0 : i32
    %c0_i32_0 = arith.constant 0 : i32
    %c0_i32_1 = arith.constant 0 : i32
    return %arg0, %c0_i32, %c0_i32_0 : i32, i32, i32
  }
  func.func @transform_1(%arg0: i32) -> (i32, i32, i32) {
    %c0_i32 = arith.constant 0 : i32
    %c0_i32_0 = arith.constant 0 : i32
    %c0_i32_1 = arith.constant 0 : i32
    return %arg0, %c0_i32, %c0_i32_0 : i32, i32, i32
  }
  func.func @transform_2(%arg0: i32) -> (i32, i32, i32) {
    %c0_i32 = arith.constant 0 : i32
    %c0_i32_0 = arith.constant 0 : i32
    %c0_i32_1 = arith.constant 0 : i32
    return %arg0, %c0_i32, %c0_i32_0 : i32, i32, i32
  }
  func.func @transform_3(%arg0: i32) -> (i32, i32, i32) {
    %c0_i32 = arith.constant 0 : i32
    %c0_i32_0 = arith.constant 0 : i32
    %c0_i32_1 = arith.constant 0 : i32
    return %arg0, %c0_i32, %c0_i32_0 : i32, i32, i32
  }
  func.func @transform_4(%arg0: i32) -> (i32, i32) {
    %c0_i32 = arith.constant 0 : i32
    %c0_i32_0 = arith.constant 0 : i32
    %c0_i32_1 = arith.constant 0 : i32
    return %c0_i32, %c0_i32_0 : i32, i32
  }
  func.func @transform_5(%arg0: i32) -> (i32, i32) {
    %c0_i32 = arith.constant 0 : i32
    %c0_i32_0 = arith.constant 0 : i32
    %c0_i32_1 = arith.constant 0 : i32
    return %c0_i32, %c0_i32_0 : i32, i32
  }
  func.func @transform_6(%arg0: i32) -> (i32, i32) {
    %c0_i32 = arith.constant 0 : i32
    %c0_i32_0 = arith.constant 0 : i32
    %c0_i32_1 = arith.constant 0 : i32
    return %c0_i32, %c0_i32_0 : i32, i32
  }
  func.func @transform_7(%arg0: i32) -> (i32, i32) {
    %c0_i32 = arith.constant 0 : i32
    %c0_i32_0 = arith.constant 0 : i32
    %c0_i32_1 = arith.constant 0 : i32
    return %c0_i32, %c0_i32_0 : i32, i32
  }
  func.func @transform_8(%arg0: i32) -> (i32, i32, i32) {
    %c0_i32 = arith.constant 0 : i32
    %c0_i32_0 = arith.constant 0 : i32
    %c0_i32_1 = arith.constant 0 : i32
    %c0_i32_2 = arith.constant 0 : i32
    return %c0_i32, %c0_i32_0, %c0_i32_1 : i32, i32, i32
  }
  func.func @transform_9(%arg0: i32) -> (i32, i32) {
    %c0_i32 = arith.constant 0 : i32
    %c0_i32_0 = arith.constant 0 : i32
    %c0_i32_1 = arith.constant 0 : i32
    return %c0_i32, %c0_i32_0 : i32, i32
  }
  func.func @transform_10(%arg0: i32) -> (i32, i32) {
    %c0_i32 = arith.constant 0 : i32
    %c0_i32_0 = arith.constant 0 : i32
    %c0_i32_1 = arith.constant 0 : i32
    return %c0_i32, %c0_i32_0 : i32, i32
  }
  func.func @transform_11(%arg0: i32) -> (i32, i32) {
    %c0_i32 = arith.constant 0 : i32
    %c0_i32_0 = arith.constant 0 : i32
    %c0_i32_1 = arith.constant 0 : i32
    return %c0_i32, %c0_i32_0 : i32, i32
  }
  func.func @transform_12(%arg0: i32) -> (i32, i32) {
    %c0_i32 = arith.constant 0 : i32
    %c0_i32_0 = arith.constant 0 : i32
    %c0_i32_1 = arith.constant 0 : i32
    return %c0_i32, %c0_i32_0 : i32, i32
  }
  func.func @transform_13(%arg0: i32) -> (i32, i32) {
    %c0_i32 = arith.constant 0 : i32
    %c0_i32_0 = arith.constant 0 : i32
    %c0_i32_1 = arith.constant 0 : i32
    return %c0_i32, %c0_i32_0 : i32, i32
  }
  func.func @transform_14(%arg0: i32) -> (i32, i32, i32) {
    %c0_i32 = arith.constant 0 : i32
    %c0_i32_0 = arith.constant 0 : i32
    %c0_i32_1 = arith.constant 0 : i32
    return %arg0, %c0_i32, %c0_i32_0 : i32, i32, i32
  }
}

</mosaic_0001>

<llo_original>
// kernel: net_forward.1
$region0: #{net_forward.1}
  #allocation0 [shape = 'u32[]', space=smem, size = 0x4, offset = 0x4, fixed_abs, tag = 'smem constant byte address 0x4 - core index']
  #allocation1 [shape = 'u32[144,128]{1,0:T(1,128)}', space=vmem, size = 0x12000, scoped, tag = 'internal scratch']
  %s0 = inlined_call_operand.vmem [shape: f32[8,9,312], index: 0, kind: input, shape index: {}]
  %s1 = inlined_call_operand.vmem [shape: f32[8,9,312], index: 1, kind: input, shape index: {}]
  %s2 = inlined_call_operand.vmem [shape: f32[8,8,312], index: 2, kind: input, shape index: {}]
  %s3 = inlined_call_operand.vmem [shape: f32[8,8,312], index: 3, kind: input, shape index: {}]
  %s4 = inlined_call_operand.vmem [shape: f32[7,312], index: 4, kind: input, shape index: {}]
  %s5 = inlined_call_operand.vmem [shape: f32[1,312], index: 5, kind: input, shape index: {}]
  %s6 = inlined_call_operand.vmem [shape: f32[312,336], index: 6, kind: input, shape index: {}]
  %s7 = inlined_call_operand.vmem [shape: f32[1,336], index: 7, kind: input, shape index: {}]
  %s8 = inlined_call_operand.vmem [shape: f32[7,336,96], index: 8, kind: input, shape index: {}]
  %s9 = inlined_call_operand.vmem [shape: f32[1,96], index: 9, kind: input, shape index: {}]
  %s10 = inlined_call_operand.vmem [shape: f32[96,100], index: 10, kind: input, shape index: {}]
  %s11 = inlined_call_operand.vmem [shape: f32[1,100], index: 11, kind: input, shape index: {}]
  %s12 = inlined_call_operand.vmem [shape: f32[100,2], index: 12, kind: input, shape index: {}]
  %s13 = inlined_call_operand.vmem [shape: f32[1,2], index: 13, kind: input, shape index: {}]
  %s14 = inlined_call_operand.vmem [shape: f32[8,1,2], index: 14, kind: output, shape index: {}]
  %s15 = sld [smem:[#allocation0]]
  $region89: #{net_forward.1} parent=0
    _
  %s17 = ssub.s32 1, %s15
  %s18 = scalar_select 0, %s17, %s15
  loop: start=0, step=1, limit=4
  $region2: #{net_forward.1} parent=0 // loop_pre_header
    _
  $region3: #{net_forward.1} parent=0 // loop_header
    %s20 = sphi 0, %s24
    %p21 = scmp.ge.s32.totalorder %s20, 4
    %s30 = sphi 0, %s32
    %s33 = sphi 0, %s30
    %s34 = sphi 0, %s33
    %s50 = sphi 0, %s34
    %s56 = sphi 0, %s58
    %s59 = sphi 0, %s56
    %s60 = sphi 0, %s59
    %s76 = sphi 0, %s60
    %s82 = sphi 0, %s84
    %s85 = sphi 0, %s82
    %s86 = sphi 0, %s85
    %s102 = sphi 0, %s86
    %s108 = sphi 0, %s110
    %s111 = sphi 0, %s108
    %s112 = sphi 0, %s111
    %s128 = sphi 0, %s112
    %s132 = sphi 0, %s132
    %s134 = sphi 0, %s132
    %s135 = sphi 0, %s134
    %s149 = sphi 0, %s135
    %s153 = sphi 0, %s153
    %s155 = sphi 0, %s153
    %s156 = sphi 0, %s155
    %s170 = sphi 0, %s156
    %s174 = sphi 0, %s174
    %s176 = sphi 0, %s174
    %s177 = sphi 0, %s176
    %s191 = sphi 0, %s177
    %s195 = sphi 0, %s195
    %s197 = sphi 0, %s195
    %s198 = sphi 0, %s197
    %s212 = sphi 0, %s198
    %s216 = sphi 0, %s216
    %s218 = sphi 0, %s216
    %s219 = sphi 0, %s218
    %s233 = sphi 0, %s219
    %s237 = sphi 0, %s237
    %s239 = sphi 0, %s237
    %s240 = sphi 0, %s239
    %s254 = sphi 0, %s240
    %s258 = sphi 0, %s258
    %s260 = sphi 0, %s258
    %s261 = sphi 0, %s260
    %s275 = sphi 0, %s261
    %s279 = sphi 0, %s279
    %s281 = sphi 0, %s279
    %s282 = sphi 0, %s281
    %s296 = sphi 0, %s282
    %s300 = sphi 0, %s300
    %s302 = sphi 0, %s300
    %s303 = sphi 0, %s302
    %s317 = sphi 0, %s303
    %s321 = sphi 0, %s321
    %s323 = sphi 0, %s321
    %s324 = sphi 0, %s323
    %s338 = sphi 0, %s324
    %s344 = sphi 0, %s346
    %s347 = sphi 0, %s344
    %s348 = sphi 0, %s347
    %s364 = sphi 0, %s348
  $region4: #{net_forward.1} parent=0 // loop_header_branch
    %23 = sbr.rel (%p21) target = $region8
  $region5: #{net_forward.1} parent=0 // loop_body
    %s25 = ssub.s32 %s20, 1
    %s26 = ssub.s32 %s20, 2
    %s27 = sadd.s32 %s20, 1
    %s28 = ssub.s32 %s20, %s27
    %p29 = scmp.eq.s32.totalorder %s28, 0
    %s31 = sadd.s32 %s30, 1
    %s32 = scalar_select %p29, %s30, %s31
    %p35 = pneg %p29
    %p36 = scmp.eq.s32.totalorder %s20, 1
    %p37 = por %p35, %p36
    %p38 = scmp.ne.s32.totalorder %s30, %s33
    %p39 = scmp.eq.s32.totalorder %s20, 0
    %p40 = por %p38, %p39
    %p41 = scmp.ne.s32.totalorder %s30, %s33
    %p42 = scmp.eq.s32.totalorder %s25, 1
    %p43 = por %p41, %p42
    %p44 = scmp.ne.s32.totalorder %s33, %s34
    %p45 = scmp.eq.s32.totalorder %s25, 0
    %p46 = por %p44, %p45
    %p47 = scmp.ne.s32.totalorder %s33, %s34
    %p48 = scmp.eq.s32.totalorder %s26, 1
    %p49 = por %p47, %p48
    %p51 = scmp.ne.s32.totalorder %s34, %s50
    %p52 = scmp.eq.s32.totalorder %s26, 0
    %p53 = por %p51, %p52
    %s54 = ssub.s32 %s20, %s27
    %p55 = scmp.eq.s32.totalorder %s54, 0
    %s57 = sadd.s32 %s56, 1
    %s58 = scalar_select %p55, %s56, %s57
    %p61 = pneg %p55
    %p62 = scmp.eq.s32.totalorder %s20, 1
    %p63 = por %p61, %p62
    %p64 = scmp.ne.s32.totalorder %s56, %s59
    %p65 = scmp.eq.s32.totalorder %s20, 0
    %p66 = por %p64, %p65
    %p67 = scmp.ne.s32.totalorder %s56, %s59
    %p68 = scmp.eq.s32.totalorder %s25, 1
    %p69 = por %p67, %p68
    %p70 = scmp.ne.s32.totalorder %s59, %s60
    %p71 = scmp.eq.s32.totalorder %s25, 0
    %p72 = por %p70, %p71
    %p73 = scmp.ne.s32.totalorder %s59, %s60
    %p74 = scmp.eq.s32.totalorder %s26, 1
    %p75 = por %p73, %p74
    %p77 = scmp.ne.s32.totalorder %s60, %s76
    %p78 = scmp.eq.s32.totalorder %s26, 0
    %p79 = por %p77, %p78
    %s80 = ssub.s32 %s20, %s27
    %p81 = scmp.eq.s32.totalorder %s80, 0
    %s83 = sadd.s32 %s82, 1
    %s84 = scalar_select %p81, %s82, %s83
    %p87 = pneg %p81
    %p88 = scmp.eq.s32.totalorder %s20, 1
    %p89 = por %p87, %p88
    %p90 = scmp.ne.s32.totalorder %s82, %s85
    %p91 = scmp.eq.s32.totalorder %s20, 0
    %p92 = por %p90, %p91
    %p93 = scmp.ne.s32.totalorder %s82, %s85
    %p94 = scmp.eq.s32.totalorder %s25, 1
    %p95 = por %p93, %p94
    %p96 = scmp.ne.s32.totalorder %s85, %s86
    %p97 = scmp.eq.s32.totalorder %s25, 0
    %p98 = por %p96, %p97
    %p99 = scmp.ne.s32.totalorder %s85, %s86
    %p100 = scmp.eq.s32.totalorder %s26, 1
    %p101 = por %p99, %p100
    %p103 = scmp.ne.s32.totalorder %s86, %s102
    %p104 = scmp.eq.s32.totalorder %s26, 0
    %p105 = por %p103, %p104
    %s106 = ssub.s32 %s20, %s27
    %p107 = scmp.eq.s32.totalorder %s106, 0
    %s109 = sadd.s32 %s108, 1
    %s110 = scalar_select %p107, %s108, %s109
    %p113 = pneg %p107
    %p114 = scmp.eq.s32.totalorder %s20, 1
    %p115 = por %p113, %p114
    %p116 = scmp.ne.s32.totalorder %s108, %s111
    %p117 = scmp.eq.s32.totalorder %s20, 0
    %p118 = por %p116, %p117
    %p119 = scmp.ne.s32.totalorder %s108, %s111
    %p120 = scmp.eq.s32.totalorder %s25, 1
    %p121 = por %p119, %p120
    %p122 = scmp.ne.s32.totalorder %s111, %s112
    %p123 = scmp.eq.s32.totalorder %s25, 0
    %p124 = por %p122, %p123
    %p125 = scmp.ne.s32.totalorder %s111, %s112
    %p126 = scmp.eq.s32.totalorder %s26, 1
    %p127 = por %p125, %p126
    %p129 = scmp.ne.s32.totalorder %s112, %s128
    %p130 = scmp.eq.s32.totalorder %s26, 0
    %p131 = por %p129, %p130
    %s133 = sadd.s32 %s132, 1
    %p136 = scmp.eq.s32.totalorder %s20, 1
    %p137 = scmp.ne.s32.totalorder %s132, %s134
    %p138 = scmp.eq.s32.totalorder %s20, 0
    %p139 = por %p137, %p138
    %p140 = scmp.ne.s32.totalorder %s132, %s134
    %p141 = scmp.eq.s32.totalorder %s25, 1
    %p142 = por %p140, %p141
    %p143 = scmp.ne.s32.totalorder %s134, %s135
    %p144 = scmp.eq.s32.totalorder %s25, 0
    %p145 = por %p143, %p144
    %p146 = scmp.ne.s32.totalorder %s134, %s135
    %p147 = scmp.eq.s32.totalorder %s26, 1
    %p148 = por %p146, %p147
    %p150 = scmp.ne.s32.totalorder %s135, %s149
    %p151 = scmp.eq.s32.totalorder %s26, 0
    %p152 = por %p150, %p151
    %s154 = sadd.s32 %s153, 1
    %p157 = scmp.eq.s32.totalorder %s20, 1
    %p158 = scmp.ne.s32.totalorder %s153, %s155
    %p159 = scmp.eq.s32.totalorder %s20, 0
    %p160 = por %p158, %p159
    %p161 = scmp.ne.s32.totalorder %s153, %s155
    %p162 = scmp.eq.s32.totalorder %s25, 1
    %p163 = por %p161, %p162
    %p164 = scmp.ne.s32.totalorder %s155, %s156
    %p165 = scmp.eq.s32.totalorder %s25, 0
    %p166 = por %p164, %p165
    %p167 = scmp.ne.s32.totalorder %s155, %s156
    %p168 = scmp.eq.s32.totalorder %s26, 1
    %p169 = por %p167, %p168
    %p171 = scmp.ne.s32.totalorder %s156, %s170
    %p172 = scmp.eq.s32.totalorder %s26, 0
    %p173 = por %p171, %p172
    %s175 = sadd.s32 %s174, 1
    %p178 = scmp.eq.s32.totalorder %s20, 1
    %p179 = scmp.ne.s32.totalorder %s174, %s176
    %p180 = scmp.eq.s32.totalorder %s20, 0
    %p181 = por %p179, %p180
    %p182 = scmp.ne.s32.totalorder %s174, %s176
    %p183 = scmp.eq.s32.totalorder %s25, 1
    %p184 = por %p182, %p183
    %p185 = scmp.ne.s32.totalorder %s176, %s177
    %p186 = scmp.eq.s32.totalorder %s25, 0
    %p187 = por %p185, %p186
    %p188 = scmp.ne.s32.totalorder %s176, %s177
    %p189 = scmp.eq.s32.totalorder %s26, 1
    %p190 = por %p188, %p189
    %p192 = scmp.ne.s32.totalorder %s177, %s191
    %p193 = scmp.eq.s32.totalorder %s26, 0
    %p194 = por %p192, %p193
    %s196 = sadd.s32 %s195, 1
    %p199 = scmp.eq.s32.totalorder %s20, 1
    %p200 = scmp.ne.s32.totalorder %s195, %s197
    %p201 = scmp.eq.s32.totalorder %s20, 0
    %p202 = por %p200, %p201
    %p203 = scmp.ne.s32.totalorder %s195, %s197
    %p204 = scmp.eq.s32.totalorder %s25, 1
    %p205 = por %p203, %p204
    %p206 = scmp.ne.s32.totalorder %s197, %s198
    %p207 = scmp.eq.s32.totalorder %s25, 0
    %p208 = por %p206, %p207
    %p209 = scmp.ne.s32.totalorder %s197, %s198
    %p210 = scmp.eq.s32.totalorder %s26, 1
    %p211 = por %p209, %p210
    %p213 = scmp.ne.s32.totalorder %s198, %s212
    %p214 = scmp.eq.s32.totalorder %s26, 0
    %p215 = por %p213, %p214
    %s217 = sadd.s32 %s216, 1
    %p220 = scmp.eq.s32.totalorder %s20, 1
    %p221 = scmp.ne.s32.totalorder %s216, %s218
    %p222 = scmp.eq.s32.totalorder %s20, 0
    %p223 = por %p221, %p222
    %p224 = scmp.ne.s32.totalorder %s216, %s218
    %p225 = scmp.eq.s32.totalorder %s25, 1
    %p226 = por %p224, %p225
    %p227 = scmp.ne.s32.totalorder %s218, %s219
    %p228 = scmp.eq.s32.totalorder %s25, 0
    %p229 = por %p227, %p228
    %p230 = scmp.ne.s32.totalorder %s218, %s219
    %p231 = scmp.eq.s32.totalorder %s26, 1
    %p232 = por %p230, %p231
    %p234 = scmp.ne.s32.totalorder %s219, %s233
    %p235 = scmp.eq.s32.totalorder %s26, 0
    %p236 = por %p234, %p235
    %s238 = sadd.s32 %s237, 1
    %p241 = scmp.eq.s32.totalorder %s20, 1
    %p242 = scmp.ne.s32.totalorder %s237, %s239
    %p243 = scmp.eq.s32.totalorder %s20, 0
    %p244 = por %p242, %p243
    %p245 = scmp.ne.s32.totalorder %s237, %s239
    %p246 = scmp.eq.s32.totalorder %s25, 1
    %p247 = por %p245, %p246
    %p248 = scmp.ne.s32.totalorder %s239, %s240
    %p249 = scmp.eq.s32.totalorder %s25, 0
    %p250 = por %p248, %p249
    %p251 = scmp.ne.s32.totalorder %s239, %s240
    %p252 = scmp.eq.s32.totalorder %s26, 1
    %p253 = por %p251, %p252
    %p255 = scmp.ne.s32.totalorder %s240, %s254
    %p256 = scmp.eq.s32.totalorder %s26, 0
    %p257 = por %p255, %p256
    %s259 = sadd.s32 %s258, 1
    %p262 = scmp.eq.s32.totalorder %s20, 1
    %p263 = scmp.ne.s32.totalorder %s258, %s260
    %p264 = scmp.eq.s32.totalorder %s20, 0
    %p265 = por %p263, %p264
    %p266 = scmp.ne.s32.totalorder %s258, %s260
    %p267 = scmp.eq.s32.totalorder %s25, 1
    %p268 = por %p266, %p267
    %p269 = scmp.ne.s32.totalorder %s260, %s261
    %p270 = scmp.eq.s32.totalorder %s25, 0
    %p271 = por %p269, %p270
    %p272 = scmp.ne.s32.totalorder %s260, %s261
    %p273 = scmp.eq.s32.totalorder %s26, 1
    %p274 = por %p272, %p273
    %p276 = scmp.ne.s32.totalorder %s261, %s275
    %p277 = scmp.eq.s32.totalorder %s26, 0
    %p278 = por %p276, %p277
    %s280 = sadd.s32 %s279, 1
    %p283 = scmp.eq.s32.totalorder %s20, 1
    %p284 = scmp.ne.s32.totalorder %s279, %s281
    %p285 = scmp.eq.s32.totalorder %s20, 0
    %p286 = por %p284, %p285
    %p287 = scmp.ne.s32.totalorder %s279, %s281
    %p288 = scmp.eq.s32.totalorder %s25, 1
    %p289 = por %p287, %p288
    %p290 = scmp.ne.s32.totalorder %s281, %s282
    %p291 = scmp.eq.s32.totalorder %s25, 0
    %p292 = por %p290, %p291
    %p293 = scmp.ne.s32.totalorder %s281, %s282
    %p294 = scmp.eq.s32.totalorder %s26, 1
    %p295 = por %p293, %p294
    %p297 = scmp.ne.s32.totalorder %s282, %s296
    %p298 = scmp.eq.s32.totalorder %s26, 0
    %p299 = por %p297, %p298
    %s301 = sadd.s32 %s300, 1
    %p304 = scmp.eq.s32.totalorder %s20, 1
    %p305 = scmp.ne.s32.totalorder %s300, %s302
    %p306 = scmp.eq.s32.totalorder %s20, 0
    %p307 = por %p305, %p306
    %p308 = scmp.ne.s32.totalorder %s300, %s302
    %p309 = scmp.eq.s32.totalorder %s25, 1
    %p310 = por %p308, %p309
    %p311 = scmp.ne.s32.totalorder %s302, %s303
    %p312 = scmp.eq.s32.totalorder %s25, 0
    %p313 = por %p311, %p312
    %p314 = scmp.ne.s32.totalorder %s302, %s303
    %p315 = scmp.eq.s32.totalorder %s26, 1
    %p316 = por %p314, %p315
    %p318 = scmp.ne.s32.totalorder %s303, %s317
    %p319 = scmp.eq.s32.totalorder %s26, 0
    %p320 = por %p318, %p319
    %s322 = sadd.s32 %s321, 1
    %p325 = scmp.eq.s32.totalorder %s20, 1
    %p326 = scmp.ne.s32.totalorder %s321, %s323
    %p327 = scmp.eq.s32.totalorder %s20, 0
    %p328 = por %p326, %p327
    %p329 = scmp.ne.s32.totalorder %s321, %s323
    %p330 = scmp.eq.s32.totalorder %s25, 1
    %p331 = por %p329, %p330
    %p332 = scmp.ne.s32.totalorder %s323, %s324
    %p333 = scmp.eq.s32.totalorder %s25, 0
    %p334 = por %p332, %p333
    %p335 = scmp.ne.s32.totalorder %s323, %s324
    %p336 = scmp.eq.s32.totalorder %s26, 1
    %p337 = por %p335, %p336
    %p339 = scmp.ne.s32.totalorder %s324, %s338
    %p340 = scmp.eq.s32.totalorder %s26, 0
    %p341 = por %p339, %p340
    %s342 = ssub.s32 %s20, %s27
    %p343 = scmp.eq.s32.totalorder %s342, 0
    %s345 = sadd.s32 %s344, 1
    %s346 = scalar_select %p343, %s344, %s345
    %p349 = pneg %p343
    %p350 = scmp.eq.s32.totalorder %s20, 1
    %p351 = por %p349, %p350
    %p352 = scmp.ne.s32.totalorder %s344, %s347
    %p353 = scmp.eq.s32.totalorder %s20, 0
    %p354 = por %p352, %p353
    %p355 = scmp.ne.s32.totalorder %s344, %s347
    %p356 = scmp.eq.s32.totalorder %s25, 1
    %p357 = por %p355, %p356
    %p358 = scmp.ne.s32.totalorder %s347, %s348
    %p359 = scmp.eq.s32.totalorder %s25, 0
    %p360 = por %p358, %p359
    %p361 = scmp.ne.s32.totalorder %s347, %s348
    %p362 = scmp.eq.s32.totalorder %s26, 1
    %p363 = por %p361, %p362
    %p365 = scmp.ne.s32.totalorder %s348, %s364
    %p366 = scmp.eq.s32.totalorder %s26, 0
    %p367 = por %p365, %p366
    %p368 = scmp.le.s32.totalorder 1, %s20
    %p369 = scmp.lt.s32.totalorder %s20, 3
    %p370 = pnand %p368, %p369
    %p371 = pneg %p370
    // Predicated region
    $region9: #{net_forward.1} parent=5 // pred_check
      _
    $region10: #{net_forward.1} parent=5 // pred_check_branch
      %373 = sbr.rel (%p370) target = $region12
    $region11: #{net_forward.1} parent=5 // pred_region
      %s374 = ssub.s32 %s20, 1
      // Predicated region
      $region13: #{net_forward.1} parent=11 // pred_check
        %p375 = pneg %p145
      $region14: #{net_forward.1} parent=11 // pred_check_branch
        %377 = sbr.rel (%p375) target = $region16
      $region15: #{net_forward.1} parent=11 // pred_region
        _
      $region16: #{net_forward.1} parent=11 // pred_fallthru
        _
      // Predicated region
      $region17: #{net_forward.1} parent=11 // pred_check
        %p378 = pneg %p166
      $region18: #{net_forward.1} parent=11 // pred_check_branch
        %380 = sbr.rel (%p378) target = $region20
      $region19: #{net_forward.1} parent=11 // pred_region
        _
      $region20: #{net_forward.1} parent=11 // pred_fallthru
        _
      // Predicated region
      $region21: #{net_forward.1} parent=11 // pred_check
        %p381 = pneg %p187
      $region22: #{net_forward.1} parent=11 // pred_check_branch
        %383 = sbr.rel (%p381) target = $region24
      $region23: #{net_forward.1} parent=11 // pred_region
        _
      $region24: #{net_forward.1} parent=11 // pred_fallthru
        _
      // Predicated region
      $region25: #{net_forward.1} parent=11 // pred_check
        %p384 = pneg %p208
      $region26: #{net_forward.1} parent=11 // pred_check_branch
        %386 = sbr.rel (%p384) target = $region28
      $region27: #{net_forward.1} parent=11 // pred_region
        _
      $region28: #{net_forward.1} parent=11 // pred_fallthru
        _
      // Predicated region
      $region29: #{net_forward.1} parent=11 // pred_check
        %p387 = pneg %p229
      $region30: #{net_forward.1} parent=11 // pred_check_branch
        %389 = sbr.rel (%p387) target = $region32
      $region31: #{net_forward.1} parent=11 // pred_region
        _
      $region32: #{net_forward.1} parent=11 // pred_fallthru
        _
      // Predicated region
      $region33: #{net_forward.1} parent=11 // pred_check
        %p390 = pneg %p250
      $region34: #{net_forward.1} parent=11 // pred_check_branch
        %392 = sbr.rel (%p390) target = $region36
      $region35: #{net_forward.1} parent=11 // pred_region
        _
      $region36: #{net_forward.1} parent=11 // pred_fallthru
        _
      // Predicated region
      $region37: #{net_forward.1} parent=11 // pred_check
        %p393 = pneg %p271
      $region38: #{net_forward.1} parent=11 // pred_check_branch
        %395 = sbr.rel (%p393) target = $region40
      $region39: #{net_forward.1} parent=11 // pred_region
        _
      $region40: #{net_forward.1} parent=11 // pred_fallthru
        _
      // Predicated region
      $region41: #{net_forward.1} parent=11 // pred_check
        %p396 = pneg %p292
      $region42: #{net_forward.1} parent=11 // pred_check_branch
        %398 = sbr.rel (%p396) target = $region44
      $region43: #{net_forward.1} parent=11 // pred_region
        _
      $region44: #{net_forward.1} parent=11 // pred_fallthru
        _
      // Predicated region
      $region45: #{net_forward.1} parent=11 // pred_check
        %p399 = pneg %p313
      $region46: #{net_forward.1} parent=11 // pred_check_branch
        %401 = sbr.rel (%p399) target = $region48
      $region47: #{net_forward.1} parent=11 // pred_region
        _
      $region48: #{net_forward.1} parent=11 // pred_fallthru
        _
      // Predicated region
      $region49: #{net_forward.1} parent=11 // pred_check
        %p402 = pneg %p334
      $region50: #{net_forward.1} parent=11 // pred_check_branch
        %404 = sbr.rel (%p402) target = $region52
      $region51: #{net_forward.1} parent=11 // pred_region
        _
      $region52: #{net_forward.1} parent=11 // pred_fallthru
        _
    $region12: #{net_forward.1} parent=5 // pred_fallthru
      _
    %p405 = scmp.lt.s32.totalorder %s20, 2
    // Predicated region
    $region53: #{net_forward.1} parent=5 // pred_check
      %p406 = pneg %p405
    $region54: #{net_forward.1} parent=5 // pred_check_branch
      %408 = sbr.rel (%p406) target = $region56
    $region55: #{net_forward.1} parent=5 // pred_region
      // Predicated region
      $region57: #{net_forward.1} parent=55 // pred_check
        %p409 = pneg %p40
      $region58: #{net_forward.1} parent=55 // pred_check_branch
        %411 = sbr.rel (%p409) target = $region60
      $region59: #{net_forward.1} parent=55 // pred_region
        %s412 = smul.u32 4, %s20
        %p413 = scmp.lt.s32.totalorder %s412, 7
        %s414 = scalar_select %p413, %s412, 7
        %s415 = smul.addr %s414, 6
        %s416 = smul.addr %s415, 8
        %s417 = scalar_lea.vmem %s0, %s416
        %s418 = smul.u32 4, %s20
      $region60: #{net_forward.1} parent=55 // pred_fallthru
        _
      // Predicated region
      $region61: #{net_forward.1} parent=55 // pred_check
        %p419 = pneg %p66
      $region62: #{net_forward.1} parent=55 // pred_check_branch
        %421 = sbr.rel (%p419) target = $region64
      $region63: #{net_forward.1} parent=55 // pred_region
        %s422 = smul.u32 4, %s20
        %p423 = scmp.lt.s32.totalorder %s422, 7
        %s424 = scalar_select %p423, %s422, 7
        %s425 = smul.addr %s424, 6
        %s426 = smul.addr %s425, 8
        %s427 = scalar_lea.vmem %s1, %s426
        %s428 = smul.u32 4, %s20
      $region64: #{net_forward.1} parent=55 // pred_fallthru
        _
      // Predicated region
      $region65: #{net_forward.1} parent=55 // pred_check
        %p429 = pneg %p92
      $region66: #{net_forward.1} parent=55 // pred_check_branch
        %431 = sbr.rel (%p429) target = $region68
      $region67: #{net_forward.1} parent=55 // pred_region
        %s432 = smul.u32 4, %s20
        %p433 = scmp.lt.s32.totalorder %s432, 7
        %s434 = scalar_select %p433, %s432, 7
        %s435 = smul.addr %s434, 3
        %s436 = smul.addr %s435, 8
        %s437 = scalar_lea.vmem %s2, %s436
        %s438 = smul.u32 4, %s20
      $region68: #{net_forward.1} parent=55 // pred_fallthru
        _
      // Predicated region
      $region69: #{net_forward.1} parent=55 // pred_check
        %p439 = pneg %p118
      $region70: #{net_forward.1} parent=55 // pred_check_branch
        %441 = sbr.rel (%p439) target = $region72
      $region71: #{net_forward.1} parent=55 // pred_region
        %s442 = smul.u32 4, %s20
        %p443 = scmp.lt.s32.totalorder %s442, 7
        %s444 = scalar_select %p443, %s442, 7
        %s445 = smul.addr %s444, 3
        %s446 = smul.addr %s445, 8
        %s447 = scalar_lea.vmem %s3, %s446
        %s448 = smul.u32 4, %s20
      $region72: #{net_forward.1} parent=55 // pred_fallthru
        _
    $region56: #{net_forward.1} parent=5 // pred_fallthru
      _
    %p449 = scmp.le.s32.totalorder 1, %s20
    %p450 = scmp.lt.s32.totalorder %s20, 3
    %p451 = pnand %p449, %p450
    %p452 = pneg %p451
    // Predicated region
    $region73: #{net_forward.1} parent=5 // pred_check
      _
    $region74: #{net_forward.1} parent=5 // pred_check_branch
      %454 = sbr.rel (%p451) target = $region76
    $region75: #{net_forward.1} parent=5 // pred_region
      %s455 = ssub.s32 %s20, 1
      %s456 = smul.u32 4, %s25
      %p457 = scmp.lt.s32.totalorder %s456, 7
      %s458 = scalar_select %p457, %s456, 7
      %s459 = smul.addr %s458, 6
      %s460 = smul.addr %s459, 8
      %s461 = scalar_lea.vmem %s0, %s460
      %p462 = pneg %p46
      %p463 = pneg %p43
      %s464 = smul.u32 4, %s25
      %p465 = scmp.lt.s32.totalorder %s464, 7
      %s466 = scalar_select %p465, %s464, 7
      %s467 = smul.addr %s466, 6
      %s468 = smul.addr %s467, 8
      %s469 = scalar_lea.vmem %s1, %s468
      %p470 = pneg %p72
      %p471 = pneg %p69
      %s472 = smul.u32 4, %s25
      %p473 = scmp.lt.s32.totalorder %s472, 7
      %s474 = scalar_select %p473, %s472, 7
      %s475 = smul.addr %s474, 3
      %s476 = smul.addr %s475, 8
      %s477 = scalar_lea.vmem %s2, %s476
      %p478 = pneg %p98
      %p479 = pneg %p95
      %s480 = smul.u32 4, %s25
      %p481 = scmp.lt.s32.totalorder %s480, 7
      %s482 = scalar_select %p481, %s480, 7
      %s483 = smul.addr %s482, 3
      %s484 = smul.addr %s483, 8
      %s485 = scalar_lea.vmem %s3, %s484
      %p486 = pneg %p124
      %p487 = pneg %p121
      %p488 = pneg %p145
      %p489 = pneg %p142
      %p490 = pneg %p166
      %p491 = pneg %p163
      %p492 = pneg %p187
      %p493 = pneg %p184
      %p494 = pneg %p208
      %p495 = pneg %p205
      %p496 = pneg %p229
      %p497 = pneg %p226
      %p498 = pneg %p250
      %p499 = pneg %p247
      %p500 = pneg %p271
      %p501 = pneg %p268
      %p502 = pneg %p292
      %p503 = pneg %p289
      %p504 = pneg %p313
      %p505 = pneg %p310
      %p506 = pneg %p334
      %p507 = pneg %p331
      %p508 = pneg %p360
      %p509 = pneg %p357
      %s510 = smul.u32 4, %s25
      %p511 = scmp.lt.s32.totalorder %s510, 7
      %s512 = scalar_select %p511, %s510, 7
      %s513 = scalar_lea.vmem %s14, %s512
      %s514 = smul.u32 4, %s25
      %p515 = scmp.lt.s32.totalorder %s514, 7
      %s516 = scalar_select %p515, %s514, 7
      %s517 = smul.addr %s516, 6
      %s518 = smul.addr %s517, 8
      %s519 = scalar_lea.vmem %s0, %s518
      %s520 = smul.u32 4, %s25
      %s521 = smul.u32 4, %s25
      %p522 = scmp.lt.s32.totalorder %s521, 7
      %s523 = scalar_select %p522, %s521, 7
      %s524 = smul.addr %s523, 6
      %s525 = smul.addr %s524, 8
      %s526 = scalar_lea.vmem %s1, %s525
      %s527 = smul.u32 4, %s25
      %s528 = smul.u32 4, %s25
      %p529 = scmp.lt.s32.totalorder %s528, 7
      %s530 = scalar_select %p529, %s528, 7
      %s531 = smul.addr %s530, 3
      %s532 = smul.addr %s531, 8
      %s533 = scalar_lea.vmem %s2, %s532
      %s534 = smul.u32 4, %s25
      %s535 = smul.u32 4, %s25
      %p536 = scmp.lt.s32.totalorder %s535, 7
      %s537 = scalar_select %p536, %s535, 7
      %s538 = smul.addr %s537, 3
      %s539 = smul.addr %s538, 8
      %s540 = scalar_lea.vmem %s3, %s539
      %s541 = smul.u32 4, %s25
      %s542 = smul.u32 4, %s25
      %p543 = scmp.lt.s32.totalorder %s542, 7
      %s544 = scalar_select %p543, %s542, 7
      %s545 = scalar_lea.vmem %s14, %s544
      %s546 = smul.u32 4, %s25
      %v547 = vld [vmem:[%s519] sm:$0xff]
      %v548 = vld [vmem:[%s519 + $0x8] sm:$0xff]
      %v549 = vld [vmem:[%s519 + $0x10] sm:$0xff]
      %v550 = vld [vmem:[%s519 + $0x18] sm:$0x1]
      %v551 = vld [vmem:[%s519 + $0x20] sm:$0x1]
      %v552 = vld [vmem:[%s519 + $0x28] sm:$0x1]
      %v553 = vld [vmem:[%s519 + $0x30] sm:$0xff]
      %v554 = vld [vmem:[%s519 + $0x38] sm:$0xff]
      %v555 = vld [vmem:[%s519 + $0x40] sm:$0xff]
      %v556 = vld [vmem:[%s519 + $0x48] sm:$0x1]
      %v557 = vld [vmem:[%s519 + $0x50] sm:$0x1]
      %v558 = vld [vmem:[%s519 + $0x58] sm:$0x1]
      %v559 = vld [vmem:[%s519 + $0x60] sm:$0xff]
      %v560 = vld [vmem:[%s519 + $0x68] sm:$0xff]
      %v561 = vld [vmem:[%s519 + $0x70] sm:$0xff]
      %v562 = vld [vmem:[%s519 + $0x78] sm:$0x1]
      %v563 = vld [vmem:[%s519 + $0x80] sm:$0x1]
      %v564 = vld [vmem:[%s519 + $0x88] sm:$0x1]
      %v565 = vld [vmem:[%s519 + $0x90] sm:$0xff]
      %v566 = vld [vmem:[%s519 + $0x98] sm:$0xff]
      %v567 = vld [vmem:[%s519 + $0xa0] sm:$0xff]
      %v568 = vld [vmem:[%s519 + $0xa8] sm:$0x1]
      %v569 = vld [vmem:[%s519 + $0xb0] sm:$0x1]
      %v570 = vld [vmem:[%s519 + $0xb8] sm:$0x1]
      %v571 = vld [vmem:[%s526] sm:$0xff]
      %v572 = vld [vmem:[%s526 + $0x8] sm:$0xff]
      %v573 = vld [vmem:[%s526 + $0x10] sm:$0xff]
      %v574 = vld [vmem:[%s526 + $0x18] sm:$0x1]
      %v575 = vld [vmem:[%s526 + $0x20] sm:$0x1]
      %v576 = vld [vmem:[%s526 + $0x28] sm:$0x1]
      %v577 = vld [vmem:[%s526 + $0x30] sm:$0xff]
      %v578 = vld [vmem:[%s526 + $0x38] sm:$0xff]
      %v579 = vld [vmem:[%s526 + $0x40] sm:$0xff]
      %v580 = vld [vmem:[%s526 + $0x48] sm:$0x1]
      %v581 = vld [vmem:[%s526 + $0x50] sm:$0x1]
      %v582 = vld [vmem:[%s526 + $0x58] sm:$0x1]
      %v583 = vld [vmem:[%s526 + $0x60] sm:$0xff]
      %v584 = vld [vmem:[%s526 + $0x68] sm:$0xff]
      %v585 = vld [vmem:[%s526 + $0x70] sm:$0xff]
      %v586 = vld [vmem:[%s526 + $0x78] sm:$0x1]
      %v587 = vld [vmem:[%s526 + $0x80] sm:$0x1]
      %v588 = vld [vmem:[%s526 + $0x88] sm:$0x1]
      %v589 = vld [vmem:[%s526 + $0x90] sm:$0xff]
      %v590 = vld [vmem:[%s526 + $0x98] sm:$0xff]
      %v591 = vld [vmem:[%s526 + $0xa0] sm:$0xff]
      %v592 = vld [vmem:[%s526 + $0xa8] sm:$0x1]
      %v593 = vld [vmem:[%s526 + $0xb0] sm:$0x1]
      %v594 = vld [vmem:[%s526 + $0xb8] sm:$0x1]
      %v595 = vld [vmem:[%s533] sm:$0xff]
      %v596 = vld [vmem:[%s533 + $0x8] sm:$0xff]
      %v597 = vld [vmem:[%s533 + $0x10] sm:$0xff]
      %v598 = vld [vmem:[%s533 + $0x18] sm:$0xff]
      %v599 = vld [vmem:[%s533 + $0x20] sm:$0xff]
      %v600 = vld [vmem:[%s533 + $0x28] sm:$0xff]
      %v601 = vld [vmem:[%s533 + $0x30] sm:$0xff]
      %v602 = vld [vmem:[%s533 + $0x38] sm:$0xff]
      %v603 = vld [vmem:[%s533 + $0x40] sm:$0xff]
      %v604 = vld [vmem:[%s533 + $0x48] sm:$0xff]
      %v605 = vld [vmem:[%s533 + $0x50] sm:$0xff]
      %v606 = vld [vmem:[%s533 + $0x58] sm:$0xff]
      %v607 = vld [vmem:[%s540] sm:$0xff]
      %v608 = vld [vmem:[%s540 + $0x8] sm:$0xff]
      %v609 = vld [vmem:[%s540 + $0x10] sm:$0xff]
      %v610 = vld [vmem:[%s540 + $0x18] sm:$0xff]
      %v611 = vld [vmem:[%s540 + $0x20] sm:$0xff]
      %v612 = vld [vmem:[%s540 + $0x28] sm:$0xff]
      %v613 = vld [vmem:[%s540 + $0x30] sm:$0xff]
      %v614 = vld [vmem:[%s540 + $0x38] sm:$0xff]
      %v615 = vld [vmem:[%s540 + $0x40] sm:$0xff]
      %v616 = vld [vmem:[%s540 + $0x48] sm:$0xff]
      %v617 = vld [vmem:[%s540 + $0x50] sm:$0xff]
      %v618 = vld [vmem:[%s540 + $0x58] sm:$0xff]
      %v619 = vld [vmem:[%s4] sm:$0x7f]
      %v620 = vld [vmem:[%s4 + $0x8] sm:$0x7f]
      %v621 = vld [vmem:[%s4 + $0x10] sm:$0x7f]
      %v622 = vld [vmem:[%s5] sm:$0x7]
      %v623 = vlaneseq
      %v624 = vshrl.u32 %v623, 7
      %v625 = vsub.s32 0, %v624
      %v626 = vrot.slane %v619, %v625
      %v627 = vlaneseq
      %v628 = vshrl.u32 %v627, 7
      %v629 = vsub.s32 0, %v628
      %v630 = vrot.slane %v620, %v629
      %v631 = vlaneseq
      %v632 = vshrl.u32 %v631, 7
      %v633 = vsub.s32 0, %v632
      %v634 = vrot.slane %v621, %v633
      %v635 = vmul.f32 %v547, %v626
      %v636 = vmul.f32 %v548, %v630
      %v637 = vmul.f32 %v549, %v634
      %v638 = vmul.f32 %v553, %v626
      %v639 = vmul.f32 %v554, %v630
      %v640 = vmul.f32 %v555, %v634
      %v641 = vmul.f32 %v559, %v626
      %v642 = vmul.f32 %v560, %v630
      %v643 = vmul.f32 %v561, %v634
      %v644 = vmul.f32 %v565, %v626
      %v645 = vmul.f32 %v566, %v630
      %v646 = vmul.f32 %v567, %v634
      %v647 = vlaneseq
      %v648 = vshrl.u32 %v647, 7
      %v649 = vsub.s32 1, %v648
      %v650 = vrot.slane %v619, %v649
      %v651 = vlaneseq
      %v652 = vshrl.u32 %v651, 7
      %v653 = vsub.s32 1, %v652
      %v654 = vrot.slane %v620, %v653
      %v655 = vlaneseq
      %v656 = vshrl.u32 %v655, 7
      %v657 = vsub.s32 1, %v656
      %v658 = vrot.slane %v621, %v657
      %v659 = vmul.f32 %v571, %v650
      %v660 = vmul.f32 %v572, %v654
      %v661 = vmul.f32 %v573, %v658
      %v662 = vmul.f32 %v577, %v650
      %v663 = vmul.f32 %v578, %v654
      %v664 = vmul.f32 %v579, %v658
      %v665 = vmul.f32 %v583, %v650
      %v666 = vmul.f32 %v584, %v654
      %v667 = vmul.f32 %v585, %v658
      %v668 = vmul.f32 %v589, %v650
      %v669 = vmul.f32 %v590, %v654
      %v670 = vmul.f32 %v591, %v658
      %v671 = vadd.f32 %v635, %v659
      %v672 = vadd.f32 %v636, %v660
      %v673 = vadd.f32 %v637, %v661
      %v674 = vadd.f32 %v638, %v662
      %v675 = vadd.f32 %v639, %v663
      %v676 = vadd.f32 %v640, %v664
      %v677 = vadd.f32 %v641, %v665
      %v678 = vadd.f32 %v642, %v666
      %v679 = vadd.f32 %v643, %v667
      %v680 = vadd.f32 %v644, %v668
      %v681 = vadd.f32 %v645, %v669
      %v682 = vadd.f32 %v646, %v670
      %v683 = vlaneseq
      %v684 = vshrl.u32 %v683, 7
      %v685 = vsub.s32 2, %v684
      %v686 = vrot.slane %v619, %v685
      %v687 = vlaneseq
      %v688 = vshrl.u32 %v687, 7
      %v689 = vsub.s32 2, %v688
      %v690 = vrot.slane %v620, %v689
      %v691 = vlaneseq
      %v692 = vshrl.u32 %v691, 7
      %v693 = vsub.s32 2, %v692
      %v694 = vrot.slane %v621, %v693
      %v695 = vmul.f32 %v595, %v686
      %v696 = vmul.f32 %v596, %v690
      %v697 = vmul.f32 %v597, %v694
      %v698 = vmul.f32 %v598, %v686
      %v699 = vmul.f32 %v599, %v690
      %v700 = vmul.f32 %v600, %v694
      %v701 = vmul.f32 %v601, %v686
      %v702 = vmul.f32 %v602, %v690
      %v703 = vmul.f32 %v603, %v694
      %v704 = vmul.f32 %v604, %v686
      %v705 = vmul.f32 %v605, %v690
      %v706 = vmul.f32 %v606, %v694
      %v707 = vadd.f32 %v671, %v695
      %v708 = vadd.f32 %v672, %v696
      %v709 = vadd.f32 %v673, %v697
      %v710 = vadd.f32 %v674, %v698
      %v711 = vadd.f32 %v675, %v699
      %v712 = vadd.f32 %v676, %v700
      %v713 = vadd.f32 %v677, %v701
      %v714 = vadd.f32 %v678, %v702
      %v715 = vadd.f32 %v679, %v703
      %v716 = vadd.f32 %v680, %v704
      %v717 = vadd.f32 %v681, %v705
      %v718 = vadd.f32 %v682, %v706
      %v719 = vlaneseq
      %v720 = vshrl.u32 %v719, 7
      %v721 = vsub.s32 3, %v720
      %v722 = vrot.slane %v619, %v721
      %v723 = vlaneseq
      %v724 = vshrl.u32 %v723, 7
      %v725 = vsub.s32 3, %v724
      %v726 = vrot.slane %v620, %v725
      %v727 = vlaneseq
      %v728 = vshrl.u32 %v727, 7
      %v729 = vsub.s32 3, %v728
      %v730 = vrot.slane %v621, %v729
      %v731 = vmul.f32 %v607, %v722
      %v732 = vmul.f32 %v608, %v726
      %v733 = vmul.f32 %v609, %v730
      %v734 = vmul.f32 %v610, %v722
      %v735 = vmul.f32 %v611, %v726
      %v736 = vmul.f32 %v612, %v730
      %v737 = vmul.f32 %v613, %v722
      %v738 = vmul.f32 %v614, %v726
      %v739 = vmul.f32 %v615, %v730
      %v740 = vmul.f32 %v616, %v722
      %v741 = vmul.f32 %v617, %v726
      %v742 = vmul.f32 %v618, %v730
      %v743 = vadd.f32 %v707, %v731
      %v744 = vadd.f32 %v708, %v732
      %v745 = vadd.f32 %v709, %v733
      %v746 = vadd.f32 %v710, %v734
      %v747 = vadd.f32 %v711, %v735
      %v748 = vadd.f32 %v712, %v736
      %v749 = vadd.f32 %v713, %v737
      %v750 = vadd.f32 %v714, %v738
      %v751 = vadd.f32 %v715, %v739
      %v752 = vadd.f32 %v716, %v740
      %v753 = vadd.f32 %v717, %v741
      %v754 = vadd.f32 %v718, %v742
      %v755 = vlaneseq
      %v756 = vshrl.u32 %v755, 7
      %v757 = vsub.s32 4, %v756
      %v758 = vrot.slane %v619, %v757
      %v759 = vlaneseq
      %v760 = vshrl.u32 %v759, 7
      %v761 = vsub.s32 4, %v760
      %v762 = vrot.slane %v620, %v761
      %v763 = vlaneseq
      %v764 = vshrl.u32 %v763, 7
      %v765 = vsub.s32 4, %v764
      %v766 = vrot.slane %v621, %v765
      %v767 = vmul.f32 %v547, %v758
      %v768 = vmul.f32 %v548, %v762
      %v769 = vmul.f32 %v549, %v766
      %v770 = vmul.f32 %v553, %v758
      %v771 = vmul.f32 %v554, %v762
      %v772 = vmul.f32 %v555, %v766
      %v773 = vmul.f32 %v559, %v758
      %v774 = vmul.f32 %v560, %v762
      %v775 = vmul.f32 %v561, %v766
      %v776 = vmul.f32 %v565, %v758
      %v777 = vmul.f32 %v566, %v762
      %v778 = vmul.f32 %v567, %v766
      %v791 = vrot.slane %v767, 1
      %v792 = vrot.slane %v768, 1
      %v793 = vrot.slane %v769, 1
      %v794 = vrot.slane %v770, 1
      %v795 = vrot.slane %v771, 1
      %v796 = vrot.slane %v772, 1
      %v797 = vrot.slane %v773, 1
      %v798 = vrot.slane %v774, 1
      %v799 = vrot.slane %v775, 1
      %v800 = vrot.slane %v776, 1
      %v801 = vrot.slane %v777, 1
      %v802 = vrot.slane %v778, 1
      %v815 = vadd.f32 %v743, %v791
      %v816 = vadd.f32 %v744, %v792
      %v817 = vadd.f32 %v745, %v793
      %v818 = vadd.f32 %v746, %v794
      %v819 = vadd.f32 %v747, %v795
      %v820 = vadd.f32 %v748, %v796
      %v821 = vadd.f32 %v749, %v797
      %v822 = vadd.f32 %v750, %v798
      %v823 = vadd.f32 %v751, %v799
      %v824 = vadd.f32 %v752, %v800
      %v825 = vadd.f32 %v753, %v801
      %v826 = vadd.f32 %v754, %v802
      %v827 = vlaneseq
      %v828 = vshrl.u32 %v827, 7
      %v829 = vsub.s32 5, %v828
      %v830 = vrot.slane %v619, %v829
      %v831 = vlaneseq
      %v832 = vshrl.u32 %v831, 7
      %v833 = vsub.s32 5, %v832
      %v834 = vrot.slane %v620, %v833
      %v835 = vlaneseq
      %v836 = vshrl.u32 %v835, 7
      %v837 = vsub.s32 5, %v836
      %v838 = vrot.slane %v621, %v837
      %v839 = vmul.f32 %v571, %v830
      %v840 = vmul.f32 %v572, %v834
      %v841 = vmul.f32 %v573, %v838
      %v842 = vmul.f32 %v577, %v830
      %v843 = vmul.f32 %v578, %v834
      %v844 = vmul.f32 %v579, %v838
      %v845 = vmul.f32 %v583, %v830
      %v846 = vmul.f32 %v584, %v834
      %v847 = vmul.f32 %v585, %v838
      %v848 = vmul.f32 %v589, %v830
      %v849 = vmul.f32 %v590, %v834
      %v850 = vmul.f32 %v591, %v838
      %v863 = vrot.slane %v839, 1
      %v864 = vrot.slane %v840, 1
      %v865 = vrot.slane %v841, 1
      %v866 = vrot.slane %v842, 1
      %v867 = vrot.slane %v843, 1
      %v868 = vrot.slane %v844, 1
      %v869 = vrot.slane %v845, 1
      %v870 = vrot.slane %v846, 1
      %v871 = vrot.slane %v847, 1
      %v872 = vrot.slane %v848, 1
      %v873 = vrot.slane %v849, 1
      %v874 = vrot.slane %v850, 1
      %v887 = vadd.f32 %v815, %v863
      %v888 = vadd.f32 %v816, %v864
      %v889 = vadd.f32 %v817, %v865
      %v890 = vadd.f32 %v818, %v866
      %v891 = vadd.f32 %v819, %v867
      %v892 = vadd.f32 %v820, %v868
      %v893 = vadd.f32 %v821, %v869
      %v894 = vadd.f32 %v822, %v870
      %v895 = vadd.f32 %v823, %v871
      %v896 = vadd.f32 %v824, %v872
      %v897 = vadd.f32 %v825, %v873
      %v898 = vadd.f32 %v826, %v874
      %v899 = vlaneseq
      %v900 = vshrl.u32 %v899, 7
      %v901 = vsub.s32 6, %v900
      %v902 = vrot.slane %v619, %v901
      %v903 = vlaneseq
      %v904 = vshrl.u32 %v903, 7
      %v905 = vsub.s32 6, %v904
      %v906 = vrot.slane %v620, %v905
      %v907 = vlaneseq
      %v908 = vshrl.u32 %v907, 7
      %v909 = vsub.s32 6, %v908
      %v910 = vrot.slane %v621, %v909
      %v911 = vmul.f32 %v595, %v902
      %v912 = vmul.f32 %v596, %v906
      %v913 = vmul.f32 %v597, %v910
      %v914 = vmul.f32 %v598, %v902
      %v915 = vmul.f32 %v599, %v906
      %v916 = vmul.f32 %v600, %v910
      %v917 = vmul.f32 %v601, %v902
      %v918 = vmul.f32 %v602, %v906
      %v919 = vmul.f32 %v603, %v910
      %v920 = vmul.f32 %v604, %v902
      %v921 = vmul.f32 %v605, %v906
      %v922 = vmul.f32 %v606, %v910
      %v935 = vrot.slane %v911, 1
      %v936 = vrot.slane %v912, 1
      %v937 = vrot.slane %v913, 1
      %v938 = vrot.slane %v914, 1
      %v939 = vrot.slane %v915, 1
      %v940 = vrot.slane %v916, 1
      %v941 = vrot.slane %v917, 1
      %v942 = vrot.slane %v918, 1
      %v943 = vrot.slane %v919, 1
      %v944 = vrot.slane %v920, 1
      %v945 = vrot.slane %v921, 1
      %v946 = vrot.slane %v922, 1
      %v959 = vadd.f32 %v887, %v935
      %v960 = vadd.f32 %v888, %v936
      %v961 = vadd.f32 %v889, %v937
      %v962 = vadd.f32 %v890, %v938
      %v963 = vadd.f32 %v891, %v939
      %v964 = vadd.f32 %v892, %v940
      %v965 = vadd.f32 %v893, %v941
      %v966 = vadd.f32 %v894, %v942
      %v967 = vadd.f32 %v895, %v943
      %v968 = vadd.f32 %v896, %v944
      %v969 = vadd.f32 %v897, %v945
      %v970 = vadd.f32 %v898, %v946
      %v971 = vmul.f32 %v571, %v626
      %v972 = vmul.f32 %v572, %v630
      %v973 = vmul.f32 %v573, %v634
      %v974 = vmul.f32 %v577, %v626
      %v975 = vmul.f32 %v578, %v630
      %v976 = vmul.f32 %v579, %v634
      %v977 = vmul.f32 %v583, %v626
      %v978 = vmul.f32 %v584, %v630
      %v979 = vmul.f32 %v585, %v634
      %v980 = vmul.f32 %v589, %v626
      %v981 = vmul.f32 %v590, %v630
      %v982 = vmul.f32 %v591, %v634
      %v983 = vmul.f32 %v595, %v650
      %v984 = vmul.f32 %v596, %v654
      %v985 = vmul.f32 %v597, %v658
      %v986 = vmul.f32 %v598, %v650
      %v987 = vmul.f32 %v599, %v654
      %v988 = vmul.f32 %v600, %v658
      %v989 = vmul.f32 %v601, %v650
      %v990 = vmul.f32 %v602, %v654
      %v991 = vmul.f32 %v603, %v658
      %v992 = vmul.f32 %v604, %v650
      %v993 = vmul.f32 %v605, %v654
      %v994 = vmul.f32 %v606, %v658
      %v995 = vadd.f32 %v971, %v983
      %v996 = vadd.f32 %v972, %v984
      %v997 = vadd.f32 %v973, %v985
      %v998 = vadd.f32 %v974, %v986
      %v999 = vadd.f32 %v975, %v987
      %v1000 = vadd.f32 %v976, %v988
      %v1001 = vadd.f32 %v977, %v989
      %v1002 = vadd.f32 %v978, %v990
      %v1003 = vadd.f32 %v979, %v991
      %v1004 = vadd.f32 %v980, %v992
      %v1005 = vadd.f32 %v981, %v993
      %v1006 = vadd.f32 %v982, %v994
      %v1007 = vmul.f32 %v607, %v686
      %v1008 = vmul.f32 %v608, %v690
      %v1009 = vmul.f32 %v609, %v694
      %v1010 = vmul.f32 %v610, %v686
      %v1011 = vmul.f32 %v611, %v690
      %v1012 = vmul.f32 %v612, %v694
      %v1013 = vmul.f32 %v613, %v686
      %v1014 = vmul.f32 %v614, %v690
      %v1015 = vmul.f32 %v615, %v694
      %v1016 = vmul.f32 %v616, %v686
      %v1017 = vmul.f32 %v617, %v690
      %v1018 = vmul.f32 %v618, %v694
      %v1019 = vadd.f32 %v995, %v1007
      %v1020 = vadd.f32 %v996, %v1008
      %v1021 = vadd.f32 %v997, %v1009
      %v1022 = vadd.f32 %v998, %v1010
      %v1023 = vadd.f32 %v999, %v1011
      %v1024 = vadd.f32 %v1000, %v1012
      %v1025 = vadd.f32 %v1001, %v1013
      %v1026 = vadd.f32 %v1002, %v1014
      %v1027 = vadd.f32 %v1003, %v1015
      %v1028 = vadd.f32 %v1004, %v1016
      %v1029 = vadd.f32 %v1005, %v1017
      %v1030 = vadd.f32 %v1006, %v1018
      %v1031 = vmul.f32 %v547, %v722
      %v1032 = vmul.f32 %v548, %v726
      %v1033 = vmul.f32 %v549, %v730
      %v1034 = vmul.f32 %v553, %v722
      %v1035 = vmul.f32 %v554, %v726
      %v1036 = vmul.f32 %v555, %v730
      %v1037 = vmul.f32 %v559, %v722
      %v1038 = vmul.f32 %v560, %v726
      %v1039 = vmul.f32 %v561, %v730
      %v1040 = vmul.f32 %v565, %v722
      %v1041 = vmul.f32 %v566, %v726
      %v1042 = vmul.f32 %v567, %v730
      %v1055 = vrot.slane %v1031, 1
      %v1056 = vrot.slane %v1032, 1
      %v1057 = vrot.slane %v1033, 1
      %v1058 = vrot.slane %v1034, 1
      %v1059 = vrot.slane %v1035, 1
      %v1060 = vrot.slane %v1036, 1
      %v1061 = vrot.slane %v1037, 1
      %v1062 = vrot.slane %v1038, 1
      %v1063 = vrot.slane %v1039, 1
      %v1064 = vrot.slane %v1040, 1
      %v1065 = vrot.slane %v1041, 1
      %v1066 = vrot.slane %v1042, 1
      %v1079 = vadd.f32 %v1019, %v1055
      %v1080 = vadd.f32 %v1020, %v1056
      %v1081 = vadd.f32 %v1021, %v1057
      %v1082 = vadd.f32 %v1022, %v1058
      %v1083 = vadd.f32 %v1023, %v1059
      %v1084 = vadd.f32 %v1024, %v1060
      %v1085 = vadd.f32 %v1025, %v1061
      %v1086 = vadd.f32 %v1026, %v1062
      %v1087 = vadd.f32 %v1027, %v1063
      %v1088 = vadd.f32 %v1028, %v1064
      %v1089 = vadd.f32 %v1029, %v1065
      %v1090 = vadd.f32 %v1030, %v1066
      %v1091 = vmul.f32 %v571, %v758
      %v1092 = vmul.f32 %v572, %v762
      %v1093 = vmul.f32 %v573, %v766
      %v1094 = vmul.f32 %v577, %v758
      %v1095 = vmul.f32 %v578, %v762
      %v1096 = vmul.f32 %v579, %v766
      %v1097 = vmul.f32 %v583, %v758
      %v1098 = vmul.f32 %v584, %v762
      %v1099 = vmul.f32 %v585, %v766
      %v1100 = vmul.f32 %v589, %v758
      %v1101 = vmul.f32 %v590, %v762
      %v1102 = vmul.f32 %v591, %v766
      %v1115 = vrot.slane %v1091, 1
      %v1116 = vrot.slane %v1092, 1
      %v1117 = vrot.slane %v1093, 1
      %v1118 = vrot.slane %v1094, 1
      %v1119 = vrot.slane %v1095, 1
      %v1120 = vrot.slane %v1096, 1
      %v1121 = vrot.slane %v1097, 1
      %v1122 = vrot.slane %v1098, 1
      %v1123 = vrot.slane %v1099, 1
      %v1124 = vrot.slane %v1100, 1
      %v1125 = vrot.slane %v1101, 1
      %v1126 = vrot.slane %v1102, 1
      %v1139 = vadd.f32 %v1079, %v1115
      %v1140 = vadd.f32 %v1080, %v1116
      %v1141 = vadd.f32 %v1081, %v1117
      %v1142 = vadd.f32 %v1082, %v1118
      %v1143 = vadd.f32 %v1083, %v1119
      %v1144 = vadd.f32 %v1084, %v1120
      %v1145 = vadd.f32 %v1085, %v1121
      %v1146 = vadd.f32 %v1086, %v1122
      %v1147 = vadd.f32 %v1087, %v1123
      %v1148 = vadd.f32 %v1088, %v1124
      %v1149 = vadd.f32 %v1089, %v1125
      %v1150 = vadd.f32 %v1090, %v1126
      %v1151 = vmul.f32 %v595, %v830
      %v1152 = vmul.f32 %v596, %v834
      %v1153 = vmul.f32 %v597, %v838
      %v1154 = vmul.f32 %v598, %v830
      %v1155 = vmul.f32 %v599, %v834
      %v1156 = vmul.f32 %v600, %v838
      %v1157 = vmul.f32 %v601, %v830
      %v1158 = vmul.f32 %v602, %v834
      %v1159 = vmul.f32 %v603, %v838
      %v1160 = vmul.f32 %v604, %v830
      %v1161 = vmul.f32 %v605, %v834
      %v1162 = vmul.f32 %v606, %v838
      %v1175 = vrot.slane %v1151, 1
      %v1176 = vrot.slane %v1152, 1
      %v1177 = vrot.slane %v1153, 1
      %v1178 = vrot.slane %v1154, 1
      %v1179 = vrot.slane %v1155, 1
      %v1180 = vrot.slane %v1156, 1
      %v1181 = vrot.slane %v1157, 1
      %v1182 = vrot.slane %v1158, 1
      %v1183 = vrot.slane %v1159, 1
      %v1184 = vrot.slane %v1160, 1
      %v1185 = vrot.slane %v1161, 1
      %v1186 = vrot.slane %v1162, 1
      %v1199 = vadd.f32 %v1139, %v1175
      %v1200 = vadd.f32 %v1140, %v1176
      %v1201 = vadd.f32 %v1141, %v1177
      %v1202 = vadd.f32 %v1142, %v1178
      %v1203 = vadd.f32 %v1143, %v1179
      %v1204 = vadd.f32 %v1144, %v1180
      %v1205 = vadd.f32 %v1145, %v1181
      %v1206 = vadd.f32 %v1146, %v1182
      %v1207 = vadd.f32 %v1147, %v1183
      %v1208 = vadd.f32 %v1148, %v1184
      %v1209 = vadd.f32 %v1149, %v1185
      %v1210 = vadd.f32 %v1150, %v1186
      %v1211 = vmul.f32 %v607, %v902
      %v1212 = vmul.f32 %v608, %v906
      %v1213 = vmul.f32 %v609, %v910
      %v1214 = vmul.f32 %v610, %v902
      %v1215 = vmul.f32 %v611, %v906
      %v1216 = vmul.f32 %v612, %v910
      %v1217 = vmul.f32 %v613, %v902
      %v1218 = vmul.f32 %v614, %v906
      %v1219 = vmul.f32 %v615, %v910
      %v1220 = vmul.f32 %v616, %v902
      %v1221 = vmul.f32 %v617, %v906
      %v1222 = vmul.f32 %v618, %v910
      %v1235 = vrot.slane %v1211, 1
      %v1236 = vrot.slane %v1212, 1
      %v1237 = vrot.slane %v1213, 1
      %v1238 = vrot.slane %v1214, 1
      %v1239 = vrot.slane %v1215, 1
      %v1240 = vrot.slane %v1216, 1
      %v1241 = vrot.slane %v1217, 1
      %v1242 = vrot.slane %v1218, 1
      %v1243 = vrot.slane %v1219, 1
      %v1244 = vrot.slane %v1220, 1
      %v1245 = vrot.slane %v1221, 1
      %v1246 = vrot.slane %v1222, 1
      %v1259 = vadd.f32 %v1199, %v1235
      %v1260 = vadd.f32 %v1200, %v1236
      %v1261 = vadd.f32 %v1201, %v1237
      %v1262 = vadd.f32 %v1202, %v1238
      %v1263 = vadd.f32 %v1203, %v1239
      %v1264 = vadd.f32 %v1204, %v1240
      %v1265 = vadd.f32 %v1205, %v1241
      %v1266 = vadd.f32 %v1206, %v1242
      %v1267 = vadd.f32 %v1207, %v1243
      %v1268 = vadd.f32 %v1208, %v1244
      %v1269 = vadd.f32 %v1209, %v1245
      %v1270 = vadd.f32 %v1210, %v1246
      %v1271 = vmul.f32 %v595, %v626
      %v1272 = vmul.f32 %v596, %v630
      %v1273 = vmul.f32 %v597, %v634
      %v1274 = vmul.f32 %v598, %v626
      %v1275 = vmul.f32 %v599, %v630
      %v1276 = vmul.f32 %v600, %v634
      %v1277 = vmul.f32 %v601, %v626
      %v1278 = vmul.f32 %v602, %v630
      %v1279 = vmul.f32 %v603, %v634
      %v1280 = vmul.f32 %v604, %v626
      %v1281 = vmul.f32 %v605, %v630
      %v1282 = vmul.f32 %v606, %v634
      %v1283 = vmul.f32 %v607, %v650
      %v1284 = vmul.f32 %v608, %v654
      %v1285 = vmul.f32 %v609, %v658
      %v1286 = vmul.f32 %v610, %v650
      %v1287 = vmul.f32 %v611, %v654
      %v1288 = vmul.f32 %v612, %v658
      %v1289 = vmul.f32 %v613, %v650
      %v1290 = vmul.f32 %v614, %v654
      %v1291 = vmul.f32 %v615, %v658
      %v1292 = vmul.f32 %v616, %v650
      %v1293 = vmul.f32 %v617, %v654
      %v1294 = vmul.f32 %v618, %v658
      %v1295 = vadd.f32 %v1271, %v1283
      %v1296 = vadd.f32 %v1272, %v1284
      %v1297 = vadd.f32 %v1273, %v1285
      %v1298 = vadd.f32 %v1274, %v1286
      %v1299 = vadd.f32 %v1275, %v1287
      %v1300 = vadd.f32 %v1276, %v1288
      %v1301 = vadd.f32 %v1277, %v1289
      %v1302 = vadd.f32 %v1278, %v1290
      %v1303 = vadd.f32 %v1279, %v1291
      %v1304 = vadd.f32 %v1280, %v1292
      %v1305 = vadd.f32 %v1281, %v1293
      %v1306 = vadd.f32 %v1282, %v1294
      %v1307 = vmul.f32 %v547, %v686
      %v1308 = vmul.f32 %v548, %v690
      %v1309 = vmul.f32 %v549, %v694
      %v1310 = vmul.f32 %v553, %v686
      %v1311 = vmul.f32 %v554, %v690
      %v1312 = vmul.f32 %v555, %v694
      %v1313 = vmul.f32 %v559, %v686
      %v1314 = vmul.f32 %v560, %v690
      %v1315 = vmul.f32 %v561, %v694
      %v1316 = vmul.f32 %v565, %v686
      %v1317 = vmul.f32 %v566, %v690
      %v1318 = vmul.f32 %v567, %v694
      %v1331 = vrot.slane %v1307, 1
      %v1332 = vrot.slane %v1308, 1
      %v1333 = vrot.slane %v1309, 1
      %v1334 = vrot.slane %v1310, 1
      %v1335 = vrot.slane %v1311, 1
      %v1336 = vrot.slane %v1312, 1
      %v1337 = vrot.slane %v1313, 1
      %v1338 = vrot.slane %v1314, 1
      %v1339 = vrot.slane %v1315, 1
      %v1340 = vrot.slane %v1316, 1
      %v1341 = vrot.slane %v1317, 1
      %v1342 = vrot.slane %v1318, 1
      %v1355 = vadd.f32 %v1295, %v1331
      %v1356 = vadd.f32 %v1296, %v1332
      %v1357 = vadd.f32 %v1297, %v1333
      %v1358 = vadd.f32 %v1298, %v1334
      %v1359 = vadd.f32 %v1299, %v1335
      %v1360 = vadd.f32 %v1300, %v1336
      %v1361 = vadd.f32 %v1301, %v1337
      %v1362 = vadd.f32 %v1302, %v1338
      %v1363 = vadd.f32 %v1303, %v1339
      %v1364 = vadd.f32 %v1304, %v1340
      %v1365 = vadd.f32 %v1305, %v1341
      %v1366 = vadd.f32 %v1306, %v1342
      %v1367 = vmul.f32 %v571, %v722
      %v1368 = vmul.f32 %v572, %v726
      %v1369 = vmul.f32 %v573, %v730
      %v1370 = vmul.f32 %v577, %v722
      %v1371 = vmul.f32 %v578, %v726
      %v1372 = vmul.f32 %v579, %v730
      %v1373 = vmul.f32 %v583, %v722
      %v1374 = vmul.f32 %v584, %v726
      %v1375 = vmul.f32 %v585, %v730
      %v1376 = vmul.f32 %v589, %v722
      %v1377 = vmul.f32 %v590, %v726
      %v1378 = vmul.f32 %v591, %v730
      %v1391 = vrot.slane %v1367, 1
      %v1392 = vrot.slane %v1368, 1
      %v1393 = vrot.slane %v1369, 1
      %v1394 = vrot.slane %v1370, 1
      %v1395 = vrot.slane %v1371, 1
      %v1396 = vrot.slane %v1372, 1
      %v1397 = vrot.slane %v1373, 1
      %v1398 = vrot.slane %v1374, 1
      %v1399 = vrot.slane %v1375, 1
      %v1400 = vrot.slane %v1376, 1
      %v1401 = vrot.slane %v1377, 1
      %v1402 = vrot.slane %v1378, 1
      %v1415 = vadd.f32 %v1355, %v1391
      %v1416 = vadd.f32 %v1356, %v1392
      %v1417 = vadd.f32 %v1357, %v1393
      %v1418 = vadd.f32 %v1358, %v1394
      %v1419 = vadd.f32 %v1359, %v1395
      %v1420 = vadd.f32 %v1360, %v1396
      %v1421 = vadd.f32 %v1361, %v1397
      %v1422 = vadd.f32 %v1362, %v1398
      %v1423 = vadd.f32 %v1363, %v1399
      %v1424 = vadd.f32 %v1364, %v1400
      %v1425 = vadd.f32 %v1365, %v1401
      %v1426 = vadd.f32 %v1366, %v1402
      %v1427 = vmul.f32 %v595, %v758
      %v1428 = vmul.f32 %v596, %v762
      %v1429 = vmul.f32 %v597, %v766
      %v1430 = vmul.f32 %v598, %v758
      %v1431 = vmul.f32 %v599, %v762
      %v1432 = vmul.f32 %v600, %v766
      %v1433 = vmul.f32 %v601, %v758
      %v1434 = vmul.f32 %v602, %v762
      %v1435 = vmul.f32 %v603, %v766
      %v1436 = vmul.f32 %v604, %v758
      %v1437 = vmul.f32 %v605, %v762
      %v1438 = vmul.f32 %v606, %v766
      %v1451 = vrot.slane %v1427, 1
      %v1452 = vrot.slane %v1428, 1
      %v1453 = vrot.slane %v1429, 1
      %v1454 = vrot.slane %v1430, 1
      %v1455 = vrot.slane %v1431, 1
      %v1456 = vrot.slane %v1432, 1
      %v1457 = vrot.slane %v1433, 1
      %v1458 = vrot.slane %v1434, 1
      %v1459 = vrot.slane %v1435, 1
      %v1460 = vrot.slane %v1436, 1
      %v1461 = vrot.slane %v1437, 1
      %v1462 = vrot.slane %v1438, 1
      %v1475 = vadd.f32 %v1415, %v1451
      %v1476 = vadd.f32 %v1416, %v1452
      %v1477 = vadd.f32 %v1417, %v1453
      %v1478 = vadd.f32 %v1418, %v1454
      %v1479 = vadd.f32 %v1419, %v1455
      %v1480 = vadd.f32 %v1420, %v1456
      %v1481 = vadd.f32 %v1421, %v1457
      %v1482 = vadd.f32 %v1422, %v1458
      %v1483 = vadd.f32 %v1423, %v1459
      %v1484 = vadd.f32 %v1424, %v1460
      %v1485 = vadd.f32 %v1425, %v1461
      %v1486 = vadd.f32 %v1426, %v1462
      %v1487 = vmul.f32 %v607, %v830
      %v1488 = vmul.f32 %v608, %v834
      %v1489 = vmul.f32 %v609, %v838
      %v1490 = vmul.f32 %v610, %v830
      %v1491 = vmul.f32 %v611, %v834
      %v1492 = vmul.f32 %v612, %v838
      %v1493 = vmul.f32 %v613, %v830
      %v1494 = vmul.f32 %v614, %v834
      %v1495 = vmul.f32 %v615, %v838
      %v1496 = vmul.f32 %v616, %v830
      %v1497 = vmul.f32 %v617, %v834
      %v1498 = vmul.f32 %v618, %v838
      %v1511 = vrot.slane %v1487, 1
      %v1512 = vrot.slane %v1488, 1
      %v1513 = vrot.slane %v1489, 1
      %v1514 = vrot.slane %v1490, 1
      %v1515 = vrot.slane %v1491, 1
      %v1516 = vrot.slane %v1492, 1
      %v1517 = vrot.slane %v1493, 1
      %v1518 = vrot.slane %v1494, 1
      %v1519 = vrot.slane %v1495, 1
      %v1520 = vrot.slane %v1496, 1
      %v1521 = vrot.slane %v1497, 1
      %v1522 = vrot.slane %v1498, 1
      %v1535 = vadd.f32 %v1475, %v1511
      %v1536 = vadd.f32 %v1476, %v1512
      %v1537 = vadd.f32 %v1477, %v1513
      %v1538 = vadd.f32 %v1478, %v1514
      %v1539 = vadd.f32 %v1479, %v1515
      %v1540 = vadd.f32 %v1480, %v1516
      %v1541 = vadd.f32 %v1481, %v1517
      %v1542 = vadd.f32 %v1482, %v1518
      %v1543 = vadd.f32 %v1483, %v1519
      %v1544 = vadd.f32 %v1484, %v1520
      %v1545 = vadd.f32 %v1485, %v1521
      %v1546 = vadd.f32 %v1486, %v1522
      %v1547 = vmul.f32 %v547, %v902
      %v1548 = vmul.f32 %v548, %v906
      %v1549 = vmul.f32 %v549, %v910
      %v1550 = vmul.f32 %v550, %v902
      %v1551 = vmul.f32 %v551, %v906
      %v1552 = vmul.f32 %v552, %v910
      %v1553 = vmul.f32 %v553, %v902
      %v1554 = vmul.f32 %v554, %v906
      %v1555 = vmul.f32 %v555, %v910
      %v1556 = vmul.f32 %v556, %v902
      %v1557 = vmul.f32 %v557, %v906
      %v1558 = vmul.f32 %v558, %v910
      %v1559 = vmul.f32 %v559, %v902
      %v1560 = vmul.f32 %v560, %v906
      %v1561 = vmul.f32 %v561, %v910
      %v1562 = vmul.f32 %v562, %v902
      %v1563 = vmul.f32 %v563, %v906
      %v1564 = vmul.f32 %v564, %v910
      %v1565 = vmul.f32 %v565, %v902
      %v1566 = vmul.f32 %v566, %v906
      %v1567 = vmul.f32 %v567, %v910
      %v1568 = vmul.f32 %v568, %v902
      %v1569 = vmul.f32 %v569, %v906
      %v1570 = vmul.f32 %v570, %v910
      %vm1595 = vcmask 1045504
      %v1596 = vrot.slane %v1547, 2
      %v1597 = vrot.slane %v1550, 2
      %v1598 = vsel %vm1595, %v1596, %v1597
      %v1599 = vrot.slane %v1548, 2
      %v1600 = vrot.slane %v1551, 2
      %v1601 = vsel %vm1595, %v1599, %v1600
      %v1602 = vrot.slane %v1549, 2
      %v1603 = vrot.slane %v1552, 2
      %v1604 = vsel %vm1595, %v1602, %v1603
      %v1605 = vrot.slane %v1553, 2
      %v1606 = vrot.slane %v1556, 2
      %v1607 = vsel %vm1595, %v1605, %v1606
      %v1608 = vrot.slane %v1554, 2
      %v1609 = vrot.slane %v1557, 2
      %v1610 = vsel %vm1595, %v1608, %v1609
      %v1611 = vrot.slane %v1555, 2
      %v1612 = vrot.slane %v1558, 2
      %v1613 = vsel %vm1595, %v1611, %v1612
      %v1614 = vrot.slane %v1559, 2
      %v1615 = vrot.slane %v1562, 2
      %v1616 = vsel %vm1595, %v1614, %v1615
      %v1617 = vrot.slane %v1560, 2
      %v1618 = vrot.slane %v1563, 2
      %v1619 = vsel %vm1595, %v1617, %v1618
      %v1620 = vrot.slane %v1561, 2
      %v1621 = vrot.slane %v1564, 2
      %v1622 = vsel %vm1595, %v1620, %v1621
      %v1623 = vrot.slane %v1565, 2
      %v1624 = vrot.slane %v1568, 2
      %v1625 = vsel %vm1595, %v1623, %v1624
      %v1626 = vrot.slane %v1566, 2
      %v1627 = vrot.slane %v1569, 2
      %v1628 = vsel %vm1595, %v1626, %v1627
      %v1629 = vrot.slane %v1567, 2
      %v1630 = vrot.slane %v1570, 2
      %v1631 = vsel %vm1595, %v1629, %v1630
      %v1644 = vadd.f32 %v1535, %v1598
      %v1645 = vadd.f32 %v1536, %v1601
      %v1646 = vadd.f32 %v1537, %v1604
      %v1647 = vadd.f32 %v1538, %v1607
      %v1648 = vadd.f32 %v1539, %v1610
      %v1649 = vadd.f32 %v1540, %v1613
      %v1650 = vadd.f32 %v1541, %v1616
      %v1651 = vadd.f32 %v1542, %v1619
      %v1652 = vadd.f32 %v1543, %v1622
      %v1653 = vadd.f32 %v1544, %v1625
      %v1654 = vadd.f32 %v1545, %v1628
      %v1655 = vadd.f32 %v1546, %v1631
      %v1656 = vmul.f32 %v607, %v626
      %v1657 = vmul.f32 %v608, %v630
      %v1658 = vmul.f32 %v609, %v634
      %v1659 = vmul.f32 %v610, %v626
      %v1660 = vmul.f32 %v611, %v630
      %v1661 = vmul.f32 %v612, %v634
      %v1662 = vmul.f32 %v613, %v626
      %v1663 = vmul.f32 %v614, %v630
      %v1664 = vmul.f32 %v615, %v634
      %v1665 = vmul.f32 %v616, %v626
      %v1666 = vmul.f32 %v617, %v630
      %v1667 = vmul.f32 %v618, %v634
      %v1668 = vmul.f32 %v547, %v650
      %v1669 = vmul.f32 %v548, %v654
      %v1670 = vmul.f32 %v549, %v658
      %v1671 = vmul.f32 %v553, %v650
      %v1672 = vmul.f32 %v554, %v654
      %v1673 = vmul.f32 %v555, %v658
      %v1674 = vmul.f32 %v559, %v650
      %v1675 = vmul.f32 %v560, %v654
      %v1676 = vmul.f32 %v561, %v658
      %v1677 = vmul.f32 %v565, %v650
      %v1678 = vmul.f32 %v566, %v654
      %v1679 = vmul.f32 %v567, %v658
      %v1692 = vrot.slane %v1668, 1
      %v1693 = vrot.slane %v1669, 1
      %v1694 = vrot.slane %v1670, 1
      %v1695 = vrot.slane %v1671, 1
      %v1696 = vrot.slane %v1672, 1
      %v1697 = vrot.slane %v1673, 1
      %v1698 = vrot.slane %v1674, 1
      %v1699 = vrot.slane %v1675, 1
      %v1700 = vrot.slane %v1676, 1
      %v1701 = vrot.slane %v1677, 1
      %v1702 = vrot.slane %v1678, 1
      %v1703 = vrot.slane %v1679, 1
      %v1716 = vadd.f32 %v1656, %v1692
      %v1717 = vadd.f32 %v1657, %v1693
      %v1718 = vadd.f32 %v1658, %v1694
      %v1719 = vadd.f32 %v1659, %v1695
      %v1720 = vadd.f32 %v1660, %v1696
      %v1721 = vadd.f32 %v1661, %v1697
      %v1722 = vadd.f32 %v1662, %v1698
      %v1723 = vadd.f32 %v1663, %v1699
      %v1724 = vadd.f32 %v1664, %v1700
      %v1725 = vadd.f32 %v1665, %v1701
      %v1726 = vadd.f32 %v1666, %v1702
      %v1727 = vadd.f32 %v1667, %v1703
      %v1728 = vmul.f32 %v571, %v686
      %v1729 = vmul.f32 %v572, %v690
      %v1730 = vmul.f32 %v573, %v694
      %v1731 = vmul.f32 %v577, %v686
      %v1732 = vmul.f32 %v578, %v690
      %v1733 = vmul.f32 %v579, %v694
      %v1734 = vmul.f32 %v583, %v686
      %v1735 = vmul.f32 %v584, %v690
      %v1736 = vmul.f32 %v585, %v694
      %v1737 = vmul.f32 %v589, %v686
      %v1738 = vmul.f32 %v590, %v690
      %v1739 = vmul.f32 %v591, %v694
      %v1752 = vrot.slane %v1728, 1
      %v1753 = vrot.slane %v1729, 1
      %v1754 = vrot.slane %v1730, 1
      %v1755 = vrot.slane %v1731, 1
      %v1756 = vrot.slane %v1732, 1
      %v1757 = vrot.slane %v1733, 1
      %v1758 = vrot.slane %v1734, 1
      %v1759 = vrot.slane %v1735, 1
      %v1760 = vrot.slane %v1736, 1
      %v1761 = vrot.slane %v1737, 1
      %v1762 = vrot.slane %v1738, 1
      %v1763 = vrot.slane %v1739, 1
      %v1776 = vadd.f32 %v1716, %v1752
      %v1777 = vadd.f32 %v1717, %v1753
      %v1778 = vadd.f32 %v1718, %v1754
      %v1779 = vadd.f32 %v1719, %v1755
      %v1780 = vadd.f32 %v1720, %v1756
      %v1781 = vadd.f32 %v1721, %v1757
      %v1782 = vadd.f32 %v1722, %v1758
      %v1783 = vadd.f32 %v1723, %v1759
      %v1784 = vadd.f32 %v1724, %v1760
      %v1785 = vadd.f32 %v1725, %v1761
      %v1786 = vadd.f32 %v1726, %v1762
      %v1787 = vadd.f32 %v1727, %v1763
      %v1788 = vmul.f32 %v595, %v722
      %v1789 = vmul.f32 %v596, %v726
      %v1790 = vmul.f32 %v597, %v730
      %v1791 = vmul.f32 %v598, %v722
      %v1792 = vmul.f32 %v599, %v726
      %v1793 = vmul.f32 %v600, %v730
      %v1794 = vmul.f32 %v601, %v722
      %v1795 = vmul.f32 %v602, %v726
      %v1796 = vmul.f32 %v603, %v730
      %v1797 = vmul.f32 %v604, %v722
      %v1798 = vmul.f32 %v605, %v726
      %v1799 = vmul.f32 %v606, %v730
      %v1812 = vrot.slane %v1788, 1
      %v1813 = vrot.slane %v1789, 1
      %v1814 = vrot.slane %v1790, 1
      %v1815 = vrot.slane %v1791, 1
      %v1816 = vrot.slane %v1792, 1
      %v1817 = vrot.slane %v1793, 1
      %v1818 = vrot.slane %v1794, 1
      %v1819 = vrot.slane %v1795, 1
      %v1820 = vrot.slane %v1796, 1
      %v1821 = vrot.slane %v1797, 1
      %v1822 = vrot.slane %v1798, 1
      %v1823 = vrot.slane %v1799, 1
      %v1836 = vadd.f32 %v1776, %v1812
      %v1837 = vadd.f32 %v1777, %v1813
      %v1838 = vadd.f32 %v1778, %v1814
      %v1839 = vadd.f32 %v1779, %v1815
      %v1840 = vadd.f32 %v1780, %v1816
      %v1841 = vadd.f32 %v1781, %v1817
      %v1842 = vadd.f32 %v1782, %v1818
      %v1843 = vadd.f32 %v1783, %v1819
      %v1844 = vadd.f32 %v1784, %v1820
      %v1845 = vadd.f32 %v1785, %v1821
      %v1846 = vadd.f32 %v1786, %v1822
      %v1847 = vadd.f32 %v1787, %v1823
      %v1848 = vmul.f32 %v607, %v758
      %v1849 = vmul.f32 %v608, %v762
      %v1850 = vmul.f32 %v609, %v766
      %v1851 = vmul.f32 %v610, %v758
      %v1852 = vmul.f32 %v611, %v762
      %v1853 = vmul.f32 %v612, %v766
      %v1854 = vmul.f32 %v613, %v758
      %v1855 = vmul.f32 %v614, %v762
      %v1856 = vmul.f32 %v615, %v766
      %v1857 = vmul.f32 %v616, %v758
      %v1858 = vmul.f32 %v617, %v762
      %v1859 = vmul.f32 %v618, %v766
      %v1872 = vrot.slane %v1848, 1
      %v1873 = vrot.slane %v1849, 1
      %v1874 = vrot.slane %v1850, 1
      %v1875 = vrot.slane %v1851, 1
      %v1876 = vrot.slane %v1852, 1
      %v1877 = vrot.slane %v1853, 1
      %v1878 = vrot.slane %v1854, 1
      %v1879 = vrot.slane %v1855, 1
      %v1880 = vrot.slane %v1856, 1
      %v1881 = vrot.slane %v1857, 1
      %v1882 = vrot.slane %v1858, 1
      %v1883 = vrot.slane %v1859, 1
      %v1896 = vadd.f32 %v1836, %v1872
      %v1897 = vadd.f32 %v1837, %v1873
      %v1898 = vadd.f32 %v1838, %v1874
      %v1899 = vadd.f32 %v1839, %v1875
      %v1900 = vadd.f32 %v1840, %v1876
      %v1901 = vadd.f32 %v1841, %v1877
      %v1902 = vadd.f32 %v1842, %v1878
      %v1903 = vadd.f32 %v1843, %v1879
      %v1904 = vadd.f32 %v1844, %v1880
      %v1905 = vadd.f32 %v1845, %v1881
      %v1906 = vadd.f32 %v1846, %v1882
      %v1907 = vadd.f32 %v1847, %v1883
      %v1908 = vmul.f32 %v547, %v830
      %v1909 = vmul.f32 %v548, %v834
      %v1910 = vmul.f32 %v549, %v838
      %v1911 = vmul.f32 %v550, %v830
      %v1912 = vmul.f32 %v551, %v834
      %v1913 = vmul.f32 %v552, %v838
      %v1914 = vmul.f32 %v553, %v830
      %v1915 = vmul.f32 %v554, %v834
      %v1916 = vmul.f32 %v555, %v838
      %v1917 = vmul.f32 %v556, %v830
      %v1918 = vmul.f32 %v557, %v834
      %v1919 = vmul.f32 %v558, %v838
      %v1920 = vmul.f32 %v559, %v830
      %v1921 = vmul.f32 %v560, %v834
      %v1922 = vmul.f32 %v561, %v838
      %v1923 = vmul.f32 %v562, %v830
      %v1924 = vmul.f32 %v563, %v834
      %v1925 = vmul.f32 %v564, %v838
      %v1926 = vmul.f32 %v565, %v830
      %v1927 = vmul.f32 %v566, %v834
      %v1928 = vmul.f32 %v567, %v838
      %v1929 = vmul.f32 %v568, %v830
      %v1930 = vmul.f32 %v569, %v834
      %v1931 = vmul.f32 %v570, %v838
      %v1956 = vrot.slane %v1908, 2
      %v1957 = vrot.slane %v1911, 2
      %v1958 = vsel %vm1595, %v1956, %v1957
      %v1959 = vrot.slane %v1909, 2
      %v1960 = vrot.slane %v1912, 2
      %v1961 = vsel %vm1595, %v1959, %v1960
      %v1962 = vrot.slane %v1910, 2
      %v1963 = vrot.slane %v1913, 2
      %v1964 = vsel %vm1595, %v1962, %v1963
      %v1965 = vrot.slane %v1914, 2
      %v1966 = vrot.slane %v1917, 2
      %v1967 = vsel %vm1595, %v1965, %v1966
      %v1968 = vrot.slane %v1915, 2
      %v1969 = vrot.slane %v1918, 2
      %v1970 = vsel %vm1595, %v1968, %v1969
      %v1971 = vrot.slane %v1916, 2
      %v1972 = vrot.slane %v1919, 2
      %v1973 = vsel %vm1595, %v1971, %v1972
      %v1974 = vrot.slane %v1920, 2
      %v1975 = vrot.slane %v1923, 2
      %v1976 = vsel %vm1595, %v1974, %v1975
      %v1977 = vrot.slane %v1921, 2
      %v1978 = vrot.slane %v1924, 2
      %v1979 = vsel %vm1595, %v1977, %v1978
      %v1980 = vrot.slane %v1922, 2
      %v1981 = vrot.slane %v1925, 2
      %v1982 = vsel %vm1595, %v1980, %v1981
      %v1983 = vrot.slane %v1926, 2
      %v1984 = vrot.slane %v1929, 2
      %v1985 = vsel %vm1595, %v1983, %v1984
      %v1986 = vrot.slane %v1927, 2
      %v1987 = vrot.slane %v1930, 2
      %v1988 = vsel %vm1595, %v1986, %v1987
      %v1989 = vrot.slane %v1928, 2
      %v1990 = vrot.slane %v1931, 2
      %v1991 = vsel %vm1595, %v1989, %v1990
      %v2004 = vadd.f32 %v1896, %v1958
      %v2005 = vadd.f32 %v1897, %v1961
      %v2006 = vadd.f32 %v1898, %v1964
      %v2007 = vadd.f32 %v1899, %v1967
      %v2008 = vadd.f32 %v1900, %v1970
      %v2009 = vadd.f32 %v1901, %v1973
      %v2010 = vadd.f32 %v1902, %v1976
      %v2011 = vadd.f32 %v1903, %v1979
      %v2012 = vadd.f32 %v1904, %v1982
      %v2013 = vadd.f32 %v1905, %v1985
      %v2014 = vadd.f32 %v1906, %v1988
      %v2015 = vadd.f32 %v1907, %v1991
      %v2016 = vmul.f32 %v571, %v902
      %v2017 = vmul.f32 %v572, %v906
      %v2018 = vmul.f32 %v573, %v910
      %v2019 = vmul.f32 %v574, %v902
      %v2020 = vmul.f32 %v575, %v906
      %v2021 = vmul.f32 %v576, %v910
      %v2022 = vmul.f32 %v577, %v902
      %v2023 = vmul.f32 %v578, %v906
      %v2024 = vmul.f32 %v579, %v910
      %v2025 = vmul.f32 %v580, %v902
      %v2026 = vmul.f32 %v581, %v906
      %v2027 = vmul.f32 %v582, %v910
      %v2028 = vmul.f32 %v583, %v902
      %v2029 = vmul.f32 %v584, %v906
      %v2030 = vmul.f32 %v585, %v910
      %v2031 = vmul.f32 %v586, %v902
      %v2032 = vmul.f32 %v587, %v906
      %v2033 = vmul.f32 %v588, %v910
      %v2034 = vmul.f32 %v589, %v902
      %v2035 = vmul.f32 %v590, %v906
      %v2036 = vmul.f32 %v591, %v910
      %v2037 = vmul.f32 %v592, %v902
      %v2038 = vmul.f32 %v593, %v906
      %v2039 = vmul.f32 %v594, %v910
      %v2064 = vrot.slane %v2016, 2
      %v2065 = vrot.slane %v2019, 2
      %v2066 = vsel %vm1595, %v2064, %v2065
      %v2067 = vrot.slane %v2017, 2
      %v2068 = vrot.slane %v2020, 2
      %v2069 = vsel %vm1595, %v2067, %v2068
      %v2070 = vrot.slane %v2018, 2
      %v2071 = vrot.slane %v2021, 2
      %v2072 = vsel %vm1595, %v2070, %v2071
      %v2073 = vrot.slane %v2022, 2
      %v2074 = vrot.slane %v2025, 2
      %v2075 = vsel %vm1595, %v2073, %v2074
      %v2076 = vrot.slane %v2023, 2
      %v2077 = vrot.slane %v2026, 2
      %v2078 = vsel %vm1595, %v2076, %v2077
      %v2079 = vrot.slane %v2024, 2
      %v2080 = vrot.slane %v2027, 2
      %v2081 = vsel %vm1595, %v2079, %v2080
      %v2082 = vrot.slane %v2028, 2
      %v2083 = vrot.slane %v2031, 2
      %v2084 = vsel %vm1595, %v2082, %v2083
      %v2085 = vrot.slane %v2029, 2
      %v2086 = vrot.slane %v2032, 2
      %v2087 = vsel %vm1595, %v2085, %v2086
      %v2088 = vrot.slane %v2030, 2
      %v2089 = vrot.slane %v2033, 2
      %v2090 = vsel %vm1595, %v2088, %v2089
      %v2091 = vrot.slane %v2034, 2
      %v2092 = vrot.slane %v2037, 2
      %v2093 = vsel %vm1595, %v2091, %v2092
      %v2094 = vrot.slane %v2035, 2
      %v2095 = vrot.slane %v2038, 2
      %v2096 = vsel %vm1595, %v2094, %v2095
      %v2097 = vrot.slane %v2036, 2
      %v2098 = vrot.slane %v2039, 2
      %v2099 = vsel %vm1595, %v2097, %v2098
      %v2112 = vadd.f32 %v2004, %v2066
      %v2113 = vadd.f32 %v2005, %v2069
      %v2114 = vadd.f32 %v2006, %v2072
      %v2115 = vadd.f32 %v2007, %v2075
      %v2116 = vadd.f32 %v2008, %v2078
      %v2117 = vadd.f32 %v2009, %v2081
      %v2118 = vadd.f32 %v2010, %v2084
      %v2119 = vadd.f32 %v2011, %v2087
      %v2120 = vadd.f32 %v2012, %v2090
      %v2121 = vadd.f32 %v2013, %v2093
      %v2122 = vadd.f32 %v2014, %v2096
      %v2123 = vadd.f32 %v2015, %v2099
      %v2124 = vmax.f32 %v959, %v1259
      %v2125 = vmax.f32 %v960, %v1260
      %v2126 = vmax.f32 %v961, %v1261
      %v2127 = vmax.f32 %v962, %v1262
      %v2128 = vmax.f32 %v963, %v1263
      %v2129 = vmax.f32 %v964, %v1264
      %v2130 = vmax.f32 %v965, %v1265
      %v2131 = vmax.f32 %v966, %v1266
      %v2132 = vmax.f32 %v967, %v1267
      %v2133 = vmax.f32 %v968, %v1268
      %v2134 = vmax.f32 %v969, %v1269
      %v2135 = vmax.f32 %v970, %v1270
      %v2137 = vlaneseq
      %v2138 = vshrl.u32 %v2137, 7
      %v2139 = vsub.s32 0, %v2138
      %v2140 = vrot.slane %v622, %v2139
      %v2141 = vlaneseq
      %v2142 = vshrl.u32 %v2141, 7
      %v2143 = vsub.s32 1, %v2142
      %v2144 = vrot.slane %v622, %v2143
      %v2145 = vlaneseq
      %v2146 = vshrl.u32 %v2145, 7
      %v2147 = vsub.s32 2, %v2146
      %v2148 = vrot.slane %v622, %v2147
      %v2152 = vadd.f32 %v2124, %v2140
      %v2153 = vadd.f32 %v2125, %v2144
      %v2154 = vadd.f32 %v2126, %v2148
      %v2155 = vadd.f32 %v2127, %v2140
      %v2156 = vadd.f32 %v2128, %v2144
      %v2157 = vadd.f32 %v2129, %v2148
      %v2158 = vadd.f32 %v2130, %v2140
      %v2159 = vadd.f32 %v2131, %v2144
      %v2160 = vadd.f32 %v2132, %v2148
      %v2161 = vadd.f32 %v2133, %v2140
      %v2162 = vadd.f32 %v2134, %v2144
      %v2163 = vadd.f32 %v2135, %v2148
      %v2164 = vsub.f32 0.0, %v2152
      %v2165 = vsub.f32 0.0, %v2153
      %v2166 = vsub.f32 0.0, %v2154
      %v2167 = vsub.f32 0.0, %v2155
      %v2168 = vsub.f32 0.0, %v2156
      %v2169 = vsub.f32 0.0, %v2157
      %v2170 = vsub.f32 0.0, %v2158
      %v2171 = vsub.f32 0.0, %v2159
      %v2172 = vsub.f32 0.0, %v2160
      %v2173 = vsub.f32 0.0, %v2161
      %v2174 = vsub.f32 0.0, %v2162
      %v2175 = vsub.f32 0.0, %v2163
      %v2176 = vmul.f32 %v2164, 1.442695
      %v2177 = vpow.pop %v2176
      %v2178 = vmul.f32 %v2165, 1.442695
      %v2179 = vpow.pop %v2178
      %v2180 = vmul.f32 %v2166, 1.442695
      %v2181 = vpow.pop %v2180
      %v2182 = vmul.f32 %v2167, 1.442695
      %v2183 = vpow.pop %v2182
      %v2184 = vmul.f32 %v2168, 1.442695
      %v2185 = vpow.pop %v2184
      %v2186 = vmul.f32 %v2169, 1.442695
      %v2187 = vpow.pop %v2186
      %v2188 = vmul.f32 %v2170, 1.442695
      %v2189 = vpow.pop %v2188
      %v2190 = vmul.f32 %v2171, 1.442695
      %v2191 = vpow.pop %v2190
      %v2192 = vmul.f32 %v2172, 1.442695
      %v2193 = vpow.pop %v2192
      %v2194 = vmul.f32 %v2173, 1.442695
      %v2195 = vpow.pop %v2194
      %v2196 = vmul.f32 %v2174, 1.442695
      %v2197 = vpow.pop %v2196
      %v2198 = vmul.f32 %v2175, 1.442695
      %v2199 = vpow.pop %v2198
      %v2200 = vadd.f32 %v2177, 1.0
      %v2201 = vadd.f32 %v2179, 1.0
      %v2202 = vadd.f32 %v2181, 1.0
      %v2203 = vadd.f32 %v2183, 1.0
      %v2204 = vadd.f32 %v2185, 1.0
      %v2205 = vadd.f32 %v2187, 1.0
      %v2206 = vadd.f32 %v2189, 1.0
      %v2207 = vadd.f32 %v2191, 1.0
      %v2208 = vadd.f32 %v2193, 1.0
      %v2209 = vadd.f32 %v2195, 1.0
      %v2210 = vadd.f32 %v2197, 1.0
      %v2211 = vadd.f32 %v2199, 1.0
      %v2212 = vrcp.pop %v2200
      %v2213 = vrcp.pop %v2201
      %v2214 = vrcp.pop %v2202
      %v2215 = vrcp.pop %v2203
      %v2216 = vrcp.pop %v2204
      %v2217 = vrcp.pop %v2205
      %v2218 = vrcp.pop %v2206
      %v2219 = vrcp.pop %v2207
      %v2220 = vrcp.pop %v2208
      %v2221 = vrcp.pop %v2209
      %v2222 = vrcp.pop %v2210
      %v2223 = vrcp.pop %v2211
      %v2224 = vmax.f32 %v1644, %v2112
      %v2225 = vmax.f32 %v1645, %v2113
      %v2226 = vmax.f32 %v1646, %v2114
      %v2227 = vmax.f32 %v1647, %v2115
      %v2228 = vmax.f32 %v1648, %v2116
      %v2229 = vmax.f32 %v1649, %v2117
      %v2230 = vmax.f32 %v1650, %v2118
      %v2231 = vmax.f32 %v1651, %v2119
      %v2232 = vmax.f32 %v1652, %v2120
      %v2233 = vmax.f32 %v1653, %v2121
      %v2234 = vmax.f32 %v1654, %v2122
      %v2235 = vmax.f32 %v1655, %v2123
      %v2236 = vadd.f32 %v2224, %v2140
      %v2237 = vadd.f32 %v2225, %v2144
      %v2238 = vadd.f32 %v2226, %v2148
      %v2239 = vadd.f32 %v2227, %v2140
      %v2240 = vadd.f32 %v2228, %v2144
      %v2241 = vadd.f32 %v2229, %v2148
      %v2242 = vadd.f32 %v2230, %v2140
      %v2243 = vadd.f32 %v2231, %v2144
      %v2244 = vadd.f32 %v2232, %v2148
      %v2245 = vadd.f32 %v2233, %v2140
      %v2246 = vadd.f32 %v2234, %v2144
      %v2247 = vadd.f32 %v2235, %v2148
      %v2248 = vsub.f32 0.0, %v2236
      %v2249 = vsub.f32 0.0, %v2237
      %v2250 = vsub.f32 0.0, %v2238
      %v2251 = vsub.f32 0.0, %v2239
      %v2252 = vsub.f32 0.0, %v2240
      %v2253 = vsub.f32 0.0, %v2241
      %v2254 = vsub.f32 0.0, %v2242
      %v2255 = vsub.f32 0.0, %v2243
      %v2256 = vsub.f32 0.0, %v2244
      %v2257 = vsub.f32 0.0, %v2245
      %v2258 = vsub.f32 0.0, %v2246
      %v2259 = vsub.f32 0.0, %v2247
      %v2260 = vmul.f32 %v2248, 1.442695
      %v2261 = vpow.pop %v2260
      %v2262 = vmul.f32 %v2249, 1.442695
      %v2263 = vpow.pop %v2262
      %v2264 = vmul.f32 %v2250, 1.442695
      %v2265 = vpow.pop %v2264
      %v2266 = vmul.f32 %v2251, 1.442695
      %v2267 = vpow.pop %v2266
      %v2268 = vmul.f32 %v2252, 1.442695
      %v2269 = vpow.pop %v2268
      %v2270 = vmul.f32 %v2253, 1.442695
      %v2271 = vpow.pop %v2270
      %v2272 = vmul.f32 %v2254, 1.442695
      %v2273 = vpow.pop %v2272
      %v2274 = vmul.f32 %v2255, 1.442695
      %v2275 = vpow.pop %v2274
      %v2276 = vmul.f32 %v2256, 1.442695
      %v2277 = vpow.pop %v2276
      %v2278 = vmul.f32 %v2257, 1.442695
      %v2279 = vpow.pop %v2278
      %v2280 = vmul.f32 %v2258, 1.442695
      %v2281 = vpow.pop %v2280
      %v2282 = vmul.f32 %v2259, 1.442695
      %v2283 = vpow.pop %v2282
      %v2284 = vadd.f32 %v2261, 1.0
      %v2285 = vadd.f32 %v2263, 1.0
      %v2286 = vadd.f32 %v2265, 1.0
      %v2287 = vadd.f32 %v2267, 1.0
      %v2288 = vadd.f32 %v2269, 1.0
      %v2289 = vadd.f32 %v2271, 1.0
      %v2290 = vadd.f32 %v2273, 1.0
      %v2291 = vadd.f32 %v2275, 1.0
      %v2292 = vadd.f32 %v2277, 1.0
      %v2293 = vadd.f32 %v2279, 1.0
      %v2294 = vadd.f32 %v2281, 1.0
      %v2295 = vadd.f32 %v2283, 1.0
      %v2296 = vrcp.pop %v2284
      %v2297 = vrcp.pop %v2285
      %v2298 = vrcp.pop %v2286
      %v2299 = vrcp.pop %v2287
      %v2300 = vrcp.pop %v2288
      %v2301 = vrcp.pop %v2289
      %v2302 = vrcp.pop %v2290
      %v2303 = vrcp.pop %v2291
      %v2304 = vrcp.pop %v2292
      %v2305 = vrcp.pop %v2293
      %v2306 = vrcp.pop %v2294
      %v2307 = vrcp.pop %v2295
      %v2308 = vld [vmem:[%s6] sm:$0xff]
      %v2309 = vld [vmem:[%s6 + $0x8] sm:$0xff]
      %v2310 = vld [vmem:[%s6 + $0x10] sm:$0xff]
      %v2311 = vld [vmem:[%s6 + $0x18] sm:$0xff]
      %v2312 = vld [vmem:[%s6 + $0x20] sm:$0xff]
      %v2313 = vld [vmem:[%s6 + $0x28] sm:$0xff]
      %v2314 = vld [vmem:[%s6 + $0x30] sm:$0xff]
      %v2315 = vld [vmem:[%s6 + $0x38] sm:$0xff]
      %v2316 = vld [vmem:[%s6 + $0x40] sm:$0xff]
      %v2317 = vld [vmem:[%s6 + $0x48] sm:$0xff]
      %v2318 = vld [vmem:[%s6 + $0x50] sm:$0xff]
      %v2319 = vld [vmem:[%s6 + $0x58] sm:$0xff]
      %v2320 = vld [vmem:[%s6 + $0x60] sm:$0xff]
      %v2321 = vld [vmem:[%s6 + $0x68] sm:$0xff]
      %v2322 = vld [vmem:[%s6 + $0x70] sm:$0xff]
      %v2323 = vld [vmem:[%s6 + $0x78] sm:$0xff]
      %v2324 = vld [vmem:[%s6 + $0x80] sm:$0xff]
      %v2325 = vld [vmem:[%s6 + $0x88] sm:$0xff]
      %v2326 = vld [vmem:[%s6 + $0x90] sm:$0xff]
      %v2327 = vld [vmem:[%s6 + $0x98] sm:$0xff]
      %v2328 = vld [vmem:[%s6 + $0xa0] sm:$0xff]
      %v2329 = vld [vmem:[%s6 + $0xa8] sm:$0xff]
      %v2330 = vld [vmem:[%s6 + $0xb0] sm:$0xff]
      %v2331 = vld [vmem:[%s6 + $0xb8] sm:$0xff]
      %v2332 = vld [vmem:[%s6 + $0xc0] sm:$0xff]
      %v2333 = vld [vmem:[%s6 + $0xc8] sm:$0xff]
      %v2334 = vld [vmem:[%s6 + $0xd0] sm:$0xff]
      %v2335 = vld [vmem:[%s6 + $0xd8] sm:$0xff]
      %v2336 = vld [vmem:[%s6 + $0xe0] sm:$0xff]
      %v2337 = vld [vmem:[%s6 + $0xe8] sm:$0xff]
      %v2338 = vld [vmem:[%s6 + $0xf0] sm:$0xff]
      %v2339 = vld [vmem:[%s6 + $0xf8] sm:$0xff]
      %v2340 = vld [vmem:[%s6 + $0x100] sm:$0xff]
      %v2341 = vld [vmem:[%s6 + $0x108] sm:$0xff]
      %v2342 = vld [vmem:[%s6 + $0x110] sm:$0xff]
      %v2343 = vld [vmem:[%s6 + $0x118] sm:$0xff]
      %v2344 = vld [vmem:[%s6 + $0x120] sm:$0xff]
      %v2345 = vld [vmem:[%s6 + $0x128] sm:$0xff]
      %v2346 = vld [vmem:[%s6 + $0x130] sm:$0xff]
      %v2347 = vld [vmem:[%s6 + $0x138] sm:$0xff]
      %v2348 = vld [vmem:[%s6 + $0x140] sm:$0xff]
      %v2349 = vld [vmem:[%s6 + $0x148] sm:$0xff]
      %v2350 = vld [vmem:[%s6 + $0x150] sm:$0xff]
      %v2351 = vld [vmem:[%s6 + $0x158] sm:$0xff]
      %v2352 = vld [vmem:[%s6 + $0x160] sm:$0xff]
      %v2353 = vld [vmem:[%s6 + $0x168] sm:$0xff]
      %v2354 = vld [vmem:[%s6 + $0x170] sm:$0xff]
      %v2355 = vld [vmem:[%s6 + $0x178] sm:$0xff]
      %v2356 = vld [vmem:[%s6 + $0x180] sm:$0xff]
      %v2357 = vld [vmem:[%s6 + $0x188] sm:$0xff]
      %v2358 = vld [vmem:[%s6 + $0x190] sm:$0xff]
      %v2359 = vld [vmem:[%s6 + $0x198] sm:$0xff]
      %v2360 = vld [vmem:[%s6 + $0x1a0] sm:$0xff]
      %v2361 = vld [vmem:[%s6 + $0x1a8] sm:$0xff]
      %v2362 = vld [vmem:[%s6 + $0x1b0] sm:$0xff]
      %v2363 = vld [vmem:[%s6 + $0x1b8] sm:$0xff]
      %v2364 = vld [vmem:[%s6 + $0x1c0] sm:$0xff]
      %v2365 = vld [vmem:[%s6 + $0x1c8] sm:$0xff]
      %v2366 = vld [vmem:[%s6 + $0x1d0] sm:$0xff]
      %v2367 = vld [vmem:[%s6 + $0x1d8] sm:$0xff]
      %v2368 = vld [vmem:[%s6 + $0x1e0] sm:$0xff]
      %v2369 = vld [vmem:[%s6 + $0x1e8] sm:$0xff]
      %v2370 = vld [vmem:[%s6 + $0x1f0] sm:$0xff]
      %v2371 = vld [vmem:[%s6 + $0x1f8] sm:$0xff]
      %v2372 = vld [vmem:[%s6 + $0x200] sm:$0xff]
      %v2373 = vld [vmem:[%s6 + $0x208] sm:$0xff]
      %v2374 = vld [vmem:[%s6 + $0x210] sm:$0xff]
      %v2375 = vld [vmem:[%s6 + $0x218] sm:$0xff]
      %v2376 = vld [vmem:[%s6 + $0x220] sm:$0xff]
      %v2377 = vld [vmem:[%s6 + $0x228] sm:$0xff]
      %v2378 = vld [vmem:[%s6 + $0x230] sm:$0xff]
      %v2379 = vld [vmem:[%s6 + $0x238] sm:$0xff]
      %v2380 = vld [vmem:[%s6 + $0x240] sm:$0xff]
      %v2381 = vld [vmem:[%s6 + $0x248] sm:$0xff]
      %v2382 = vld [vmem:[%s6 + $0x250] sm:$0xff]
      %v2383 = vld [vmem:[%s6 + $0x258] sm:$0xff]
      %v2384 = vld [vmem:[%s6 + $0x260] sm:$0xff]
      %v2385 = vld [vmem:[%s6 + $0x268] sm:$0xff]
      %v2386 = vld [vmem:[%s6 + $0x270] sm:$0xff]
      %v2387 = vld [vmem:[%s6 + $0x278] sm:$0xff]
      %v2388 = vld [vmem:[%s6 + $0x280] sm:$0xff]
      %v2389 = vld [vmem:[%s6 + $0x288] sm:$0xff]
      %v2390 = vld [vmem:[%s6 + $0x290] sm:$0xff]
      %v2391 = vld [vmem:[%s6 + $0x298] sm:$0xff]
      %v2392 = vld [vmem:[%s6 + $0x2a0] sm:$0xff]
      %v2393 = vld [vmem:[%s6 + $0x2a8] sm:$0xff]
      %v2394 = vld [vmem:[%s6 + $0x2b0] sm:$0xff]
      %v2395 = vld [vmem:[%s6 + $0x2b8] sm:$0xff]
      %v2396 = vld [vmem:[%s6 + $0x2c0] sm:$0xff]
      %v2397 = vld [vmem:[%s6 + $0x2c8] sm:$0xff]
      %v2398 = vld [vmem:[%s6 + $0x2d0] sm:$0xff]
      %v2399 = vld [vmem:[%s6 + $0x2d8] sm:$0xff]
      %v2400 = vld [vmem:[%s6 + $0x2e0] sm:$0xff]
      %v2401 = vld [vmem:[%s6 + $0x2e8] sm:$0xff]
      %v2402 = vld [vmem:[%s6 + $0x2f0] sm:$0xff]
      %v2403 = vld [vmem:[%s6 + $0x2f8] sm:$0xff]
      %v2404 = vld [vmem:[%s6 + $0x300] sm:$0xff]
      %v2405 = vld [vmem:[%s6 + $0x308] sm:$0xff]
      %v2406 = vld [vmem:[%s6 + $0x310] sm:$0xff]
      %v2407 = vld [vmem:[%s6 + $0x318] sm:$0xff]
      %v2408 = vld [vmem:[%s6 + $0x320] sm:$0xff]
      %v2409 = vld [vmem:[%s6 + $0x328] sm:$0xff]
      %v2410 = vld [vmem:[%s6 + $0x330] sm:$0xff]
      %v2411 = vld [vmem:[%s6 + $0x338] sm:$0xff]
      %v2412 = vld [vmem:[%s6 + $0x340] sm:$0xff]
      %v2413 = vld [vmem:[%s6 + $0x348] sm:$0xff]
      %v2414 = vld [vmem:[%s6 + $0x350] sm:$0xff]
      %v2415 = vld [vmem:[%s6 + $0x358] sm:$0xff]
      %v2416 = vld [vmem:[%s6 + $0x360] sm:$0xff]
      %v2417 = vld [vmem:[%s6 + $0x368] sm:$0xff]
      %v2418 = vld [vmem:[%s6 + $0x370] sm:$0xff]
      %v2419 = vld [vmem:[%s6 + $0x378] sm:$0xff]
      %v2420 = vld [vmem:[%s6 + $0x380] sm:$0xff]
      %v2421 = vld [vmem:[%s6 + $0x388] sm:$0xff]
      %v2422 = vld [vmem:[%s6 + $0x390] sm:$0xff]
      %v2423 = vld [vmem:[%s6 + $0x398] sm:$0xff]
      %v2424 = vld [vmem:[%s6 + $0x3a0] sm:$0xff]
      %v2425 = vld [vmem:[%s7] sm:$0x7]
      %v2426 = vld [vmem:[%s8] sm:$0xff]
      %v2427 = vld [vmem:[%s8 + $0x8] sm:$0xff]
      %v2428 = vld [vmem:[%s8 + $0x10] sm:$0xff]
      %v2429 = vld [vmem:[%s8 + $0x18] sm:$0xff]
      %v2430 = vld [vmem:[%s8 + $0x20] sm:$0xff]
      %v2431 = vld [vmem:[%s8 + $0x28] sm:$0xff]
      %v2432 = vld [vmem:[%s8 + $0x30] sm:$0xff]
      %v2433 = vld [vmem:[%s8 + $0x38] sm:$0xff]
      %v2434 = vld [vmem:[%s8 + $0x40] sm:$0xff]
      %v2435 = vld [vmem:[%s8 + $0x48] sm:$0xff]
      %v2436 = vld [vmem:[%s8 + $0x50] sm:$0xff]
      %v2437 = vld [vmem:[%s8 + $0x58] sm:$0xff]
      %v2438 = vld [vmem:[%s8 + $0x60] sm:$0xff]
      %v2439 = vld [vmem:[%s8 + $0x68] sm:$0xff]
      %v2440 = vld [vmem:[%s8 + $0x70] sm:$0xff]
      %v2441 = vld [vmem:[%s8 + $0x78] sm:$0xff]
      %v2442 = vld [vmem:[%s8 + $0x80] sm:$0xff]
      %v2443 = vld [vmem:[%s8 + $0x88] sm:$0xff]
      %v2444 = vld [vmem:[%s8 + $0x90] sm:$0xff]
      %v2445 = vld [vmem:[%s8 + $0x98] sm:$0xff]
      %v2446 = vld [vmem:[%s8 + $0xa0] sm:$0xff]
      %v2447 = vld [vmem:[%s8 + $0xa8] sm:$0xff]
      %v2448 = vld [vmem:[%s8 + $0xb0] sm:$0xff]
      %v2449 = vld [vmem:[%s8 + $0xb8] sm:$0xff]
      %v2450 = vld [vmem:[%s8 + $0xc0] sm:$0xff]
      %v2451 = vld [vmem:[%s8 + $0xc8] sm:$0xff]
      %v2452 = vld [vmem:[%s8 + $0xd0] sm:$0xff]
      %v2453 = vld [vmem:[%s8 + $0xd8] sm:$0xff]
      %v2454 = vld [vmem:[%s8 + $0xe0] sm:$0xff]
      %v2455 = vld [vmem:[%s8 + $0xe8] sm:$0xff]
      %v2456 = vld [vmem:[%s8 + $0xf0] sm:$0xff]
      %v2457 = vld [vmem:[%s8 + $0xf8] sm:$0xff]
      %v2458 = vld [vmem:[%s8 + $0x100] sm:$0xff]
      %v2459 = vld [vmem:[%s8 + $0x108] sm:$0xff]
      %v2460 = vld [vmem:[%s8 + $0x110] sm:$0xff]
      %v2461 = vld [vmem:[%s8 + $0x118] sm:$0xff]
      %v2462 = vld [vmem:[%s8 + $0x120] sm:$0xff]
      %v2463 = vld [vmem:[%s8 + $0x128] sm:$0xff]
      %v2464 = vld [vmem:[%s8 + $0x130] sm:$0xff]
      %v2465 = vld [vmem:[%s8 + $0x138] sm:$0xff]
      %v2466 = vld [vmem:[%s8 + $0x140] sm:$0xff]
      %v2467 = vld [vmem:[%s8 + $0x148] sm:$0xff]
      %v2468 = vld [vmem:[%s8 + $0x150] sm:$0xff]
      %v2469 = vld [vmem:[%s8 + $0x158] sm:$0xff]
      %v2470 = vld [vmem:[%s8 + $0x160] sm:$0xff]
      %v2471 = vld [vmem:[%s8 + $0x168] sm:$0xff]
      %v2472 = vld [vmem:[%s8 + $0x170] sm:$0xff]
      %v2473 = vld [vmem:[%s8 + $0x178] sm:$0xff]
      %v2474 = vld [vmem:[%s8 + $0x180] sm:$0xff]
      %v2475 = vld [vmem:[%s8 + $0x188] sm:$0xff]
      %v2476 = vld [vmem:[%s8 + $0x190] sm:$0xff]
      %v2477 = vld [vmem:[%s8 + $0x198] sm:$0xff]
      %v2478 = vld [vmem:[%s8 + $0x1a0] sm:$0xff]
      %v2479 = vld [vmem:[%s8 + $0x1a8] sm:$0xff]
      %v2480 = vld [vmem:[%s8 + $0x1b0] sm:$0xff]
      %v2481 = vld [vmem:[%s8 + $0x1b8] sm:$0xff]
      %v2482 = vld [vmem:[%s8 + $0x1c0] sm:$0xff]
      %v2483 = vld [vmem:[%s8 + $0x1c8] sm:$0xff]
      %v2484 = vld [vmem:[%s8 + $0x1d0] sm:$0xff]
      %v2485 = vld [vmem:[%s8 + $0x1d8] sm:$0xff]
      %v2486 = vld [vmem:[%s8 + $0x1e0] sm:$0xff]
      %v2487 = vld [vmem:[%s8 + $0x1e8] sm:$0xff]
      %v2488 = vld [vmem:[%s8 + $0x1f0] sm:$0xff]
      %v2489 = vld [vmem:[%s8 + $0x1f8] sm:$0xff]
      %v2490 = vld [vmem:[%s8 + $0x200] sm:$0xff]
      %v2491 = vld [vmem:[%s8 + $0x208] sm:$0xff]
      %v2492 = vld [vmem:[%s8 + $0x210] sm:$0xff]
      %v2493 = vld [vmem:[%s8 + $0x218] sm:$0xff]
      %v2494 = vld [vmem:[%s8 + $0x220] sm:$0xff]
      %v2495 = vld [vmem:[%s8 + $0x228] sm:$0xff]
      %v2496 = vld [vmem:[%s8 + $0x230] sm:$0xff]
      %v2497 = vld [vmem:[%s8 + $0x238] sm:$0xff]
      %v2498 = vld [vmem:[%s8 + $0x240] sm:$0xff]
      %v2499 = vld [vmem:[%s8 + $0x248] sm:$0xff]
      %v2500 = vld [vmem:[%s8 + $0x250] sm:$0xff]
      %v2501 = vld [vmem:[%s8 + $0x258] sm:$0xff]
      %v2502 = vld [vmem:[%s8 + $0x260] sm:$0xff]
      %v2503 = vld [vmem:[%s8 + $0x268] sm:$0xff]
      %v2504 = vld [vmem:[%s8 + $0x270] sm:$0xff]
      %v2505 = vld [vmem:[%s8 + $0x278] sm:$0xff]
      %v2506 = vld [vmem:[%s8 + $0x280] sm:$0xff]
      %v2507 = vld [vmem:[%s8 + $0x288] sm:$0xff]
      %v2508 = vld [vmem:[%s8 + $0x290] sm:$0xff]
      %v2509 = vld [vmem:[%s8 + $0x298] sm:$0xff]
      %v2510 = vld [vmem:[%s8 + $0x2a0] sm:$0xff]
      %v2511 = vld [vmem:[%s8 + $0x2a8] sm:$0xff]
      %v2512 = vld [vmem:[%s8 + $0x2b0] sm:$0xff]
      %v2513 = vld [vmem:[%s8 + $0x2b8] sm:$0xff]
      %v2514 = vld [vmem:[%s8 + $0x2c0] sm:$0xff]
      %v2515 = vld [vmem:[%s8 + $0x2c8] sm:$0xff]
      %v2516 = vld [vmem:[%s8 + $0x2d0] sm:$0xff]
      %v2517 = vld [vmem:[%s8 + $0x2d8] sm:$0xff]
      %v2518 = vld [vmem:[%s8 + $0x2e0] sm:$0xff]
      %v2519 = vld [vmem:[%s8 + $0x2e8] sm:$0xff]
      %v2520 = vld [vmem:[%s8 + $0x2f0] sm:$0xff]
      %v2521 = vld [vmem:[%s8 + $0x2f8] sm:$0xff]
      %v2522 = vld [vmem:[%s8 + $0x300] sm:$0xff]
      %v2523 = vld [vmem:[%s8 + $0x308] sm:$0xff]
      %v2524 = vld [vmem:[%s8 + $0x310] sm:$0xff]
      %v2525 = vld [vmem:[%s8 + $0x318] sm:$0xff]
      %v2526 = vld [vmem:[%s8 + $0x320] sm:$0xff]
      %v2527 = vld [vmem:[%s8 + $0x328] sm:$0xff]
      %v2528 = vld [vmem:[%s8 + $0x330] sm:$0xff]
      %v2529 = vld [vmem:[%s8 + $0x338] sm:$0xff]
      %v2530 = vld [vmem:[%s8 + $0x340] sm:$0xff]
      %v2531 = vld [vmem:[%s8 + $0x348] sm:$0xff]
      %v2532 = vld [vmem:[%s8 + $0x350] sm:$0xff]
      %v2533 = vld [vmem:[%s8 + $0x358] sm:$0xff]
      %v2534 = vld [vmem:[%s8 + $0x360] sm:$0xff]
      %v2535 = vld [vmem:[%s8 + $0x368] sm:$0xff]
      %v2536 = vld [vmem:[%s8 + $0x370] sm:$0xff]
      %v2537 = vld [vmem:[%s8 + $0x378] sm:$0xff]
      %v2538 = vld [vmem:[%s8 + $0x380] sm:$0xff]
      %v2539 = vld [vmem:[%s8 + $0x388] sm:$0xff]
      %v2540 = vld [vmem:[%s8 + $0x390] sm:$0xff]
      %v2541 = vld [vmem:[%s8 + $0x398] sm:$0xff]
      %v2542 = vld [vmem:[%s8 + $0x3a0] sm:$0xff]
      %v2543 = vld [vmem:[%s8 + $0x3a8] sm:$0xff]
      %v2544 = vld [vmem:[%s8 + $0x3b0] sm:$0xff]
      %v2545 = vld [vmem:[%s8 + $0x3b8] sm:$0xff]
      %v2546 = vld [vmem:[%s8 + $0x3c0] sm:$0xff]
      %v2547 = vld [vmem:[%s8 + $0x3c8] sm:$0xff]
      %v2548 = vld [vmem:[%s8 + $0x3d0] sm:$0xff]
      %v2549 = vld [vmem:[%s8 + $0x3d8] sm:$0xff]
      %v2550 = vld [vmem:[%s8 + $0x3e0] sm:$0xff]
      %v2551 = vld [vmem:[%s8 + $0x3e8] sm:$0xff]
      %v2552 = vld [vmem:[%s8 + $0x3f0] sm:$0xff]
      %v2553 = vld [vmem:[%s8 + $0x3f8] sm:$0xff]
      %v2554 = vld [vmem:[%s8 + $0x400] sm:$0xff]
      %v2555 = vld [vmem:[%s8 + $0x408] sm:$0xff]
      %v2556 = vld [vmem:[%s8 + $0x410] sm:$0xff]
      %v2557 = vld [vmem:[%s8 + $0x418] sm:$0xff]
      %v2558 = vld [vmem:[%s8 + $0x420] sm:$0xff]
      %v2559 = vld [vmem:[%s8 + $0x428] sm:$0xff]
      %v2560 = vld [vmem:[%s8 + $0x430] sm:$0xff]
      %v2561 = vld [vmem:[%s8 + $0x438] sm:$0xff]
      %v2562 = vld [vmem:[%s8 + $0x440] sm:$0xff]
      %v2563 = vld [vmem:[%s8 + $0x448] sm:$0xff]
      %v2564 = vld [vmem:[%s8 + $0x450] sm:$0xff]
      %v2565 = vld [vmem:[%s8 + $0x458] sm:$0xff]
      %v2566 = vld [vmem:[%s8 + $0x460] sm:$0xff]
      %v2567 = vld [vmem:[%s8 + $0x468] sm:$0xff]
      %v2568 = vld [vmem:[%s8 + $0x470] sm:$0xff]
      %v2569 = vld [vmem:[%s8 + $0x478] sm:$0xff]
      %v2570 = vld [vmem:[%s8 + $0x480] sm:$0xff]
      %v2571 = vld [vmem:[%s8 + $0x488] sm:$0xff]
      %v2572 = vld [vmem:[%s8 + $0x490] sm:$0xff]
      %v2573 = vld [vmem:[%s8 + $0x498] sm:$0xff]
      %v2574 = vld [vmem:[%s8 + $0x4a0] sm:$0xff]
      %v2575 = vld [vmem:[%s8 + $0x4a8] sm:$0xff]
      %v2576 = vld [vmem:[%s8 + $0x4b0] sm:$0xff]
      %v2577 = vld [vmem:[%s8 + $0x4b8] sm:$0xff]
      %v2578 = vld [vmem:[%s8 + $0x4c0] sm:$0xff]
      %v2579 = vld [vmem:[%s8 + $0x4c8] sm:$0xff]
      %v2580 = vld [vmem:[%s8 + $0x4d0] sm:$0xff]
      %v2581 = vld [vmem:[%s8 + $0x4d8] sm:$0xff]
      %v2582 = vld [vmem:[%s8 + $0x4e0] sm:$0xff]
      %v2583 = vld [vmem:[%s8 + $0x4e8] sm:$0xff]
      %v2584 = vld [vmem:[%s8 + $0x4f0] sm:$0xff]
      %v2585 = vld [vmem:[%s8 + $0x4f8] sm:$0xff]
      %v2586 = vld [vmem:[%s8 + $0x500] sm:$0xff]
      %v2587 = vld [vmem:[%s8 + $0x508] sm:$0xff]
      %v2588 = vld [vmem:[%s8 + $0x510] sm:$0xff]
      %v2589 = vld [vmem:[%s8 + $0x518] sm:$0xff]
      %v2590 = vld [vmem:[%s8 + $0x520] sm:$0xff]
      %v2591 = vld [vmem:[%s8 + $0x528] sm:$0xff]
      %v2592 = vld [vmem:[%s8 + $0x530] sm:$0xff]
      %v2593 = vld [vmem:[%s8 + $0x538] sm:$0xff]
      %v2594 = vld [vmem:[%s8 + $0x540] sm:$0xff]
      %v2595 = vld [vmem:[%s8 + $0x548] sm:$0xff]
      %v2596 = vld [vmem:[%s8 + $0x550] sm:$0xff]
      %v2597 = vld [vmem:[%s8 + $0x558] sm:$0xff]
      %v2598 = vld [vmem:[%s8 + $0x560] sm:$0xff]
      %v2599 = vld [vmem:[%s8 + $0x568] sm:$0xff]
      %v2600 = vld [vmem:[%s8 + $0x570] sm:$0xff]
      %v2601 = vld [vmem:[%s8 + $0x578] sm:$0xff]
      %v2602 = vld [vmem:[%s8 + $0x580] sm:$0xff]
      %v2603 = vld [vmem:[%s8 + $0x588] sm:$0xff]
      %v2604 = vld [vmem:[%s8 + $0x590] sm:$0xff]
      %v2605 = vld [vmem:[%s8 + $0x598] sm:$0xff]
      %v2606 = vld [vmem:[%s8 + $0x5a0] sm:$0xff]
      %v2607 = vld [vmem:[%s8 + $0x5a8] sm:$0xff]
      %v2608 = vld [vmem:[%s8 + $0x5b0] sm:$0xff]
      %v2609 = vld [vmem:[%s8 + $0x5b8] sm:$0xff]
      %v2610 = vld [vmem:[%s8 + $0x5c0] sm:$0xff]
      %v2611 = vld [vmem:[%s8 + $0x5c8] sm:$0xff]
      %v2612 = vld [vmem:[%s8 + $0x5d0] sm:$0xff]
      %v2613 = vld [vmem:[%s8 + $0x5d8] sm:$0xff]
      %v2614 = vld [vmem:[%s8 + $0x5e0] sm:$0xff]
      %v2615 = vld [vmem:[%s8 + $0x5e8] sm:$0xff]
      %v2616 = vld [vmem:[%s8 + $0x5f0] sm:$0xff]
      %v2617 = vld [vmem:[%s8 + $0x5f8] sm:$0xff]
      %v2618 = vld [vmem:[%s8 + $0x600] sm:$0xff]
      %v2619 = vld [vmem:[%s8 + $0x608] sm:$0xff]
      %v2620 = vld [vmem:[%s8 + $0x610] sm:$0xff]
      %v2621 = vld [vmem:[%s8 + $0x618] sm:$0xff]
      %v2622 = vld [vmem:[%s8 + $0x620] sm:$0xff]
      %v2623 = vld [vmem:[%s8 + $0x628] sm:$0xff]
      %v2624 = vld [vmem:[%s8 + $0x630] sm:$0xff]
      %v2625 = vld [vmem:[%s8 + $0x638] sm:$0xff]
      %v2626 = vld [vmem:[%s8 + $0x640] sm:$0xff]
      %v2627 = vld [vmem:[%s8 + $0x648] sm:$0xff]
      %v2628 = vld [vmem:[%s8 + $0x650] sm:$0xff]
      %v2629 = vld [vmem:[%s8 + $0x658] sm:$0xff]
      %v2630 = vld [vmem:[%s8 + $0x660] sm:$0xff]
      %v2631 = vld [vmem:[%s8 + $0x668] sm:$0xff]
      %v2632 = vld [vmem:[%s8 + $0x670] sm:$0xff]
      %v2633 = vld [vmem:[%s8 + $0x678] sm:$0xff]
      %v2634 = vld [vmem:[%s8 + $0x680] sm:$0xff]
      %v2635 = vld [vmem:[%s8 + $0x688] sm:$0xff]
      %v2636 = vld [vmem:[%s8 + $0x690] sm:$0xff]
      %v2637 = vld [vmem:[%s8 + $0x698] sm:$0xff]
      %v2638 = vld [vmem:[%s8 + $0x6a0] sm:$0xff]
      %v2639 = vld [vmem:[%s8 + $0x6a8] sm:$0xff]
      %v2640 = vld [vmem:[%s8 + $0x6b0] sm:$0xff]
      %v2641 = vld [vmem:[%s8 + $0x6b8] sm:$0xff]
      %v2642 = vld [vmem:[%s8 + $0x6c0] sm:$0xff]
      %v2643 = vld [vmem:[%s8 + $0x6c8] sm:$0xff]
      %v2644 = vld [vmem:[%s8 + $0x6d0] sm:$0xff]
      %v2645 = vld [vmem:[%s8 + $0x6d8] sm:$0xff]
      %v2646 = vld [vmem:[%s8 + $0x6e0] sm:$0xff]
      %v2647 = vld [vmem:[%s8 + $0x6e8] sm:$0xff]
      %v2648 = vld [vmem:[%s8 + $0x6f0] sm:$0xff]
      %v2649 = vld [vmem:[%s8 + $0x6f8] sm:$0xff]
      %v2650 = vld [vmem:[%s8 + $0x700] sm:$0xff]
      %v2651 = vld [vmem:[%s8 + $0x708] sm:$0xff]
      %v2652 = vld [vmem:[%s8 + $0x710] sm:$0xff]
      %v2653 = vld [vmem:[%s8 + $0x718] sm:$0xff]
      %v2654 = vld [vmem:[%s8 + $0x720] sm:$0xff]
      %v2655 = vld [vmem:[%s8 + $0x728] sm:$0xff]
      %v2656 = vld [vmem:[%s8 + $0x730] sm:$0xff]
      %v2657 = vld [vmem:[%s8 + $0x738] sm:$0xff]
      %v2658 = vld [vmem:[%s8 + $0x740] sm:$0xff]
      %v2659 = vld [vmem:[%s8 + $0x748] sm:$0xff]
      %v2660 = vld [vmem:[%s8 + $0x750] sm:$0xff]
      %v2661 = vld [vmem:[%s8 + $0x758] sm:$0xff]
      %v2662 = vld [vmem:[%s8 + $0x760] sm:$0xff]
      %v2663 = vld [vmem:[%s8 + $0x768] sm:$0xff]
      %v2664 = vld [vmem:[%s8 + $0x770] sm:$0xff]
      %v2665 = vld [vmem:[%s8 + $0x778] sm:$0xff]
      %v2666 = vld [vmem:[%s8 + $0x780] sm:$0xff]
      %v2667 = vld [vmem:[%s8 + $0x788] sm:$0xff]
      %v2668 = vld [vmem:[%s8 + $0x790] sm:$0xff]
      %v2669 = vld [vmem:[%s8 + $0x798] sm:$0xff]
      %v2670 = vld [vmem:[%s8 + $0x7a0] sm:$0xff]
      %v2671 = vld [vmem:[%s8 + $0x7a8] sm:$0xff]
      %v2672 = vld [vmem:[%s8 + $0x7b0] sm:$0xff]
      %v2673 = vld [vmem:[%s8 + $0x7b8] sm:$0xff]
      %v2674 = vld [vmem:[%s8 + $0x7c0] sm:$0xff]
      %v2675 = vld [vmem:[%s8 + $0x7c8] sm:$0xff]
      %v2676 = vld [vmem:[%s8 + $0x7d0] sm:$0xff]
      %v2677 = vld [vmem:[%s8 + $0x7d8] sm:$0xff]
      %v2678 = vld [vmem:[%s8 + $0x7e0] sm:$0xff]
      %v2679 = vld [vmem:[%s8 + $0x7e8] sm:$0xff]
      %v2680 = vld [vmem:[%s8 + $0x7f0] sm:$0xff]
      %v2681 = vld [vmem:[%s8 + $0x7f8] sm:$0xff]
      %v2682 = vld [vmem:[%s8 + $0x800] sm:$0xff]
      %v2683 = vld [vmem:[%s8 + $0x808] sm:$0xff]
      %v2684 = vld [vmem:[%s8 + $0x810] sm:$0xff]
      %v2685 = vld [vmem:[%s8 + $0x818] sm:$0xff]
      %v2686 = vld [vmem:[%s8 + $0x820] sm:$0xff]
      %v2687 = vld [vmem:[%s8 + $0x828] sm:$0xff]
      %v2688 = vld [vmem:[%s8 + $0x830] sm:$0xff]
      %v2689 = vld [vmem:[%s8 + $0x838] sm:$0xff]
      %v2690 = vld [vmem:[%s8 + $0x840] sm:$0xff]
      %v2691 = vld [vmem:[%s8 + $0x848] sm:$0xff]
      %v2692 = vld [vmem:[%s8 + $0x850] sm:$0xff]
      %v2693 = vld [vmem:[%s8 + $0x858] sm:$0xff]
      %v2694 = vld [vmem:[%s8 + $0x860] sm:$0xff]
      %v2695 = vld [vmem:[%s8 + $0x868] sm:$0xff]
      %v2696 = vld [vmem:[%s8 + $0x870] sm:$0xff]
      %v2697 = vld [vmem:[%s8 + $0x878] sm:$0xff]
      %v2698 = vld [vmem:[%s8 + $0x880] sm:$0xff]
      %v2699 = vld [vmem:[%s8 + $0x888] sm:$0xff]
      %v2700 = vld [vmem:[%s8 + $0x890] sm:$0xff]
      %v2701 = vld [vmem:[%s8 + $0x898] sm:$0xff]
      %v2702 = vld [vmem:[%s8 + $0x8a0] sm:$0xff]
      %v2703 = vld [vmem:[%s8 + $0x8a8] sm:$0xff]
      %v2704 = vld [vmem:[%s8 + $0x8b0] sm:$0xff]
      %v2705 = vld [vmem:[%s8 + $0x8b8] sm:$0xff]
      %v2706 = vld [vmem:[%s8 + $0x8c0] sm:$0xff]
      %v2707 = vld [vmem:[%s8 + $0x8c8] sm:$0xff]
      %v2708 = vld [vmem:[%s8 + $0x8d0] sm:$0xff]
      %v2709 = vld [vmem:[%s8 + $0x8d8] sm:$0xff]
      %v2710 = vld [vmem:[%s8 + $0x8e0] sm:$0xff]
      %v2711 = vld [vmem:[%s8 + $0x8e8] sm:$0xff]
      %v2712 = vld [vmem:[%s8 + $0x8f0] sm:$0xff]
      %v2713 = vld [vmem:[%s8 + $0x8f8] sm:$0xff]
      %v2714 = vld [vmem:[%s8 + $0x900] sm:$0xff]
      %v2715 = vld [vmem:[%s8 + $0x908] sm:$0xff]
      %v2716 = vld [vmem:[%s8 + $0x910] sm:$0xff]
      %v2717 = vld [vmem:[%s8 + $0x918] sm:$0xff]
      %v2718 = vld [vmem:[%s8 + $0x920] sm:$0xff]
      %v2719 = vld [vmem:[%s8 + $0x928] sm:$0xff]
      %v2720 = vld [vmem:[%s9] sm:$0x1]
      %v2721 = vld [vmem:[%s10] sm:$0xff]
      %v2722 = vld [vmem:[%s10 + $0x8] sm:$0xff]
      %v2723 = vld [vmem:[%s10 + $0x10] sm:$0xff]
      %v2724 = vld [vmem:[%s10 + $0x18] sm:$0xff]
      %v2725 = vld [vmem:[%s10 + $0x20] sm:$0xff]
      %v2726 = vld [vmem:[%s10 + $0x28] sm:$0xff]
      %v2727 = vld [vmem:[%s10 + $0x30] sm:$0xff]
      %v2728 = vld [vmem:[%s10 + $0x38] sm:$0xff]
      %v2729 = vld [vmem:[%s10 + $0x40] sm:$0xff]
      %v2730 = vld [vmem:[%s10 + $0x48] sm:$0xff]
      %v2731 = vld [vmem:[%s10 + $0x50] sm:$0xff]
      %v2732 = vld [vmem:[%s10 + $0x58] sm:$0xff]
      %v2733 = vld [vmem:[%s11] sm:$0x1]
      %v2734 = vld [vmem:[%s12] sm:$0xff]
      %v2735 = vld [vmem:[%s12 + $0x8] sm:$0xff]
      %v2736 = vld [vmem:[%s12 + $0x10] sm:$0xff]
      %v2737 = vld [vmem:[%s12 + $0x18] sm:$0xff]
      %v2738 = vld [vmem:[%s12 + $0x20] sm:$0xff]
      %v2739 = vld [vmem:[%s12 + $0x28] sm:$0xff]
      %v2740 = vld [vmem:[%s12 + $0x30] sm:$0xff]
      %v2741 = vld [vmem:[%s12 + $0x38] sm:$0xff]
      %v2742 = vld [vmem:[%s12 + $0x40] sm:$0xff]
      %v2743 = vld [vmem:[%s12 + $0x48] sm:$0xff]
      %v2744 = vld [vmem:[%s12 + $0x50] sm:$0xff]
      %v2745 = vld [vmem:[%s12 + $0x58] sm:$0xff]
      %v2746 = vld [vmem:[%s12 + $0x60] sm:$0xf]
      %v2747 = vld [vmem:[%s13] sm:$0x1]
      %v2749 = vlaneseq
      %v2750 = vshrl.u32 %v2749, 7
      %v2751 = vsub.s32 0, %v2750
      %v2752 = vrot.slane %v2425, %v2751
      %v2753 = vlaneseq
      %v2754 = vshrl.u32 %v2753, 7
      %v2755 = vsub.s32 1, %v2754
      %v2756 = vrot.slane %v2425, %v2755
      %v2757 = vlaneseq
      %v2758 = vshrl.u32 %v2757, 7
      %v2759 = vsub.s32 2, %v2758
      %v2760 = vrot.slane %v2425, %v2759
      %vm2764 = vcmask 457728
      %v2766 = vsel %vm2764, %v2214, 0
      %2768 = vmatprep.subr.mxu0 %v2309
      %2769 = vmatpush1.msra.mxu0 %v2308
      %2770 = vmatprep.subr.mxu0 %v2312
      %2771 = vmatpush1.msra.mxu0 %v2311
      %2772 = vmatprep.subr.mxu0 %v2315
      %2773 = vmatpush1.msra.mxu0 %v2314
      %2774 = vmatprep.subr.mxu0 %v2318
      %2775 = vmatpush1.msra.mxu0 %v2317
      %2776 = vmatprep.subr.mxu0 %v2321
      %2777 = vmatpush1.msra.mxu0 %v2320
      %2778 = vmatprep.subr.mxu0 %v2324
      %2779 = vmatpush1.msra.mxu0 %v2323
      %2780 = vmatprep.subr.mxu0 %v2327
      %2781 = vmatpush1.msra.mxu0 %v2326
      %2782 = vmatprep.subr.mxu0 %v2330
      %2783 = vmatpush1.msra.mxu0 %v2329
      %2784 = vmatprep.subr.mxu0 %v2333
      %2785 = vmatpush1.msra.mxu0 %v2332
      %2786 = vmatprep.subr.mxu0 %v2336
      %2787 = vmatpush1.msra.mxu0 %v2335
      %2788 = vmatprep.subr.mxu0 %v2339
      %2789 = vmatpush1.msra.mxu0 %v2338
      %2790 = vmatprep.subr.mxu0 %v2342
      %2791 = vmatpush1.msra.mxu0 %v2341
      %2792 = vmatprep.subr.mxu0 %v2345
      %2793 = vmatpush1.msra.mxu0 %v2344
      %2794 = vmatprep.subr.mxu0 %v2348
      %2795 = vmatpush1.msra.mxu0 %v2347
      %2796 = vmatprep.subr.mxu0 %v2351
      %2797 = vmatpush1.msra.mxu0 %v2350
      %2798 = vmatprep.subr.mxu0 %v2354
      %2799 = vmatpush1.msra.mxu0 %v2353
      %2800 = vmatprep.subr.mxu0 %v2357
      %2801 = vmatpush1.msra.mxu0 %v2356
      %2802 = vmatprep.subr.mxu0 %v2360
      %2803 = vmatpush1.msra.mxu0 %v2359
      %2804 = vmatprep.subr.mxu0 %v2363
      %2805 = vmatpush1.msra.mxu0 %v2362
      %2806 = vmatprep.subr.mxu0 %v2366
      %2807 = vmatpush1.msra.mxu0 %v2365
      %2808 = vmatprep.subr.mxu0 %v2369
      %2809 = vmatpush1.msra.mxu0 %v2368
      %2810 = vmatprep.subr.mxu0 %v2372
      %2811 = vmatpush1.msra.mxu0 %v2371
      %2812 = vmatprep.subr.mxu0 %v2375
      %2813 = vmatpush1.msra.mxu0 %v2374
      %2814 = vmatprep.subr.mxu0 %v2378
      %2815 = vmatpush1.msra.mxu0 %v2377
      %2816 = vmatprep.subr.mxu0 %v2381
      %2817 = vmatpush1.msra.mxu0 %v2380
      %2818 = vmatprep.subr.mxu0 %v2384
      %2819 = vmatpush1.msra.mxu0 %v2383
      %2820 = vmatprep.subr.mxu0 %v2387
      %2821 = vmatpush1.msra.mxu0 %v2386
      %2822 = vmatprep.subr.mxu0 %v2390
      %2823 = vmatpush1.msra.mxu0 %v2389
      %2824 = vmatprep.subr.mxu0 %v2393
      %2825 = vmatpush1.msra.mxu0 %v2392
      %2826 = vmatprep.subr.mxu0 %v2396
      %2827 = vmatpush1.msra.mxu0 %v2395
      %2828 = vmatprep.subr.mxu0 %v2399
      %2829 = vmatpush1.msra.mxu0 %v2398
      %2830 = vmatprep.subr.mxu0 %v2402
      %2831 = vmatpush1.msra.mxu0 %v2401
      %2832 = vmatprep.mubr.f32.mxu0 %v2213
      %2833 = vmatmul.mubr.f32.gmra.mrb[0].mxu0 %v2212
      %v2834 = vpop.f32.mrb[0].mxu0
      %v2835 = vadd.f32 %v2752, %v2834
      %v2836 = vpop.f32.mrb[0].mxu0
      %v2837 = vadd.f32 %v2756, %v2836
      %2838 = vdwg.mxu0
      %2839 = vmatprep.subr.mxu0 %v2405
      %2840 = vmatpush1.msra.mxu0 %v2404
      %2841 = vmatprep.subr.mxu0 %v2408
      %2842 = vmatpush1.msra.mxu0 %v2407
      %2843 = vmatprep.subr.mxu0 %v2411
      %2844 = vmatpush1.msra.mxu0 %v2410
      %2845 = vmatprep.subr.mxu0 %v2414
      %2846 = vmatpush1.msra.mxu0 %v2413
      %2847 = vmatprep.subr.mxu0 %v2417
      %2848 = vmatpush1.msra.mxu0 %v2416
      %2849 = vmatprep.subr.mxu0 %v2420
      %2850 = vmatpush1.msra.mxu0 %v2419
      %2851 = vmatprep.subr.mxu0 %v2423
      %2852 = vmatpush1.msra.mxu0 %v2422
      %2853 = vmatprep.subr.mxu0 0.0
      %2854 = vmatpush1.msra.mxu0 0.0
      %2855 = vmatprep.subr.mxu0 0.0
      %2856 = vmatpush1.msra.mxu0 0.0
      %2857 = vmatprep.subr.mxu0 0.0
      %2858 = vmatpush1.msra.mxu0 0.0
      %2859 = vmatprep.subr.mxu0 0.0
      %2860 = vmatpush1.msra.mxu0 0.0
      %2861 = vmatprep.subr.mxu0 0.0
      %2862 = vmatpush1.msra.mxu0 0.0
      %2863 = vmatprep.subr.mxu0 0.0
      %2864 = vmatpush1.msra.mxu0 0.0
      %2865 = vmatprep.subr.mxu0 0.0
      %2866 = vmatpush1.msra.mxu0 0.0
      %2867 = vmatprep.subr.mxu0 0.0
      %2868 = vmatpush1.msra.mxu0 0.0
      %2869 = vmatprep.subr.mxu0 0.0
      %2870 = vmatpush1.msra.mxu0 0.0
      %2871 = vmatprep.subr.mxu0 0.0
      %2872 = vmatpush1.msra.mxu0 0.0
      %2873 = vmatprep.subr.mxu0 0.0
      %2874 = vmatpush1.msra.mxu0 0.0
      %2875 = vmatprep.subr.mxu0 0.0
      %2876 = vmatpush1.msra.mxu0 0.0
      %2877 = vmatprep.subr.mxu0 0.0
      %2878 = vmatpush1.msra.mxu0 0.0
      %2879 = vmatprep.subr.mxu0 0.0
      %2880 = vmatpush1.msra.mxu0 0.0
      %2881 = vmatprep.subr.mxu0 0.0
      %2882 = vmatpush1.msra.mxu0 0.0
      %2883 = vmatprep.subr.mxu0 0.0
      %2884 = vmatpush1.msra.mxu0 0.0
      %2885 = vmatprep.subr.mxu0 0.0
      %2886 = vmatpush1.msra.mxu0 0.0
      %2887 = vmatprep.subr.mxu0 0.0
      %2888 = vmatpush1.msra.mxu0 0.0
      %2889 = vmatprep.subr.mxu0 0.0
      %2890 = vmatpush1.msra.mxu0 0.0
      %2891 = vmatprep.subr.mxu0 0.0
      %2892 = vmatpush1.msra.mxu0 0.0
      %2893 = vmatprep.subr.mxu0 0.0
      %2894 = vmatpush1.msra.mxu0 0.0
      %2895 = vmatprep.subr.mxu0 0.0
      %2896 = vmatpush1.msra.mxu0 0.0
      %2897 = vmatprep.subr.mxu0 0.0
      %2898 = vmatpush1.msra.mxu0 0.0
      %2899 = vmatprep.subr.mxu0 0.0
      %2900 = vmatpush1.msra.mxu0 0.0
      %2901 = vmatprep.subr.mxu0 0.0
      %2902 = vmatpush1.msra.mxu0 0.0
      %2903 = vmatprep.mubr.f32.mxu0 0.0
      %2904 = vmatmul.mubr.f32.gmra.mrb[0].mxu0 %v2766
      %v2905 = vpop.f32.mrb[0].mxu0
      %v2906 = vadd.f32 %v2835, %v2905
      %v2907 = vpop.f32.mrb[0].mxu0
      %v2908 = vadd.f32 %v2837, %v2907
      %2909 = vdwg.mxu0
      %2910 = vmatprep.subr.mxu0 0.0
      %2911 = vmatpush1.msra.mxu0 %v2310
      %2912 = vmatprep.subr.mxu0 0.0
      %2913 = vmatpush1.msra.mxu0 %v2313
      %2914 = vmatprep.subr.mxu0 0.0
      %2915 = vmatpush1.msra.mxu0 %v2316
      %2916 = vmatprep.subr.mxu0 0.0
      %2917 = vmatpush1.msra.mxu0 %v2319
      %2918 = vmatprep.subr.mxu0 0.0
      %2919 = vmatpush1.msra.mxu0 %v2322
      %2920 = vmatprep.subr.mxu0 0.0
      %2921 = vmatpush1.msra.mxu0 %v2325
      %2922 = vmatprep.subr.mxu0 0.0
      %2923 = vmatpush1.msra.mxu0 %v2328
      %2924 = vmatprep.subr.mxu0 0.0
      %2925 = vmatpush1.msra.mxu0 %v2331
      %2926 = vmatprep.subr.mxu0 0.0
      %2927 = vmatpush1.msra.mxu0 %v2334
      %2928 = vmatprep.subr.mxu0 0.0
      %2929 = vmatpush1.msra.mxu0 %v2337
      %2930 = vmatprep.subr.mxu0 0.0
      %2931 = vmatpush1.msra.mxu0 %v2340
      %2932 = vmatprep.subr.mxu0 0.0
      %2933 = vmatpush1.msra.mxu0 %v2343
      %2934 = vmatprep.subr.mxu0 0.0
      %2935 = vmatpush1.msra.mxu0 %v2346
      %2936 = vmatprep.subr.mxu0 0.0
      %2937 = vmatpush1.msra.mxu0 %v2349
      %2938 = vmatprep.subr.mxu0 0.0
      %2939 = vmatpush1.msra.mxu0 %v2352
      %2940 = vmatprep.subr.mxu0 0.0
      %2941 = vmatpush1.msra.mxu0 %v2355
      %2942 = vmatprep.subr.mxu0 0.0
      %2943 = vmatpush1.msra.mxu0 %v2358
      %2944 = vmatprep.subr.mxu0 0.0
      %2945 = vmatpush1.msra.mxu0 %v2361
      %2946 = vmatprep.subr.mxu0 0.0
      %2947 = vmatpush1.msra.mxu0 %v2364
      %2948 = vmatprep.subr.mxu0 0.0
      %2949 = vmatpush1.msra.mxu0 %v2367
      %2950 = vmatprep.subr.mxu0 0.0
      %2951 = vmatpush1.msra.mxu0 %v2370
      %2952 = vmatprep.subr.mxu0 0.0
      %2953 = vmatpush1.msra.mxu0 %v2373
      %2954 = vmatprep.subr.mxu0 0.0
      %2955 = vmatpush1.msra.mxu0 %v2376
      %2956 = vmatprep.subr.mxu0 0.0
      %2957 = vmatpush1.msra.mxu0 %v2379
      %2958 = vmatprep.subr.mxu0 0.0
      %2959 = vmatpush1.msra.mxu0 %v2382
      %2960 = vmatprep.subr.mxu0 0.0
      %2961 = vmatpush1.msra.mxu0 %v2385
      %2962 = vmatprep.subr.mxu0 0.0
      %2963 = vmatpush1.msra.mxu0 %v2388
      %2964 = vmatprep.subr.mxu0 0.0
      %2965 = vmatpush1.msra.mxu0 %v2391
      %2966 = vmatprep.subr.mxu0 0.0
      %2967 = vmatpush1.msra.mxu0 %v2394
      %2968 = vmatprep.subr.mxu0 0.0
      %2969 = vmatpush1.msra.mxu0 %v2397
      %2970 = vmatprep.subr.mxu0 0.0
      %2971 = vmatpush1.msra.mxu0 %v2400
      %2972 = vmatprep.subr.mxu0 0.0
      %2973 = vmatpush1.msra.mxu0 %v2403
      %2974 = vmatprep.mubr.f32.mxu0 %v2213
      %2975 = vmatmul.mubr.f32.gmra.mrb[0].mxu0 %v2212
      %v2976 = vpop.f32.mrb[0].mxu0
      %v2977 = vadd.f32 %v2760, %v2976
      %v2978 = vpop.f32.mrb[0].mxu0
      %2979 = vdwg.mxu0
      %2980 = vmatprep.subr.mxu0 0.0
      %2981 = vmatpush1.msra.mxu0 %v2406
      %2982 = vmatprep.subr.mxu0 0.0
      %2983 = vmatpush1.msra.mxu0 %v2409
      %2984 = vmatprep.subr.mxu0 0.0
      %2985 = vmatpush1.msra.mxu0 %v2412
      %2986 = vmatprep.subr.mxu0 0.0
      %2987 = vmatpush1.msra.mxu0 %v2415
      %2988 = vmatprep.subr.mxu0 0.0
      %2989 = vmatpush1.msra.mxu0 %v2418
      %2990 = vmatprep.subr.mxu0 0.0
      %2991 = vmatpush1.msra.mxu0 %v2421
      %2992 = vmatprep.subr.mxu0 0.0
      %2993 = vmatpush1.msra.mxu0 %v2424
      %2994 = vmatprep.subr.mxu0 0.0
      %2995 = vmatpush1.msra.mxu0 0.0
      %2996 = vmatprep.subr.mxu0 0.0
      %2997 = vmatpush1.msra.mxu0 0.0
      %2998 = vmatprep.subr.mxu0 0.0
      %2999 = vmatpush1.msra.mxu0 0.0
      %3000 = vmatprep.subr.mxu0 0.0
      %3001 = vmatpush1.msra.mxu0 0.0
      %3002 = vmatprep.subr.mxu0 0.0
      %3003 = vmatpush1.msra.mxu0 0.0
      %3004 = vmatprep.subr.mxu0 0.0
      %3005 = vmatpush1.msra.mxu0 0.0
      %3006 = vmatprep.subr.mxu0 0.0
      %3007 = vmatpush1.msra.mxu0 0.0
      %3008 = vmatprep.subr.mxu0 0.0
      %3009 = vmatpush1.msra.mxu0 0.0
      %3010 = vmatprep.subr.mxu0 0.0
      %3011 = vmatpush1.msra.mxu0 0.0
      %3012 = vmatprep.subr.mxu0 0.0
      %3013 = vmatpush1.msra.mxu0 0.0
      %3014 = vmatprep.subr.mxu0 0.0
      %3015 = vmatpush1.msra.mxu0 0.0
      %3016 = vmatprep.subr.mxu0 0.0
      %3017 = vmatpush1.msra.mxu0 0.0
      %3018 = vmatprep.subr.mxu0 0.0
      %3019 = vmatpush1.msra.mxu0 0.0
      %3020 = vmatprep.subr.mxu0 0.0
      %3021 = vmatpush1.msra.mxu0 0.0
      %3022 = vmatprep.subr.mxu0 0.0
      %3023 = vmatpush1.msra.mxu0 0.0
      %3024 = vmatprep.subr.mxu0 0.0
      %3025 = vmatpush1.msra.mxu0 0.0
      %3026 = vmatprep.subr.mxu0 0.0
      %3027 = vmatpush1.msra.mxu0 0.0
      %3028 = vmatprep.subr.mxu0 0.0
      %3029 = vmatpush1.msra.mxu0 0.0
      %3030 = vmatprep.subr.mxu0 0.0
      %3031 = vmatpush1.msra.mxu0 0.0
      %3032 = vmatprep.subr.mxu0 0.0
      %3033 = vmatpush1.msra.mxu0 0.0
      %3034 = vmatprep.subr.mxu0 0.0
      %3035 = vmatpush1.msra.mxu0 0.0
      %3036 = vmatprep.subr.mxu0 0.0
      %3037 = vmatpush1.msra.mxu0 0.0
      %3038 = vmatprep.subr.mxu0 0.0
      %3039 = vmatpush1.msra.mxu0 0.0
      %3040 = vmatprep.subr.mxu0 0.0
      %3041 = vmatpush1.msra.mxu0 0.0
      %3042 = vmatprep.subr.mxu0 0.0
      %3043 = vmatpush1.msra.mxu0 0.0
      %3044 = vmatprep.mubr.f32.mxu0 0.0
      %3045 = vmatmul.mubr.f32.gmra.mrb[0].mxu0 %v2766
      %v3046 = vpop.f32.mrb[0].mxu0
      %v3047 = vadd.f32 %v2977, %v3046
      %v3048 = vpop.f32.mrb[0].mxu0
      %3049 = vdwg.mxu0
      %v3050 = vsub.f32 0.0, %v2906
      %v3051 = vsub.f32 0.0, %v2908
      %v3052 = vsub.f32 0.0, %v3047
      %v3053 = vmul.f32 %v3050, 1.442695
      %v3054 = vpow.pop %v3053
      %v3055 = vmul.f32 %v3051, 1.442695
      %v3056 = vpow.pop %v3055
      %v3057 = vmul.f32 %v3052, 1.442695
      %v3058 = vpow.pop %v3057
      %v3059 = vadd.f32 %v3054, 1.0
      %v3060 = vadd.f32 %v3056, 1.0
      %v3061 = vadd.f32 %v3058, 1.0
      %v3062 = vrcp.pop %v3059
      %v3063 = vrcp.pop %v3060
      %v3064 = vrcp.pop %v3061
      %v3066 = vsel %vm2764, %v2298, 0
      %3068 = vmatprep.subr.mxu0 %v2309
      %3069 = vmatpush1.msra.mxu0 %v2308
      %3070 = vmatprep.subr.mxu0 %v2312
      %3071 = vmatpush1.msra.mxu0 %v2311
      %3072 = vmatprep.subr.mxu0 %v2315
      %3073 = vmatpush1.msra.mxu0 %v2314
      %3074 = vmatprep.subr.mxu0 %v2318
      %3075 = vmatpush1.msra.mxu0 %v2317
      %3076 = vmatprep.subr.mxu0 %v2321
      %3077 = vmatpush1.msra.mxu0 %v2320
      %3078 = vmatprep.subr.mxu0 %v2324
      %3079 = vmatpush1.msra.mxu0 %v2323
      %3080 = vmatprep.subr.mxu0 %v2327
      %3081 = vmatpush1.msra.mxu0 %v2326
      %3082 = vmatprep.subr.mxu0 %v2330
      %3083 = vmatpush1.msra.mxu0 %v2329
      %3084 = vmatprep.subr.mxu0 %v2333
      %3085 = vmatpush1.msra.mxu0 %v2332
      %3086 = vmatprep.subr.mxu0 %v2336
      %3087 = vmatpush1.msra.mxu0 %v2335
      %3088 = vmatprep.subr.mxu0 %v2339
      %3089 = vmatpush1.msra.mxu0 %v2338
      %3090 = vmatprep.subr.mxu0 %v2342
      %3091 = vmatpush1.msra.mxu0 %v2341
      %3092 = vmatprep.subr.mxu0 %v2345
      %3093 = vmatpush1.msra.mxu0 %v2344
      %3094 = vmatprep.subr.mxu0 %v2348
      %3095 = vmatpush1.msra.mxu0 %v2347
      %3096 = vmatprep.subr.mxu0 %v2351
      %3097 = vmatpush1.msra.mxu0 %v2350
      %3098 = vmatprep.subr.mxu0 %v2354
      %3099 = vmatpush1.msra.mxu0 %v2353
      %3100 = vmatprep.subr.mxu0 %v2357
      %3101 = vmatpush1.msra.mxu0 %v2356
      %3102 = vmatprep.subr.mxu0 %v2360
      %3103 = vmatpush1.msra.mxu0 %v2359
      %3104 = vmatprep.subr.mxu0 %v2363
      %3105 = vmatpush1.msra.mxu0 %v2362
      %3106 = vmatprep.subr.mxu0 %v2366
      %3107 = vmatpush1.msra.mxu0 %v2365
      %3108 = vmatprep.subr.mxu0 %v2369
      %3109 = vmatpush1.msra.mxu0 %v2368
      %3110 = vmatprep.subr.mxu0 %v2372
      %3111 = vmatpush1.msra.mxu0 %v2371
      %3112 = vmatprep.subr.mxu0 %v2375
      %3113 = vmatpush1.msra.mxu0 %v2374
      %3114 = vmatprep.subr.mxu0 %v2378
      %3115 = vmatpush1.msra.mxu0 %v2377
      %3116 = vmatprep.subr.mxu0 %v2381
      %3117 = vmatpush1.msra.mxu0 %v2380
      %3118 = vmatprep.subr.mxu0 %v2384
      %3119 = vmatpush1.msra.mxu0 %v2383
      %3120 = vmatprep.subr.mxu0 %v2387
      %3121 = vmatpush1.msra.mxu0 %v2386
      %3122 = vmatprep.subr.mxu0 %v2390
      %3123 = vmatpush1.msra.mxu0 %v2389
      %3124 = vmatprep.subr.mxu0 %v2393
      %3125 = vmatpush1.msra.mxu0 %v2392
      %3126 = vmatprep.subr.mxu0 %v2396
      %3127 = vmatpush1.msra.mxu0 %v2395
      %3128 = vmatprep.subr.mxu0 %v2399
      %3129 = vmatpush1.msra.mxu0 %v2398
      %3130 = vmatprep.subr.mxu0 %v2402
      %3131 = vmatpush1.msra.mxu0 %v2401
      %3132 = vmatprep.mubr.f32.mxu0 %v2297
      %3133 = vmatmul.mubr.f32.gmra.mrb[0].mxu0 %v2296
      %v3134 = vpop.f32.mrb[0].mxu0
      %v3135 = vadd.f32 %v2752, %v3134
      %v3136 = vpop.f32.mrb[0].mxu0
      %v3137 = vadd.f32 %v2756, %v3136
      %3138 = vdwg.mxu0
      %3139 = vmatprep.subr.mxu0 %v2405
      %3140 = vmatpush1.msra.mxu0 %v2404
      %3141 = vmatprep.subr.mxu0 %v2408
      %3142 = vmatpush1.msra.mxu0 %v2407
      %3143 = vmatprep.subr.mxu0 %v2411
      %3144 = vmatpush1.msra.mxu0 %v2410
      %3145 = vmatprep.subr.mxu0 %v2414
      %3146 = vmatpush1.msra.mxu0 %v2413
      %3147 = vmatprep.subr.mxu0 %v2417
      %3148 = vmatpush1.msra.mxu0 %v2416
      %3149 = vmatprep.subr.mxu0 %v2420
      %3150 = vmatpush1.msra.mxu0 %v2419
      %3151 = vmatprep.subr.mxu0 %v2423
      %3152 = vmatpush1.msra.mxu0 %v2422
      %3153 = vmatprep.subr.mxu0 0.0
      %3154 = vmatpush1.msra.mxu0 0.0
      %3155 = vmatprep.subr.mxu0 0.0
      %3156 = vmatpush1.msra.mxu0 0.0
      %3157 = vmatprep.subr.mxu0 0.0
      %3158 = vmatpush1.msra.mxu0 0.0
      %3159 = vmatprep.subr.mxu0 0.0
      %3160 = vmatpush1.msra.mxu0 0.0
      %3161 = vmatprep.subr.mxu0 0.0
      %3162 = vmatpush1.msra.mxu0 0.0
      %3163 = vmatprep.subr.mxu0 0.0
      %3164 = vmatpush1.msra.mxu0 0.0
      %3165 = vmatprep.subr.mxu0 0.0
      %3166 = vmatpush1.msra.mxu0 0.0
      %3167 = vmatprep.subr.mxu0 0.0
      %3168 = vmatpush1.msra.mxu0 0.0
      %3169 = vmatprep.subr.mxu0 0.0
      %3170 = vmatpush1.msra.mxu0 0.0
      %3171 = vmatprep.subr.mxu0 0.0
      %3172 = vmatpush1.msra.mxu0 0.0
      %3173 = vmatprep.subr.mxu0 0.0
      %3174 = vmatpush1.msra.mxu0 0.0
      %3175 = vmatprep.subr.mxu0 0.0
      %3176 = vmatpush1.msra.mxu0 0.0
      %3177 = vmatprep.subr.mxu0 0.0
      %3178 = vmatpush1.msra.mxu0 0.0
      %3179 = vmatprep.subr.mxu0 0.0
      %3180 = vmatpush1.msra.mxu0 0.0
      %3181 = vmatprep.subr.mxu0 0.0
      %3182 = vmatpush1.msra.mxu0 0.0
      %3183 = vmatprep.subr.mxu0 0.0
      %3184 = vmatpush1.msra.mxu0 0.0
      %3185 = vmatprep.subr.mxu0 0.0
      %3186 = vmatpush1.msra.mxu0 0.0
      %3187 = vmatprep.subr.mxu0 0.0
      %3188 = vmatpush1.msra.mxu0 0.0
      %3189 = vmatprep.subr.mxu0 0.0
      %3190 = vmatpush1.msra.mxu0 0.0
      %3191 = vmatprep.subr.mxu0 0.0
      %3192 = vmatpush1.msra.mxu0 0.0
      %3193 = vmatprep.subr.mxu0 0.0
      %3194 = vmatpush1.msra.mxu0 0.0
      %3195 = vmatprep.subr.mxu0 0.0
      %3196 = vmatpush1.msra.mxu0 0.0
      %3197 = vmatprep.subr.mxu0 0.0
      %3198 = vmatpush1.msra.mxu0 0.0
      %3199 = vmatprep.subr.mxu0 0.0
      %3200 = vmatpush1.msra.mxu0 0.0
      %3201 = vmatprep.subr.mxu0 0.0
      %3202 = vmatpush1.msra.mxu0 0.0
      %3203 = vmatprep.mubr.f32.mxu0 0.0
      %3204 = vmatmul.mubr.f32.gmra.mrb[0].mxu0 %v3066
      %v3205 = vpop.f32.mrb[0].mxu0
      %v3206 = vadd.f32 %v3135, %v3205
      %v3207 = vpop.f32.mrb[0].mxu0
      %v3208 = vadd.f32 %v3137, %v3207
      %3209 = vdwg.mxu0
      %3210 = vmatprep.subr.mxu0 0.0
      %3211 = vmatpush1.msra.mxu0 %v2310
      %3212 = vmatprep.subr.mxu0 0.0
      %3213 = vmatpush1.msra.mxu0 %v2313
      %3214 = vmatprep.subr.mxu0 0.0
      %3215 = vmatpush1.msra.mxu0 %v2316
      %3216 = vmatprep.subr.mxu0 0.0
      %3217 = vmatpush1.msra.mxu0 %v2319
      %3218 = vmatprep.subr.mxu0 0.0
      %3219 = vmatpush1.msra.mxu0 %v2322
      %3220 = vmatprep.subr.mxu0 0.0
      %3221 = vmatpush1.msra.mxu0 %v2325
      %3222 = vmatprep.subr.mxu0 0.0
      %3223 = vmatpush1.msra.mxu0 %v2328
      %3224 = vmatprep.subr.mxu0 0.0
      %3225 = vmatpush1.msra.mxu0 %v2331
      %3226 = vmatprep.subr.mxu0 0.0
      %3227 = vmatpush1.msra.mxu0 %v2334
      %3228 = vmatprep.subr.mxu0 0.0
      %3229 = vmatpush1.msra.mxu0 %v2337
      %3230 = vmatprep.subr.mxu0 0.0
      %3231 = vmatpush1.msra.mxu0 %v2340
      %3232 = vmatprep.subr.mxu0 0.0
      %3233 = vmatpush1.msra.mxu0 %v2343
      %3234 = vmatprep.subr.mxu0 0.0
      %3235 = vmatpush1.msra.mxu0 %v2346
      %3236 = vmatprep.subr.mxu0 0.0
      %3237 = vmatpush1.msra.mxu0 %v2349
      %3238 = vmatprep.subr.mxu0 0.0
      %3239 = vmatpush1.msra.mxu0 %v2352
      %3240 = vmatprep.subr.mxu0 0.0
      %3241 = vmatpush1.msra.mxu0 %v2355
      %3242 = vmatprep.subr.mxu0 0.0
      %3243 = vmatpush1.msra.mxu0 %v2358
      %3244 = vmatprep.subr.mxu0 0.0
      %3245 = vmatpush1.msra.mxu0 %v2361
      %3246 = vmatprep.subr.mxu0 0.0
      %3247 = vmatpush1.msra.mxu0 %v2364
      %3248 = vmatprep.subr.mxu0 0.0
      %3249 = vmatpush1.msra.mxu0 %v2367
      %3250 = vmatprep.subr.mxu0 0.0
      %3251 = vmatpush1.msra.mxu0 %v2370
      %3252 = vmatprep.subr.mxu0 0.0
      %3253 = vmatpush1.msra.mxu0 %v2373
      %3254 = vmatprep.subr.mxu0 0.0
      %3255 = vmatpush1.msra.mxu0 %v2376
      %3256 = vmatprep.subr.mxu0 0.0
      %3257 = vmatpush1.msra.mxu0 %v2379
      %3258 = vmatprep.subr.mxu0 0.0
      %3259 = vmatpush1.msra.mxu0 %v2382
      %3260 = vmatprep.subr.mxu0 0.0
      %3261 = vmatpush1.msra.mxu0 %v2385
      %3262 = vmatprep.subr.mxu0 0.0
      %3263 = vmatpush1.msra.mxu0 %v2388
      %3264 = vmatprep.subr.mxu0 0.0
      %3265 = vmatpush1.msra.mxu0 %v2391
      %3266 = vmatprep.subr.mxu0 0.0
      %3267 = vmatpush1.msra.mxu0 %v2394
      %3268 = vmatprep.subr.mxu0 0.0
      %3269 = vmatpush1.msra.mxu0 %v2397
      %3270 = vmatprep.subr.mxu0 0.0
      %3271 = vmatpush1.msra.mxu0 %v2400
      %3272 = vmatprep.subr.mxu0 0.0
      %3273 = vmatpush1.msra.mxu0 %v2403
      %3274 = vmatprep.mubr.f32.mxu0 %v2297
      %3275 = vmatmul.mubr.f32.gmra.mrb[0].mxu0 %v2296
      %v3276 = vpop.f32.mrb[0].mxu0
      %v3277 = vadd.f32 %v2760, %v3276
      %v3278 = vpop.f32.mrb[0].mxu0
      %3279 = vdwg.mxu0
      %3280 = vmatprep.subr.mxu0 0.0
      %3281 = vmatpush1.msra.mxu0 %v2406
      %3282 = vmatprep.subr.mxu0 0.0
      %3283 = vmatpush1.msra.mxu0 %v2409
      %3284 = vmatprep.subr.mxu0 0.0
      %3285 = vmatpush1.msra.mxu0 %v2412
      %3286 = vmatprep.subr.mxu0 0.0
      %3287 = vmatpush1.msra.mxu0 %v2415
      %3288 = vmatprep.subr.mxu0 0.0
      %3289 = vmatpush1.msra.mxu0 %v2418
      %3290 = vmatprep.subr.mxu0 0.0
      %3291 = vmatpush1.msra.mxu0 %v2421
      %3292 = vmatprep.subr.mxu0 0.0
      %3293 = vmatpush1.msra.mxu0 %v2424
      %3294 = vmatprep.subr.mxu0 0.0
      %3295 = vmatpush1.msra.mxu0 0.0
      %3296 = vmatprep.subr.mxu0 0.0
      %3297 = vmatpush1.msra.mxu0 0.0
      %3298 = vmatprep.subr.mxu0 0.0
      %3299 = vmatpush1.msra.mxu0 0.0
      %3300 = vmatprep.subr.mxu0 0.0
      %3301 = vmatpush1.msra.mxu0 0.0
      %3302 = vmatprep.subr.mxu0 0.0
      %3303 = vmatpush1.msra.mxu0 0.0
      %3304 = vmatprep.subr.mxu0 0.0
      %3305 = vmatpush1.msra.mxu0 0.0
      %3306 = vmatprep.subr.mxu0 0.0
      %3307 = vmatpush1.msra.mxu0 0.0
      %3308 = vmatprep.subr.mxu0 0.0
      %3309 = vmatpush1.msra.mxu0 0.0
      %3310 = vmatprep.subr.mxu0 0.0
      %3311 = vmatpush1.msra.mxu0 0.0
      %3312 = vmatprep.subr.mxu0 0.0
      %3313 = vmatpush1.msra.mxu0 0.0
      %3314 = vmatprep.subr.mxu0 0.0
      %3315 = vmatpush1.msra.mxu0 0.0
      %3316 = vmatprep.subr.mxu0 0.0
      %3317 = vmatpush1.msra.mxu0 0.0
      %3318 = vmatprep.subr.mxu0 0.0
      %3319 = vmatpush1.msra.mxu0 0.0
      %3320 = vmatprep.subr.mxu0 0.0
      %3321 = vmatpush1.msra.mxu0 0.0
      %3322 = vmatprep.subr.mxu0 0.0
      %3323 = vmatpush1.msra.mxu0 0.0
      %3324 = vmatprep.subr.mxu0 0.0
      %3325 = vmatpush1.msra.mxu0 0.0
      %3326 = vmatprep.subr.mxu0 0.0
      %3327 = vmatpush1.msra.mxu0 0.0
      %3328 = vmatprep.subr.mxu0 0.0
      %3329 = vmatpush1.msra.mxu0 0.0
      %3330 = vmatprep.subr.mxu0 0.0
      %3331 = vmatpush1.msra.mxu0 0.0
      %3332 = vmatprep.subr.mxu0 0.0
      %3333 = vmatpush1.msra.mxu0 0.0
      %3334 = vmatprep.subr.mxu0 0.0
      %3335 = vmatpush1.msra.mxu0 0.0
      %3336 = vmatprep.subr.mxu0 0.0
      %3337 = vmatpush1.msra.mxu0 0.0
      %3338 = vmatprep.subr.mxu0 0.0
      %3339 = vmatpush1.msra.mxu0 0.0
      %3340 = vmatprep.subr.mxu0 0.0
      %3341 = vmatpush1.msra.mxu0 0.0
      %3342 = vmatprep.subr.mxu0 0.0
      %3343 = vmatpush1.msra.mxu0 0.0
      %3344 = vmatprep.mubr.f32.mxu0 0.0
      %3345 = vmatmul.mubr.f32.gmra.mrb[0].mxu0 %v3066
      %v3346 = vpop.f32.mrb[0].mxu0
      %v3347 = vadd.f32 %v3277, %v3346
      %v3348 = vpop.f32.mrb[0].mxu0
      %3349 = vdwg.mxu0
      %v3350 = vsub.f32 0.0, %v3206
      %v3351 = vsub.f32 0.0, %v3208
      %v3352 = vsub.f32 0.0, %v3347
      %v3353 = vmul.f32 %v3350, 1.442695
      %v3354 = vpow.pop %v3353
      %v3355 = vmul.f32 %v3351, 1.442695
      %v3356 = vpow.pop %v3355
      %v3357 = vmul.f32 %v3352, 1.442695
      %v3358 = vpow.pop %v3357
      %v3359 = vadd.f32 %v3354, 1.0
      %v3360 = vadd.f32 %v3356, 1.0
      %v3361 = vadd.f32 %v3358, 1.0
      %v3362 = vrcp.pop %v3359
      %v3363 = vrcp.pop %v3360
      %v3364 = vrcp.pop %v3361
      %v3365 = vmax.f32 %v3062, %v3362
      %v3366 = vmax.f32 %v3063, %v3363
      %v3367 = vmax.f32 %v3064, %v3364
      %vm3368 = vcmask 654336
      %v3370 = vsel %vm3368, %v3367, 0
      %3372 = vmatprep.subr.mxu0 0.0
      %3373 = vmatpush1.msra.mxu0 %v2426
      %3374 = vmatprep.subr.mxu0 0.0
      %3375 = vmatpush1.msra.mxu0 %v2427
      %3376 = vmatprep.subr.mxu0 0.0
      %3377 = vmatpush1.msra.mxu0 %v2428
      %3378 = vmatprep.subr.mxu0 0.0
      %3379 = vmatpush1.msra.mxu0 %v2429
      %3380 = vmatprep.subr.mxu0 0.0
      %3381 = vmatpush1.msra.mxu0 %v2430
      %3382 = vmatprep.subr.mxu0 0.0
      %3383 = vmatpush1.msra.mxu0 %v2431
      %3384 = vmatprep.subr.mxu0 0.0
      %3385 = vmatpush1.msra.mxu0 %v2432
      %3386 = vmatprep.subr.mxu0 0.0
      %3387 = vmatpush1.msra.mxu0 %v2433
      %3388 = vmatprep.subr.mxu0 0.0
      %3389 = vmatpush1.msra.mxu0 %v2434
      %3390 = vmatprep.subr.mxu0 0.0
      %3391 = vmatpush1.msra.mxu0 %v2435
      %3392 = vmatprep.subr.mxu0 0.0
      %3393 = vmatpush1.msra.mxu0 %v2436
      %3394 = vmatprep.subr.mxu0 0.0
      %3395 = vmatpush1.msra.mxu0 %v2437
      %3396 = vmatprep.subr.mxu0 0.0
      %3397 = vmatpush1.msra.mxu0 %v2438
      %3398 = vmatprep.subr.mxu0 0.0
      %3399 = vmatpush1.msra.mxu0 %v2439
      %3400 = vmatprep.subr.mxu0 0.0
      %3401 = vmatpush1.msra.mxu0 %v2440
      %3402 = vmatprep.subr.mxu0 0.0
      %3403 = vmatpush1.msra.mxu0 %v2441
      %3404 = vmatprep.subr.mxu0 0.0
      %3405 = vmatpush1.msra.mxu0 %v2442
      %3406 = vmatprep.subr.mxu0 0.0
      %3407 = vmatpush1.msra.mxu0 %v2443
      %3408 = vmatprep.subr.mxu0 0.0
      %3409 = vmatpush1.msra.mxu0 %v2444
      %3410 = vmatprep.subr.mxu0 0.0
      %3411 = vmatpush1.msra.mxu0 %v2445
      %3412 = vmatprep.subr.mxu0 0.0
      %3413 = vmatpush1.msra.mxu0 %v2446
      %3414 = vmatprep.subr.mxu0 0.0
      %3415 = vmatpush1.msra.mxu0 %v2447
      %3416 = vmatprep.subr.mxu0 0.0
      %3417 = vmatpush1.msra.mxu0 %v2448
      %3418 = vmatprep.subr.mxu0 0.0
      %3419 = vmatpush1.msra.mxu0 %v2449
      %3420 = vmatprep.subr.mxu0 0.0
      %3421 = vmatpush1.msra.mxu0 %v2450
      %3422 = vmatprep.subr.mxu0 0.0
      %3423 = vmatpush1.msra.mxu0 %v2451
      %3424 = vmatprep.subr.mxu0 0.0
      %3425 = vmatpush1.msra.mxu0 %v2452
      %3426 = vmatprep.subr.mxu0 0.0
      %3427 = vmatpush1.msra.mxu0 %v2453
      %3428 = vmatprep.subr.mxu0 0.0
      %3429 = vmatpush1.msra.mxu0 %v2454
      %3430 = vmatprep.subr.mxu0 0.0
      %3431 = vmatpush1.msra.mxu0 %v2455
      %3432 = vmatprep.subr.mxu0 0.0
      %3433 = vmatpush1.msra.mxu0 %v2456
      %3434 = vmatprep.subr.mxu0 0.0
      %3435 = vmatpush1.msra.mxu0 %v2457
      %3436 = vmatprep.mubr.f32.mxu0 %v3366
      %3437 = vmatmul.mubr.f32.gmra.mrb[0].mxu0 %v3365
      %v3438 = vpop.f32.mrb[0].mxu0
      %v3439 = vadd.f32 0.0, %v3438
      %v3440 = vpop.f32.mrb[0].mxu0
      %3441 = vdwg.mxu0
      %3442 = vmatprep.subr.mxu0 0.0
      %3443 = vmatpush1.msra.mxu0 %v2458
      %3444 = vmatprep.subr.mxu0 0.0
      %3445 = vmatpush1.msra.mxu0 %v2459
      %3446 = vmatprep.subr.mxu0 0.0
      %3447 = vmatpush1.msra.mxu0 %v2460
      %3448 = vmatprep.subr.mxu0 0.0
      %3449 = vmatpush1.msra.mxu0 %v2461
      %3450 = vmatprep.subr.mxu0 0.0
      %3451 = vmatpush1.msra.mxu0 %v2462
      %3452 = vmatprep.subr.mxu0 0.0
      %3453 = vmatpush1.msra.mxu0 %v2463
      %3454 = vmatprep.subr.mxu0 0.0
      %3455 = vmatpush1.msra.mxu0 %v2464
      %3456 = vmatprep.subr.mxu0 0.0
      %3457 = vmatpush1.msra.mxu0 %v2465
      %3458 = vmatprep.subr.mxu0 0.0
      %3459 = vmatpush1.msra.mxu0 %v2466
      %3460 = vmatprep.subr.mxu0 0.0
      %3461 = vmatpush1.msra.mxu0 %v2467
      %3462 = vmatprep.subr.mxu0 0.0
      %3463 = vmatpush1.msra.mxu0 0.0
      %3464 = vmatprep.subr.mxu0 0.0
      %3465 = vmatpush1.msra.mxu0 0.0
      %3466 = vmatprep.subr.mxu0 0.0
      %3467 = vmatpush1.msra.mxu0 0.0
      %3468 = vmatprep.subr.mxu0 0.0
      %3469 = vmatpush1.msra.mxu0 0.0
      %3470 = vmatprep.subr.mxu0 0.0
      %3471 = vmatpush1.msra.mxu0 0.0
      %3472 = vmatprep.subr.mxu0 0.0
      %3473 = vmatpush1.msra.mxu0 0.0
      %3474 = vmatprep.subr.mxu0 0.0
      %3475 = vmatpush1.msra.mxu0 0.0
      %3476 = vmatprep.subr.mxu0 0.0
      %3477 = vmatpush1.msra.mxu0 0.0
      %3478 = vmatprep.subr.mxu0 0.0
      %3479 = vmatpush1.msra.mxu0 0.0
      %3480 = vmatprep.subr.mxu0 0.0
      %3481 = vmatpush1.msra.mxu0 0.0
      %3482 = vmatprep.subr.mxu0 0.0
      %3483 = vmatpush1.msra.mxu0 0.0
      %3484 = vmatprep.subr.mxu0 0.0
      %3485 = vmatpush1.msra.mxu0 0.0
      %3486 = vmatprep.subr.mxu0 0.0
      %3487 = vmatpush1.msra.mxu0 0.0
      %3488 = vmatprep.subr.mxu0 0.0
      %3489 = vmatpush1.msra.mxu0 0.0
      %3490 = vmatprep.subr.mxu0 0.0
      %3491 = vmatpush1.msra.mxu0 0.0
      %3492 = vmatprep.subr.mxu0 0.0
      %3493 = vmatpush1.msra.mxu0 0.0
      %3494 = vmatprep.subr.mxu0 0.0
      %3495 = vmatpush1.msra.mxu0 0.0
      %3496 = vmatprep.subr.mxu0 0.0
      %3497 = vmatpush1.msra.mxu0 0.0
      %3498 = vmatprep.subr.mxu0 0.0
      %3499 = vmatpush1.msra.mxu0 0.0
      %3500 = vmatprep.subr.mxu0 0.0
      %3501 = vmatpush1.msra.mxu0 0.0
      %3502 = vmatprep.subr.mxu0 0.0
      %3503 = vmatpush1.msra.mxu0 0.0
      %3504 = vmatprep.subr.mxu0 0.0
      %3505 = vmatpush1.msra.mxu0 0.0
      %3506 = vmatprep.mubr.f32.mxu0 0.0
      %3507 = vmatmul.mubr.f32.gmra.mrb[0].mxu0 %v3370
      %v3508 = vpop.f32.mrb[0].mxu0
      %v3509 = vadd.f32 %v3439, %v3508
      %v3510 = vpop.f32.mrb[0].mxu0
      %3511 = vdwg.mxu0
      %v3512 = vadd.f32 %v2720, %v3509
      %v3515 = vrot.slane %v3365, 1
      %v3516 = vrot.slane %v3366, 1
      %v3517 = vrot.slane %v3367, 1
      %v3520 = vsel %vm3368, %v3517, 0
      %3522 = vmatprep.subr.mxu0 0.0
      %3523 = vmatpush1.msra.mxu0 %v2468
      %3524 = vmatprep.subr.mxu0 0.0
      %3525 = vmatpush1.msra.mxu0 %v2469
      %3526 = vmatprep.subr.mxu0 0.0
      %3527 = vmatpush1.msra.mxu0 %v2470
      %3528 = vmatprep.subr.mxu0 0.0
      %3529 = vmatpush1.msra.mxu0 %v2471
      %3530 = vmatprep.subr.mxu0 0.0
      %3531 = vmatpush1.msra.mxu0 %v2472
      %3532 = vmatprep.subr.mxu0 0.0
      %3533 = vmatpush1.msra.mxu0 %v2473
      %3534 = vmatprep.subr.mxu0 0.0
      %3535 = vmatpush1.msra.mxu0 %v2474
      %3536 = vmatprep.subr.mxu0 0.0
      %3537 = vmatpush1.msra.mxu0 %v2475
      %3538 = vmatprep.subr.mxu0 0.0
      %3539 = vmatpush1.msra.mxu0 %v2476
      %3540 = vmatprep.subr.mxu0 0.0
      %3541 = vmatpush1.msra.mxu0 %v2477
      %3542 = vmatprep.subr.mxu0 0.0
      %3543 = vmatpush1.msra.mxu0 %v2478
      %3544 = vmatprep.subr.mxu0 0.0
      %3545 = vmatpush1.msra.mxu0 %v2479
      %3546 = vmatprep.subr.mxu0 0.0
      %3547 = vmatpush1.msra.mxu0 %v2480
      %3548 = vmatprep.subr.mxu0 0.0
      %3549 = vmatpush1.msra.mxu0 %v2481
      %3550 = vmatprep.subr.mxu0 0.0
      %3551 = vmatpush1.msra.mxu0 %v2482
      %3552 = vmatprep.subr.mxu0 0.0
      %3553 = vmatpush1.msra.mxu0 %v2483
      %3554 = vmatprep.subr.mxu0 0.0
      %3555 = vmatpush1.msra.mxu0 %v2484
      %3556 = vmatprep.subr.mxu0 0.0
      %3557 = vmatpush1.msra.mxu0 %v2485
      %3558 = vmatprep.subr.mxu0 0.0
      %3559 = vmatpush1.msra.mxu0 %v2486
      %3560 = vmatprep.subr.mxu0 0.0
      %3561 = vmatpush1.msra.mxu0 %v2487
      %3562 = vmatprep.subr.mxu0 0.0
      %3563 = vmatpush1.msra.mxu0 %v2488
      %3564 = vmatprep.subr.mxu0 0.0
      %3565 = vmatpush1.msra.mxu0 %v2489
      %3566 = vmatprep.subr.mxu0 0.0
      %3567 = vmatpush1.msra.mxu0 %v2490
      %3568 = vmatprep.subr.mxu0 0.0
      %3569 = vmatpush1.msra.mxu0 %v2491
      %3570 = vmatprep.subr.mxu0 0.0
      %3571 = vmatpush1.msra.mxu0 %v2492
      %3572 = vmatprep.subr.mxu0 0.0
      %3573 = vmatpush1.msra.mxu0 %v2493
      %3574 = vmatprep.subr.mxu0 0.0
      %3575 = vmatpush1.msra.mxu0 %v2494
      %3576 = vmatprep.subr.mxu0 0.0
      %3577 = vmatpush1.msra.mxu0 %v2495
      %3578 = vmatprep.subr.mxu0 0.0
      %3579 = vmatpush1.msra.mxu0 %v2496
      %3580 = vmatprep.subr.mxu0 0.0
      %3581 = vmatpush1.msra.mxu0 %v2497
      %3582 = vmatprep.subr.mxu0 0.0
      %3583 = vmatpush1.msra.mxu0 %v2498
      %3584 = vmatprep.subr.mxu0 0.0
      %3585 = vmatpush1.msra.mxu0 %v2499
      %3586 = vmatprep.mubr.f32.mxu0 %v3516
      %3587 = vmatmul.mubr.f32.gmra.mrb[0].mxu0 %v3515
      %v3588 = vpop.f32.mrb[0].mxu0
      %v3589 = vadd.f32 0.0, %v3588
      %v3590 = vpop.f32.mrb[0].mxu0
      %3591 = vdwg.mxu0
      %3592 = vmatprep.subr.mxu0 0.0
      %3593 = vmatpush1.msra.mxu0 %v2500
      %3594 = vmatprep.subr.mxu0 0.0
      %3595 = vmatpush1.msra.mxu0 %v2501
      %3596 = vmatprep.subr.mxu0 0.0
      %3597 = vmatpush1.msra.mxu0 %v2502
      %3598 = vmatprep.subr.mxu0 0.0
      %3599 = vmatpush1.msra.mxu0 %v2503
      %3600 = vmatprep.subr.mxu0 0.0
      %3601 = vmatpush1.msra.mxu0 %v2504
      %3602 = vmatprep.subr.mxu0 0.0
      %3603 = vmatpush1.msra.mxu0 %v2505
      %3604 = vmatprep.subr.mxu0 0.0
      %3605 = vmatpush1.msra.mxu0 %v2506
      %3606 = vmatprep.subr.mxu0 0.0
      %3607 = vmatpush1.msra.mxu0 %v2507
      %3608 = vmatprep.subr.mxu0 0.0
      %3609 = vmatpush1.msra.mxu0 %v2508
      %3610 = vmatprep.subr.mxu0 0.0
      %3611 = vmatpush1.msra.mxu0 %v2509
      %3612 = vmatprep.subr.mxu0 0.0
      %3613 = vmatpush1.msra.mxu0 0.0
      %3614 = vmatprep.subr.mxu0 0.0
      %3615 = vmatpush1.msra.mxu0 0.0
      %3616 = vmatprep.subr.mxu0 0.0
      %3617 = vmatpush1.msra.mxu0 0.0
      %3618 = vmatprep.subr.mxu0 0.0
      %3619 = vmatpush1.msra.mxu0 0.0
      %3620 = vmatprep.subr.mxu0 0.0
      %3621 = vmatpush1.msra.mxu0 0.0
      %3622 = vmatprep.subr.mxu0 0.0
      %3623 = vmatpush1.msra.mxu0 0.0
      %3624 = vmatprep.subr.mxu0 0.0
      %3625 = vmatpush1.msra.mxu0 0.0
      %3626 = vmatprep.subr.mxu0 0.0
      %3627 = vmatpush1.msra.mxu0 0.0
      %3628 = vmatprep.subr.mxu0 0.0
      %3629 = vmatpush1.msra.mxu0 0.0
      %3630 = vmatprep.subr.mxu0 0.0
      %3631 = vmatpush1.msra.mxu0 0.0
      %3632 = vmatprep.subr.mxu0 0.0
      %3633 = vmatpush1.msra.mxu0 0.0
      %3634 = vmatprep.subr.mxu0 0.0
      %3635 = vmatpush1.msra.mxu0 0.0
      %3636 = vmatprep.subr.mxu0 0.0
      %3637 = vmatpush1.msra.mxu0 0.0
      %3638 = vmatprep.subr.mxu0 0.0
      %3639 = vmatpush1.msra.mxu0 0.0
      %3640 = vmatprep.subr.mxu0 0.0
      %3641 = vmatpush1.msra.mxu0 0.0
      %3642 = vmatprep.subr.mxu0 0.0
      %3643 = vmatpush1.msra.mxu0 0.0
      %3644 = vmatprep.subr.mxu0 0.0
      %3645 = vmatpush1.msra.mxu0 0.0
      %3646 = vmatprep.subr.mxu0 0.0
      %3647 = vmatpush1.msra.mxu0 0.0
      %3648 = vmatprep.subr.mxu0 0.0
      %3649 = vmatpush1.msra.mxu0 0.0
      %3650 = vmatprep.subr.mxu0 0.0
      %3651 = vmatpush1.msra.mxu0 0.0
      %3652 = vmatprep.subr.mxu0 0.0
      %3653 = vmatpush1.msra.mxu0 0.0
      %3654 = vmatprep.subr.mxu0 0.0
      %3655 = vmatpush1.msra.mxu0 0.0
      %3656 = vmatprep.mubr.f32.mxu0 0.0
      %3657 = vmatmul.mubr.f32.gmra.mrb[0].mxu0 %v3520
      %v3658 = vpop.f32.mrb[0].mxu0
      %v3659 = vadd.f32 %v3589, %v3658
      %v3660 = vpop.f32.mrb[0].mxu0
      %3661 = vdwg.mxu0
      %v3662 = vadd.f32 %v3512, %v3659
      %v3663 = vrot.slane %v3365, 2
      %v3664 = vrot.slane %v3366, 2
      %v3665 = vrot.slane %v3367, 2
      %v3668 = vsel %vm3368, %v3665, 0
      %3670 = vmatprep.subr.mxu0 0.0
      %3671 = vmatpush1.msra.mxu0 %v2510
      %3672 = vmatprep.subr.mxu0 0.0
      %3673 = vmatpush1.msra.mxu0 %v2511
      %3674 = vmatprep.subr.mxu0 0.0
      %3675 = vmatpush1.msra.mxu0 %v2512
      %3676 = vmatprep.subr.mxu0 0.0
      %3677 = vmatpush1.msra.mxu0 %v2513
      %3678 = vmatprep.subr.mxu0 0.0
      %3679 = vmatpush1.msra.mxu0 %v2514
      %3680 = vmatprep.subr.mxu0 0.0
      %3681 = vmatpush1.msra.mxu0 %v2515
      %3682 = vmatprep.subr.mxu0 0.0
      %3683 = vmatpush1.msra.mxu0 %v2516
      %3684 = vmatprep.subr.mxu0 0.0
      %3685 = vmatpush1.msra.mxu0 %v2517
      %3686 = vmatprep.subr.mxu0 0.0
      %3687 = vmatpush1.msra.mxu0 %v2518
      %3688 = vmatprep.subr.mxu0 0.0
      %3689 = vmatpush1.msra.mxu0 %v2519
      %3690 = vmatprep.subr.mxu0 0.0
      %3691 = vmatpush1.msra.mxu0 %v2520
      %3692 = vmatprep.subr.mxu0 0.0
      %3693 = vmatpush1.msra.mxu0 %v2521
      %3694 = vmatprep.subr.mxu0 0.0
      %3695 = vmatpush1.msra.mxu0 %v2522
      %3696 = vmatprep.subr.mxu0 0.0
      %3697 = vmatpush1.msra.mxu0 %v2523
      %3698 = vmatprep.subr.mxu0 0.0
      %3699 = vmatpush1.msra.mxu0 %v2524
      %3700 = vmatprep.subr.mxu0 0.0
      %3701 = vmatpush1.msra.mxu0 %v2525
      %3702 = vmatprep.subr.mxu0 0.0
      %3703 = vmatpush1.msra.mxu0 %v2526
      %3704 = vmatprep.subr.mxu0 0.0
      %3705 = vmatpush1.msra.mxu0 %v2527
      %3706 = vmatprep.subr.mxu0 0.0
      %3707 = vmatpush1.msra.mxu0 %v2528
      %3708 = vmatprep.subr.mxu0 0.0
      %3709 = vmatpush1.msra.mxu0 %v2529
      %3710 = vmatprep.subr.mxu0 0.0
      %3711 = vmatpush1.msra.mxu0 %v2530
      %3712 = vmatprep.subr.mxu0 0.0
      %3713 = vmatpush1.msra.mxu0 %v2531
      %3714 = vmatprep.subr.mxu0 0.0
      %3715 = vmatpush1.msra.mxu0 %v2532
      %3716 = vmatprep.subr.mxu0 0.0
      %3717 = vmatpush1.msra.mxu0 %v2533
      %3718 = vmatprep.subr.mxu0 0.0
      %3719 = vmatpush1.msra.mxu0 %v2534
      %3720 = vmatprep.subr.mxu0 0.0
      %3721 = vmatpush1.msra.mxu0 %v2535
      %3722 = vmatprep.subr.mxu0 0.0
      %3723 = vmatpush1.msra.mxu0 %v2536
      %3724 = vmatprep.subr.mxu0 0.0
      %3725 = vmatpush1.msra.mxu0 %v2537
      %3726 = vmatprep.subr.mxu0 0.0
      %3727 = vmatpush1.msra.mxu0 %v2538
      %3728 = vmatprep.subr.mxu0 0.0
      %3729 = vmatpush1.msra.mxu0 %v2539
      %3730 = vmatprep.subr.mxu0 0.0
      %3731 = vmatpush1.msra.mxu0 %v2540
      %3732 = vmatprep.subr.mxu0 0.0
      %3733 = vmatpush1.msra.mxu0 %v2541
      %3734 = vmatprep.mubr.f32.mxu0 %v3664
      %3735 = vmatmul.mubr.f32.gmra.mrb[0].mxu0 %v3663
      %v3736 = vpop.f32.mrb[0].mxu0
      %v3737 = vadd.f32 0.0, %v3736
      %v3738 = vpop.f32.mrb[0].mxu0
      %3739 = vdwg.mxu0
      %3740 = vmatprep.subr.mxu0 0.0
      %3741 = vmatpush1.msra.mxu0 %v2542
      %3742 = vmatprep.subr.mxu0 0.0
      %3743 = vmatpush1.msra.mxu0 %v2543
      %3744 = vmatprep.subr.mxu0 0.0
      %3745 = vmatpush1.msra.mxu0 %v2544
      %3746 = vmatprep.subr.mxu0 0.0
      %3747 = vmatpush1.msra.mxu0 %v2545
      %3748 = vmatprep.subr.mxu0 0.0
      %3749 = vmatpush1.msra.mxu0 %v2546
      %3750 = vmatprep.subr.mxu0 0.0
      %3751 = vmatpush1.msra.mxu0 %v2547
      %3752 = vmatprep.subr.mxu0 0.0
      %3753 = vmatpush1.msra.mxu0 %v2548
      %3754 = vmatprep.subr.mxu0 0.0
      %3755 = vmatpush1.msra.mxu0 %v2549
      %3756 = vmatprep.subr.mxu0 0.0
      %3757 = vmatpush1.msra.mxu0 %v2550
      %3758 = vmatprep.subr.mxu0 0.0
      %3759 = vmatpush1.msra.mxu0 %v2551
      %3760 = vmatprep.subr.mxu0 0.0
      %3761 = vmatpush1.msra.mxu0 0.0
      %3762 = vmatprep.subr.mxu0 0.0
      %3763 = vmatpush1.msra.mxu0 0.0
      %3764 = vmatprep.subr.mxu0 0.0
      %3765 = vmatpush1.msra.mxu0 0.0
      %3766 = vmatprep.subr.mxu0 0.0
      %3767 = vmatpush1.msra.mxu0 0.0
      %3768 = vmatprep.subr.mxu0 0.0
      %3769 = vmatpush1.msra.mxu0 0.0
      %3770 = vmatprep.subr.mxu0 0.0
      %3771 = vmatpush1.msra.mxu0 0.0
      %3772 = vmatprep.subr.mxu0 0.0
      %3773 = vmatpush1.msra.mxu0 0.0
      %3774 = vmatprep.subr.mxu0 0.0
      %3775 = vmatpush1.msra.mxu0 0.0
      %3776 = vmatprep.subr.mxu0 0.0
      %3777 = vmatpush1.msra.mxu0 0.0
      %3778 = vmatprep.subr.mxu0 0.0
      %3779 = vmatpush1.msra.mxu0 0.0
      %3780 = vmatprep.subr.mxu0 0.0
      %3781 = vmatpush1.msra.mxu0 0.0
      %3782 = vmatprep.subr.mxu0 0.0
      %3783 = vmatpush1.msra.mxu0 0.0
      %3784 = vmatprep.subr.mxu0 0.0
      %3785 = vmatpush1.msra.mxu0 0.0
      %3786 = vmatprep.subr.mxu0 0.0
      %3787 = vmatpush1.msra.mxu0 0.0
      %3788 = vmatprep.subr.mxu0 0.0
      %3789 = vmatpush1.msra.mxu0 0.0
      %3790 = vmatprep.subr.mxu0 0.0
      %3791 = vmatpush1.msra.mxu0 0.0
      %3792 = vmatprep.subr.mxu0 0.0
      %3793 = vmatpush1.msra.mxu0 0.0
      %3794 = vmatprep.subr.mxu0 0.0
      %3795 = vmatpush1.msra.mxu0 0.0
      %3796 = vmatprep.subr.mxu0 0.0
      %3797 = vmatpush1.msra.mxu0 0.0
      %3798 = vmatprep.subr.mxu0 0.0
      %3799 = vmatpush1.msra.mxu0 0.0
      %3800 = vmatprep.subr.mxu0 0.0
      %3801 = vmatpush1.msra.mxu0 0.0
      %3802 = vmatprep.subr.mxu0 0.0
      %3803 = vmatpush1.msra.mxu0 0.0
      %3804 = vmatprep.mubr.f32.mxu0 0.0
      %3805 = vmatmul.mubr.f32.gmra.mrb[0].mxu0 %v3668
      %v3806 = vpop.f32.mrb[0].mxu0
      %v3807 = vadd.f32 %v3737, %v3806
      %v3808 = vpop.f32.mrb[0].mxu0
      %3809 = vdwg.mxu0
      %v3810 = vadd.f32 %v3662, %v3807
      %v3811 = vrot.slane %v3365, 3
      %v3812 = vrot.slane %v3366, 3
      %v3813 = vrot.slane %v3367, 3
      %v3816 = vsel %vm3368, %v3813, 0
      %3818 = vmatprep.subr.mxu0 0.0
      %3819 = vmatpush1.msra.mxu0 %v2552
      %3820 = vmatprep.subr.mxu0 0.0
      %3821 = vmatpush1.msra.mxu0 %v2553
      %3822 = vmatprep.subr.mxu0 0.0
      %3823 = vmatpush1.msra.mxu0 %v2554
      %3824 = vmatprep.subr.mxu0 0.0
      %3825 = vmatpush1.msra.mxu0 %v2555
      %3826 = vmatprep.subr.mxu0 0.0
      %3827 = vmatpush1.msra.mxu0 %v2556
      %3828 = vmatprep.subr.mxu0 0.0
      %3829 = vmatpush1.msra.mxu0 %v2557
      %3830 = vmatprep.subr.mxu0 0.0
      %3831 = vmatpush1.msra.mxu0 %v2558
      %3832 = vmatprep.subr.mxu0 0.0
      %3833 = vmatpush1.msra.mxu0 %v2559
      %3834 = vmatprep.subr.mxu0 0.0
      %3835 = vmatpush1.msra.mxu0 %v2560
      %3836 = vmatprep.subr.mxu0 0.0
      %3837 = vmatpush1.msra.mxu0 %v2561
      %3838 = vmatprep.subr.mxu0 0.0
      %3839 = vmatpush1.msra.mxu0 %v2562
      %3840 = vmatprep.subr.mxu0 0.0
      %3841 = vmatpush1.msra.mxu0 %v2563
      %3842 = vmatprep.subr.mxu0 0.0
      %3843 = vmatpush1.msra.mxu0 %v2564
      %3844 = vmatprep.subr.mxu0 0.0
      %3845 = vmatpush1.msra.mxu0 %v2565
      %3846 = vmatprep.subr.mxu0 0.0
      %3847 = vmatpush1.msra.mxu0 %v2566
      %3848 = vmatprep.subr.mxu0 0.0
      %3849 = vmatpush1.msra.mxu0 %v2567
      %3850 = vmatprep.subr.mxu0 0.0
      %3851 = vmatpush1.msra.mxu0 %v2568
      %3852 = vmatprep.subr.mxu0 0.0
      %3853 = vmatpush1.msra.mxu0 %v2569
      %3854 = vmatprep.subr.mxu0 0.0
      %3855 = vmatpush1.msra.mxu0 %v2570
      %3856 = vmatprep.subr.mxu0 0.0
      %3857 = vmatpush1.msra.mxu0 %v2571
      %3858 = vmatprep.subr.mxu0 0.0
      %3859 = vmatpush1.msra.mxu0 %v2572
      %3860 = vmatprep.subr.mxu0 0.0
      %3861 = vmatpush1.msra.mxu0 %v2573
      %3862 = vmatprep.subr.mxu0 0.0
      %3863 = vmatpush1.msra.mxu0 %v2574
      %3864 = vmatprep.subr.mxu0 0.0
      %3865 = vmatpush1.msra.mxu0 %v2575
      %3866 = vmatprep.subr.mxu0 0.0
      %3867 = vmatpush1.msra.mxu0 %v2576
      %3868 = vmatprep.subr.mxu0 0.0
      %3869 = vmatpush1.msra.mxu0 %v2577
      %3870 = vmatprep.subr.mxu0 0.0
      %3871 = vmatpush1.msra.mxu0 %v2578
      %3872 = vmatprep.subr.mxu0 0.0
      %3873 = vmatpush1.msra.mxu0 %v2579
      %3874 = vmatprep.subr.mxu0 0.0
      %3875 = vmatpush1.msra.mxu0 %v2580
      %3876 = vmatprep.subr.mxu0 0.0
      %3877 = vmatpush1.msra.mxu0 %v2581
      %3878 = vmatprep.subr.mxu0 0.0
      %3879 = vmatpush1.msra.mxu0 %v2582
      %3880 = vmatprep.subr.mxu0 0.0
      %3881 = vmatpush1.msra.mxu0 %v2583
      %3882 = vmatprep.mubr.f32.mxu0 %v3812
      %3883 = vmatmul.mubr.f32.gmra.mrb[0].mxu0 %v3811
      %v3884 = vpop.f32.mrb[0].mxu0
      %v3885 = vadd.f32 0.0, %v3884
      %v3886 = vpop.f32.mrb[0].mxu0
      %3887 = vdwg.mxu0
      %3888 = vmatprep.subr.mxu0 0.0
      %3889 = vmatpush1.msra.mxu0 %v2584
      %3890 = vmatprep.subr.mxu0 0.0
      %3891 = vmatpush1.msra.mxu0 %v2585
      %3892 = vmatprep.subr.mxu0 0.0
      %3893 = vmatpush1.msra.mxu0 %v2586
      %3894 = vmatprep.subr.mxu0 0.0
      %3895 = vmatpush1.msra.mxu0 %v2587
      %3896 = vmatprep.subr.mxu0 0.0
      %3897 = vmatpush1.msra.mxu0 %v2588
      %3898 = vmatprep.subr.mxu0 0.0
      %3899 = vmatpush1.msra.mxu0 %v2589
      %3900 = vmatprep.subr.mxu0 0.0
      %3901 = vmatpush1.msra.mxu0 %v2590
      %3902 = vmatprep.subr.mxu0 0.0
      %3903 = vmatpush1.msra.mxu0 %v2591
      %3904 = vmatprep.subr.mxu0 0.0
      %3905 = vmatpush1.msra.mxu0 %v2592
      %3906 = vmatprep.subr.mxu0 0.0
      %3907 = vmatpush1.msra.mxu0 %v2593
      %3908 = vmatprep.subr.mxu0 0.0
      %3909 = vmatpush1.msra.mxu0 0.0
      %3910 = vmatprep.subr.mxu0 0.0
      %3911 = vmatpush1.msra.mxu0 0.0
      %3912 = vmatprep.subr.mxu0 0.0
      %3913 = vmatpush1.msra.mxu0 0.0
      %3914 = vmatprep.subr.mxu0 0.0
      %3915 = vmatpush1.msra.mxu0 0.0
      %3916 = vmatprep.subr.mxu0 0.0
      %3917 = vmatpush1.msra.mxu0 0.0
      %3918 = vmatprep.subr.mxu0 0.0
      %3919 = vmatpush1.msra.mxu0 0.0
      %3920 = vmatprep.subr.mxu0 0.0
      %3921 = vmatpush1.msra.mxu0 0.0
      %3922 = vmatprep.subr.mxu0 0.0
      %3923 = vmatpush1.msra.mxu0 0.0
      %3924 = vmatprep.subr.mxu0 0.0
      %3925 = vmatpush1.msra.mxu0 0.0
      %3926 = vmatprep.subr.mxu0 0.0
      %3927 = vmatpush1.msra.mxu0 0.0
      %3928 = vmatprep.subr.mxu0 0.0
      %3929 = vmatpush1.msra.mxu0 0.0
      %3930 = vmatprep.subr.mxu0 0.0
      %3931 = vmatpush1.msra.mxu0 0.0
      %3932 = vmatprep.subr.mxu0 0.0
      %3933 = vmatpush1.msra.mxu0 0.0
      %3934 = vmatprep.subr.mxu0 0.0
      %3935 = vmatpush1.msra.mxu0 0.0
      %3936 = vmatprep.subr.mxu0 0.0
      %3937 = vmatpush1.msra.mxu0 0.0
      %3938 = vmatprep.subr.mxu0 0.0
      %3939 = vmatpush1.msra.mxu0 0.0
      %3940 = vmatprep.subr.mxu0 0.0
      %3941 = vmatpush1.msra.mxu0 0.0
      %3942 = vmatprep.subr.mxu0 0.0
      %3943 = vmatpush1.msra.mxu0 0.0
      %3944 = vmatprep.subr.mxu0 0.0
      %3945 = vmatpush1.msra.mxu0 0.0
      %3946 = vmatprep.subr.mxu0 0.0
      %3947 = vmatpush1.msra.mxu0 0.0
      %3948 = vmatprep.subr.mxu0 0.0
      %3949 = vmatpush1.msra.mxu0 0.0
      %3950 = vmatprep.subr.mxu0 0.0
      %3951 = vmatpush1.msra.mxu0 0.0
      %3952 = vmatprep.mubr.f32.mxu0 0.0
      %3953 = vmatmul.mubr.f32.gmra.mrb[0].mxu0 %v3816
      %v3954 = vpop.f32.mrb[0].mxu0
      %v3955 = vadd.f32 %v3885, %v3954
      %v3956 = vpop.f32.mrb[0].mxu0
      %3957 = vdwg.mxu0
      %v3958 = vadd.f32 %v3810, %v3955
      %v3959 = vrot.slane %v3365, 4
      %v3960 = vrot.slane %v3366, 4
      %v3961 = vrot.slane %v3367, 4
      %v3964 = vsel %vm3368, %v3961, 0
      %3966 = vmatprep.subr.mxu0 0.0
      %3967 = vmatpush1.msra.mxu0 %v2594
      %3968 = vmatprep.subr.mxu0 0.0
      %3969 = vmatpush1.msra.mxu0 %v2595
      %3970 = vmatprep.subr.mxu0 0.0
      %3971 = vmatpush1.msra.mxu0 %v2596
      %3972 = vmatprep.subr.mxu0 0.0
      %3973 = vmatpush1.msra.mxu0 %v2597
      %3974 = vmatprep.subr.mxu0 0.0
      %3975 = vmatpush1.msra.mxu0 %v2598
      %3976 = vmatprep.subr.mxu0 0.0
      %3977 = vmatpush1.msra.mxu0 %v2599
      %3978 = vmatprep.subr.mxu0 0.0
      %3979 = vmatpush1.msra.mxu0 %v2600
      %3980 = vmatprep.subr.mxu0 0.0
      %3981 = vmatpush1.msra.mxu0 %v2601
      %3982 = vmatprep.subr.mxu0 0.0
      %3983 = vmatpush1.msra.mxu0 %v2602
      %3984 = vmatprep.subr.mxu0 0.0
      %3985 = vmatpush1.msra.mxu0 %v2603
      %3986 = vmatprep.subr.mxu0 0.0
      %3987 = vmatpush1.msra.mxu0 %v2604
      %3988 = vmatprep.subr.mxu0 0.0
      %3989 = vmatpush1.msra.mxu0 %v2605
      %3990 = vmatprep.subr.mxu0 0.0
      %3991 = vmatpush1.msra.mxu0 %v2606
      %3992 = vmatprep.subr.mxu0 0.0
      %3993 = vmatpush1.msra.mxu0 %v2607
      %3994 = vmatprep.subr.mxu0 0.0
      %3995 = vmatpush1.msra.mxu0 %v2608
      %3996 = vmatprep.subr.mxu0 0.0
      %3997 = vmatpush1.msra.mxu0 %v2609
      %3998 = vmatprep.subr.mxu0 0.0
      %3999 = vmatpush1.msra.mxu0 %v2610
      %4000 = vmatprep.subr.mxu0 0.0
      %4001 = vmatpush1.msra.mxu0 %v2611
      %4002 = vmatprep.subr.mxu0 0.0
      %4003 = vmatpush1.msra.mxu0 %v2612
      %4004 = vmatprep.subr.mxu0 0.0
      %4005 = vmatpush1.msra.mxu0 %v2613
      %4006 = vmatprep.subr.mxu0 0.0
      %4007 = vmatpush1.msra.mxu0 %v2614
      %4008 = vmatprep.subr.mxu0 0.0
      %4009 = vmatpush1.msra.mxu0 %v2615
      %4010 = vmatprep.subr.mxu0 0.0
      %4011 = vmatpush1.msra.mxu0 %v2616
      %4012 = vmatprep.subr.mxu0 0.0
      %4013 = vmatpush1.msra.mxu0 %v2617
      %4014 = vmatprep.subr.mxu0 0.0
      %4015 = vmatpush1.msra.mxu0 %v2618
      %4016 = vmatprep.subr.mxu0 0.0
      %4017 = vmatpush1.msra.mxu0 %v2619
      %4018 = vmatprep.subr.mxu0 0.0
      %4019 = vmatpush1.msra.mxu0 %v2620
      %4020 = vmatprep.subr.mxu0 0.0
      %4021 = vmatpush1.msra.mxu0 %v2621
      %4022 = vmatprep.subr.mxu0 0.0
      %4023 = vmatpush1.msra.mxu0 %v2622
      %4024 = vmatprep.subr.mxu0 0.0
      %4025 = vmatpush1.msra.mxu0 %v2623
      %4026 = vmatprep.subr.mxu0 0.0
      %4027 = vmatpush1.msra.mxu0 %v2624
      %4028 = vmatprep.subr.mxu0 0.0
      %4029 = vmatpush1.msra.mxu0 %v2625
      %4030 = vmatprep.mubr.f32.mxu0 %v3960
      %4031 = vmatmul.mubr.f32.gmra.mrb[0].mxu0 %v3959
      %v4032 = vpop.f32.mrb[0].mxu0
      %v4033 = vadd.f32 0.0, %v4032
      %v4034 = vpop.f32.mrb[0].mxu0
      %4035 = vdwg.mxu0
      %4036 = vmatprep.subr.mxu0 0.0
      %4037 = vmatpush1.msra.mxu0 %v2626
      %4038 = vmatprep.subr.mxu0 0.0
      %4039 = vmatpush1.msra.mxu0 %v2627
      %4040 = vmatprep.subr.mxu0 0.0
      %4041 = vmatpush1.msra.mxu0 %v2628
      %4042 = vmatprep.subr.mxu0 0.0
      %4043 = vmatpush1.msra.mxu0 %v2629
      %4044 = vmatprep.subr.mxu0 0.0
      %4045 = vmatpush1.msra.mxu0 %v2630
      %4046 = vmatprep.subr.mxu0 0.0
      %4047 = vmatpush1.msra.mxu0 %v2631
      %4048 = vmatprep.subr.mxu0 0.0
      %4049 = vmatpush1.msra.mxu0 %v2632
      %4050 = vmatprep.subr.mxu0 0.0
      %4051 = vmatpush1.msra.mxu0 %v2633
      %4052 = vmatprep.subr.mxu0 0.0
      %4053 = vmatpush1.msra.mxu0 %v2634
      %4054 = vmatprep.subr.mxu0 0.0
      %4055 = vmatpush1.msra.mxu0 %v2635
      %4056 = vmatprep.subr.mxu0 0.0
      %4057 = vmatpush1.msra.mxu0 0.0
      %4058 = vmatprep.subr.mxu0 0.0
      %4059 = vmatpush1.msra.mxu0 0.0
      %4060 = vmatprep.subr.mxu0 0.0
      %4061 = vmatpush1.msra.mxu0 0.0
      %4062 = vmatprep.subr.mxu0 0.0
      %4063 = vmatpush1.msra.mxu0 0.0
      %4064 = vmatprep.subr.mxu0 0.0
      %4065 = vmatpush1.msra.mxu0 0.0
      %4066 = vmatprep.subr.mxu0 0.0
      %4067 = vmatpush1.msra.mxu0 0.0
      %4068 = vmatprep.subr.mxu0 0.0
      %4069 = vmatpush1.msra.mxu0 0.0
      %4070 = vmatprep.subr.mxu0 0.0
      %4071 = vmatpush1.msra.mxu0 0.0
      %4072 = vmatprep.subr.mxu0 0.0
      %4073 = vmatpush1.msra.mxu0 0.0
      %4074 = vmatprep.subr.mxu0 0.0
      %4075 = vmatpush1.msra.mxu0 0.0
      %4076 = vmatprep.subr.mxu0 0.0
      %4077 = vmatpush1.msra.mxu0 0.0
      %4078 = vmatprep.subr.mxu0 0.0
      %4079 = vmatpush1.msra.mxu0 0.0
      %4080 = vmatprep.subr.mxu0 0.0
      %4081 = vmatpush1.msra.mxu0 0.0
      %4082 = vmatprep.subr.mxu0 0.0
      %4083 = vmatpush1.msra.mxu0 0.0
      %4084 = vmatprep.subr.mxu0 0.0
      %4085 = vmatpush1.msra.mxu0 0.0
      %4086 = vmatprep.subr.mxu0 0.0
      %4087 = vmatpush1.msra.mxu0 0.0
      %4088 = vmatprep.subr.mxu0 0.0
      %4089 = vmatpush1.msra.mxu0 0.0
      %4090 = vmatprep.subr.mxu0 0.0
      %4091 = vmatpush1.msra.mxu0 0.0
      %4092 = vmatprep.subr.mxu0 0.0
      %4093 = vmatpush1.msra.mxu0 0.0
      %4094 = vmatprep.subr.mxu0 0.0
      %4095 = vmatpush1.msra.mxu0 0.0
      %4096 = vmatprep.subr.mxu0 0.0
      %4097 = vmatpush1.msra.mxu0 0.0
      %4098 = vmatprep.subr.mxu0 0.0
      %4099 = vmatpush1.msra.mxu0 0.0
      %4100 = vmatprep.mubr.f32.mxu0 0.0
      %4101 = vmatmul.mubr.f32.gmra.mrb[0].mxu0 %v3964
      %v4102 = vpop.f32.mrb[0].mxu0
      %v4103 = vadd.f32 %v4033, %v4102
      %v4104 = vpop.f32.mrb[0].mxu0
      %4105 = vdwg.mxu0
      %v4106 = vadd.f32 %v3958, %v4103
      %v4107 = vrot.slane %v3365, 5
      %v4108 = vrot.slane %v3366, 5
      %v4109 = vrot.slane %v3367, 5
      %v4112 = vsel %vm3368, %v4109, 0
      %4114 = vmatprep.subr.mxu0 0.0
      %4115 = vmatpush1.msra.mxu0 %v2636
      %4116 = vmatprep.subr.mxu0 0.0
      %4117 = vmatpush1.msra.mxu0 %v2637
      %4118 = vmatprep.subr.mxu0 0.0
      %4119 = vmatpush1.msra.mxu0 %v2638
      %4120 = vmatprep.subr.mxu0 0.0
      %4121 = vmatpush1.msra.mxu0 %v2639
      %4122 = vmatprep.subr.mxu0 0.0
      %4123 = vmatpush1.msra.mxu0 %v2640
      %4124 = vmatprep.subr.mxu0 0.0
      %4125 = vmatpush1.msra.mxu0 %v2641
      %4126 = vmatprep.subr.mxu0 0.0
      %4127 = vmatpush1.msra.mxu0 %v2642
      %4128 = vmatprep.subr.mxu0 0.0
      %4129 = vmatpush1.msra.mxu0 %v2643
      %4130 = vmatprep.subr.mxu0 0.0
      %4131 = vmatpush1.msra.mxu0 %v2644
      %4132 = vmatprep.subr.mxu0 0.0
      %4133 = vmatpush1.msra.mxu0 %v2645
      %4134 = vmatprep.subr.mxu0 0.0
      %4135 = vmatpush1.msra.mxu0 %v2646
      %4136 = vmatprep.subr.mxu0 0.0
      %4137 = vmatpush1.msra.mxu0 %v2647
      %4138 = vmatprep.subr.mxu0 0.0
      %4139 = vmatpush1.msra.mxu0 %v2648
      %4140 = vmatprep.subr.mxu0 0.0
      %4141 = vmatpush1.msra.mxu0 %v2649
      %4142 = vmatprep.subr.mxu0 0.0
      %4143 = vmatpush1.msra.mxu0 %v2650
      %4144 = vmatprep.subr.mxu0 0.0
      %4145 = vmatpush1.msra.mxu0 %v2651
      %4146 = vmatprep.subr.mxu0 0.0
      %4147 = vmatpush1.msra.mxu0 %v2652
      %4148 = vmatprep.subr.mxu0 0.0
      %4149 = vmatpush1.msra.mxu0 %v2653
      %4150 = vmatprep.subr.mxu0 0.0
      %4151 = vmatpush1.msra.mxu0 %v2654
      %4152 = vmatprep.subr.mxu0 0.0
      %4153 = vmatpush1.msra.mxu0 %v2655
      %4154 = vmatprep.subr.mxu0 0.0
      %4155 = vmatpush1.msra.mxu0 %v2656
      %4156 = vmatprep.subr.mxu0 0.0
      %4157 = vmatpush1.msra.mxu0 %v2657
      %4158 = vmatprep.subr.mxu0 0.0
      %4159 = vmatpush1.msra.mxu0 %v2658
      %4160 = vmatprep.subr.mxu0 0.0
      %4161 = vmatpush1.msra.mxu0 %v2659
      %4162 = vmatprep.subr.mxu0 0.0
      %4163 = vmatpush1.msra.mxu0 %v2660
      %4164 = vmatprep.subr.mxu0 0.0
      %4165 = vmatpush1.msra.mxu0 %v2661
      %4166 = vmatprep.subr.mxu0 0.0
      %4167 = vmatpush1.msra.mxu0 %v2662
      %4168 = vmatprep.subr.mxu0 0.0
      %4169 = vmatpush1.msra.mxu0 %v2663
      %4170 = vmatprep.subr.mxu0 0.0
      %4171 = vmatpush1.msra.mxu0 %v2664
      %4172 = vmatprep.subr.mxu0 0.0
      %4173 = vmatpush1.msra.mxu0 %v2665
      %4174 = vmatprep.subr.mxu0 0.0
      %4175 = vmatpush1.msra.mxu0 %v2666
      %4176 = vmatprep.subr.mxu0 0.0
      %4177 = vmatpush1.msra.mxu0 %v2667
      %4178 = vmatprep.mubr.f32.mxu0 %v4108
      %4179 = vmatmul.mubr.f32.gmra.mrb[0].mxu0 %v4107
      %v4180 = vpop.f32.mrb[0].mxu0
      %v4181 = vadd.f32 0.0, %v4180
      %v4182 = vpop.f32.mrb[0].mxu0
      %4183 = vdwg.mxu0
      %4184 = vmatprep.subr.mxu0 0.0
      %4185 = vmatpush1.msra.mxu0 %v2668
      %4186 = vmatprep.subr.mxu0 0.0
      %4187 = vmatpush1.msra.mxu0 %v2669
      %4188 = vmatprep.subr.mxu0 0.0
      %4189 = vmatpush1.msra.mxu0 %v2670
      %4190 = vmatprep.subr.mxu0 0.0
      %4191 = vmatpush1.msra.mxu0 %v2671
      %4192 = vmatprep.subr.mxu0 0.0
      %4193 = vmatpush1.msra.mxu0 %v2672
      %4194 = vmatprep.subr.mxu0 0.0
      %4195 = vmatpush1.msra.mxu0 %v2673
      %4196 = vmatprep.subr.mxu0 0.0
      %4197 = vmatpush1.msra.mxu0 %v2674
      %4198 = vmatprep.subr.mxu0 0.0
      %4199 = vmatpush1.msra.mxu0 %v2675
      %4200 = vmatprep.subr.mxu0 0.0
      %4201 = vmatpush1.msra.mxu0 %v2676
      %4202 = vmatprep.subr.mxu0 0.0
      %4203 = vmatpush1.msra.mxu0 %v2677
      %4204 = vmatprep.subr.mxu0 0.0
      %4205 = vmatpush1.msra.mxu0 0.0
      %4206 = vmatprep.subr.mxu0 0.0
      %4207 = vmatpush1.msra.mxu0 0.0
      %4208 = vmatprep.subr.mxu0 0.0
      %4209 = vmatpush1.msra.mxu0 0.0
      %4210 = vmatprep.subr.mxu0 0.0
      %4211 = vmatpush1.msra.mxu0 0.0
      %4212 = vmatprep.subr.mxu0 0.0
      %4213 = vmatpush1.msra.mxu0 0.0
      %4214 = vmatprep.subr.mxu0 0.0
      %4215 = vmatpush1.msra.mxu0 0.0
      %4216 = vmatprep.subr.mxu0 0.0
      %4217 = vmatpush1.msra.mxu0 0.0
      %4218 = vmatprep.subr.mxu0 0.0
      %4219 = vmatpush1.msra.mxu0 0.0
      %4220 = vmatprep.subr.mxu0 0.0
      %4221 = vmatpush1.msra.mxu0 0.0
      %4222 = vmatprep.subr.mxu0 0.0
      %4223 = vmatpush1.msra.mxu0 0.0
      %4224 = vmatprep.subr.mxu0 0.0
      %4225 = vmatpush1.msra.mxu0 0.0
      %4226 = vmatprep.subr.mxu0 0.0
      %4227 = vmatpush1.msra.mxu0 0.0
      %4228 = vmatprep.subr.mxu0 0.0
      %4229 = vmatpush1.msra.mxu0 0.0
      %4230 = vmatprep.subr.mxu0 0.0
      %4231 = vmatpush1.msra.mxu0 0.0
      %4232 = vmatprep.subr.mxu0 0.0
      %4233 = vmatpush1.msra.mxu0 0.0
      %4234 = vmatprep.subr.mxu0 0.0
      %4235 = vmatpush1.msra.mxu0 0.0
      %4236 = vmatprep.subr.mxu0 0.0
      %4237 = vmatpush1.msra.mxu0 0.0
      %4238 = vmatprep.subr.mxu0 0.0
      %4239 = vmatpush1.msra.mxu0 0.0
      %4240 = vmatprep.subr.mxu0 0.0
      %4241 = vmatpush1.msra.mxu0 0.0
      %4242 = vmatprep.subr.mxu0 0.0
      %4243 = vmatpush1.msra.mxu0 0.0
      %4244 = vmatprep.subr.mxu0 0.0
      %4245 = vmatpush1.msra.mxu0 0.0
      %4246 = vmatprep.subr.mxu0 0.0
      %4247 = vmatpush1.msra.mxu0 0.0
      %4248 = vmatprep.mubr.f32.mxu0 0.0
      %4249 = vmatmul.mubr.f32.gmra.mrb[0].mxu0 %v4112
      %v4250 = vpop.f32.mrb[0].mxu0
      %v4251 = vadd.f32 %v4181, %v4250
      %v4252 = vpop.f32.mrb[0].mxu0
      %4253 = vdwg.mxu0
      %v4254 = vadd.f32 %v4106, %v4251
      %v4255 = vrot.slane %v3365, 6
      %v4256 = vrot.slane %v3366, 6
      %v4257 = vrot.slane %v3367, 6
      %v4260 = vsel %vm3368, %v4257, 0
      %4262 = vmatprep.subr.mxu0 0.0
      %4263 = vmatpush1.msra.mxu0 %v2678
      %4264 = vmatprep.subr.mxu0 0.0
      %4265 = vmatpush1.msra.mxu0 %v2679
      %4266 = vmatprep.subr.mxu0 0.0
      %4267 = vmatpush1.msra.mxu0 %v2680
      %4268 = vmatprep.subr.mxu0 0.0
      %4269 = vmatpush1.msra.mxu0 %v2681
      %4270 = vmatprep.subr.mxu0 0.0
      %4271 = vmatpush1.msra.mxu0 %v2682
      %4272 = vmatprep.subr.mxu0 0.0
      %4273 = vmatpush1.msra.mxu0 %v2683
      %4274 = vmatprep.subr.mxu0 0.0
      %4275 = vmatpush1.msra.mxu0 %v2684
      %4276 = vmatprep.subr.mxu0 0.0
      %4277 = vmatpush1.msra.mxu0 %v2685
      %4278 = vmatprep.subr.mxu0 0.0
      %4279 = vmatpush1.msra.mxu0 %v2686
      %4280 = vmatprep.subr.mxu0 0.0
      %4281 = vmatpush1.msra.mxu0 %v2687
      %4282 = vmatprep.subr.mxu0 0.0
      %4283 = vmatpush1.msra.mxu0 %v2688
      %4284 = vmatprep.subr.mxu0 0.0
      %4285 = vmatpush1.msra.mxu0 %v2689
      %4286 = vmatprep.subr.mxu0 0.0
      %4287 = vmatpush1.msra.mxu0 %v2690
      %4288 = vmatprep.subr.mxu0 0.0
      %4289 = vmatpush1.msra.mxu0 %v2691
      %4290 = vmatprep.subr.mxu0 0.0
      %4291 = vmatpush1.msra.mxu0 %v2692
      %4292 = vmatprep.subr.mxu0 0.0
      %4293 = vmatpush1.msra.mxu0 %v2693
      %4294 = vmatprep.subr.mxu0 0.0
      %4295 = vmatpush1.msra.mxu0 %v2694
      %4296 = vmatprep.subr.mxu0 0.0
      %4297 = vmatpush1.msra.mxu0 %v2695
      %4298 = vmatprep.subr.mxu0 0.0
      %4299 = vmatpush1.msra.mxu0 %v2696
      %4300 = vmatprep.subr.mxu0 0.0
      %4301 = vmatpush1.msra.mxu0 %v2697
      %4302 = vmatprep.subr.mxu0 0.0
      %4303 = vmatpush1.msra.mxu0 %v2698
      %4304 = vmatprep.subr.mxu0 0.0
      %4305 = vmatpush1.msra.mxu0 %v2699
      %4306 = vmatprep.subr.mxu0 0.0
      %4307 = vmatpush1.msra.mxu0 %v2700
      %4308 = vmatprep.subr.mxu0 0.0
      %4309 = vmatpush1.msra.mxu0 %v2701
      %4310 = vmatprep.subr.mxu0 0.0
      %4311 = vmatpush1.msra.mxu0 %v2702
      %4312 = vmatprep.subr.mxu0 0.0
      %4313 = vmatpush1.msra.mxu0 %v2703
      %4314 = vmatprep.subr.mxu0 0.0
      %4315 = vmatpush1.msra.mxu0 %v2704
      %4316 = vmatprep.subr.mxu0 0.0
      %4317 = vmatpush1.msra.mxu0 %v2705
      %4318 = vmatprep.subr.mxu0 0.0
      %4319 = vmatpush1.msra.mxu0 %v2706
      %4320 = vmatprep.subr.mxu0 0.0
      %4321 = vmatpush1.msra.mxu0 %v2707
      %4322 = vmatprep.subr.mxu0 0.0
      %4323 = vmatpush1.msra.mxu0 %v2708
      %4324 = vmatprep.subr.mxu0 0.0
      %4325 = vmatpush1.msra.mxu0 %v2709
      %4326 = vmatprep.mubr.f32.mxu0 %v4256
      %4327 = vmatmul.mubr.f32.gmra.mrb[0].mxu0 %v4255
      %v4328 = vpop.f32.mrb[0].mxu0
      %v4329 = vadd.f32 0.0, %v4328
      %v4330 = vpop.f32.mrb[0].mxu0
      %4331 = vdwg.mxu0
      %4332 = vmatprep.subr.mxu0 0.0
      %4333 = vmatpush1.msra.mxu0 %v2710
      %4334 = vmatprep.subr.mxu0 0.0
      %4335 = vmatpush1.msra.mxu0 %v2711
      %4336 = vmatprep.subr.mxu0 0.0
      %4337 = vmatpush1.msra.mxu0 %v2712
      %4338 = vmatprep.subr.mxu0 0.0
      %4339 = vmatpush1.msra.mxu0 %v2713
      %4340 = vmatprep.subr.mxu0 0.0
      %4341 = vmatpush1.msra.mxu0 %v2714
      %4342 = vmatprep.subr.mxu0 0.0
      %4343 = vmatpush1.msra.mxu0 %v2715
      %4344 = vmatprep.subr.mxu0 0.0
      %4345 = vmatpush1.msra.mxu0 %v2716
      %4346 = vmatprep.subr.mxu0 0.0
      %4347 = vmatpush1.msra.mxu0 %v2717
      %4348 = vmatprep.subr.mxu0 0.0
      %4349 = vmatpush1.msra.mxu0 %v2718
      %4350 = vmatprep.subr.mxu0 0.0
      %4351 = vmatpush1.msra.mxu0 %v2719
      %4352 = vmatprep.subr.mxu0 0.0
      %4353 = vmatpush1.msra.mxu0 0.0
      %4354 = vmatprep.subr.mxu0 0.0
      %4355 = vmatpush1.msra.mxu0 0.0
      %4356 = vmatprep.subr.mxu0 0.0
      %4357 = vmatpush1.msra.mxu0 0.0
      %4358 = vmatprep.subr.mxu0 0.0
      %4359 = vmatpush1.msra.mxu0 0.0
      %4360 = vmatprep.subr.mxu0 0.0
      %4361 = vmatpush1.msra.mxu0 0.0
      %4362 = vmatprep.subr.mxu0 0.0
      %4363 = vmatpush1.msra.mxu0 0.0
      %4364 = vmatprep.subr.mxu0 0.0
      %4365 = vmatpush1.msra.mxu0 0.0
      %4366 = vmatprep.subr.mxu0 0.0
      %4367 = vmatpush1.msra.mxu0 0.0
      %4368 = vmatprep.subr.mxu0 0.0
      %4369 = vmatpush1.msra.mxu0 0.0
      %4370 = vmatprep.subr.mxu0 0.0
      %4371 = vmatpush1.msra.mxu0 0.0
      %4372 = vmatprep.subr.mxu0 0.0
      %4373 = vmatpush1.msra.mxu0 0.0
      %4374 = vmatprep.subr.mxu0 0.0
      %4375 = vmatpush1.msra.mxu0 0.0
      %4376 = vmatprep.subr.mxu0 0.0
      %4377 = vmatpush1.msra.mxu0 0.0
      %4378 = vmatprep.subr.mxu0 0.0
      %4379 = vmatpush1.msra.mxu0 0.0
      %4380 = vmatprep.subr.mxu0 0.0
      %4381 = vmatpush1.msra.mxu0 0.0
      %4382 = vmatprep.subr.mxu0 0.0
      %4383 = vmatpush1.msra.mxu0 0.0
      %4384 = vmatprep.subr.mxu0 0.0
      %4385 = vmatpush1.msra.mxu0 0.0
      %4386 = vmatprep.subr.mxu0 0.0
      %4387 = vmatpush1.msra.mxu0 0.0
      %4388 = vmatprep.subr.mxu0 0.0
      %4389 = vmatpush1.msra.mxu0 0.0
      %4390 = vmatprep.subr.mxu0 0.0
      %4391 = vmatpush1.msra.mxu0 0.0
      %4392 = vmatprep.subr.mxu0 0.0
      %4393 = vmatpush1.msra.mxu0 0.0
      %4394 = vmatprep.subr.mxu0 0.0
      %4395 = vmatpush1.msra.mxu0 0.0
      %4396 = vmatprep.mubr.f32.mxu0 0.0
      %4397 = vmatmul.mubr.f32.gmra.mrb[0].mxu0 %v4260
      %v4398 = vpop.f32.mrb[0].mxu0
      %v4399 = vadd.f32 %v4329, %v4398
      %v4400 = vpop.f32.mrb[0].mxu0
      %4401 = vdwg.mxu0
      %v4402 = vadd.f32 %v4254, %v4399
      %v4403 = vsub.f32 0.0, %v4402
      %v4404 = vmul.f32 %v4403, 1.442695
      %v4405 = vpow.pop %v4404
      %v4406 = vadd.f32 %v4405, 1.0
      %v4407 = vrcp.pop %v4406
      %vm4408 = vcmask 785408
      %v4410 = vsel %vm4408, %v4407, 0
      %4412 = vmatprep.subr.mxu0 0.0
      %4413 = vmatpush1.msra.mxu0 %v2721
      %4414 = vmatprep.subr.mxu0 0.0
      %4415 = vmatpush1.msra.mxu0 %v2722
      %4416 = vmatprep.subr.mxu0 0.0
      %4417 = vmatpush1.msra.mxu0 %v2723
      %4418 = vmatprep.subr.mxu0 0.0
      %4419 = vmatpush1.msra.mxu0 %v2724
      %4420 = vmatprep.subr.mxu0 0.0
      %4421 = vmatpush1.msra.mxu0 %v2725
      %4422 = vmatprep.subr.mxu0 0.0
      %4423 = vmatpush1.msra.mxu0 %v2726
      %4424 = vmatprep.subr.mxu0 0.0
      %4425 = vmatpush1.msra.mxu0 %v2727
      %4426 = vmatprep.subr.mxu0 0.0
      %4427 = vmatpush1.msra.mxu0 %v2728
      %4428 = vmatprep.subr.mxu0 0.0
      %4429 = vmatpush1.msra.mxu0 %v2729
      %4430 = vmatprep.subr.mxu0 0.0
      %4431 = vmatpush1.msra.mxu0 %v2730
      %4432 = vmatprep.subr.mxu0 0.0
      %4433 = vmatpush1.msra.mxu0 %v2731
      %4434 = vmatprep.subr.mxu0 0.0
      %4435 = vmatpush1.msra.mxu0 %v2732
      %4436 = vmatprep.subr.mxu0 0.0
      %4437 = vmatpush1.msra.mxu0 0.0
      %4438 = vmatprep.subr.mxu0 0.0
      %4439 = vmatpush1.msra.mxu0 0.0
      %4440 = vmatprep.subr.mxu0 0.0
      %4441 = vmatpush1.msra.mxu0 0.0
      %4442 = vmatprep.subr.mxu0 0.0
      %4443 = vmatpush1.msra.mxu0 0.0
      %4444 = vmatprep.subr.mxu0 0.0
      %4445 = vmatpush1.msra.mxu0 0.0
      %4446 = vmatprep.subr.mxu0 0.0
      %4447 = vmatpush1.msra.mxu0 0.0
      %4448 = vmatprep.subr.mxu0 0.0
      %4449 = vmatpush1.msra.mxu0 0.0
      %4450 = vmatprep.subr.mxu0 0.0
      %4451 = vmatpush1.msra.mxu0 0.0
      %4452 = vmatprep.subr.mxu0 0.0
      %4453 = vmatpush1.msra.mxu0 0.0
      %4454 = vmatprep.subr.mxu0 0.0
      %4455 = vmatpush1.msra.mxu0 0.0
      %4456 = vmatprep.subr.mxu0 0.0
      %4457 = vmatpush1.msra.mxu0 0.0
      %4458 = vmatprep.subr.mxu0 0.0
      %4459 = vmatpush1.msra.mxu0 0.0
      %4460 = vmatprep.subr.mxu0 0.0
      %4461 = vmatpush1.msra.mxu0 0.0
      %4462 = vmatprep.subr.mxu0 0.0
      %4463 = vmatpush1.msra.mxu0 0.0
      %4464 = vmatprep.subr.mxu0 0.0
      %4465 = vmatpush1.msra.mxu0 0.0
      %4466 = vmatprep.subr.mxu0 0.0
      %4467 = vmatpush1.msra.mxu0 0.0
      %4468 = vmatprep.subr.mxu0 0.0
      %4469 = vmatpush1.msra.mxu0 0.0
      %4470 = vmatprep.subr.mxu0 0.0
      %4471 = vmatpush1.msra.mxu0 0.0
      %4472 = vmatprep.subr.mxu0 0.0
      %4473 = vmatpush1.msra.mxu0 0.0
      %4474 = vmatprep.subr.mxu0 0.0
      %4475 = vmatpush1.msra.mxu0 0.0
      %4476 = vmatprep.mubr.f32.mxu0 0.0
      %4477 = vmatmul.mubr.f32.gmra.mrb[0].mxu0 %v4410
      %v4478 = vpop.f32.mrb[0].mxu0
      %v4479 = vadd.f32 %v2733, %v4478
      %v4480 = vpop.f32.mrb[0].mxu0
      %4481 = vdwg.mxu0
      %v4482 = vmax.f32 %v4479, 0.0
      %vm4483 = vcmask 818176
      %v4485 = vsel %vm4483, %v4482, 0
      %vm4487 = vcmask 1043456
      %v4489 = vsel %vm4487, %v2746, 0
      %4491 = vmatprep.subr.mxu0 0.0
      %4492 = vmatpush1.msra.mxu0 %v2734
      %4493 = vmatprep.subr.mxu0 0.0
      %4494 = vmatpush1.msra.mxu0 %v2735
      %4495 = vmatprep.subr.mxu0 0.0
      %4496 = vmatpush1.msra.mxu0 %v2736
      %4497 = vmatprep.subr.mxu0 0.0
      %4498 = vmatpush1.msra.mxu0 %v2737
      %4499 = vmatprep.subr.mxu0 0.0
      %4500 = vmatpush1.msra.mxu0 %v2738
      %4501 = vmatprep.subr.mxu0 0.0
      %4502 = vmatpush1.msra.mxu0 %v2739
      %4503 = vmatprep.subr.mxu0 0.0
      %4504 = vmatpush1.msra.mxu0 %v2740
      %4505 = vmatprep.subr.mxu0 0.0
      %4506 = vmatpush1.msra.mxu0 %v2741
      %4507 = vmatprep.subr.mxu0 0.0
      %4508 = vmatpush1.msra.mxu0 %v2742
      %4509 = vmatprep.subr.mxu0 0.0
      %4510 = vmatpush1.msra.mxu0 %v2743
      %4511 = vmatprep.subr.mxu0 0.0
      %4512 = vmatpush1.msra.mxu0 %v2744
      %4513 = vmatprep.subr.mxu0 0.0
      %4514 = vmatpush1.msra.mxu0 %v2745
      %4515 = vmatprep.subr.mxu0 0.0
      %4516 = vmatpush1.msra.mxu0 %v4489
      %4517 = vmatprep.subr.mxu0 0.0
      %4518 = vmatpush1.msra.mxu0 0.0
      %4519 = vmatprep.subr.mxu0 0.0
      %4520 = vmatpush1.msra.mxu0 0.0
      %4521 = vmatprep.subr.mxu0 0.0
      %4522 = vmatpush1.msra.mxu0 0.0
      %4523 = vmatprep.subr.mxu0 0.0
      %4524 = vmatpush1.msra.mxu0 0.0
      %4525 = vmatprep.subr.mxu0 0.0
      %4526 = vmatpush1.msra.mxu0 0.0
      %4527 = vmatprep.subr.mxu0 0.0
      %4528 = vmatpush1.msra.mxu0 0.0
      %4529 = vmatprep.subr.mxu0 0.0
      %4530 = vmatpush1.msra.mxu0 0.0
      %4531 = vmatprep.subr.mxu0 0.0
      %4532 = vmatpush1.msra.mxu0 0.0
      %4533 = vmatprep.subr.mxu0 0.0
      %4534 = vmatpush1.msra.mxu0 0.0
      %4535 = vmatprep.subr.mxu0 0.0
      %4536 = vmatpush1.msra.mxu0 0.0
      %4537 = vmatprep.subr.mxu0 0.0
      %4538 = vmatpush1.msra.mxu0 0.0
      %4539 = vmatprep.subr.mxu0 0.0
      %4540 = vmatpush1.msra.mxu0 0.0
      %4541 = vmatprep.subr.mxu0 0.0
      %4542 = vmatpush1.msra.mxu0 0.0
      %4543 = vmatprep.subr.mxu0 0.0
      %4544 = vmatpush1.msra.mxu0 0.0
      %4545 = vmatprep.subr.mxu0 0.0
      %4546 = vmatpush1.msra.mxu0 0.0
      %4547 = vmatprep.subr.mxu0 0.0
      %4548 = vmatpush1.msra.mxu0 0.0
      %4549 = vmatprep.subr.mxu0 0.0
      %4550 = vmatpush1.msra.mxu0 0.0
      %4551 = vmatprep.subr.mxu0 0.0
      %4552 = vmatpush1.msra.mxu0 0.0
      %4553 = vmatprep.subr.mxu0 0.0
      %4554 = vmatpush1.msra.mxu0 0.0
      %4555 = vmatprep.mubr.f32.mxu0 0.0
      %4556 = vmatmul.mubr.f32.gmra.mrb[0].mxu0 %v4485
      %v4557 = vpop.f32.mrb[0].mxu0
      %v4558 = vadd.f32 %v2747, %v4557
      %v4559 = vpop.f32.mrb[0].mxu0
      %4560 = vdwg.mxu0
      %vm4561 = vcmask 8192
      %v4562 = vsel %vm4561, %v4558, -inf
      %4563 = vmax.xlane.f32.xlu0 %v4562
      %v4564 = vpop.xlane.xlu0 %4563
      %v4565 = vsub.f32 %v4558, %v4564
      %v4566 = vmul.f32 %v4565, 1.442695
      %v4567 = vpow.pop %v4566
      %v4568 = vsel %vm4561, %v4567, 0.0
      %4569 = vadd.xlane.f32.xlu0 %v4568
      %v4570 = vpop.xlane.xlu0 %4569
      %v4571 = vrcp.pop %v4570
      %v4572 = vmul.f32 %v4567, %v4571
      %4573 = vst.msk [vmem:[%s545] sm:$0x1] %vm4561, %v4572
      %v4575 = vsel %vm2764, %v2217, 0
      %4577 = vmatprep.subr.mxu0 %v2309
      %4578 = vmatpush1.msra.mxu0 %v2308
      %4579 = vmatprep.subr.mxu0 %v2312
      %4580 = vmatpush1.msra.mxu0 %v2311
      %4581 = vmatprep.subr.mxu0 %v2315
      %4582 = vmatpush1.msra.mxu0 %v2314
      %4583 = vmatprep.subr.mxu0 %v2318
      %4584 = vmatpush1.msra.mxu0 %v2317
      %4585 = vmatprep.subr.mxu0 %v2321
      %4586 = vmatpush1.msra.mxu0 %v2320
      %4587 = vmatprep.subr.mxu0 %v2324
      %4588 = vmatpush1.msra.mxu0 %v2323
      %4589 = vmatprep.subr.mxu0 %v2327
      %4590 = vmatpush1.msra.mxu0 %v2326
      %4591 = vmatprep.subr.mxu0 %v2330
      %4592 = vmatpush1.msra.mxu0 %v2329
      %4593 = vmatprep.subr.mxu0 %v2333
      %4594 = vmatpush1.msra.mxu0 %v2332
      %4595 = vmatprep.subr.mxu0 %v2336
      %4596 = vmatpush1.msra.mxu0 %v2335
      %4597 = vmatprep.subr.mxu0 %v2339
      %4598 = vmatpush1.msra.mxu0 %v2338
      %4599 = vmatprep.subr.mxu0 %v2342
      %4600 = vmatpush1.msra.mxu0 %v2341
      %4601 = vmatprep.subr.mxu0 %v2345
      %4602 = vmatpush1.msra.mxu0 %v2344
      %4603 = vmatprep.subr.mxu0 %v2348
      %4604 = vmatpush1.msra.mxu0 %v2347
      %4605 = vmatprep.subr.mxu0 %v2351
      %4606 = vmatpush1.msra.mxu0 %v2350
      %4607 = vmatprep.subr.mxu0 %v2354
      %4608 = vmatpush1.msra.mxu0 %v2353
      %4609 = vmatprep.subr.mxu0 %v2357
      %4610 = vmatpush1.msra.mxu0 %v2356
      %4611 = vmatprep.subr.mxu0 %v2360
      %4612 = vmatpush1.msra.mxu0 %v2359
      %4613 = vmatprep.subr.mxu0 %v2363
      %4614 = vmatpush1.msra.mxu0 %v2362
      %4615 = vmatprep.subr.mxu0 %v2366
      %4616 = vmatpush1.msra.mxu0 %v2365
      %4617 = vmatprep.subr.mxu0 %v2369
      %4618 = vmatpush1.msra.mxu0 %v2368
      %4619 = vmatprep.subr.mxu0 %v2372
      %4620 = vmatpush1.msra.mxu0 %v2371
      %4621 = vmatprep.subr.mxu0 %v2375
      %4622 = vmatpush1.msra.mxu0 %v2374
      %4623 = vmatprep.subr.mxu0 %v2378
      %4624 = vmatpush1.msra.mxu0 %v2377
      %4625 = vmatprep.subr.mxu0 %v2381
      %4626 = vmatpush1.msra.mxu0 %v2380
      %4627 = vmatprep.subr.mxu0 %v2384
      %4628 = vmatpush1.msra.mxu0 %v2383
      %4629 = vmatprep.subr.mxu0 %v2387
      %4630 = vmatpush1.msra.mxu0 %v2386
      %4631 = vmatprep.subr.mxu0 %v2390
      %4632 = vmatpush1.msra.mxu0 %v2389
      %4633 = vmatprep.subr.mxu0 %v2393
      %4634 = vmatpush1.msra.mxu0 %v2392
      %4635 = vmatprep.subr.mxu0 %v2396
      %4636 = vmatpush1.msra.mxu0 %v2395
      %4637 = vmatprep.subr.mxu0 %v2399
      %4638 = vmatpush1.msra.mxu0 %v2398
      %4639 = vmatprep.subr.mxu0 %v2402
      %4640 = vmatpush1.msra.mxu0 %v2401
      %4641 = vmatprep.mubr.f32.mxu0 %v2216
      %4642 = vmatmul.mubr.f32.gmra.mrb[0].mxu0 %v2215
      %v4643 = vpop.f32.mrb[0].mxu0
      %v4644 = vadd.f32 %v2752, %v4643
      %v4645 = vpop.f32.mrb[0].mxu0
      %v4646 = vadd.f32 %v2756, %v4645
      %4647 = vdwg.mxu0
      %4648 = vmatprep.subr.mxu0 %v2405
      %4649 = vmatpush1.msra.mxu0 %v2404
      %4650 = vmatprep.subr.mxu0 %v2408
      %4651 = vmatpush1.msra.mxu0 %v2407
      %4652 = vmatprep.subr.mxu0 %v2411
      %4653 = vmatpush1.msra.mxu0 %v2410
      %4654 = vmatprep.subr.mxu0 %v2414
      %4655 = vmatpush1.msra.mxu0 %v2413
      %4656 = vmatprep.subr.mxu0 %v2417
      %4657 = vmatpush1.msra.mxu0 %v2416
      %4658 = vmatprep.subr.mxu0 %v2420
      %4659 = vmatpush1.msra.mxu0 %v2419
      %4660 = vmatprep.subr.mxu0 %v2423
      %4661 = vmatpush1.msra.mxu0 %v2422
      %4662 = vmatprep.subr.mxu0 0.0
      %4663 = vmatpush1.msra.mxu0 0.0
      %4664 = vmatprep.subr.mxu0 0.0
      %4665 = vmatpush1.msra.mxu0 0.0
      %4666 = vmatprep.subr.mxu0 0.0
      %4667 = vmatpush1.msra.mxu0 0.0
      %4668 = vmatprep.subr.mxu0 0.0
      %4669 = vmatpush1.msra.mxu0 0.0
      %4670 = vmatprep.subr.mxu0 0.0
      %4671 = vmatpush1.msra.mxu0 0.0
      %4672 = vmatprep.subr.mxu0 0.0
      %4673 = vmatpush1.msra.mxu0 0.0
      %4674 = vmatprep.subr.mxu0 0.0
      %4675 = vmatpush1.msra.mxu0 0.0
      %4676 = vmatprep.subr.mxu0 0.0
      %4677 = vmatpush1.msra.mxu0 0.0
      %4678 = vmatprep.subr.mxu0 0.0
      %4679 = vmatpush1.msra.mxu0 0.0
      %4680 = vmatprep.subr.mxu0 0.0
      %4681 = vmatpush1.msra.mxu0 0.0
      %4682 = vmatprep.subr.mxu0 0.0
      %4683 = vmatpush1.msra.mxu0 0.0
      %4684 = vmatprep.subr.mxu0 0.0
      %4685 = vmatpush1.msra.mxu0 0.0
      %4686 = vmatprep.subr.mxu0 0.0
      %4687 = vmatpush1.msra.mxu0 0.0
      %4688 = vmatprep.subr.mxu0 0.0
      %4689 = vmatpush1.msra.mxu0 0.0
      %4690 = vmatprep.subr.mxu0 0.0
      %4691 = vmatpush1.msra.mxu0 0.0
      %4692 = vmatprep.subr.mxu0 0.0
      %4693 = vmatpush1.msra.mxu0 0.0
      %4694 = vmatprep.subr.mxu0 0.0
      %4695 = vmatpush1.msra.mxu0 0.0
      %4696 = vmatprep.subr.mxu0 0.0
      %4697 = vmatpush1.msra.mxu0 0.0
      %4698 = vmatprep.subr.mxu0 0.0
      %4699 = vmatpush1.msra.mxu0 0.0
      %4700 = vmatprep.subr.mxu0 0.0
      %4701 = vmatpush1.msra.mxu0 0.0
      %4702 = vmatprep.subr.mxu0 0.0
      %4703 = vmatpush1.msra.mxu0 0.0
      %4704 = vmatprep.subr.mxu0 0.0
      %4705 = vmatpush1.msra.mxu0 0.0
      %4706 = vmatprep.subr.mxu0 0.0
      %4707 = vmatpush1.msra.mxu0 0.0
      %4708 = vmatprep.subr.mxu0 0.0
      %4709 = vmatpush1.msra.mxu0 0.0
      %4710 = vmatprep.subr.mxu0 0.0
      %4711 = vmatpush1.msra.mxu0 0.0
      %4712 = vmatprep.mubr.f32.mxu0 0.0
      %4713 = vmatmul.mubr.f32.gmra.mrb[0].mxu0 %v4575
      %v4714 = vpop.f32.mrb[0].mxu0
      %v4715 = vadd.f32 %v4644, %v4714
      %v4716 = vpop.f32.mrb[0].mxu0
      %v4717 = vadd.f32 %v4646, %v4716
      %4718 = vdwg.mxu0
      %4719 = vmatprep.subr.mxu0 0.0
      %4720 = vmatpush1.msra.mxu0 %v2310
      %4721 = vmatprep.subr.mxu0 0.0
      %4722 = vmatpush1.msra.mxu0 %v2313
      %4723 = vmatprep.subr.mxu0 0.0
      %4724 = vmatpush1.msra.mxu0 %v2316
      %4725 = vmatprep.subr.mxu0 0.0
      %4726 = vmatpush1.msra.mxu0 %v2319
      %4727 = vmatprep.subr.mxu0 0.0
      %4728 = vmatpush1.msra.mxu0 %v2322
      %4729 = vmatprep.subr.mxu0 0.0
      %4730 = vmatpush1.msra.mxu0 %v2325
      %4731 = vmatprep.subr.mxu0 0.0
      %4732 = vmatpush1.msra.mxu0 %v2328
      %4733 = vmatprep.subr.mxu0 0.0
      %4734 = vmatpush1.msra.mxu0 %v2331
      %4735 = vmatprep.subr.mxu0 0.0
      %4736 = vmatpush1.msra.mxu0 %v2334
      %4737 = vmatprep.subr.mxu0 0.0
      %4738 = vmatpush1.msra.mxu0 %v2337
      %4739 = vmatprep.subr.mxu0 0.0
      %4740 = vmatpush1.msra.mxu0 %v2340
      %4741 = vmatprep.subr.mxu0 0.0
      %4742 = vmatpush1.msra.mxu0 %v2343
      %4743 = vmatprep.subr.mxu0 0.0
      %4744 = vmatpush1.msra.mxu0 %v2346
      %4745 = vmatprep.subr.mxu0 0.0
      %4746 = vmatpush1.msra.mxu0 %v2349
      %4747 = vmatprep.subr.mxu0 0.0
      %4748 = vmatpush1.msra.mxu0 %v2352
      %4749 = vmatprep.subr.mxu0 0.0
      %4750 = vmatpush1.msra.mxu0 %v2355
      %4751 = vmatprep.subr.mxu0 0.0
      %4752 = vmatpush1.msra.mxu0 %v2358
      %4753 = vmatprep.subr.mxu0 0.0
      %4754 = vmatpush1.msra.mxu0 %v2361
      %4755 = vmatprep.subr.mxu0 0.0
      %4756 = vmatpush1.msra.mxu0 %v2364
      %4757 = vmatprep.subr.mxu0 0.0
      %4758 = vmatpush1.msra.mxu0 %v2367
      %4759 = vmatprep.subr.mxu0 0.0
      %4760 = vmatpush1.msra.mxu0 %v2370
      %4761 = vmatprep.subr.mxu0 0.0
      %4762 = vmatpush1.msra.mxu0 %v2373
      %4763 = vmatprep.subr.mxu0 0.0
      %4764 = vmatpush1.msra.mxu0 %v2376
      %4765 = vmatprep.subr.mxu0 0.0
      %4766 = vmatpush1.msra.mxu0 %v2379
      %4767 = vmatprep.subr.mxu0 0.0
      %4768 = vmatpush1.msra.mxu0 %v2382
      %4769 = vmatprep.subr.mxu0 0.0
      %4770 = vmatpush1.msra.mxu0 %v2385
      %4771 = vmatprep.subr.mxu0 0.0
      %4772 = vmatpush1.msra.mxu0 %v2388
      %4773 = vmatprep.subr.mxu0 0.0
      %4774 = vmatpush1.msra.mxu0 %v2391
      %4775 = vmatprep.subr.mxu0 0.0
      %4776 = vmatpush1.msra.mxu0 %v2394
      %4777 = vmatprep.subr.mxu0 0.0
      %4778 = vmatpush1.msra.mxu0 %v2397
      %4779 = vmatprep.subr.mxu0 0.0
      %4780 = vmatpush1.msra.mxu0 %v2400
      %4781 = vmatprep.subr.mxu0 0.0
      %4782 = vmatpush1.msra.mxu0 %v2403
      %4783 = vmatprep.mubr.f32.mxu0 %v2216
      %4784 = vmatmul.mubr.f32.gmra.mrb[0].mxu0 %v2215
      %v4785 = vpop.f32.mrb[0].mxu0
      %v4786 = vadd.f32 %v2760, %v4785
      %v4787 = vpop.f32.mrb[0].mxu0
      %4788 = vdwg.mxu0
      %4789 = vmatprep.subr.mxu0 0.0
      %4790 = vmatpush1.msra.mxu0 %v2406
      %4791 = vmatprep.subr.mxu0 0.0
      %4792 = vmatpush1.msra.mxu0 %v2409
      %4793 = vmatprep.subr.mxu0 0.0
      %4794 = vmatpush1.msra.mxu0 %v2412
      %4795 = vmatprep.subr.mxu0 0.0
      %4796 = vmatpush1.msra.mxu0 %v2415
      %4797 = vmatprep.subr.mxu0 0.0
      %4798 = vmatpush1.msra.mxu0 %v2418
      %4799 = vmatprep.subr.mxu0 0.0
      %4800 = vmatpush1.msra.mxu0 %v2421
      %4801 = vmatprep.subr.mxu0 0.0
      %4802 = vmatpush1.msra.mxu0 %v2424
      %4803 = vmatprep.subr.mxu0 0.0
      %4804 = vmatpush1.msra.mxu0 0.0
      %4805 = vmatprep.subr.mxu0 0.0
      %4806 = vmatpush1.msra.mxu0 0.0
      %4807 = vmatprep.subr.mxu0 0.0
      %4808 = vmatpush1.msra.mxu0 0.0
      %4809 = vmatprep.subr.mxu0 0.0
      %4810 = vmatpush1.msra.mxu0 0.0
      %4811 = vmatprep.subr.mxu0 0.0
      %4812 = vmatpush1.msra.mxu0 0.0
      %4813 = vmatprep.subr.mxu0 0.0
      %4814 = vmatpush1.msra.mxu0 0.0
      %4815 = vmatprep.subr.mxu0 0.0
      %4816 = vmatpush1.msra.mxu0 0.0
      %4817 = vmatprep.subr.mxu0 0.0
      %4818 = vmatpush1.msra.mxu0 0.0
      %4819 = vmatprep.subr.mxu0 0.0
      %4820 = vmatpush1.msra.mxu0 0.0
      %4821 = vmatprep.subr.mxu0 0.0
      %4822 = vmatpush1.msra.mxu0 0.0
      %4823 = vmatprep.subr.mxu0 0.0
      %4824 = vmatpush1.msra.mxu0 0.0
      %4825 = vmatprep.subr.mxu0 0.0
      %4826 = vmatpush1.msra.mxu0 0.0
      %4827 = vmatprep.subr.mxu0 0.0
      %4828 = vmatpush1.msra.mxu0 0.0
      %4829 = vmatprep.subr.mxu0 0.0
      %4830 = vmatpush1.msra.mxu0 0.0
      %4831 = vmatprep.subr.mxu0 0.0
      %4832 = vmatpush1.msra.mxu0 0.0
      %4833 = vmatprep.subr.mxu0 0.0
      %4834 = vmatpush1.msra.mxu0 0.0
      %4835 = vmatprep.subr.mxu0 0.0
      %4836 = vmatpush1.msra.mxu0 0.0
      %4837 = vmatprep.subr.mxu0 0.0
      %4838 = vmatpush1.msra.mxu0 0.0
      %4839 = vmatprep.subr.mxu0 0.0
      %4840 = vmatpush1.msra.mxu0 0.0
      %4841 = vmatprep.subr.mxu0 0.0
      %4842 = vmatpush1.msra.mxu0 0.0
      %4843 = vmatprep.subr.mxu0 0.0
      %4844 = vmatpush1.msra.mxu0 0.0
      %4845 = vmatprep.subr.mxu0 0.0
      %4846 = vmatpush1.msra.mxu0 0.0
      %4847 = vmatprep.subr.mxu0 0.0
      %4848 = vmatpush1.msra.mxu0 0.0
      %4849 = vmatprep.subr.mxu0 0.0
      %4850 = vmatpush1.msra.mxu0 0.0
      %4851 = vmatprep.subr.mxu0 0.0
      %4852 = vmatpush1.msra.mxu0 0.0
      %4853 = vmatprep.mubr.f32.mxu0 0.0
      %4854 = vmatmul.mubr.f32.gmra.mrb[0].mxu0 %v4575
      %v4855 = vpop.f32.mrb[0].mxu0
      %v4856 = vadd.f32 %v4786, %v4855
      %v4857 = vpop.f32.mrb[0].mxu0
      %4858 = vdwg.mxu0
      %v4859 = vsub.f32 0.0, %v4715
      %v4860 = vsub.f32 0.0, %v4717
      %v4861 = vsub.f32 0.0, %v4856
      %v4862 = vmul.f32 %v4859, 1.442695
      %v4863 = vpow.pop %v4862
      %v4864 = vmul.f32 %v4860, 1.442695
      %v4865 = vpow.pop %v4864
      %v4866 = vmul.f32 %v4861, 1.442695
      %v4867 = vpow.pop %v4866
      %v4868 = vadd.f32 %v4863, 1.0
      %v4869 = vadd.f32 %v4865, 1.0
      %v4870 = vadd.f32 %v4867, 1.0
      %v4871 = vrcp.pop %v4868
      %v4872 = vrcp.pop %v4869
      %v4873 = vrcp.pop %v4870
      %v4875 = vsel %vm2764, %v2301, 0
      %4877 = vmatprep.subr.mxu0 %v2309
      %4878 = vmatpush1.msra.mxu0 %v2308
      %4879 = vmatprep.subr.mxu0 %v2312
      %4880 = vmatpush1.msra.mxu0 %v2311
      %4881 = vmatprep.subr.mxu0 %v2315
      %4882 = vmatpush1.msra.mxu0 %v2314
      %4883 = vmatprep.subr.mxu0 %v2318
      %4884 = vmatpush1.msra.mxu0 %v2317
      %4885 = vmatprep.subr.mxu0 %v2321
      %4886 = vmatpush1.msra.mxu0 %v2320
      %4887 = vmatprep.subr.mxu0 %v2324
      %4888 = vmatpush1.msra.mxu0 %v2323
      %4889 = vmatprep.subr.mxu0 %v2327
      %4890 = vmatpush1.msra.mxu0 %v2326
      %4891 = vmatprep.subr.mxu0 %v2330
      %4892 = vmatpush1.msra.mxu0 %v2329
      %4893 = vmatprep.subr.mxu0 %v2333
      %4894 = vmatpush1.msra.mxu0 %v2332
      %4895 = vmatprep.subr.mxu0 %v2336
      %4896 = vmatpush1.msra.mxu0 %v2335
      %4897 = vmatprep.subr.mxu0 %v2339
      %4898 = vmatpush1.msra.mxu0 %v2338
      %4899 = vmatprep.subr.mxu0 %v2342
      %4900 = vmatpush1.msra.mxu0 %v2341
      %4901 = vmatprep.subr.mxu0 %v2345
      %4902 = vmatpush1.msra.mxu0 %v2344
      %4903 = vmatprep.subr.mxu0 %v2348
      %4904 = vmatpush1.msra.mxu0 %v2347
      %4905 = vmatprep.subr.mxu0 %v2351
      %4906 = vmatpush1.msra.mxu0 %v2350
      %4907 = vmatprep.subr.mxu0 %v2354
      %4908 = vmatpush1.msra.mxu0 %v2353
      %4909 = vmatprep.subr.mxu0 %v2357
      %4910 = vmatpush1.msra.mxu0 %v2356
      %4911 = vmatprep.subr.mxu0 %v2360
      %4912 = vmatpush1.msra.mxu0 %v2359
      %4913 = vmatprep.subr.mxu0 %v2363
      %4914 = vmatpush1.msra.mxu0 %v2362
      %4915 = vmatprep.subr.mxu0 %v2366
      %4916 = vmatpush1.msra.mxu0 %v2365
      %4917 = vmatprep.subr.mxu0 %v2369
      %4918 = vmatpush1.msra.mxu0 %v2368
      %4919 = vmatprep.subr.mxu0 %v2372
      %4920 = vmatpush1.msra.mxu0 %v2371
      %4921 = vmatprep.subr.mxu0 %v2375
      %4922 = vmatpush1.msra.mxu0 %v2374
      %4923 = vmatprep.subr.mxu0 %v2378
      %4924 = vmatpush1.msra.mxu0 %v2377
      %4925 = vmatprep.subr.mxu0 %v2381
      %4926 = vmatpush1.msra.mxu0 %v2380
      %4927 = vmatprep.subr.mxu0 %v2384
      %4928 = vmatpush1.msra.mxu0 %v2383
      %4929 = vmatprep.subr.mxu0 %v2387
      %4930 = vmatpush1.msra.mxu0 %v2386
      %4931 = vmatprep.subr.mxu0 %v2390
      %4932 = vmatpush1.msra.mxu0 %v2389
      %4933 = vmatprep.subr.mxu0 %v2393
      %4934 = vmatpush1.msra.mxu0 %v2392
      %4935 = vmatprep.subr.mxu0 %v2396
      %4936 = vmatpush1.msra.mxu0 %v2395
      %4937 = vmatprep.subr.mxu0 %v2399
      %4938 = vmatpush1.msra.mxu0 %v2398
      %4939 = vmatprep.subr.mxu0 %v2402
      %4940 = vmatpush1.msra.mxu0 %v2401
      %4941 = vmatprep.mubr.f32.mxu0 %v2300
      %4942 = vmatmul.mubr.f32.gmra.mrb[0].mxu0 %v2299
      %v4943 = vpop.f32.mrb[0].mxu0
      %v4944 = vadd.f32 %v2752, %v4943
      %v4945 = vpop.f32.mrb[0].mxu0
      %v4946 = vadd.f32 %v2756, %v4945
      %4947 = vdwg.mxu0
      %4948 = vmatprep.subr.mxu0 %v2405
      %4949 = vmatpush1.msra.mxu0 %v2404
      %4950 = vmatprep.subr.mxu0 %v2408
      %4951 = vmatpush1.msra.mxu0 %v2407
      %4952 = vmatprep.subr.mxu0 %v2411
      %4953 = vmatpush1.msra.mxu0 %v2410
      %4954 = vmatprep.subr.mxu0 %v2414
      %4955 = vmatpush1.msra.mxu0 %v2413
      %4956 = vmatprep.subr.mxu0 %v2417
      %4957 = vmatpush1.msra.mxu0 %v2416
      %4958 = vmatprep.subr.mxu0 %v2420
      %4959 = vmatpush1.msra.mxu0 %v2419
      %4960 = vmatprep.subr.mxu0 %v2423
      %4961 = vmatpush1.msra.mxu0 %v2422
      %4962 = vmatprep.subr.mxu0 0.0
      %4963 = vmatpush1.msra.mxu0 0.0
      %4964 = vmatprep.subr.mxu0 0.0
      %4965 = vmatpush1.msra.mxu0 0.0
      %4966 = vmatprep.subr.mxu0 0.0
      %4967 = vmatpush1.msra.mxu0 0.0
      %4968 = vmatprep.subr.mxu0 0.0
      %4969 = vmatpush1.msra.mxu0 0.0
      %4970 = vmatprep.subr.mxu0 0.0
      %4971 = vmatpush1.msra.mxu0 0.0
      %4972 = vmatprep.subr.mxu0 0.0
      %4973 = vmatpush1.msra.mxu0 0.0
      %4974 = vmatprep.subr.mxu0 0.0
      %4975 = vmatpush1.msra.mxu0 0.0
      %4976 = vmatprep.subr.mxu0 0.0
      %4977 = vmatpush1.msra.mxu0 0.0
      %4978 = vmatprep.subr.mxu0 0.0
      %4979 = vmatpush1.msra.mxu0 0.0
      %4980 = vmatprep.subr.mxu0 0.0
      %4981 = vmatpush1.msra.mxu0 0.0
      %4982 = vmatprep.subr.mxu0 0.0
      %4983 = vmatpush1.msra.mxu0 0.0
      %4984 = vmatprep.subr.mxu0 0.0
      %4985 = vmatpush1.msra.mxu0 0.0
      %4986 = vmatprep.subr.mxu0 0.0
      %4987 = vmatpush1.msra.mxu0 0.0
      %4988 = vmatprep.subr.mxu0 0.0
      %4989 = vmatpush1.msra.mxu0 0.0
      %4990 = vmatprep.subr.mxu0 0.0
      %4991 = vmatpush1.msra.mxu0 0.0
      %4992 = vmatprep.subr.mxu0 0.0
      %4993 = vmatpush1.msra.mxu0 0.0
      %4994 = vmatprep.subr.mxu0 0.0
      %4995 = vmatpush1.msra.mxu0 0.0
      %4996 = vmatprep.subr.mxu0 0.0
      %4997 = vmatpush1.msra.mxu0 0.0
      %4998 = vmatprep.subr.mxu0 0.0
      %4999 = vmatpush1.msra.mxu0 0.0
      %5000 = vmatprep.subr.mxu0 0.0
      %5001 = vmatpush1.msra.mxu0 0.0
      %5002 = vmatprep.subr.mxu0 0.0
      %5003 = vmatpush1.msra.mxu0 0.0
      %5004 = vmatprep.subr.mxu0 0.0
      %5005 = vmatpush1.msra.mxu0 0.0
      %5006 = vmatprep.subr.mxu0 0.0
      %5007 = vmatpush1.msra.mxu0 0.0
      %5008 = vmatprep.subr.mxu0 0.0
      %5009 = vmatpush1.msra.mxu0 0.0
      %5010 = vmatprep.subr.mxu0 0.0
      %5011 = vmatpush1.msra.mxu0 0.0
      %5012 = vmatprep.mubr.f32.mxu0 0.0
      %5013 = vmatmul.mubr.f32.gmra.mrb[0].mxu0 %v4875
      %v5014 = vpop.f32.mrb[0].mxu0
      %v5015 = vadd.f32 %v4944, %v5014
      %v5016 = vpop.f32.mrb[0].mxu0
      %v5017 = vadd.f32 %v4946, %v5016
      %5018 = vdwg.mxu0
      %5019 = vmatprep.subr.mxu0 0.0
      %5020 = vmatpush1.msra.mxu0 %v2310
      %5021 = vmatprep.subr.mxu0 0.0
      %5022 = vmatpush1.msra.mxu0 %v2313
      %5023 = vmatprep.subr.mxu0 0.0
      %5024 = vmatpush1.msra.mxu0 %v2316
      %5025 = vmatprep.subr.mxu0 0.0
      %5026 = vmatpush1.msra.mxu0 %v2319
      %5027 = vmatprep.subr.mxu0 0.0
      %5028 = vmatpush1.msra.mxu0 %v2322
      %5029 = vmatprep.subr.mxu0 0.0
      %5030 = vmatpush1.msra.mxu0 %v2325
      %5031 = vmatprep.subr.mxu0 0.0
      %5032 = vmatpush1.msra.mxu0 %v2328
      %5033 = vmatprep.subr.mxu0 0.0
      %5034 = vmatpush1.msra.mxu0 %v2331
      %5035 = vmatprep.subr.mxu0 0.0
      %5036 = vmatpush1.msra.mxu0 %v2334
      %5037 = vmatprep.subr.mxu0 0.0
      %5038 = vmatpush1.msra.mxu0 %v2337
      %5039 = vmatprep.subr.mxu0 0.0
      %5040 = vmatpush1.msra.mxu0 %v2340
      %5041 = vmatprep.subr.mxu0 0.0
      %5042 = vmatpush1.msra.mxu0 %v2343
      %5043 = vmatprep.subr.mxu0 0.0
      %5044 = vmatpush1.msra.mxu0 %v2346
      %5045 = vmatprep.subr.mxu0 0.0
      %5046 = vmatpush1.msra.mxu0 %v2349
      %5047 = vmatprep.subr.mxu0 0.0
      %5048 = vmatpush1.msra.mxu0 %v2352
      %5049 = vmatprep.subr.mxu0 0.0
      %5050 = vmatpush1.msra.mxu0 %v2355
      %5051 = vmatprep.subr.mxu0 0.0
      %5052 = vmatpush1.msra.mxu0 %v2358
      %5053 = vmatprep.subr.mxu0 0.0
      %5054 = vmatpush1.msra.mxu0 %v2361
      %5055 = vmatprep.subr.mxu0 0.0
      %5056 = vmatpush1.msra.mxu0 %v2364
      %5057 = vmatprep.subr.mxu0 0.0
      %5058 = vmatpush1.msra.mxu0 %v2367
      %5059 = vmatprep.subr.mxu0 0.0
      %5060 = vmatpush1.msra.mxu0 %v2370
      %5061 = vmatprep.subr.mxu0 0.0
      %5062 = vmatpush1.msra.mxu0 %v2373
      %5063 = vmatprep.subr.mxu0 0.0
      %5064 = vmatpush1.msra.mxu0 %v2376
      %5065 = vmatprep.subr.mxu0 0.0
      %5066 = vmatpush1.msra.mxu0 %v2379
      %5067 = vmatprep.subr.mxu0 0.0
      %5068 = vmatpush1.msra.mxu0 %v2382
      %5069 = vmatprep.subr.mxu0 0.0
      %5070 = vmatpush1.msra.mxu0 %v2385
      %5071 = vmatprep.subr.mxu0 0.0
      %5072 = vmatpush1.msra.mxu0 %v2388
      %5073 = vmatprep.subr.mxu0 0.0
      %5074 = vmatpush1.msra.mxu0 %v2391
      %5075 = vmatprep.subr.mxu0 0.0
      %5076 = vmatpush1.msra.mxu0 %v2394
      %5077 = vmatprep.subr.mxu0 0.0
      %5078 = vmatpush1.msra.mxu0 %v2397
      %5079 = vmatprep.subr.mxu0 0.0
      %5080 = vmatpush1.msra.mxu0 %v2400
      %5081 = vmatprep.subr.mxu0 0.0
      %5082 = vmatpush1.msra.mxu0 %v2403
      %5083 = vmatprep.mubr.f32.mxu0 %v2300
      %5084 = vmatmul.mubr.f32.gmra.mrb[0].mxu0 %v2299
      %v5085 = vpop.f32.mrb[0].mxu0
      %v5086 = vadd.f32 %v2760, %v5085
      %v5087 = vpop.f32.mrb[0].mxu0
      %5088 = vdwg.mxu0
      %5089 = vmatprep.subr.mxu0 0.0
      %5090 = vmatpush1.msra.mxu0 %v2406
      %5091 = vmatprep.subr.mxu0 0.0
      %5092 = vmatpush1.msra.mxu0 %v2409
      %5093 = vmatprep.subr.mxu0 0.0
      %5094 = vmatpush1.msra.mxu0 %v2412
      %5095 = vmatprep.subr.mxu0 0.0
      %5096 = vmatpush1.msra.mxu0 %v2415
      %5097 = vmatprep.subr.mxu0 0.0
      %5098 = vmatpush1.msra.mxu0 %v2418
      %5099 = vmatprep.subr.mxu0 0.0
      %5100 = vmatpush1.msra.mxu0 %v2421
      %5101 = vmatprep.subr.mxu0 0.0
      %5102 = vmatpush1.msra.mxu0 %v2424
      %5103 = vmatprep.subr.mxu0 0.0
      %5104 = vmatpush1.msra.mxu0 0.0
      %5105 = vmatprep.subr.mxu0 0.0
      %5106 = vmatpush1.msra.mxu0 0.0
      %5107 = vmatprep.subr.mxu0 0.0
      %5108 = vmatpush1.msra.mxu0 0.0
      %5109 = vmatprep.subr.mxu0 0.0
      %5110 = vmatpush1.msra.mxu0 0.0
      %5111 = vmatprep.subr.mxu0 0.0
      %5112 = vmatpush1.msra.mxu0 0.0
      %5113 = vmatprep.subr.mxu0 0.0
      %5114 = vmatpush1.msra.mxu0 0.0
      %5115 = vmatprep.subr.mxu0 0.0
      %5116 = vmatpush1.msra.mxu0 0.0
      %5117 = vmatprep.subr.mxu0 0.0
      %5118 = vmatpush1.msra.mxu0 0.0
      %5119 = vmatprep.subr.mxu0 0.0
      %5120 = vmatpush1.msra.mxu0 0.0
      %5121 = vmatprep.subr.mxu0 0.0
      %5122 = vmatpush1.msra.mxu0 0.0
      %5123 = vmatprep.subr.mxu0 0.0
      %5124 = vmatpush1.msra.mxu0 0.0
      %5125 = vmatprep.subr.mxu0 0.0
      %5126 = vmatpush1.msra.mxu0 0.0
      %5127 = vmatprep.subr.mxu0 0.0
      %5128 = vmatpush1.msra.mxu0 0.0
      %5129 = vmatprep.subr.mxu0 0.0
      %5130 = vmatpush1.msra.mxu0 0.0
      %5131 = vmatprep.subr.mxu0 0.0
      %5132 = vmatpush1.msra.mxu0 0.0
      %5133 = vmatprep.subr.mxu0 0.0
      %5134 = vmatpush1.msra.mxu0 0.0
      %5135 = vmatprep.subr.mxu0 0.0
      %5136 = vmatpush1.msra.mxu0 0.0
      %5137 = vmatprep.subr.mxu0 0.0
      %5138 = vmatpush1.msra.mxu0 0.0
      %5139 = vmatprep.subr.mxu0 0.0
      %5140 = vmatpush1.msra.mxu0 0.0
      %5141 = vmatprep.subr.mxu0 0.0
      %5142 = vmatpush1.msra.mxu0 0.0
      %5143 = vmatprep.subr.mxu0 0.0
      %5144 = vmatpush1.msra.mxu0 0.0
      %5145 = vmatprep.subr.mxu0 0.0
      %5146 = vmatpush1.msra.mxu0 0.0
      %5147 = vmatprep.subr.mxu0 0.0
      %5148 = vmatpush1.msra.mxu0 0.0
      %5149 = vmatprep.subr.mxu0 0.0
      %5150 = vmatpush1.msra.mxu0 0.0
      %5151 = vmatprep.subr.mxu0 0.0
      %5152 = vmatpush1.msra.mxu0 0.0
      %5153 = vmatprep.mubr.f32.mxu0 0.0
      %5154 = vmatmul.mubr.f32.gmra.mrb[0].mxu0 %v4875
      %v5155 = vpop.f32.mrb[0].mxu0
      %v5156 = vadd.f32 %v5086, %v5155
      %v5157 = vpop.f32.mrb[0].mxu0
      %5158 = vdwg.mxu0
      %v5159 = vsub.f32 0.0, %v5015
      %v5160 = vsub.f32 0.0, %v5017
      %v5161 = vsub.f32 0.0, %v5156
      %v5162 = vmul.f32 %v5159, 1.442695
      %v5163 = vpow.pop %v5162
      %v5164 = vmul.f32 %v5160, 1.442695
      %v5165 = vpow.pop %v5164
      %v5166 = vmul.f32 %v5161, 1.442695
      %v5167 = vpow.pop %v5166
      %v5168 = vadd.f32 %v5163, 1.0
      %v5169 = vadd.f32 %v5165, 1.0
      %v5170 = vadd.f32 %v5167, 1.0
      %v5171 = vrcp.pop %v5168
      %v5172 = vrcp.pop %v5169
      %v5173 = vrcp.pop %v5170
      %v5174 = vmax.f32 %v4871, %v5171
      %v5175 = vmax.f32 %v4872, %v5172
      %v5176 = vmax.f32 %v4873, %v5173
      %v5178 = vsel %vm3368, %v5176, 0
      %5180 = vmatprep.subr.mxu0 0.0
      %5181 = vmatpush1.msra.mxu0 %v2426
      %5182 = vmatprep.subr.mxu0 0.0
      %5183 = vmatpush1.msra.mxu0 %v2427
      %5184 = vmatprep.subr.mxu0 0.0
      %5185 = vmatpush1.msra.mxu0 %v2428
      %5186 = vmatprep.subr.mxu0 0.0
      %5187 = vmatpush1.msra.mxu0 %v2429
      %5188 = vmatprep.subr.mxu0 0.0
      %5189 = vmatpush1.msra.mxu0 %v2430
      %5190 = vmatprep.subr.mxu0 0.0
      %5191 = vmatpush1.msra.mxu0 %v2431
      %5192 = vmatprep.subr.mxu0 0.0
      %5193 = vmatpush1.msra.mxu0 %v2432
      %5194 = vmatprep.subr.mxu0 0.0
      %5195 = vmatpush1.msra.mxu0 %v2433
      %5196 = vmatprep.subr.mxu0 0.0
      %5197 = vmatpush1.msra.mxu0 %v2434
      %5198 = vmatprep.subr.mxu0 0.0
      %5199 = vmatpush1.msra.mxu0 %v2435
      %5200 = vmatprep.subr.mxu0 0.0
      %5201 = vmatpush1.msra.mxu0 %v2436
      %5202 = vmatprep.subr.mxu0 0.0
      %5203 = vmatpush1.msra.mxu0 %v2437
      %5204 = vmatprep.subr.mxu0 0.0
      %5205 = vmatpush1.msra.mxu0 %v2438
      %5206 = vmatprep.subr.mxu0 0.0
      %5207 = vmatpush1.msra.mxu0 %v2439
      %5208 = vmatprep.subr.mxu0 0.0
      %5209 = vmatpush1.msra.mxu0 %v2440
      %5210 = vmatprep.subr.mxu0 0.0
      %5211 = vmatpush1.msra.mxu0 %v2441
      %5212 = vmatprep.subr.mxu0 0.0
      %5213 = vmatpush1.msra.mxu0 %v2442
      %5214 = vmatprep.subr.mxu0 0.0
      %5215 = vmatpush1.msra.mxu0 %v2443
      %5216 = vmatprep.subr.mxu0 0.0
      %5217 = vmatpush1.msra.mxu0 %v2444
      %5218 = vmatprep.subr.mxu0 0.0
      %5219 = vmatpush1.msra.mxu0 %v2445
      %5220 = vmatprep.subr.mxu0 0.0
      %5221 = vmatpush1.msra.mxu0 %v2446
      %5222 = vmatprep.subr.mxu0 0.0
      %5223 = vmatpush1.msra.mxu0 %v2447
      %5224 = vmatprep.subr.mxu0 0.0
      %5225 = vmatpush1.msra.mxu0 %v2448
      %5226 = vmatprep.subr.mxu0 0.0
      %5227 = vmatpush1.msra.mxu0 %v2449
      %5228 = vmatprep.subr.mxu0 0.0
      %5229 = vmatpush1.msra.mxu0 %v2450
      %5230 = vmatprep.subr.mxu0 0.0
      %5231 = vmatpush1.msra.mxu0 %v2451
      %5232 = vmatprep.subr.mxu0 0.0
      %5233 = vmatpush1.msra.mxu0 %v2452
      %5234 = vmatprep.subr.mxu0 0.0
      %5235 = vmatpush1.msra.mxu0 %v2453
      %5236 = vmatprep.subr.mxu0 0.0
      %5237 = vmatpush1.msra.mxu0 %v2454
      %5238 = vmatprep.subr.mxu0 0.0
      %5239 = vmatpush1.msra.mxu0 %v2455
      %5240 = vmatprep.subr.mxu0 0.0
      %5241 = vmatpush1.msra.mxu0 %v2456
      %5242 = vmatprep.subr.mxu0 0.0
      %5243 = vmatpush1.msra.mxu0 %v2457
      %5244 = vmatprep.mubr.f32.mxu0 %v5175
      %5245 = vmatmul.mubr.f32.gmra.mrb[0].mxu0 %v5174
      %v5246 = vpop.f32.mrb[0].mxu0
      %v5247 = vadd.f32 0.0, %v5246
      %v5248 = vpop.f32.mrb[0].mxu0
      %5249 = vdwg.mxu0
      %5250 = vmatprep.subr.mxu0 0.0
      %5251 = vmatpush1.msra.mxu0 %v2458
      %5252 = vmatprep.subr.mxu0 0.0
      %5253 = vmatpush1.msra.mxu0 %v2459
      %5254 = vmatprep.subr.mxu0 0.0
      %5255 = vmatpush1.msra.mxu0 %v2460
      %5256 = vmatprep.subr.mxu0 0.0
      %5257 = vmatpush1.msra.mxu0 %v2461
      %5258 = vmatprep.subr.mxu0 0.0
      %5259 = vmatpush1.msra.mxu0 %v2462
      %5260 = vmatprep.subr.mxu0 0.0
      %5261 = vmatpush1.msra.mxu0 %v2463
      %5262 = vmatprep.subr.mxu0 0.0
      %5263 = vmatpush1.msra.mxu0 %v2464
      %5264 = vmatprep.subr.mxu0 0.0
      %5265 = vmatpush1.msra.mxu0 %v2465
      %5266 = vmatprep.subr.mxu0 0.0
      %5267 = vmatpush1.msra.mxu0 %v2466
      %5268 = vmatprep.subr.mxu0 0.0
      %5269 = vmatpush1.msra.mxu0 %v2467
      %5270 = vmatprep.subr.mxu0 0.0
      %5271 = vmatpush1.msra.mxu0 0.0
      %5272 = vmatprep.subr.mxu0 0.0
      %5273 = vmatpush1.msra.mxu0 0.0
      %5274 = vmatprep.subr.mxu0 0.0
      %5275 = vmatpush1.msra.mxu0 0.0
      %5276 = vmatprep.subr.mxu0 0.0
      %5277 = vmatpush1.msra.mxu0 0.0
      %5278 = vmatprep.subr.mxu0 0.0
      %5279 = vmatpush1.msra.mxu0 0.0
      %5280 = vmatprep.subr.mxu0 0.0
      %5281 = vmatpush1.msra.mxu0 0.0
      %5282 = vmatprep.subr.mxu0 0.0
      %5283 = vmatpush1.msra.mxu0 0.0
      %5284 = vmatprep.subr.mxu0 0.0
      %5285 = vmatpush1.msra.mxu0 0.0
      %5286 = vmatprep.subr.mxu0 0.0
      %5287 = vmatpush1.msra.mxu0 0.0
      %5288 = vmatprep.subr.mxu0 0.0
      %5289 = vmatpush1.msra.mxu0 0.0
      %5290 = vmatprep.subr.mxu0 0.0
      %5291 = vmatpush1.msra.mxu0 0.0
      %5292 = vmatprep.subr.mxu0 0.0
      %5293 = vmatpush1.msra.mxu0 0.0
      %5294 = vmatprep.subr.mxu0 0.0
      %5295 = vmatpush1.msra.mxu0 0.0
      %5296 = vmatprep.subr.mxu0 0.0
      %5297 = vmatpush1.msra.mxu0 0.0
      %5298 = vmatprep.subr.mxu0 0.0
      %5299 = vmatpush1.msra.mxu0 0.0
      %5300 = vmatprep.subr.mxu0 0.0
      %5301 = vmatpush1.msra.mxu0 0.0
      %5302 = vmatprep.subr.mxu0 0.0
      %5303 = vmatpush1.msra.mxu0 0.0
      %5304 = vmatprep.subr.mxu0 0.0
      %5305 = vmatpush1.msra.mxu0 0.0
      %5306 = vmatprep.subr.mxu0 0.0
      %5307 = vmatpush1.msra.mxu0 0.0
      %5308 = vmatprep.subr.mxu0 0.0
      %5309 = vmatpush1.msra.mxu0 0.0
      %5310 = vmatprep.subr.mxu0 0.0
      %5311 = vmatpush1.msra.mxu0 0.0
      %5312 = vmatprep.subr.mxu0 0.0
      %5313 = vmatpush1.msra.mxu0 0.0
      %5314 = vmatprep.mubr.f32.mxu0 0.0
      %5315 = vmatmul.mubr.f32.gmra.mrb[0].mxu0 %v5178
      %v5316 = vpop.f32.mrb[0].mxu0
      %v5317 = vadd.f32 %v5247, %v5316
      %v5318 = vpop.f32.mrb[0].mxu0
      %5319 = vdwg.mxu0
      %v5320 = vadd.f32 %v2720, %v5317
      %v5323 = vrot.slane %v5174, 1
      %v5324 = vrot.slane %v5175, 1
      %v5325 = vrot.slane %v5176, 1
      %v5328 = vsel %vm3368, %v5325, 0
      %5330 = vmatprep.subr.mxu0 0.0
      %5331 = vmatpush1.msra.mxu0 %v2468
      %5332 = vmatprep.subr.mxu0 0.0
      %5333 = vmatpush1.msra.mxu0 %v2469
      %5334 = vmatprep.subr.mxu0 0.0
      %5335 = vmatpush1.msra.mxu0 %v2470
      %5336 = vmatprep.subr.mxu0 0.0
      %5337 = vmatpush1.msra.mxu0 %v2471
      %5338 = vmatprep.subr.mxu0 0.0
      %5339 = vmatpush1.msra.mxu0 %v2472
      %5340 = vmatprep.subr.mxu0 0.0
      %5341 = vmatpush1.msra.mxu0 %v2473
      %5342 = vmatprep.subr.mxu0 0.0
      %5343 = vmatpush1.msra.mxu0 %v2474
      %5344 = vmatprep.subr.mxu0 0.0
      %5345 = vmatpush1.msra.mxu0 %v2475
      %5346 = vmatprep.subr.mxu0 0.0
      %5347 = vmatpush1.msra.mxu0 %v2476
      %5348 = vmatprep.subr.mxu0 0.0
      %5349 = vmatpush1.msra.mxu0 %v2477
      %5350 = vmatprep.subr.mxu0 0.0
      %5351 = vmatpush1.msra.mxu0 %v2478
      %5352 = vmatprep.subr.mxu0 0.0
      %5353 = vmatpush1.msra.mxu0 %v2479
      %5354 = vmatprep.subr.mxu0 0.0
      %5355 = vmatpush1.msra.mxu0 %v2480
      %5356 = vmatprep.subr.mxu0 0.0
      %5357 = vmatpush1.msra.mxu0 %v2481
      %5358 = vmatprep.subr.mxu0 0.0
      %5359 = vmatpush1.msra.mxu0 %v2482
      %5360 = vmatprep.subr.mxu0 0.0
      %5361 = vmatpush1.msra.mxu0 %v2483
      %5362 = vmatprep.subr.mxu0 0.0
      %5363 = vmatpush1.msra.mxu0 %v2484
      %5364 = vmatprep.subr.mxu0 0.0
      %5365 = vmatpush1.msra.mxu0 %v2485
      %5366 = vmatprep.subr.mxu0 0.0
      %5367 = vmatpush1.msra.mxu0 %v2486
      %5368 = vmatprep.subr.mxu0 0.0
      %5369 = vmatpush1.msra.mxu0 %v2487
      %5370 = vmatprep.subr.mxu0 0.0
      %5371 = vmatpush1.msra.mxu0 %v2488
      %5372 = vmatprep.subr.mxu0 0.0
      %5373 = vmatpush1.msra.mxu0 %v2489
      %5374 = vmatprep.subr.mxu0 0.0
      %5375 = vmatpush1.msra.mxu0 %v2490
      %5376 = vmatprep.subr.mxu0 0.0
      %5377 = vmatpush1.msra.mxu0 %v2491
      %5378 = vmatprep.subr.mxu0 0.0
      %5379 = vmatpush1.msra.mxu0 %v2492
      %5380 = vmatprep.subr.mxu0 0.0
      %5381 = vmatpush1.msra.mxu0 %v2493
      %5382 = vmatprep.subr.mxu0 0.0
      %5383 = vmatpush1.msra.mxu0 %v2494
      %5384 = vmatprep.subr.mxu0 0.0
      %5385 = vmatpush1.msra.mxu0 %v2495
      %5386 = vmatprep.subr.mxu0 0.0
      %5387 = vmatpush1.msra.mxu0 %v2496
      %5388 = vmatprep.subr.mxu0 0.0
      %5389 = vmatpush1.msra.mxu0 %v2497
      %5390 = vmatprep.subr.mxu0 0.0
      %5391 = vmatpush1.msra.mxu0 %v2498
      %5392 = vmatprep.subr.mxu0 0.0
      %5393 = vmatpush1.msra.mxu0 %v2499
      %5394 = vmatprep.mubr.f32.mxu0 %v5324
      %5395 = vmatmul.mubr.f32.gmra.mrb[0].mxu0 %v5323
      %v5396 = vpop.f32.mrb[0].mxu0
      %v5397 = vadd.f32 0.0, %v5396
      %v5398 = vpop.f32.mrb[0].mxu0
      %5399 = vdwg.mxu0
      %5400 = vmatprep.subr.mxu0 0.0
      %5401 = vmatpush1.msra.mxu0 %v2500
      %5402 = vmatprep.subr.mxu0 0.0
      %5403 = vmatpush1.msra.mxu0 %v2501
      %5404 = vmatprep.subr.mxu0 0.0
      %5405 = vmatpush1.msra.mxu0 %v2502
      %5406 = vmatprep.subr.mxu0 0.0
      %5407 = vmatpush1.msra.mxu0 %v2503
      %5408 = vmatprep.subr.mxu0 0.0
      %5409 = vmatpush1.msra.mxu0 %v2504
      %5410 = vmatprep.subr.mxu0 0.0
      %5411 = vmatpush1.msra.mxu0 %v2505
      %5412 = vmatprep.subr.mxu0 0.0
      %5413 = vmatpush1.msra.mxu0 %v2506
      %5414 = vmatprep.subr.mxu0 0.0
      %5415 = vmatpush1.msra.mxu0 %v2507
      %5416 = vmatprep.subr.mxu0 0.0
      %5417 = vmatpush1.msra.mxu0 %v2508
      %5418 = vmatprep.subr.mxu0 0.0
      %5419 = vmatpush1.msra.mxu0 %v2509
      %5420 = vmatprep.subr.mxu0 0.0
      %5421 = vmatpush1.msra.mxu0 0.0
      %5422 = vmatprep.subr.mxu0 0.0
      %5423 = vmatpush1.msra.mxu0 0.0
      %5424 = vmatprep.subr.mxu0 0.0
      %5425 = vmatpush1.msra.mxu0 0.0
      %5426 = vmatprep.subr.mxu0 0.0
      %5427 = vmatpush1.msra.mxu0 0.0
      %5428 = vmatprep.subr.mxu0 0.0
      %5429 = vmatpush1.msra.mxu0 0.0
      %5430 = vmatprep.subr.mxu0 0.0
      %5431 = vmatpush1.msra.mxu0 0.0
      %5432 = vmatprep.subr.mxu0 0.0
      %5433 = vmatpush1.msra.mxu0 0.0
      %5434 = vmatprep.subr.mxu0 0.0
      %5435 = vmatpush1.msra.mxu0 0.0
      %5436 = vmatprep.subr.mxu0 0.0
      %5437 = vmatpush1.msra.mxu0 0.0
      %5438 = vmatprep.subr.mxu0 0.0
      %5439 = vmatpush1.msra.mxu0 0.0
      %5440 = vmatprep.subr.mxu0 0.0
      %5441 = vmatpush1.msra.mxu0 0.0
      %5442 = vmatprep.subr.mxu0 0.0
      %5443 = vmatpush1.msra.mxu0 0.0
      %5444 = vmatprep.subr.mxu0 0.0
      %5445 = vmatpush1.msra.mxu0 0.0
      %5446 = vmatprep.subr.mxu0 0.0
      %5447 = vmatpush1.msra.mxu0 0.0
      %5448 = vmatprep.subr.mxu0 0.0
      %5449 = vmatpush1.msra.mxu0 0.0
      %5450 = vmatprep.subr.mxu0 0.0
      %5451 = vmatpush1.msra.mxu0 0.0
      %5452 = vmatprep.subr.mxu0 0.0
      %5453 = vmatpush1.msra.mxu0 0.0
      %5454 = vmatprep.subr.mxu0 0.0
      %5455 = vmatpush1.msra.mxu0 0.0
      %5456 = vmatprep.subr.mxu0 0.0
      %5457 = vmatpush1.msra.mxu0 0.0
      %5458 = vmatprep.subr.mxu0 0.0
      %5459 = vmatpush1.msra.mxu0 0.0
      %5460 = vmatprep.subr.mxu0 0.0
      %5461 = vmatpush1.msra.mxu0 0.0
      %5462 = vmatprep.subr.mxu0 0.0
      %5463 = vmatpush1.msra.mxu0 0.0
      %5464 = vmatprep.mubr.f32.mxu0 0.0
      %5465 = vmatmul.mubr.f32.gmra.mrb[0].mxu0 %v5328
      %v5466 = vpop.f32.mrb[0].mxu0
      %v5467 = vadd.f32 %v5397, %v5466
      %v5468 = vpop.f32.mrb[0].mxu0
      %5469 = vdwg.mxu0
      %v5470 = vadd.f32 %v5320, %v5467
      %v5471 = vrot.slane %v5174, 2
      %v5472 = vrot.slane %v5175, 2
      %v5473 = vrot.slane %v5176, 2
      %v5476 = vsel %vm3368, %v5473, 0
      %5478 = vmatprep.subr.mxu0 0.0
      %5479 = vmatpush1.msra.mxu0 %v2510
      %5480 = vmatprep.subr.mxu0 0.0
      %5481 = vmatpush1.msra.mxu0 %v2511
      %5482 = vmatprep.subr.mxu0 0.0
      %5483 = vmatpush1.msra.mxu0 %v2512
      %5484 = vmatprep.subr.mxu0 0.0
      %5485 = vmatpush1.msra.mxu0 %v2513
      %5486 = vmatprep.subr.mxu0 0.0
      %5487 = vmatpush1.msra.mxu0 %v2514
      %5488 = vmatprep.subr.mxu0 0.0
      %5489 = vmatpush1.msra.mxu0 %v2515
      %5490 = vmatprep.subr.mxu0 0.0
      %5491 = vmatpush1.msra.mxu0 %v2516
      %5492 = vmatprep.subr.mxu0 0.0
      %5493 = vmatpush1.msra.mxu0 %v2517
      %5494 = vmatprep.subr.mxu0 0.0
      %5495 = vmatpush1.msra.mxu0 %v2518
      %5496 = vmatprep.subr.mxu0 0.0
      %5497 = vmatpush1.msra.mxu0 %v2519
      %5498 = vmatprep.subr.mxu0 0.0
      %5499 = vmatpush1.msra.mxu0 %v2520
      %5500 = vmatprep.subr.mxu0 0.0
      %5501 = vmatpush1.msra.mxu0 %v2521
      %5502 = vmatprep.subr.mxu0 0.0
      %5503 = vmatpush1.msra.mxu0 %v2522
      %5504 = vmatprep.subr.mxu0 0.0
      %5505 = vmatpush1.msra.mxu0 %v2523
      %5506 = vmatprep.subr.mxu0 0.0
      %5507 = vmatpush1.msra.mxu0 %v2524
      %5508 = vmatprep.subr.mxu0 0.0
      %5509 = vmatpush1.msra.mxu0 %v2525
      %5510 = vmatprep.subr.mxu0 0.0
      %5511 = vmatpush1.msra.mxu0 %v2526
      %5512 = vmatprep.subr.mxu0 0.0
      %5513 = vmatpush1.msra.mxu0 %v2527
      %5514 = vmatprep.subr.mxu0 0.0
      %5515 = vmatpush1.msra.mxu0 %v2528
      %5516 = vmatprep.subr.mxu0 0.0
      %5517 = vmatpush1.msra.mxu0 %v2529
      %5518 = vmatprep.subr.mxu0 0.0
      %5519 = vmatpush1.msra.mxu0 %v2530
      %5520 = vmatprep.subr.mxu0 0.0
      %5521 = vmatpush1.msra.mxu0 %v2531
      %5522 = vmatprep.subr.mxu0 0.0
      %5523 = vmatpush1.msra.mxu0 %v2532
      %5524 = vmatprep.subr.mxu0 0.0
      %5525 = vmatpush1.msra.mxu0 %v2533
      %5526 = vmatprep.subr.mxu0 0.0
      %5527 = vmatpush1.msra.mxu0 %v2534
      %5528 = vmatprep.subr.mxu0 0.0
      %5529 = vmatpush1.msra.mxu0 %v2535
      %5530 = vmatprep.subr.mxu0 0.0
      %5531 = vmatpush1.msra.mxu0 %v2536
      %5532 = vmatprep.subr.mxu0 0.0
      %5533 = vmatpush1.msra.mxu0 %v2537
      %5534 = vmatprep.subr.mxu0 0.0
      %5535 = vmatpush1.msra.mxu0 %v2538
      %5536 = vmatprep.subr.mxu0 0.0
      %5537 = vmatpush1.msra.mxu0 %v2539
      %5538 = vmatprep.subr.mxu0 0.0
      %5539 = vmatpush1.msra.mxu0 %v2540
      %5540 = vmatprep.subr.mxu0 0.0
      %5541 = vmatpush1.msra.mxu0 %v2541
      %5542 = vmatprep.mubr.f32.mxu0 %v5472
      %5543 = vmatmul.mubr.f32.gmra.mrb[0].mxu0 %v5471
      %v5544 = vpop.f32.mrb[0].mxu0
      %v5545 = vadd.f32 0.0, %v5544
      %v5546 = vpop.f32.mrb[0].mxu0
      %5547 = vdwg.mxu0
      %5548 = vmatprep.subr.mxu0 0.0
      %5549 = vmatpush1.msra.mxu0 %v2542
      %5550 = vmatprep.subr.mxu0 0.0
      %5551 = vmatpush1.msra.mxu0 %v2543
      %5552 = vmatprep.subr.mxu0 0.0
      %5553 = vmatpush1.msra.mxu0 %v2544
      %5554 = vmatprep.subr.mxu0 0.0
      %5555 = vmatpush1.msra.mxu0 %v2545
      %5556 = vmatprep.subr.mxu0 0.0
      %5557 = vmatpush1.msra.mxu0 %v2546
      %5558 = vmatprep.subr.mxu0 0.0
      %5559 = vmatpush1.msra.mxu0 %v2547
      %5560 = vmatprep.subr.mxu0 0.0
      %5561 = vmatpush1.msra.mxu0 %v2548
      %5562 = vmatprep.subr.mxu0 0.0
      %5563 = vmatpush1.msra.mxu0 %v2549
      %5564 = vmatprep.subr.mxu0 0.0
      %5565 = vmatpush1.msra.mxu0 %v2550
      %5566 = vmatprep.subr.mxu0 0.0
      %5567 = vmatpush1.msra.mxu0 %v2551
      %5568 = vmatprep.subr.mxu0 0.0
      %5569 = vmatpush1.msra.mxu0 0.0
      %5570 = vmatprep.subr.mxu0 0.0
      %5571 = vmatpush1.msra.mxu0 0.0
      %5572 = vmatprep.subr.mxu0 0.0
      %5573 = vmatpush1.msra.mxu0 0.0
      %5574 = vmatprep.subr.mxu0 0.0
      %5575 = vmatpush1.msra.mxu0 0.0
      %5576 = vmatprep.subr.mxu0 0.0
      %5577 = vmatpush1.msra.mxu0 0.0
      %5578 = vmatprep.subr.mxu0 0.0
      %5579 = vmatpush1.msra.mxu0 0.0
      %5580 = vmatprep.subr.mxu0 0.0
      %5581 = vmatpush1.msra.mxu0 0.0
      %5582 = vmatprep.subr.mxu0 0.0
      %5583 = vmatpush1.msra.mxu0 0.0
      %5584 = vmatprep.subr.mxu0 0.0
      %5585 = vmatpush1.msra.mxu0 0.0
      %5586 = vmatprep.subr.mxu0 0.0
      %5587 = vmatpush1.msra.mxu0 0.0
      %5588 = vmatprep.subr.mxu0 0.0
      %5589 = vmatpush1.msra.mxu0 0.0
      %5590 = vmatprep.subr.mxu0 0.0
      %5591 = vmatpush1.msra.mxu0 0.0
      %5592 = vmatprep.subr.mxu0 0.0
      %5593 = vmatpush1.msra.mxu0 0.0
      %5594 = vmatprep.subr.mxu0 0.0
      %5595 = vmatpush1.msra.mxu0 0.0
      %5596 = vmatprep.subr.mxu0 0.0
      %5597 = vmatpush1.msra.mxu0 0.0
      %5598 = vmatprep.subr.mxu0 0.0
      %5599 = vmatpush1.msra.mxu0 0.0
      %5600 = vmatprep.subr.mxu0 0.0
      %5601 = vmatpush1.msra.mxu0 0.0
      %5602 = vmatprep.subr.mxu0 0.0
      %5603 = vmatpush1.msra.mxu0 0.0
      %5604 = vmatprep.subr.mxu0 0.0
      %5605 = vmatpush1.msra.mxu0 0.0
      %5606 = vmatprep.subr.mxu0 0.0
      %5607 = vmatpush1.msra.mxu0 0.0
      %5608 = vmatprep.subr.mxu0 0.0
      %5609 = vmatpush1.msra.mxu0 0.0
      %5610 = vmatprep.subr.mxu0 0.0
      %5611 = vmatpush1.msra.mxu0 0.0
      %5612 = vmatprep.mubr.f32.mxu0 0.0
      %5613 = vmatmul.mubr.f32.gmra.mrb[0].mxu0 %v5476
      %v5614 = vpop.f32.mrb[0].mxu0
      %v5615 = vadd.f32 %v5545, %v5614
      %v5616 = vpop.f32.mrb[0].mxu0
      %5617 = vdwg.mxu0
      %v5618 = vadd.f32 %v5470, %v5615
      %v5619 = vrot.slane %v5174, 3
      %v5620 = vrot.slane %v5175, 3
      %v5621 = vrot.slane %v5176, 3
      %v5624 = vsel %vm3368, %v5621, 0
      %5626 = vmatprep.subr.mxu0 0.0
      %5627 = vmatpush1.msra.mxu0 %v2552
      %5628 = vmatprep.subr.mxu0 0.0
      %5629 = vmatpush1.msra.mxu0 %v2553
      %5630 = vmatprep.subr.mxu0 0.0
      %5631 = vmatpush1.msra.mxu0 %v2554
      %5632 = vmatprep.subr.mxu0 0.0
      %5633 = vmatpush1.msra.mxu0 %v2555
      %5634 = vmatprep.subr.mxu0 0.0
      %5635 = vmatpush1.msra.mxu0 %v2556
      %5636 = vmatprep.subr.mxu0 0.0
      %5637 = vmatpush1.msra.mxu0 %v2557
      %5638 = vmatprep.subr.mxu0 0.0
      %5639 = vmatpush1.msra.mxu0 %v2558
      %5640 = vmatprep.subr.mxu0 0.0
      %5641 = vmatpush1.msra.mxu0 %v2559
      %5642 = vmatprep.subr.mxu0 0.0
      %5643 = vmatpush1.msra.mxu0 %v2560
      %5644 = vmatprep.subr.mxu0 0.0
      %5645 = vmatpush1.msra.mxu0 %v2561
      %5646 = vmatprep.subr.mxu0 0.0
      %5647 = vmatpush1.msra.mxu0 %v2562
      %5648 = vmatprep.subr.mxu0 0.0
      %5649 = vmatpush1.msra.mxu0 %v2563
      %5650 = vmatprep.subr.mxu0 0.0
      %5651 = vmatpush1.msra.mxu0 %v2564
      %5652 = vmatprep.subr.mxu0 0.0
      %5653 = vmatpush1.msra.mxu0 %v2565
      %5654 = vmatprep.subr.mxu0 0.0
      %5655 = vmatpush1.msra.mxu0 %v2566
      %5656 = vmatprep.subr.mxu0 0.0
      %5657 = vmatpush1.msra.mxu0 %v2567
      %5658 = vmatprep.subr.mxu0 0.0
      %5659 = vmatpush1.msra.mxu0 %v2568
      %5660 = vmatprep.subr.mxu0 0.0
      %5661 = vmatpush1.msra.mxu0 %v2569
      %5662 = vmatprep.subr.mxu0 0.0
      %5663 = vmatpush1.msra.mxu0 %v2570
      %5664 = vmatprep.subr.mxu0 0.0
      %5665 = vmatpush1.msra.mxu0 %v2571
      %5666 = vmatprep.subr.mxu0 0.0
      %5667 = vmatpush1.msra.mxu0 %v2572
      %5668 = vmatprep.subr.mxu0 0.0
      %5669 = vmatpush1.msra.mxu0 %v2573
      %5670 = vmatprep.subr.mxu0 0.0
      %5671 = vmatpush1.msra.mxu0 %v2574
      %5672 = vmatprep.subr.mxu0 0.0
      %5673 = vmatpush1.msra.mxu0 %v2575
      %5674 = vmatprep.subr.mxu0 0.0
      %5675 = vmatpush1.msra.mxu0 %v2576
      %5676 = vmatprep.subr.mxu0 0.0
      %5677 = vmatpush1.msra.mxu0 %v2577
      %5678 = vmatprep.subr.mxu0 0.0
      %5679 = vmatpush1.msra.mxu0 %v2578
      %5680 = vmatprep.subr.mxu0 0.0
      %5681 = vmatpush1.msra.mxu0 %v2579
      %5682 = vmatprep.subr.mxu0 0.0
      %5683 = vmatpush1.msra.mxu0 %v2580
      %5684 = vmatprep.subr.mxu0 0.0
      %5685 = vmatpush1.msra.mxu0 %v2581
      %5686 = vmatprep.subr.mxu0 0.0
      %5687 = vmatpush1.msra.mxu0 %v2582
      %5688 = vmatprep.subr.mxu0 0.0
      %5689 = vmatpush1.msra.mxu0 %v2583
      %5690 = vmatprep.mubr.f32.mxu0 %v5620
      %5691 = vmatmul.mubr.f32.gmra.mrb[0].mxu0 %v5619
      %v5692 = vpop.f32.mrb[0].mxu0
      %v5693 = vadd.f32 0.0, %v5692
      %v5694 = vpop.f32.mrb[0].mxu0
      %5695 = vdwg.mxu0
      %5696 = vmatprep.subr.mxu0 0.0
      %5697 = vmatpush1.msra.mxu0 %v2584
      %5698 = vmatprep.subr.mxu0 0.0
      %5699 = vmatpush1.msra.mxu0 %v2585
      %5700 = vmatprep.subr.mxu0 0.0
      %5701 = vmatpush1.msra.mxu0 %v2586
      %5702 = vmatprep.subr.mxu0 0.0
      %5703 = vmatpush1.msra.mxu0 %v2587
      %5704 = vmatprep.subr.mxu0 0.0
      %5705 = vmatpush1.msra.mxu0 %v2588
      %5706 = vmatprep.subr.mxu0 0.0
      %5707 = vmatpush1.msra.mxu0 %v2589
      %5708 = vmatprep.subr.mxu0 0.0
      %5709 = vmatpush1.msra.mxu0 %v2590
      %5710 = vmatprep.subr.mxu0 0.0
      %5711 = vmatpush1.msra.mxu0 %v2591
      %5712 = vmatprep.subr.mxu0 0.0
      %5713 = vmatpush1.msra.mxu0 %v2592
      %5714 = vmatprep.subr.mxu0 0.0
      %5715 = vmatpush1.msra.mxu0 %v2593
      %5716 = vmatprep.subr.mxu0 0.0
      %5717 = vmatpush1.msra.mxu0 0.0
      %5718 = vmatprep.subr.mxu0 0.0
      %5719 = vmatpush1.msra.mxu0 0.0
      %5720 = vmatprep.subr.mxu0 0.0
      %5721 = vmatpush1.msra.mxu0 0.0
      %5722 = vmatprep.subr.mxu0 0.0
      %5723 = vmatpush1.msra.mxu0 0.0
      %5724 = vmatprep.subr.mxu0 0.0
      %5725 = vmatpush1.msra.mxu0 0.0
      %5726 = vmatprep.subr.mxu0 0.0
      %5727 = vmatpush1.msra.mxu0 0.0
      %5728 = vmatprep.subr.mxu0 0.0
      %5729 = vmatpush1.msra.mxu0 0.0
      %5730 = vmatprep.subr.mxu0 0.0
      %5731 = vmatpush1.msra.mxu0 0.0
      %5732 = vmatprep.subr.mxu0 0.0
      %5733 = vmatpush1.msra.mxu0 0.0
      %5734 = vmatprep.subr.mxu0 0.0
      %5735 = vmatpush1.msra.mxu0 0.0
      %5736 = vmatprep.subr.mxu0 0.0
      %5737 = vmatpush1.msra.mxu0 0.0
      %5738 = vmatprep.subr.mxu0 0.0
      %5739 = vmatpush1.msra.mxu0 0.0
      %5740 = vmatprep.subr.mxu0 0.0
      %5741 = vmatpush1.msra.mxu0 0.0
      %5742 = vmatprep.subr.mxu0 0.0
      %5743 = vmatpush1.msra.mxu0 0.0
      %5744 = vmatprep.subr.mxu0 0.0
      %5745 = vmatpush1.msra.mxu0 0.0
      %5746 = vmatprep.subr.mxu0 0.0
      %5747 = vmatpush1.msra.mxu0 0.0
      %5748 = vmatprep.subr.mxu0 0.0
      %5749 = vmatpush1.msra.mxu0 0.0
      %5750 = vmatprep.subr.mxu0 0.0
      %5751 = vmatpush1.msra.mxu0 0.0
      %5752 = vmatprep.subr.mxu0 0.0
      %5753 = vmatpush1.msra.mxu0 0.0
      %5754 = vmatprep.subr.mxu0 0.0
      %5755 = vmatpush1.msra.mxu0 0.0
      %5756 = vmatprep.subr.mxu0 0.0
      %5757 = vmatpush1.msra.mxu0 0.0
      %5758 = vmatprep.subr.mxu0 0.0
      %5759 = vmatpush1.msra.mxu0 0.0
      %5760 = vmatprep.mubr.f32.mxu0 0.0
      %5761 = vmatmul.mubr.f32.gmra.mrb[0].mxu0 %v5624
      %v5762 = vpop.f32.mrb[0].mxu0
      %v5763 = vadd.f32 %v5693, %v5762
      %v5764 = vpop.f32.mrb[0].mxu0
      %5765 = vdwg.mxu0
      %v5766 = vadd.f32 %v5618, %v5763
      %v5767 = vrot.slane %v5174, 4
      %v5768 = vrot.slane %v5175, 4
      %v5769 = vrot.slane %v5176, 4
      %v5772 = vsel %vm3368, %v5769, 0
      %5774 = vmatprep.subr.mxu0 0.0
      %5775 = vmatpush1.msra.mxu0 %v2594
      %5776 = vmatprep.subr.mxu0 0.0
      %5777 = vmatpush1.msra.mxu0 %v2595
      %5778 = vmatprep.subr.mxu0 0.0
      %5779 = vmatpush1.msra.mxu0 %v2596
      %5780 = vmatprep.subr.mxu0 0.0
      %5781 = vmatpush1.msra.mxu0 %v2597
      %5782 = vmatprep.subr.mxu0 0.0
      %5783 = vmatpush1.msra.mxu0 %v2598
      %5784 = vmatprep.subr.mxu0 0.0
      %5785 = vmatpush1.msra.mxu0 %v2599
      %5786 = vmatprep.subr.mxu0 0.0
      %5787 = vmatpush1.msra.mxu0 %v2600
      %5788 = vmatprep.subr.mxu0 0.0
      %5789 = vmatpush1.msra.mxu0 %v2601
      %5790 = vmatprep.subr.mxu0 0.0
      %5791 = vmatpush1.msra.mxu0 %v2602
      %5792 = vmatprep.subr.mxu0 0.0
      %5793 = vmatpush1.msra.mxu0 %v2603
      %5794 = vmatprep.subr.mxu0 0.0
      %5795 = vmatpush1.msra.mxu0 %v2604
      %5796 = vmatprep.subr.mxu0 0.0
      %5797 = vmatpush1.msra.mxu0 %v2605
      %5798 = vmatprep.subr.mxu0 0.0
      %5799 = vmatpush1.msra.mxu0 %v2606
      %5800 = vmatprep.subr.mxu0 0.0
      %5801 = vmatpush1.msra.mxu0 %v2607
      %5802 = vmatprep.subr.mxu0 0.0
      %5803 = vmatpush1.msra.mxu0 %v2608
      %5804 = vmatprep.subr.mxu0 0.0
      %5805 = vmatpush1.msra.mxu0 %v2609
      %5806 = vmatprep.subr.mxu0 0.0
      %5807 = vmatpush1.msra.mxu0 %v2610
      %5808 = vmatprep.subr.mxu0 0.0
      %5809 = vmatpush1.msra.mxu0 %v2611
      %5810 = vmatprep.subr.mxu0 0.0
      %5811 = vmatpush1.msra.mxu0 %v2612
      %5812 = vmatprep.subr.mxu0 0.0
      %5813 = vmatpush1.msra.mxu0 %v2613
      %5814 = vmatprep.subr.mxu0 0.0
      %5815 = vmatpush1.msra.mxu0 %v2614
      %5816 = vmatprep.subr.mxu0 0.0
      %5817 = vmatpush1.msra.mxu0 %v2615
      %5818 = vmatprep.subr.mxu0 0.0
      %5819 = vmatpush1.msra.mxu0 %v2616
      %5820 = vmatprep.subr.mxu0 0.0
      %5821 = vmatpush1.msra.mxu0 %v2617
      %5822 = vmatprep.subr.mxu0 0.0
      %5823 = vmatpush1.msra.mxu0 %v2618
      %5824 = vmatprep.subr.mxu0 0.0
      %5825 = vmatpush1.msra.mxu0 %v2619
      %5826 = vmatprep.subr.mxu0 0.0
      %5827 = vmatpush1.msra.mxu0 %v2620
      %5828 = vmatprep.subr.mxu0 0.0
      %5829 = vmatpush1.msra.mxu0 %v2621
      %5830 = vmatprep.subr.mxu0 0.0
      %5831 = vmatpush1.msra.mxu0 %v2622
      %5832 = vmatprep.subr.mxu0 0.0
      %5833 = vmatpush1.msra.mxu0 %v2623
      %5834 = vmatprep.subr.mxu0 0.0
      %5835 = vmatpush1.msra.mxu0 %v2624
      %5836 = vmatprep.subr.mxu0 0.0
      %5837 = vmatpush1.msra.mxu0 %v2625
      %5838 = vmatprep.mubr.f32.mxu0 %v5768
      %5839 = vmatmul.mubr.f32.gmra.mrb[0].mxu0 %v5767
      %v5840 = vpop.f32.mrb[0].mxu0
      %v5841 = vadd.f32 0.0, %v5840
      %v5842 = vpop.f32.mrb[0].mxu0
      %5843 = vdwg.mxu0
      %5844 = vmatprep.subr.mxu0 0.0
      %5845 = vmatpush1.msra.mxu0 %v2626
      %5846 = vmatprep.subr.mxu0 0.0
      %5847 = vmatpush1.msra.mxu0 %v2627
      %5848 = vmatprep.subr.mxu0 0.0
      %5849 = vmatpush1.msra.mxu0 %v2628
      %5850 = vmatprep.subr.mxu0 0.0
      %5851 = vmatpush1.msra.mxu0 %v2629
      %5852 = vmatprep.subr.mxu0 0.0
      %5853 = vmatpush1.msra.mxu0 %v2630
      %5854 = vmatprep.subr.mxu0 0.0
      %5855 = vmatpush1.msra.mxu0 %v2631
      %5856 = vmatprep.subr.mxu0 0.0
      %5857 = vmatpush1.msra.mxu0 %v2632
      %5858 = vmatprep.subr.mxu0 0.0
      %5859 = vmatpush1.msra.mxu0 %v2633
      %5860 = vmatprep.subr.mxu0 0.0
      %5861 = vmatpush1.msra.mxu0 %v2634
      %5862 = vmatprep.subr.mxu0 0.0
      %5863 = vmatpush1.msra.mxu0 %v2635
      %5864 = vmatprep.subr.mxu0 0.0
      %5865 = vmatpush1.msra.mxu0 0.0
      %5866 = vmatprep.subr.mxu0 0.0
      %5867 = vmatpush1.msra.mxu0 0.0
      %5868 = vmatprep.subr.mxu0 0.0
      %5869 = vmatpush1.msra.mxu0 0.0
      %5870 = vmatprep.subr.mxu0 0.0
      %5871 = vmatpush1.msra.mxu0 0.0
      %5872 = vmatprep.subr.mxu0 0.0
      %5873 = vmatpush1.msra.mxu0 0.0
      %5874 = vmatprep.subr.mxu0 0.0
      %5875 = vmatpush1.msra.mxu0 0.0
      %5876 = vmatprep.subr.mxu0 0.0
      %5877 = vmatpush1.msra.mxu0 0.0
      %5878 = vmatprep.subr.mxu0 0.0
      %5879 = vmatpush1.msra.mxu0 0.0
      %5880 = vmatprep.subr.mxu0 0.0
      %5881 = vmatpush1.msra.mxu0 0.0
      %5882 = vmatprep.subr.mxu0 0.0
      %5883 = vmatpush1.msra.mxu0 0.0
      %5884 = vmatprep.subr.mxu0 0.0
      %5885 = vmatpush1.msra.mxu0 0.0
      %5886 = vmatprep.subr.mxu0 0.0
      %5887 = vmatpush1.msra.mxu0 0.0
      %5888 = vmatprep.subr.mxu0 0.0
      %5889 = vmatpush1.msra.mxu0 0.0
      %5890 = vmatprep.subr.mxu0 0.0
      %5891 = vmatpush1.msra.mxu0 0.0
      %5892 = vmatprep.subr.mxu0 0.0
      %5893 = vmatpush1.msra.mxu0 0.0
      %5894 = vmatprep.subr.mxu0 0.0
      %5895 = vmatpush1.msra.mxu0 0.0
      %5896 = vmatprep.subr.mxu0 0.0
      %5897 = vmatpush1.msra.mxu0 0.0
      %5898 = vmatprep.subr.mxu0 0.0
      %5899 = vmatpush1.msra.mxu0 0.0
      %5900 = vmatprep.subr.mxu0 0.0
      %5901 = vmatpush1.msra.mxu0 0.0
      %5902 = vmatprep.subr.mxu0 0.0
      %5903 = vmatpush1.msra.mxu0 0.0
      %5904 = vmatprep.subr.mxu0 0.0
      %5905 = vmatpush1.msra.mxu0 0.0
      %5906 = vmatprep.subr.mxu0 0.0
      %5907 = vmatpush1.msra.mxu0 0.0
      %5908 = vmatprep.mubr.f32.mxu0 0.0
      %5909 = vmatmul.mubr.f32.gmra.mrb[0].mxu0 %v5772
      %v5910 = vpop.f32.mrb[0].mxu0
      %v5911 = vadd.f32 %v5841, %v5910
      %v5912 = vpop.f32.mrb[0].mxu0
      %5913 = vdwg.mxu0
      %v5914 = vadd.f32 %v5766, %v5911
      %v5915 = vrot.slane %v5174, 5
      %v5916 = vrot.slane %v5175, 5
      %v5917 = vrot.slane %v5176, 5
      %v5920 = vsel %vm3368, %v5917, 0
      %5922 = vmatprep.subr.mxu0 0.0
      %5923 = vmatpush1.msra.mxu0 %v2636
      %5924 = vmatprep.subr.mxu0 0.0
      %5925 = vmatpush1.msra.mxu0 %v2637
      %5926 = vmatprep.subr.mxu0 0.0
      %5927 = vmatpush1.msra.mxu0 %v2638
      %5928 = vmatprep.subr.mxu0 0.0
      %5929 = vmatpush1.msra.mxu0 %v2639
      %5930 = vmatprep.subr.mxu0 0.0
      %5931 = vmatpush1.msra.mxu0 %v2640
      %5932 = vmatprep.subr.mxu0 0.0
      %5933 = vmatpush1.msra.mxu0 %v2641
      %5934 = vmatprep.subr.mxu0 0.0
      %5935 = vmatpush1.msra.mxu0 %v2642
      %5936 = vmatprep.subr.mxu0 0.0
      %5937 = vmatpush1.msra.mxu0 %v2643
      %5938 = vmatprep.subr.mxu0 0.0
      %5939 = vmatpush1.msra.mxu0 %v2644
      %5940 = vmatprep.subr.mxu0 0.0
      %5941 = vmatpush1.msra.mxu0 %v2645
      %5942 = vmatprep.subr.mxu0 0.0
      %5943 = vmatpush1.msra.mxu0 %v2646
      %5944 = vmatprep.subr.mxu0 0.0
      %5945 = vmatpush1.msra.mxu0 %v2647
      %5946 = vmatprep.subr.mxu0 0.0
      %5947 = vmatpush1.msra.mxu0 %v2648
      %5948 = vmatprep.subr.mxu0 0.0
      %5949 = vmatpush1.msra.mxu0 %v2649
      %5950 = vmatprep.subr.mxu0 0.0
      %5951 = vmatpush1.msra.mxu0 %v2650
      %5952 = vmatprep.subr.mxu0 0.0
      %5953 = vmatpush1.msra.mxu0 %v2651
      %5954 = vmatprep.subr.mxu0 0.0
      %5955 = vmatpush1.msra.mxu0 %v2652
      %5956 = vmatprep.subr.mxu0 0.0
      %5957 = vmatpush1.msra.mxu0 %v2653
      %5958 = vmatprep.subr.mxu0 0.0
      %5959 = vmatpush1.msra.mxu0 %v2654
      %5960 = vmatprep.subr.mxu0 0.0
      %5961 = vmatpush1.msra.mxu0 %v2655
      %5962 = vmatprep.subr.mxu0 0.0
      %5963 = vmatpush1.msra.mxu0 %v2656
      %5964 = vmatprep.subr.mxu0 0.0
      %5965 = vmatpush1.msra.mxu0 %v2657
      %5966 = vmatprep.subr.mxu0 0.0
      %5967 = vmatpush1.msra.mxu0 %v2658
      %5968 = vmatprep.subr.mxu0 0.0
      %5969 = vmatpush1.msra.mxu0 %v2659
      %5970 = vmatprep.subr.mxu0 0.0
      %5971 = vmatpush1.msra.mxu0 %v2660
      %5972 = vmatprep.subr.mxu0 0.0
      %5973 = vmatpush1.msra.mxu0 %v2661
      %5974 = vmatprep.subr.mxu0 0.0
      %5975 = vmatpush1.msra.mxu0 %v2662
      %5976 = vmatprep.subr.mxu0 0.0
      %5977 = vmatpush1.msra.mxu0 %v2663
      %5978 = vmatprep.subr.mxu0 0.0
      %5979 = vmatpush1.msra.mxu0 %v2664
      %5980 = vmatprep.subr.mxu0 0.0
      %5981 = vmatpush1.msra.mxu0 %v2665
      %5982 = vmatprep.subr.mxu0 0.0
      %5983 = vmatpush1.msra.mxu0 %v2666
      %5984 = vmatprep.subr.mxu0 0.0
      %5985 = vmatpush1.msra.mxu0 %v2667
      %5986 = vmatprep.mubr.f32.mxu0 %v5916
      %5987 = vmatmul.mubr.f32.gmra.mrb[0].mxu0 %v5915
      %v5988 = vpop.f32.mrb[0].mxu0
      %v5989 = vadd.f32 0.0, %v5988
      %v5990 = vpop.f32.mrb[0].mxu0
      %5991 = vdwg.mxu0
      %5992 = vmatprep.subr.mxu0 0.0
      %5993 = vmatpush1.msra.mxu0 %v2668
      %5994 = vmatprep.subr.mxu0 0.0
      %5995 = vmatpush1.msra.mxu0 %v2669
      %5996 = vmatprep.subr.mxu0 0.0
      %5997 = vmatpush1.msra.mxu0 %v2670
      %5998 = vmatprep.subr.mxu0 0.0
      %5999 = vmatpush1.msra.mxu0 %v2671
      %6000 = vmatprep.subr.mxu0 0.0
      %6001 = vmatpush1.msra.mxu0 %v2672
      %6002 = vmatprep.subr.mxu0 0.0
      %6003 = vmatpush1.msra.mxu0 %v2673
      %6004 = vmatprep.subr.mxu0 0.0
      %6005 = vmatpush1.msra.mxu0 %v2674
      %6006 = vmatprep.subr.mxu0 0.0
      %6007 = vmatpush1.msra.mxu0 %v2675
      %6008 = vmatprep.subr.mxu0 0.0
      %6009 = vmatpush1.msra.mxu0 %v2676
      %6010 = vmatprep.subr.mxu0 0.0
      %6011 = vmatpush1.msra.mxu0 %v2677
      %6012 = vmatprep.subr.mxu0 0.0
      %6013 = vmatpush1.msra.mxu0 0.0
      %6014 = vmatprep.subr.mxu0 0.0
      %6015 = vmatpush1.msra.mxu0 0.0
      %6016 = vmatprep.subr.mxu0 0.0
      %6017 = vmatpush1.msra.mxu0 0.0
      %6018 = vmatprep.subr.mxu0 0.0
      %6019 = vmatpush1.msra.mxu0 0.0
      %6020 = vmatprep.subr.mxu0 0.0
      %6021 = vmatpush1.msra.mxu0 0.0
      %6022 = vmatprep.subr.mxu0 0.0
      %6023 = vmatpush1.msra.mxu0 0.0
      %6024 = vmatprep.subr.mxu0 0.0
      %6025 = vmatpush1.msra.mxu0 0.0
      %6026 = vmatprep.subr.mxu0 0.0
      %6027 = vmatpush1.msra.mxu0 0.0
      %6028 = vmatprep.subr.mxu0 0.0
      %6029 = vmatpush1.msra.mxu0 0.0
      %6030 = vmatprep.subr.mxu0 0.0
      %6031 = vmatpush1.msra.mxu0 0.0
      %6032 = vmatprep.subr.mxu0 0.0
      %6033 = vmatpush1.msra.mxu0 0.0
      %6034 = vmatprep.subr.mxu0 0.0
      %6035 = vmatpush1.msra.mxu0 0.0
      %6036 = vmatprep.subr.mxu0 0.0
      %6037 = vmatpush1.msra.mxu0 0.0
      %6038 = vmatprep.subr.mxu0 0.0
      %6039 = vmatpush1.msra.mxu0 0.0
      %6040 = vmatprep.subr.mxu0 0.0
      %6041 = vmatpush1.msra.mxu0 0.0
      %6042 = vmatprep.subr.mxu0 0.0
      %6043 = vmatpush1.msra.mxu0 0.0
      %6044 = vmatprep.subr.mxu0 0.0
      %6045 = vmatpush1.msra.mxu0 0.0
      %6046 = vmatprep.subr.mxu0 0.0
      %6047 = vmatpush1.msra.mxu0 0.0
      %6048 = vmatprep.subr.mxu0 0.0
      %6049 = vmatpush1.msra.mxu0 0.0
      %6050 = vmatprep.subr.mxu0 0.0
      %6051 = vmatpush1.msra.mxu0 0.0
      %6052 = vmatprep.subr.mxu0 0.0
      %6053 = vmatpush1.msra.mxu0 0.0
      %6054 = vmatprep.subr.mxu0 0.0
      %6055 = vmatpush1.msra.mxu0 0.0
      %6056 = vmatprep.mubr.f32.mxu0 0.0
      %6057 = vmatmul.mubr.f32.gmra.mrb[0].mxu0 %v5920
      %v6058 = vpop.f32.mrb[0].mxu0
      %v6059 = vadd.f32 %v5989, %v6058
      %v6060 = vpop.f32.mrb[0].mxu0
      %6061 = vdwg.mxu0
      %v6062 = vadd.f32 %v5914, %v6059
      %v6063 = vrot.slane %v5174, 6
      %v6064 = vrot.slane %v5175, 6
      %v6065 = vrot.slane %v5176, 6
      %v6068 = vsel %vm3368, %v6065, 0
      %6070 = vmatprep.subr.mxu0 0.0
      %6071 = vmatpush1.msra.mxu0 %v2678
      %6072 = vmatprep.subr.mxu0 0.0
      %6073 = vmatpush1.msra.mxu0 %v2679
      %6074 = vmatprep.subr.mxu0 0.0
      %6075 = vmatpush1.msra.mxu0 %v2680
      %6076 = vmatprep.subr.mxu0 0.0
      %6077 = vmatpush1.msra.mxu0 %v2681
      %6078 = vmatprep.subr.mxu0 0.0
      %6079 = vmatpush1.msra.mxu0 %v2682
      %6080 = vmatprep.subr.mxu0 0.0
      %6081 = vmatpush1.msra.mxu0 %v2683
      %6082 = vmatprep.subr.mxu0 0.0
      %6083 = vmatpush1.msra.mxu0 %v2684
      %6084 = vmatprep.subr.mxu0 0.0
      %6085 = vmatpush1.msra.mxu0 %v2685
      %6086 = vmatprep.subr.mxu0 0.0
      %6087 = vmatpush1.msra.mxu0 %v2686
      %6088 = vmatprep.subr.mxu0 0.0
      %6089 = vmatpush1.msra.mxu0 %v2687
      %6090 = vmatprep.subr.mxu0 0.0
      %6091 = vmatpush1.msra.mxu0 %v2688
      %6092 = vmatprep.subr.mxu0 0.0
      %6093 = vmatpush1.msra.mxu0 %v2689
      %6094 = vmatprep.subr.mxu0 0.0
      %6095 = vmatpush1.msra.mxu0 %v2690
      %6096 = vmatprep.subr.mxu0 0.0
      %6097 = vmatpush1.msra.mxu0 %v2691
      %6098 = vmatprep.subr.mxu0 0.0
      %6099 = vmatpush1.msra.mxu0 %v2692
      %6100 = vmatprep.subr.mxu0 0.0
      %6101 = vmatpush1.msra.mxu0 %v2693
      %6102 = vmatprep.subr.mxu0 0.0
      %6103 = vmatpush1.msra.mxu0 %v2694
      %6104 = vmatprep.subr.mxu0 0.0
      %6105 = vmatpush1.msra.mxu0 %v2695
      %6106 = vmatprep.subr.mxu0 0.0
      %6107 = vmatpush1.msra.mxu0 %v2696
      %6108 = vmatprep.subr.mxu0 0.0
      %6109 = vmatpush1.msra.mxu0 %v2697
      %6110 = vmatprep.subr.mxu0 0.0
      %6111 = vmatpush1.msra.mxu0 %v2698
      %6112 = vmatprep.subr.mxu0 0.0
      %6113 = vmatpush1.msra.mxu0 %v2699
      %6114 = vmatprep.subr.mxu0 0.0
      %6115 = vmatpush1.msra.mxu0 %v2700
      %6116 = vmatprep.subr.mxu0 0.0
      %6117 = vmatpush1.msra.mxu0 %v2701
      %6118 = vmatprep.subr.mxu0 0.0
      %6119 = vmatpush1.msra.mxu0 %v2702
      %6120 = vmatprep.subr.mxu0 0.0
      %6121 = vmatpush1.msra.mxu0 %v2703
      %6122 = vmatprep.subr.mxu0 0.0
      %6123 = vmatpush1.msra.mxu0 %v2704
      %6124 = vmatprep.subr.mxu0 0.0
      %6125 = vmatpush1.msra.mxu0 %v2705
      %6126 = vmatprep.subr.mxu0 0.0
      %6127 = vmatpush1.msra.mxu0 %v2706
      %6128 = vmatprep.subr.mxu0 0.0
      %6129 = vmatpush1.msra.mxu0 %v2707
      %6130 = vmatprep.subr.mxu0 0.0
      %6131 = vmatpush1.msra.mxu0 %v2708
      %6132 = vmatprep.subr.mxu0 0.0
      %6133 = vmatpush1.msra.mxu0 %v2709
      %6134 = vmatprep.mubr.f32.mxu0 %v6064
      %6135 = vmatmul.mubr.f32.gmra.mrb[0].mxu0 %v6063
      %v6136 = vpop.f32.mrb[0].mxu0
      %v6137 = vadd.f32 0.0, %v6136
      %v6138 = vpop.f32.mrb[0].mxu0
      %6139 = vdwg.mxu0
      %6140 = vmatprep.subr.mxu0 0.0
      %6141 = vmatpush1.msra.mxu0 %v2710
      %6142 = vmatprep.subr.mxu0 0.0
      %6143 = vmatpush1.msra.mxu0 %v2711
      %6144 = vmatprep.subr.mxu0 0.0
      %6145 = vmatpush1.msra.mxu0 %v2712
      %6146 = vmatprep.subr.mxu0 0.0
      %6147 = vmatpush1.msra.mxu0 %v2713
      %6148 = vmatprep.subr.mxu0 0.0
      %6149 = vmatpush1.msra.mxu0 %v2714
      %6150 = vmatprep.subr.mxu0 0.0
      %6151 = vmatpush1.msra.mxu0 %v2715
      %6152 = vmatprep.subr.mxu0 0.0
      %6153 = vmatpush1.msra.mxu0 %v2716
      %6154 = vmatprep.subr.mxu0 0.0
      %6155 = vmatpush1.msra.mxu0 %v2717
      %6156 = vmatprep.subr.mxu0 0.0
      %6157 = vmatpush1.msra.mxu0 %v2718
      %6158 = vmatprep.subr.mxu0 0.0
      %6159 = vmatpush1.msra.mxu0 %v2719
      %6160 = vmatprep.subr.mxu0 0.0
      %6161 = vmatpush1.msra.mxu0 0.0
      %6162 = vmatprep.subr.mxu0 0.0
      %6163 = vmatpush1.msra.mxu0 0.0
      %6164 = vmatprep.subr.mxu0 0.0
      %6165 = vmatpush1.msra.mxu0 0.0
      %6166 = vmatprep.subr.mxu0 0.0
      %6167 = vmatpush1.msra.mxu0 0.0
      %6168 = vmatprep.subr.mxu0 0.0
      %6169 = vmatpush1.msra.mxu0 0.0
      %6170 = vmatprep.subr.mxu0 0.0
      %6171 = vmatpush1.msra.mxu0 0.0
      %6172 = vmatprep.subr.mxu0 0.0
      %6173 = vmatpush1.msra.mxu0 0.0
      %6174 = vmatprep.subr.mxu0 0.0
      %6175 = vmatpush1.msra.mxu0 0.0
      %6176 = vmatprep.subr.mxu0 0.0
      %6177 = vmatpush1.msra.mxu0 0.0
      %6178 = vmatprep.subr.mxu0 0.0
      %6179 = vmatpush1.msra.mxu0 0.0
      %6180 = vmatprep.subr.mxu0 0.0
      %6181 = vmatpush1.msra.mxu0 0.0
      %6182 = vmatprep.subr.mxu0 0.0
      %6183 = vmatpush1.msra.mxu0 0.0
      %6184 = vmatprep.subr.mxu0 0.0
      %6185 = vmatpush1.msra.mxu0 0.0
      %6186 = vmatprep.subr.mxu0 0.0
      %6187 = vmatpush1.msra.mxu0 0.0
      %6188 = vmatprep.subr.mxu0 0.0
      %6189 = vmatpush1.msra.mxu0 0.0
      %6190 = vmatprep.subr.mxu0 0.0
      %6191 = vmatpush1.msra.mxu0 0.0
      %6192 = vmatprep.subr.mxu0 0.0
      %6193 = vmatpush1.msra.mxu0 0.0
      %6194 = vmatprep.subr.mxu0 0.0
      %6195 = vmatpush1.msra.mxu0 0.0
      %6196 = vmatprep.subr.mxu0 0.0
      %6197 = vmatpush1.msra.mxu0 0.0
      %6198 = vmatprep.subr.mxu0 0.0
      %6199 = vmatpush1.msra.mxu0 0.0
      %6200 = vmatprep.subr.mxu0 0.0
      %6201 = vmatpush1.msra.mxu0 0.0
      %6202 = vmatprep.subr.mxu0 0.0
      %6203 = vmatpush1.msra.mxu0 0.0
      %6204 = vmatprep.mubr.f32.mxu0 0.0
      %6205 = vmatmul.mubr.f32.gmra.mrb[0].mxu0 %v6068
      %v6206 = vpop.f32.mrb[0].mxu0
      %v6207 = vadd.f32 %v6137, %v6206
      %v6208 = vpop.f32.mrb[0].mxu0
      %6209 = vdwg.mxu0
      %v6210 = vadd.f32 %v6062, %v6207
      %v6211 = vsub.f32 0.0, %v6210
      %v6212 = vmul.f32 %v6211, 1.442695
      %v6213 = vpow.pop %v6212
      %v6214 = vadd.f32 %v6213, 1.0
      %v6215 = vrcp.pop %v6214
      %v6217 = vsel %vm4408, %v6215, 0
      %6219 = vmatprep.subr.mxu0 0.0
      %6220 = vmatpush1.msra.mxu0 %v2721
      %6221 = vmatprep.subr.mxu0 0.0
      %6222 = vmatpush1.msra.mxu0 %v2722
      %6223 = vmatprep.subr.mxu0 0.0
      %6224 = vmatpush1.msra.mxu0 %v2723
      %6225 = vmatprep.subr.mxu0 0.0
      %6226 = vmatpush1.msra.mxu0 %v2724
      %6227 = vmatprep.subr.mxu0 0.0
      %6228 = vmatpush1.msra.mxu0 %v2725
      %6229 = vmatprep.subr.mxu0 0.0
      %6230 = vmatpush1.msra.mxu0 %v2726
      %6231 = vmatprep.subr.mxu0 0.0
      %6232 = vmatpush1.msra.mxu0 %v2727
      %6233 = vmatprep.subr.mxu0 0.0
      %6234 = vmatpush1.msra.mxu0 %v2728
      %6235 = vmatprep.subr.mxu0 0.0
      %6236 = vmatpush1.msra.mxu0 %v2729
      %6237 = vmatprep.subr.mxu0 0.0
      %6238 = vmatpush1.msra.mxu0 %v2730
      %6239 = vmatprep.subr.mxu0 0.0
      %6240 = vmatpush1.msra.mxu0 %v2731
      %6241 = vmatprep.subr.mxu0 0.0
      %6242 = vmatpush1.msra.mxu0 %v2732
      %6243 = vmatprep.subr.mxu0 0.0
      %6244 = vmatpush1.msra.mxu0 0.0
      %6245 = vmatprep.subr.mxu0 0.0
      %6246 = vmatpush1.msra.mxu0 0.0
      %6247 = vmatprep.subr.mxu0 0.0
      %6248 = vmatpush1.msra.mxu0 0.0
      %6249 = vmatprep.subr.mxu0 0.0
      %6250 = vmatpush1.msra.mxu0 0.0
      %6251 = vmatprep.subr.mxu0 0.0
      %6252 = vmatpush1.msra.mxu0 0.0
      %6253 = vmatprep.subr.mxu0 0.0
      %6254 = vmatpush1.msra.mxu0 0.0
      %6255 = vmatprep.subr.mxu0 0.0
      %6256 = vmatpush1.msra.mxu0 0.0
      %6257 = vmatprep.subr.mxu0 0.0
      %6258 = vmatpush1.msra.mxu0 0.0
      %6259 = vmatprep.subr.mxu0 0.0
      %6260 = vmatpush1.msra.mxu0 0.0
      %6261 = vmatprep.subr.mxu0 0.0
      %6262 = vmatpush1.msra.mxu0 0.0
      %6263 = vmatprep.subr.mxu0 0.0
      %6264 = vmatpush1.msra.mxu0 0.0
      %6265 = vmatprep.subr.mxu0 0.0
      %6266 = vmatpush1.msra.mxu0 0.0
      %6267 = vmatprep.subr.mxu0 0.0
      %6268 = vmatpush1.msra.mxu0 0.0
      %6269 = vmatprep.subr.mxu0 0.0
      %6270 = vmatpush1.msra.mxu0 0.0
      %6271 = vmatprep.subr.mxu0 0.0
      %6272 = vmatpush1.msra.mxu0 0.0
      %6273 = vmatprep.subr.mxu0 0.0
      %6274 = vmatpush1.msra.mxu0 0.0
      %6275 = vmatprep.subr.mxu0 0.0
      %6276 = vmatpush1.msra.mxu0 0.0
      %6277 = vmatprep.subr.mxu0 0.0
      %6278 = vmatpush1.msra.mxu0 0.0
      %6279 = vmatprep.subr.mxu0 0.0
      %6280 = vmatpush1.msra.mxu0 0.0
      %6281 = vmatprep.subr.mxu0 0.0
      %6282 = vmatpush1.msra.mxu0 0.0
      %6283 = vmatprep.mubr.f32.mxu0 0.0
      %6284 = vmatmul.mubr.f32.gmra.mrb[0].mxu0 %v6217
      %v6285 = vpop.f32.mrb[0].mxu0
      %v6286 = vadd.f32 %v2733, %v6285
      %v6287 = vpop.f32.mrb[0].mxu0
      %6288 = vdwg.mxu0
      %v6289 = vmax.f32 %v6286, 0.0
      %v6291 = vsel %vm4483, %v6289, 0
      %6293 = vmatprep.subr.mxu0 0.0
      %6294 = vmatpush1.msra.mxu0 %v2734
      %6295 = vmatprep.subr.mxu0 0.0
      %6296 = vmatpush1.msra.mxu0 %v2735
      %6297 = vmatprep.subr.mxu0 0.0
      %6298 = vmatpush1.msra.mxu0 %v2736
      %6299 = vmatprep.subr.mxu0 0.0
      %6300 = vmatpush1.msra.mxu0 %v2737
      %6301 = vmatprep.subr.mxu0 0.0
      %6302 = vmatpush1.msra.mxu0 %v2738
      %6303 = vmatprep.subr.mxu0 0.0
      %6304 = vmatpush1.msra.mxu0 %v2739
      %6305 = vmatprep.subr.mxu0 0.0
      %6306 = vmatpush1.msra.mxu0 %v2740
      %6307 = vmatprep.subr.mxu0 0.0
      %6308 = vmatpush1.msra.mxu0 %v2741
      %6309 = vmatprep.subr.mxu0 0.0
      %6310 = vmatpush1.msra.mxu0 %v2742
      %6311 = vmatprep.subr.mxu0 0.0
      %6312 = vmatpush1.msra.mxu0 %v2743
      %6313 = vmatprep.subr.mxu0 0.0
      %6314 = vmatpush1.msra.mxu0 %v2744
      %6315 = vmatprep.subr.mxu0 0.0
      %6316 = vmatpush1.msra.mxu0 %v2745
      %6317 = vmatprep.subr.mxu0 0.0
      %6318 = vmatpush1.msra.mxu0 %v4489
      %6319 = vmatprep.subr.mxu0 0.0
      %6320 = vmatpush1.msra.mxu0 0.0
      %6321 = vmatprep.subr.mxu0 0.0
      %6322 = vmatpush1.msra.mxu0 0.0
      %6323 = vmatprep.subr.mxu0 0.0
      %6324 = vmatpush1.msra.mxu0 0.0
      %6325 = vmatprep.subr.mxu0 0.0
      %6326 = vmatpush1.msra.mxu0 0.0
      %6327 = vmatprep.subr.mxu0 0.0
      %6328 = vmatpush1.msra.mxu0 0.0
      %6329 = vmatprep.subr.mxu0 0.0
      %6330 = vmatpush1.msra.mxu0 0.0
      %6331 = vmatprep.subr.mxu0 0.0
      %6332 = vmatpush1.msra.mxu0 0.0
      %6333 = vmatprep.subr.mxu0 0.0
      %6334 = vmatpush1.msra.mxu0 0.0
      %6335 = vmatprep.subr.mxu0 0.0
      %6336 = vmatpush1.msra.mxu0 0.0
      %6337 = vmatprep.subr.mxu0 0.0
      %6338 = vmatpush1.msra.mxu0 0.0
      %6339 = vmatprep.subr.mxu0 0.0
      %6340 = vmatpush1.msra.mxu0 0.0
      %6341 = vmatprep.subr.mxu0 0.0
      %6342 = vmatpush1.msra.mxu0 0.0
      %6343 = vmatprep.subr.mxu0 0.0
      %6344 = vmatpush1.msra.mxu0 0.0
      %6345 = vmatprep.subr.mxu0 0.0
      %6346 = vmatpush1.msra.mxu0 0.0
      %6347 = vmatprep.subr.mxu0 0.0
      %6348 = vmatpush1.msra.mxu0 0.0
      %6349 = vmatprep.subr.mxu0 0.0
      %6350 = vmatpush1.msra.mxu0 0.0
      %6351 = vmatprep.subr.mxu0 0.0
      %6352 = vmatpush1.msra.mxu0 0.0
      %6353 = vmatprep.subr.mxu0 0.0
      %6354 = vmatpush1.msra.mxu0 0.0
      %6355 = vmatprep.subr.mxu0 0.0
      %6356 = vmatpush1.msra.mxu0 0.0
      %6357 = vmatprep.mubr.f32.mxu0 0.0
      %6358 = vmatmul.mubr.f32.gmra.mrb[0].mxu0 %v6291
      %v6359 = vpop.f32.mrb[0].mxu0
      %v6360 = vadd.f32 %v2747, %v6359
      %v6361 = vpop.f32.mrb[0].mxu0
      %6362 = vdwg.mxu0
      %v6363 = vsel %vm4561, %v6360, -inf
      %6364 = vmax.xlane.f32.xlu0 %v6363
      %v6365 = vpop.xlane.xlu0 %6364
      %v6366 = vsub.f32 %v6360, %v6365
      %v6367 = vmul.f32 %v6366, 1.442695
      %v6368 = vpow.pop %v6367
      %v6369 = vsel %vm4561, %v6368, 0.0
      %6370 = vadd.xlane.f32.xlu0 %v6369
      %v6371 = vpop.xlane.xlu0 %6370
      %v6372 = vrcp.pop %v6371
      %v6373 = vmul.f32 %v6368, %v6372
      %s6374 = scalar_lea.vmem %s545, 1
      %6375 = vst.msk [vmem:[%s6374] sm:$0x1] %vm4561, %v6373
      %v6377 = vsel %vm2764, %v2220, 0
      %6379 = vmatprep.subr.mxu0 %v2309
      %6380 = vmatpush1.msra.mxu0 %v2308
      %6381 = vmatprep.subr.mxu0 %v2312
      %6382 = vmatpush1.msra.mxu0 %v2311
      %6383 = vmatprep.subr.mxu0 %v2315
      %6384 = vmatpush1.msra.mxu0 %v2314
      %6385 = vmatprep.subr.mxu0 %v2318
      %6386 = vmatpush1.msra.mxu0 %v2317
      %6387 = vmatprep.subr.mxu0 %v2321
      %6388 = vmatpush1.msra.mxu0 %v2320
      %6389 = vmatprep.subr.mxu0 %v2324
      %6390 = vmatpush1.msra.mxu0 %v2323
      %6391 = vmatprep.subr.mxu0 %v2327
      %6392 = vmatpush1.msra.mxu0 %v2326
      %6393 = vmatprep.subr.mxu0 %v2330
      %6394 = vmatpush1.msra.mxu0 %v2329
      %6395 = vmatprep.subr.mxu0 %v2333
      %6396 = vmatpush1.msra.mxu0 %v2332
      %6397 = vmatprep.subr.mxu0 %v2336
      %6398 = vmatpush1.msra.mxu0 %v2335
      %6399 = vmatprep.subr.mxu0 %v2339
      %6400 = vmatpush1.msra.mxu0 %v2338
      %6401 = vmatprep.subr.mxu0 %v2342
      %6402 = vmatpush1.msra.mxu0 %v2341
      %6403 = vmatprep.subr.mxu0 %v2345
      %6404 = vmatpush1.msra.mxu0 %v2344
      %6405 = vmatprep.subr.mxu0 %v2348
      %6406 = vmatpush1.msra.mxu0 %v2347
      %6407 = vmatprep.subr.mxu0 %v2351
      %6408 = vmatpush1.msra.mxu0 %v2350
      %6409 = vmatprep.subr.mxu0 %v2354
      %6410 = vmatpush1.msra.mxu0 %v2353
      %6411 = vmatprep.subr.mxu0 %v2357
      %6412 = vmatpush1.msra.mxu0 %v2356
      %6413 = vmatprep.subr.mxu0 %v2360
      %6414 = vmatpush1.msra.mxu0 %v2359
      %6415 = vmatprep.subr.mxu0 %v2363
      %6416 = vmatpush1.msra.mxu0 %v2362
      %6417 = vmatprep.subr.mxu0 %v2366
      %6418 = vmatpush1.msra.mxu0 %v2365
      %6419 = vmatprep.subr.mxu0 %v2369
      %6420 = vmatpush1.msra.mxu0 %v2368
      %6421 = vmatprep.subr.mxu0 %v2372
      %6422 = vmatpush1.msra.mxu0 %v2371
      %6423 = vmatprep.subr.mxu0 %v2375
      %6424 = vmatpush1.msra.mxu0 %v2374
      %6425 = vmatprep.subr.mxu0 %v2378
      %6426 = vmatpush1.msra.mxu0 %v2377
      %6427 = vmatprep.subr.mxu0 %v2381
      %6428 = vmatpush1.msra.mxu0 %v2380
      %6429 = vmatprep.subr.mxu0 %v2384
      %6430 = vmatpush1.msra.mxu0 %v2383
      %6431 = vmatprep.subr.mxu0 %v2387
      %6432 = vmatpush1.msra.mxu0 %v2386
      %6433 = vmatprep.subr.mxu0 %v2390
      %6434 = vmatpush1.msra.mxu0 %v2389
      %6435 = vmatprep.subr.mxu0 %v2393
      %6436 = vmatpush1.msra.mxu0 %v2392
      %6437 = vmatprep.subr.mxu0 %v2396
      %6438 = vmatpush1.msra.mxu0 %v2395
      %6439 = vmatprep.subr.mxu0 %v2399
      %6440 = vmatpush1.msra.mxu0 %v2398
      %6441 = vmatprep.subr.mxu0 %v2402
      %6442 = vmatpush1.msra.mxu0 %v2401
      %6443 = vmatprep.mubr.f32.mxu0 %v2219
      %6444 = vmatmul.mubr.f32.gmra.mrb[0].mxu0 %v2218
      %v6445 = vpop.f32.mrb[0].mxu0
      %v6446 = vadd.f32 %v2752, %v6445
      %v6447 = vpop.f32.mrb[0].mxu0
      %v6448 = vadd.f32 %v2756, %v6447
      %6449 = vdwg.mxu0
      %6450 = vmatprep.subr.mxu0 %v2405
      %6451 = vmatpush1.msra.mxu0 %v2404
      %6452 = vmatprep.subr.mxu0 %v2408
      %6453 = vmatpush1.msra.mxu0 %v2407
      %6454 = vmatprep.subr.mxu0 %v2411
      %6455 = vmatpush1.msra.mxu0 %v2410
      %6456 = vmatprep.subr.mxu0 %v2414
      %6457 = vmatpush1.msra.mxu0 %v2413
      %6458 = vmatprep.subr.mxu0 %v2417
      %6459 = vmatpush1.msra.mxu0 %v2416
      %6460 = vmatprep.subr.mxu0 %v2420
      %6461 = vmatpush1.msra.mxu0 %v2419
      %6462 = vmatprep.subr.mxu0 %v2423
      %6463 = vmatpush1.msra.mxu0 %v2422
      %6464 = vmatprep.subr.mxu0 0.0
      %6465 = vmatpush1.msra.mxu0 0.0
      %6466 = vmatprep.subr.mxu0 0.0
      %6467 = vmatpush1.msra.mxu0 0.0
      %6468 = vmatprep.subr.mxu0 0.0
      %6469 = vmatpush1.msra.mxu0 0.0
      %6470 = vmatprep.subr.mxu0 0.0
      %6471 = vmatpush1.msra.mxu0 0.0
      %6472 = vmatprep.subr.mxu0 0.0
      %6473 = vmatpush1.msra.mxu0 0.0
      %6474 = vmatprep.subr.mxu0 0.0
      %6475 = vmatpush1.msra.mxu0 0.0
      %6476 = vmatprep.subr.mxu0 0.0
      %6477 = vmatpush1.msra.mxu0 0.0
      %6478 = vmatprep.subr.mxu0 0.0
      %6479 = vmatpush1.msra.mxu0 0.0
      %6480 = vmatprep.subr.mxu0 0.0
      %6481 = vmatpush1.msra.mxu0 0.0
      %6482 = vmatprep.subr.mxu0 0.0
      %6483 = vmatpush1.msra.mxu0 0.0
      %6484 = vmatprep.subr.mxu0 0.0
      %6485 = vmatpush1.msra.mxu0 0.0
      %6486 = vmatprep.subr.mxu0 0.0
      %6487 = vmatpush1.msra.mxu0 0.0
      %6488 = vmatprep.subr.mxu0 0.0
      %6489 = vmatpush1.msra.mxu0 0.0
      %6490 = vmatprep.subr.mxu0 0.0
      %6491 = vmatpush1.msra.mxu0 0.0
      %6492 = vmatprep.subr.mxu0 0.0
      %6493 = vmatpush1.msra.mxu0 0.0
      %6494 = vmatprep.subr.mxu0 0.0
      %6495 = vmatpush1.msra.mxu0 0.0
      %6496 = vmatprep.subr.mxu0 0.0
      %6497 = vmatpush1.msra.mxu0 0.0
      %6498 = vmatprep.subr.mxu0 0.0
      %6499 = vmatpush1.msra.mxu0 0.0
      %6500 = vmatprep.subr.mxu0 0.0
      %6501 = vmatpush1.msra.mxu0 0.0
      %6502 = vmatprep.subr.mxu0 0.0
      %6503 = vmatpush1.msra.mxu0 0.0
      %6504 = vmatprep.subr.mxu0 0.0
      %6505 = vmatpush1.msra.mxu0 0.0
      %6506 = vmatprep.subr.mxu0 0.0
      %6507 = vmatpush1.msra.mxu0 0.0
      %6508 = vmatprep.subr.mxu0 0.0
      %6509 = vmatpush1.msra.mxu0 0.0
      %6510 = vmatprep.subr.mxu0 0.0
      %6511 = vmatpush1.msra.mxu0 0.0
      %6512 = vmatprep.subr.mxu0 0.0
      %6513 = vmatpush1.msra.mxu0 0.0
      %6514 = vmatprep.mubr.f32.mxu0 0.0
      %6515 = vmatmul.mubr.f32.gmra.mrb[0].mxu0 %v6377
      %v6516 = vpop.f32.mrb[0].mxu0
      %v6517 = vadd.f32 %v6446, %v6516
      %v6518 = vpop.f32.mrb[0].mxu0
      %v6519 = vadd.f32 %v6448, %v6518
      %6520 = vdwg.mxu0
      %6521 = vmatprep.subr.mxu0 0.0
      %6522 = vmatpush1.msra.mxu0 %v2310
      %6523 = vmatprep.subr.mxu0 0.0
      %6524 = vmatpush1.msra.mxu0 %v2313
      %6525 = vmatprep.subr.mxu0 0.0
      %6526 = vmatpush1.msra.mxu0 %v2316
      %6527 = vmatprep.subr.mxu0 0.0
      %6528 = vmatpush1.msra.mxu0 %v2319
      %6529 = vmatprep.subr.mxu0 0.0
      %6530 = vmatpush1.msra.mxu0 %v2322
      %6531 = vmatprep.subr.mxu0 0.0
      %6532 = vmatpush1.msra.mxu0 %v2325
      %6533 = vmatprep.subr.mxu0 0.0
      %6534 = vmatpush1.msra.mxu0 %v2328
      %6535 = vmatprep.subr.mxu0 0.0
      %6536 = vmatpush1.msra.mxu0 %v2331
      %6537 = vmatprep.subr.mxu0 0.0
      %6538 = vmatpush1.msra.mxu0 %v2334
      %6539 = vmatprep.subr.mxu0 0.0
      %6540 = vmatpush1.msra.mxu0 %v2337
      %6541 = vmatprep.subr.mxu0 0.0
      %6542 = vmatpush1.msra.mxu0 %v2340
      %6543 = vmatprep.subr.mxu0 0.0
      %6544 = vmatpush1.msra.mxu0 %v2343
      %6545 = vmatprep.subr.mxu0 0.0
      %6546 = vmatpush1.msra.mxu0 %v2346
      %6547 = vmatprep.subr.mxu0 0.0
      %6548 = vmatpush1.msra.mxu0 %v2349
      %6549 = vmatprep.subr.mxu0 0.0
      %6550 = vmatpush1.msra.mxu0 %v2352
      %6551 = vmatprep.subr.mxu0 0.0
      %6552 = vmatpush1.msra.mxu0 %v2355
      %6553 = vmatprep.subr.mxu0 0.0
      %6554 = vmatpush1.msra.mxu0 %v2358
      %6555 = vmatprep.subr.mxu0 0.0
      %6556 = vmatpush1.msra.mxu0 %v2361
      %6557 = vmatprep.subr.mxu0 0.0
      %6558 = vmatpush1.msra.mxu0 %v2364
      %6559 = vmatprep.subr.mxu0 0.0
      %6560 = vmatpush1.msra.mxu0 %v2367
      %6561 = vmatprep.subr.mxu0 0.0
      %6562 = vmatpush1.msra.mxu0 %v2370
      %6563 = vmatprep.subr.mxu0 0.0
      %6564 = vmatpush1.msra.mxu0 %v2373
      %6565 = vmatprep.subr.mxu0 0.0
      %6566 = vmatpush1.msra.mxu0 %v2376
      %6567 = vmatprep.subr.mxu0 0.0
      %6568 = vmatpush1.msra.mxu0 %v2379
      %6569 = vmatprep.subr.mxu0 0.0
      %6570 = vmatpush1.msra.mxu0 %v2382
      %6571 = vmatprep.subr.mxu0 0.0
      %6572 = vmatpush1.msra.mxu0 %v2385
      %6573 = vmatprep.subr.mxu0 0.0
      %6574 = vmatpush1.msra.mxu0 %v2388
      %6575 = vmatprep.subr.mxu0 0.0
      %6576 = vmatpush1.msra.mxu0 %v2391
      %6577 = vmatprep.subr.mxu0 0.0
      %6578 = vmatpush1.msra.mxu0 %v2394
      %6579 = vmatprep.subr.mxu0 0.0
      %6580 = vmatpush1.msra.mxu0 %v2397
      %6581 = vmatprep.subr.mxu0 0.0
      %6582 = vmatpush1.msra.mxu0 %v2400
      %6583 = vmatprep.subr.mxu0 0.0
      %6584 = vmatpush1.msra.mxu0 %v2403
      %6585 = vmatprep.mubr.f32.mxu0 %v2219
      %6586 = vmatmul.mubr.f32.gmra.mrb[0].mxu0 %v2218
      %v6587 = vpop.f32.mrb[0].mxu0
      %v6588 = vadd.f32 %v2760, %v6587
      %v6589 = vpop.f32.mrb[0].mxu0
      %6590 = vdwg.mxu0
      %6591 = vmatprep.subr.mxu0 0.0
      %6592 = vmatpush1.msra.mxu0 %v2406
      %6593 = vmatprep.subr.mxu0 0.0
      %6594 = vmatpush1.msra.mxu0 %v2409
      %6595 = vmatprep.subr.mxu0 0.0
      %6596 = vmatpush1.msra.mxu0 %v2412
      %6597 = vmatprep.subr.mxu0 0.0
      %6598 = vmatpush1.msra.mxu0 %v2415
      %6599 = vmatprep.subr.mxu0 0.0
      %6600 = vmatpush1.msra.mxu0 %v2418
      %6601 = vmatprep.subr.mxu0 0.0
      %6602 = vmatpush1.msra.mxu0 %v2421
      %6603 = vmatprep.subr.mxu0 0.0
      %6604 = vmatpush1.msra.mxu0 %v2424
      %6605 = vmatprep.subr.mxu0 0.0
      %6606 = vmatpush1.msra.mxu0 0.0
      %6607 = vmatprep.subr.mxu0 0.0
      %6608 = vmatpush1.msra.mxu0 0.0
      %6609 = vmatprep.subr.mxu0 0.0
      %6610 = vmatpush1.msra.mxu0 0.0
      %6611 = vmatprep.subr.mxu0 0.0
      %6612 = vmatpush1.msra.mxu0 0.0
      %6613 = vmatprep.subr.mxu0 0.0
      %6614 = vmatpush1.msra.mxu0 0.0
      %6615 = vmatprep.subr.mxu0 0.0
      %6616 = vmatpush1.msra.mxu0 0.0
      %6617 = vmatprep.subr.mxu0 0.0
      %6618 = vmatpush1.msra.mxu0 0.0
      %6619 = vmatprep.subr.mxu0 0.0
      %6620 = vmatpush1.msra.mxu0 0.0
      %6621 = vmatprep.subr.mxu0 0.0
      %6622 = vmatpush1.msra.mxu0 0.0
      %6623 = vmatprep.subr.mxu0 0.0
      %6624 = vmatpush1.msra.mxu0 0.0
      %6625 = vmatprep.subr.mxu0 0.0
      %6626 = vmatpush1.msra.mxu0 0.0
      %6627 = vmatprep.subr.mxu0 0.0
      %6628 = vmatpush1.msra.mxu0 0.0
      %6629 = vmatprep.subr.mxu0 0.0
      %6630 = vmatpush1.msra.mxu0 0.0
      %6631 = vmatprep.subr.mxu0 0.0
      %6632 = vmatpush1.msra.mxu0 0.0
      %6633 = vmatprep.subr.mxu0 0.0
      %6634 = vmatpush1.msra.mxu0 0.0
      %6635 = vmatprep.subr.mxu0 0.0
      %6636 = vmatpush1.msra.mxu0 0.0
      %6637 = vmatprep.subr.mxu0 0.0
      %6638 = vmatpush1.msra.mxu0 0.0
      %6639 = vmatprep.subr.mxu0 0.0
      %6640 = vmatpush1.msra.mxu0 0.0
      %6641 = vmatprep.subr.mxu0 0.0
      %6642 = vmatpush1.msra.mxu0 0.0
      %6643 = vmatprep.subr.mxu0 0.0
      %6644 = vmatpush1.msra.mxu0 0.0
      %6645 = vmatprep.subr.mxu0 0.0
      %6646 = vmatpush1.msra.mxu0 0.0
      %6647 = vmatprep.subr.mxu0 0.0
      %6648 = vmatpush1.msra.mxu0 0.0
      %6649 = vmatprep.subr.mxu0 0.0
      %6650 = vmatpush1.msra.mxu0 0.0
      %6651 = vmatprep.subr.mxu0 0.0
      %6652 = vmatpush1.msra.mxu0 0.0
      %6653 = vmatprep.subr.mxu0 0.0
      %6654 = vmatpush1.msra.mxu0 0.0
      %6655 = vmatprep.mubr.f32.mxu0 0.0
      %6656 = vmatmul.mubr.f32.gmra.mrb[0].mxu0 %v6377
      %v6657 = vpop.f32.mrb[0].mxu0
      %v6658 = vadd.f32 %v6588, %v6657
      %v6659 = vpop.f32.mrb[0].mxu0
      %6660 = vdwg.mxu0
      %v6661 = vsub.f32 0.0, %v6517
      %v6662 = vsub.f32 0.0, %v6519
      %v6663 = vsub.f32 0.0, %v6658
      %v6664 = vmul.f32 %v6661, 1.442695
      %v6665 = vpow.pop %v6664
      %v6666 = vmul.f32 %v6662, 1.442695
      %v6667 = vpow.pop %v6666
      %v6668 = vmul.f32 %v6663, 1.442695
      %v6669 = vpow.pop %v6668
      %v6670 = vadd.f32 %v6665, 1.0
      %v6671 = vadd.f32 %v6667, 1.0
      %v6672 = vadd.f32 %v6669, 1.0
      %v6673 = vrcp.pop %v6670
      %v6674 = vrcp.pop %v6671
      %v6675 = vrcp.pop %v6672
      %v6677 = vsel %vm2764, %v2304, 0
      %6679 = vmatprep.subr.mxu0 %v2309
      %6680 = vmatpush1.msra.mxu0 %v2308
      %6681 = vmatprep.subr.mxu0 %v2312
      %6682 = vmatpush1.msra.mxu0 %v2311
      %6683 = vmatprep.subr.mxu0 %v2315
      %6684 = vmatpush1.msra.mxu0 %v2314
      %6685 = vmatprep.subr.mxu0 %v2318
      %6686 = vmatpush1.msra.mxu0 %v2317
      %6687 = vmatprep.subr.mxu0 %v2321
      %6688 = vmatpush1.msra.mxu0 %v2320
      %6689 = vmatprep.subr.mxu0 %v2324
      %6690 = vmatpush1.msra.mxu0 %v2323
      %6691 = vmatprep.subr.mxu0 %v2327
      %6692 = vmatpush1.msra.mxu0 %v2326
      %6693 = vmatprep.subr.mxu0 %v2330
      %6694 = vmatpush1.msra.mxu0 %v2329
      %6695 = vmatprep.subr.mxu0 %v2333
      %6696 = vmatpush1.msra.mxu0 %v2332
      %6697 = vmatprep.subr.mxu0 %v2336
      %6698 = vmatpush1.msra.mxu0 %v2335
      %6699 = vmatprep.subr.mxu0 %v2339
      %6700 = vmatpush1.msra.mxu0 %v2338
      %6701 = vmatprep.subr.mxu0 %v2342
      %6702 = vmatpush1.msra.mxu0 %v2341
      %6703 = vmatprep.subr.mxu0 %v2345
      %6704 = vmatpush1.msra.mxu0 %v2344
      %6705 = vmatprep.subr.mxu0 %v2348
      %6706 = vmatpush1.msra.mxu0 %v2347
      %6707 = vmatprep.subr.mxu0 %v2351
      %6708 = vmatpush1.msra.mxu0 %v2350
      %6709 = vmatprep.subr.mxu0 %v2354
      %6710 = vmatpush1.msra.mxu0 %v2353
      %6711 = vmatprep.subr.mxu0 %v2357
      %6712 = vmatpush1.msra.mxu0 %v2356
      %6713 = vmatprep.subr.mxu0 %v2360
      %6714 = vmatpush1.msra.mxu0 %v2359
      %6715 = vmatprep.subr.mxu0 %v2363
      %6716 = vmatpush1.msra.mxu0 %v2362
      %6717 = vmatprep.subr.mxu0 %v2366
      %6718 = vmatpush1.msra.mxu0 %v2365
      %6719 = vmatprep.subr.mxu0 %v2369
      %6720 = vmatpush1.msra.mxu0 %v2368
      %6721 = vmatprep.subr.mxu0 %v2372
      %6722 = vmatpush1.msra.mxu0 %v2371
      %6723 = vmatprep.subr.mxu0 %v2375
      %6724 = vmatpush1.msra.mxu0 %v2374
      %6725 = vmatprep.subr.mxu0 %v2378
      %6726 = vmatpush1.msra.mxu0 %v2377
      %6727 = vmatprep.subr.mxu0 %v2381
      %6728 = vmatpush1.msra.mxu0 %v2380
      %6729 = vmatprep.subr.mxu0 %v2384
      %6730 = vmatpush1.msra.mxu0 %v2383
      %6731 = vmatprep.subr.mxu0 %v2387
      %6732 = vmatpush1.msra.mxu0 %v2386
      %6733 = vmatprep.subr.mxu0 %v2390
      %6734 = vmatpush1.msra.mxu0 %v2389
      %6735 = vmatprep.subr.mxu0 %v2393
      %6736 = vmatpush1.msra.mxu0 %v2392
      %6737 = vmatprep.subr.mxu0 %v2396
      %6738 = vmatpush1.msra.mxu0 %v2395
      %6739 = vmatprep.subr.mxu0 %v2399
      %6740 = vmatpush1.msra.mxu0 %v2398
      %6741 = vmatprep.subr.mxu0 %v2402
      %6742 = vmatpush1.msra.mxu0 %v2401
      %6743 = vmatprep.mubr.f32.mxu0 %v2303
      %6744 = vmatmul.mubr.f32.gmra.mrb[0].mxu0 %v2302
      %v6745 = vpop.f32.mrb[0].mxu0
      %v6746 = vadd.f32 %v2752, %v6745
      %v6747 = vpop.f32.mrb[0].mxu0
      %v6748 = vadd.f32 %v2756, %v6747
      %6749 = vdwg.mxu0
      %6750 = vmatprep.subr.mxu0 %v2405
      %6751 = vmatpush1.msra.mxu0 %v2404
      %6752 = vmatprep.subr.mxu0 %v2408
      %6753 = vmatpush1.msra.mxu0 %v2407
      %6754 = vmatprep.subr.mxu0 %v2411
      %6755 = vmatpush1.msra.mxu0 %v2410
      %6756 = vmatprep.subr.mxu0 %v2414
      %6757 = vmatpush1.msra.mxu0 %v2413
      %6758 = vmatprep.subr.mxu0 %v2417
      %6759 = vmatpush1.msra.mxu0 %v2416
      %6760 = vmatprep.subr.mxu0 %v2420
      %6761 = vmatpush1.msra.mxu0 %v2419
      %6762 = vmatprep.subr.mxu0 %v2423
      %6763 = vmatpush1.msra.mxu0 %v2422
      %6764 = vmatprep.subr.mxu0 0.0
      %6765 = vmatpush1.msra.mxu0 0.0
      %6766 = vmatprep.subr.mxu0 0.0
      %6767 = vmatpush1.msra.mxu0 0.0
      %6768 = vmatprep.subr.mxu0 0.0
      %6769 = vmatpush1.msra.mxu0 0.0
      %6770 = vmatprep.subr.mxu0 0.0
      %6771 = vmatpush1.msra.mxu0 0.0
      %6772 = vmatprep.subr.mxu0 0.0
      %6773 = vmatpush1.msra.mxu0 0.0
      %6774 = vmatprep.subr.mxu0 0.0
      %6775 = vmatpush1.msra.mxu0 0.0
      %6776 = vmatprep.subr.mxu0 0.0
      %6777 = vmatpush1.msra.mxu0 0.0
      %6778 = vmatprep.subr.mxu0 0.0
      %6779 = vmatpush1.msra.mxu0 0.0
      %6780 = vmatprep.subr.mxu0 0.0
      %6781 = vmatpush1.msra.mxu0 0.0
      %6782 = vmatprep.subr.mxu0 0.0
      %6783 = vmatpush1.msra.mxu0 0.0
      %6784 = vmatprep.subr.mxu0 0.0
      %6785 = vmatpush1.msra.mxu0 0.0
      %6786 = vmatprep.subr.mxu0 0.0
      %6787 = vmatpush1.msra.mxu0 0.0
      %6788 = vmatprep.subr.mxu0 0.0
      %6789 = vmatpush1.msra.mxu0 0.0
      %6790 = vmatprep.subr.mxu0 0.0
      %6791 = vmatpush1.msra.mxu0 0.0
      %6792 = vmatprep.subr.mxu0 0.0
      %6793 = vmatpush1.msra.mxu0 0.0
      %6794 = vmatprep.subr.mxu0 0.0
      %6795 = vmatpush1.msra.mxu0 0.0
      %6796 = vmatprep.subr.mxu0 0.0
      %6797 = vmatpush1.msra.mxu0 0.0
      %6798 = vmatprep.subr.mxu0 0.0
      %6799 = vmatpush1.msra.mxu0 0.0
      %6800 = vmatprep.subr.mxu0 0.0
      %6801 = vmatpush1.msra.mxu0 0.0
      %6802 = vmatprep.subr.mxu0 0.0
      %6803 = vmatpush1.msra.mxu0 0.0
      %6804 = vmatprep.subr.mxu0 0.0
      %6805 = vmatpush1.msra.mxu0 0.0
      %6806 = vmatprep.subr.mxu0 0.0
      %6807 = vmatpush1.msra.mxu0 0.0
      %6808 = vmatprep.subr.mxu0 0.0
      %6809 = vmatpush1.msra.mxu0 0.0
      %6810 = vmatprep.subr.mxu0 0.0
      %6811 = vmatpush1.msra.mxu0 0.0
      %6812 = vmatprep.subr.mxu0 0.0
      %6813 = vmatpush1.msra.mxu0 0.0
      %6814 = vmatprep.mubr.f32.mxu0 0.0
      %6815 = vmatmul.mubr.f32.gmra.mrb[0].mxu0 %v6677
      %v6816 = vpop.f32.mrb[0].mxu0
      %v6817 = vadd.f32 %v6746, %v6816
      %v6818 = vpop.f32.mrb[0].mxu0
      %v6819 = vadd.f32 %v6748, %v6818
      %6820 = vdwg.mxu0
      %6821 = vmatprep.subr.mxu0 0.0
      %6822 = vmatpush1.msra.mxu0 %v2310
      %6823 = vmatprep.subr.mxu0 0.0
      %6824 = vmatpush1.msra.mxu0 %v2313
      %6825 = vmatprep.subr.mxu0 0.0
      %6826 = vmatpush1.msra.mxu0 %v2316
      %6827 = vmatprep.subr.mxu0 0.0
      %6828 = vmatpush1.msra.mxu0 %v2319
      %6829 = vmatprep.subr.mxu0 0.0
      %6830 = vmatpush1.msra.mxu0 %v2322
      %6831 = vmatprep.subr.mxu0 0.0
      %6832 = vmatpush1.msra.mxu0 %v2325
      %6833 = vmatprep.subr.mxu0 0.0
      %6834 = vmatpush1.msra.mxu0 %v2328
      %6835 = vmatprep.subr.mxu0 0.0
      %6836 = vmatpush1.msra.mxu0 %v2331
      %6837 = vmatprep.subr.mxu0 0.0
      %6838 = vmatpush1.msra.mxu0 %v2334
      %6839 = vmatprep.subr.mxu0 0.0
      %6840 = vmatpush1.msra.mxu0 %v2337
      %6841 = vmatprep.subr.mxu0 0.0
      %6842 = vmatpush1.msra.mxu0 %v2340
      %6843 = vmatprep.subr.mxu0 0.0
      %6844 = vmatpush1.msra.mxu0 %v2343
      %6845 = vmatprep.subr.mxu0 0.0
      %6846 = vmatpush1.msra.mxu0 %v2346
      %6847 = vmatprep.subr.mxu0 0.0
      %6848 = vmatpush1.msra.mxu0 %v2349
      %6849 = vmatprep.subr.mxu0 0.0
      %6850 = vmatpush1.msra.mxu0 %v2352
      %6851 = vmatprep.subr.mxu0 0.0
      %6852 = vmatpush1.msra.mxu0 %v2355
      %6853 = vmatprep.subr.mxu0 0.0
      %6854 = vmatpush1.msra.mxu0 %v2358
      %6855 = vmatprep.subr.mxu0 0.0
      %6856 = vmatpush1.msra.mxu0 %v2361
      %6857 = vmatprep.subr.mxu0 0.0
      %6858 = vmatpush1.msra.mxu0 %v2364
      %6859 = vmatprep.subr.mxu0 0.0
      %6860 = vmatpush1.msra.mxu0 %v2367
      %6861 = vmatprep.subr.mxu0 0.0
      %6862 = vmatpush1.msra.mxu0 %v2370
      %6863 = vmatprep.subr.mxu0 0.0
      %6864 = vmatpush1.msra.mxu0 %v2373
      %6865 = vmatprep.subr.mxu0 0.0
      %6866 = vmatpush1.msra.mxu0 %v2376
      %6867 = vmatprep.subr.mxu0 0.0
      %6868 = vmatpush1.msra.mxu0 %v2379
      %6869 = vmatprep.subr.mxu0 0.0
      %6870 = vmatpush1.msra.mxu0 %v2382
      %6871 = vmatprep.subr.mxu0 0.0
      %6872 = vmatpush1.msra.mxu0 %v2385
      %6873 = vmatprep.subr.mxu0 0.0
      %6874 = vmatpush1.msra.mxu0 %v2388
      %6875 = vmatprep.subr.mxu0 0.0
      %6876 = vmatpush1.msra.mxu0 %v2391
      %6877 = vmatprep.subr.mxu0 0.0
      %6878 = vmatpush1.msra.mxu0 %v2394
      %6879 = vmatprep.subr.mxu0 0.0
      %6880 = vmatpush1.msra.mxu0 %v2397
      %6881 = vmatprep.subr.mxu0 0.0
      %6882 = vmatpush1.msra.mxu0 %v2400
      %6883 = vmatprep.subr.mxu0 0.0
      %6884 = vmatpush1.msra.mxu0 %v2403
      %6885 = vmatprep.mubr.f32.mxu0 %v2303
      %6886 = vmatmul.mubr.f32.gmra.mrb[0].mxu0 %v2302
      %v6887 = vpop.f32.mrb[0].mxu0
      %v6888 = vadd.f32 %v2760, %v6887
      %v6889 = vpop.f32.mrb[0].mxu0
      %6890 = vdwg.mxu0
      %6891 = vmatprep.subr.mxu0 0.0
      %6892 = vmatpush1.msra.mxu0 %v2406
      %6893 = vmatprep.subr.mxu0 0.0
      %6894 = vmatpush1.msra.mxu0 %v2409
      %6895 = vmatprep.subr.mxu0 0.0
      %6896 = vmatpush1.msra.mxu0 %v2412
      %6897 = vmatprep.subr.mxu0 0.0
      %6898 = vmatpush1.msra.mxu0 %v2415
      %6899 = vmatprep.subr.mxu0 0.0
      %6900 = vmatpush1.msra.mxu0 %v2418
      %6901 = vmatprep.subr.mxu0 0.0
      %6902 = vmatpush1.msra.mxu0 %v2421
      %6903 = vmatprep.subr.mxu0 0.0
      %6904 = vmatpush1.msra.mxu0 %v2424
      %6905 = vmatprep.subr.mxu0 0.0
      %6906 = vmatpush1.msra.mxu0 0.0
      %6907 = vmatprep.subr.mxu0 0.0
      %6908 = vmatpush1.msra.mxu0 0.0
      %6909 = vmatprep.subr.mxu0 0.0
      %6910 = vmatpush1.msra.mxu0 0.0
      %6911 = vmatprep.subr.mxu0 0.0
      %6912 = vmatpush1.msra.mxu0 0.0
      %6913 = vmatprep.subr.mxu0 0.0
      %6914 = vmatpush1.msra.mxu0 0.0
      %6915 = vmatprep.subr.mxu0 0.0
      %6916 = vmatpush1.msra.mxu0 0.0
      %6917 = vmatprep.subr.mxu0 0.0
      %6918 = vmatpush1.msra.mxu0 0.0
      %6919 = vmatprep.subr.mxu0 0.0
      %6920 = vmatpush1.msra.mxu0 0.0
      %6921 = vmatprep.subr.mxu0 0.0
      %6922 = vmatpush1.msra.mxu0 0.0
      %6923 = vmatprep.subr.mxu0 0.0
      %6924 = vmatpush1.msra.mxu0 0.0
      %6925 = vmatprep.subr.mxu0 0.0
      %6926 = vmatpush1.msra.mxu0 0.0
      %6927 = vmatprep.subr.mxu0 0.0
      %6928 = vmatpush1.msra.mxu0 0.0
      %6929 = vmatprep.subr.mxu0 0.0
      %6930 = vmatpush1.msra.mxu0 0.0
      %6931 = vmatprep.subr.mxu0 0.0
      %6932 = vmatpush1.msra.mxu0 0.0
      %6933 = vmatprep.subr.mxu0 0.0
      %6934 = vmatpush1.msra.mxu0 0.0
      %6935 = vmatprep.subr.mxu0 0.0
      %6936 = vmatpush1.msra.mxu0 0.0
      %6937 = vmatprep.subr.mxu0 0.0
      %6938 = vmatpush1.msra.mxu0 0.0
      %6939 = vmatprep.subr.mxu0 0.0
      %6940 = vmatpush1.msra.mxu0 0.0
      %6941 = vmatprep.subr.mxu0 0.0
      %6942 = vmatpush1.msra.mxu0 0.0
      %6943 = vmatprep.subr.mxu0 0.0
      %6944 = vmatpush1.msra.mxu0 0.0
      %6945 = vmatprep.subr.mxu0 0.0
      %6946 = vmatpush1.msra.mxu0 0.0
      %6947 = vmatprep.subr.mxu0 0.0
      %6948 = vmatpush1.msra.mxu0 0.0
      %6949 = vmatprep.subr.mxu0 0.0
      %6950 = vmatpush1.msra.mxu0 0.0
      %6951 = vmatprep.subr.mxu0 0.0
      %6952 = vmatpush1.msra.mxu0 0.0
      %6953 = vmatprep.subr.mxu0 0.0
      %6954 = vmatpush1.msra.mxu0 0.0
      %6955 = vmatprep.mubr.f32.mxu0 0.0
      %6956 = vmatmul.mubr.f32.gmra.mrb[0].mxu0 %v6677
      %v6957 = vpop.f32.mrb[0].mxu0
      %v6958 = vadd.f32 %v6888, %v6957
      %v6959 = vpop.f32.mrb[0].mxu0
      %6960 = vdwg.mxu0
      %v6961 = vsub.f32 0.0, %v6817
      %v6962 = vsub.f32 0.0, %v6819
      %v6963 = vsub.f32 0.0, %v6958
      %v6964 = vmul.f32 %v6961, 1.442695
      %v6965 = vpow.pop %v6964
      %v6966 = vmul.f32 %v6962, 1.442695
      %v6967 = vpow.pop %v6966
      %v6968 = vmul.f32 %v6963, 1.442695
      %v6969 = vpow.pop %v6968
      %v6970 = vadd.f32 %v6965, 1.0
      %v6971 = vadd.f32 %v6967, 1.0
      %v6972 = vadd.f32 %v6969, 1.0
      %v6973 = vrcp.pop %v6970
      %v6974 = vrcp.pop %v6971
      %v6975 = vrcp.pop %v6972
      %v6976 = vmax.f32 %v6673, %v6973
      %v6977 = vmax.f32 %v6674, %v6974
      %v6978 = vmax.f32 %v6675, %v6975
      %v6980 = vsel %vm3368, %v6978, 0
      %6982 = vmatprep.subr.mxu0 0.0
      %6983 = vmatpush1.msra.mxu0 %v2426
      %6984 = vmatprep.subr.mxu0 0.0
      %6985 = vmatpush1.msra.mxu0 %v2427
      %6986 = vmatprep.subr.mxu0 0.0
      %6987 = vmatpush1.msra.mxu0 %v2428
      %6988 = vmatprep.subr.mxu0 0.0
      %6989 = vmatpush1.msra.mxu0 %v2429
      %6990 = vmatprep.subr.mxu0 0.0
      %6991 = vmatpush1.msra.mxu0 %v2430
      %6992 = vmatprep.subr.mxu0 0.0
      %6993 = vmatpush1.msra.mxu0 %v2431
      %6994 = vmatprep.subr.mxu0 0.0
      %6995 = vmatpush1.msra.mxu0 %v2432
      %6996 = vmatprep.subr.mxu0 0.0
      %6997 = vmatpush1.msra.mxu0 %v2433
      %6998 = vmatprep.subr.mxu0 0.0
      %6999 = vmatpush1.msra.mxu0 %v2434
      %7000 = vmatprep.subr.mxu0 0.0
      %7001 = vmatpush1.msra.mxu0 %v2435
      %7002 = vmatprep.subr.mxu0 0.0
      %7003 = vmatpush1.msra.mxu0 %v2436
      %7004 = vmatprep.subr.mxu0 0.0
      %7005 = vmatpush1.msra.mxu0 %v2437
      %7006 = vmatprep.subr.mxu0 0.0
      %7007 = vmatpush1.msra.mxu0 %v2438
      %7008 = vmatprep.subr.mxu0 0.0
      %7009 = vmatpush1.msra.mxu0 %v2439
      %7010 = vmatprep.subr.mxu0 0.0
      %7011 = vmatpush1.msra.mxu0 %v2440
      %7012 = vmatprep.subr.mxu0 0.0
      %7013 = vmatpush1.msra.mxu0 %v2441
      %7014 = vmatprep.subr.mxu0 0.0
      %7015 = vmatpush1.msra.mxu0 %v2442
      %7016 = vmatprep.subr.mxu0 0.0
      %7017 = vmatpush1.msra.mxu0 %v2443
      %7018 = vmatprep.subr.mxu0 0.0
      %7019 = vmatpush1.msra.mxu0 %v2444
      %7020 = vmatprep.subr.mxu0 0.0
      %7021 = vmatpush1.msra.mxu0 %v2445
      %7022 = vmatprep.subr.mxu0 0.0
      %7023 = vmatpush1.msra.mxu0 %v2446
      %7024 = vmatprep.subr.mxu0 0.0
      %7025 = vmatpush1.msra.mxu0 %v2447
      %7026 = vmatprep.subr.mxu0 0.0
      %7027 = vmatpush1.msra.mxu0 %v2448
      %7028 = vmatprep.subr.mxu0 0.0
      %7029 = vmatpush1.msra.mxu0 %v2449
      %7030 = vmatprep.subr.mxu0 0.0
      %7031 = vmatpush1.msra.mxu0 %v2450
      %7032 = vmatprep.subr.mxu0 0.0
      %7033 = vmatpush1.msra.mxu0 %v2451
      %7034 = vmatprep.subr.mxu0 0.0
      %7035 = vmatpush1.msra.mxu0 %v2452
      %7036 = vmatprep.subr.mxu0 0.0
      %7037 = vmatpush1.msra.mxu0 %v2453
      %7038 = vmatprep.subr.mxu0 0.0
      %7039 = vmatpush1.msra.mxu0 %v2454
      %7040 = vmatprep.subr.mxu0 0.0
      %7041 = vmatpush1.msra.mxu0 %v2455
      %7042 = vmatprep.subr.mxu0 0.0
      %7043 = vmatpush1.msra.mxu0 %v2456
      %7044 = vmatprep.subr.mxu0 0.0
      %7045 = vmatpush1.msra.mxu0 %v2457
      %7046 = vmatprep.mubr.f32.mxu0 %v6977
      %7047 = vmatmul.mubr.f32.gmra.mrb[0].mxu0 %v6976
      %v7048 = vpop.f32.mrb[0].mxu0
      %v7049 = vadd.f32 0.0, %v7048
      %v7050 = vpop.f32.mrb[0].mxu0
      %7051 = vdwg.mxu0
      %7052 = vmatprep.subr.mxu0 0.0
      %7053 = vmatpush1.msra.mxu0 %v2458
      %7054 = vmatprep.subr.mxu0 0.0
      %7055 = vmatpush1.msra.mxu0 %v2459
      %7056 = vmatprep.subr.mxu0 0.0
      %7057 = vmatpush1.msra.mxu0 %v2460
      %7058 = vmatprep.subr.mxu0 0.0
      %7059 = vmatpush1.msra.mxu0 %v2461
      %7060 = vmatprep.subr.mxu0 0.0
      %7061 = vmatpush1.msra.mxu0 %v2462
      %7062 = vmatprep.subr.mxu0 0.0
      %7063 = vmatpush1.msra.mxu0 %v2463
      %7064 = vmatprep.subr.mxu0 0.0
      %7065 = vmatpush1.msra.mxu0 %v2464
      %7066 = vmatprep.subr.mxu0 0.0
      %7067 = vmatpush1.msra.mxu0 %v2465
      %7068 = vmatprep.subr.mxu0 0.0
      %7069 = vmatpush1.msra.mxu0 %v2466
      %7070 = vmatprep.subr.mxu0 0.0
      %7071 = vmatpush1.msra.mxu0 %v2467
      %7072 = vmatprep.subr.mxu0 0.0
      %7073 = vmatpush1.msra.mxu0 0.0
      %7074 = vmatprep.subr.mxu0 0.0
      %7075 = vmatpush1.msra.mxu0 0.0
      %7076 = vmatprep.subr.mxu0 0.0
      %7077 = vmatpush1.msra.mxu0 0.0
      %7078 = vmatprep.subr.mxu0 0.0
      %7079 = vmatpush1.msra.mxu0 0.0
      %7080 = vmatprep.subr.mxu0 0.0
      %7081 = vmatpush1.msra.mxu0 0.0
      %7082 = vmatprep.subr.mxu0 0.0
      %7083 = vmatpush1.msra.mxu0 0.0
      %7084 = vmatprep.subr.mxu0 0.0
      %7085 = vmatpush1.msra.mxu0 0.0
      %7086 = vmatprep.subr.mxu0 0.0
      %7087 = vmatpush1.msra.mxu0 0.0
      %7088 = vmatprep.subr.mxu0 0.0
      %7089 = vmatpush1.msra.mxu0 0.0
      %7090 = vmatprep.subr.mxu0 0.0
      %7091 = vmatpush1.msra.mxu0 0.0
      %7092 = vmatprep.subr.mxu0 0.0
      %7093 = vmatpush1.msra.mxu0 0.0
      %7094 = vmatprep.subr.mxu0 0.0
      %7095 = vmatpush1.msra.mxu0 0.0
      %7096 = vmatprep.subr.mxu0 0.0
      %7097 = vmatpush1.msra.mxu0 0.0
      %7098 = vmatprep.subr.mxu0 0.0
      %7099 = vmatpush1.msra.mxu0 0.0
      %7100 = vmatprep.subr.mxu0 0.0
      %7101 = vmatpush1.msra.mxu0 0.0
      %7102 = vmatprep.subr.mxu0 0.0
      %7103 = vmatpush1.msra.mxu0 0.0
      %7104 = vmatprep.subr.mxu0 0.0
      %7105 = vmatpush1.msra.mxu0 0.0
      %7106 = vmatprep.subr.mxu0 0.0
      %7107 = vmatpush1.msra.mxu0 0.0
      %7108 = vmatprep.subr.mxu0 0.0
      %7109 = vmatpush1.msra.mxu0 0.0
      %7110 = vmatprep.subr.mxu0 0.0
      %7111 = vmatpush1.msra.mxu0 0.0
      %7112 = vmatprep.subr.mxu0 0.0
      %7113 = vmatpush1.msra.mxu0 0.0
      %7114 = vmatprep.subr.mxu0 0.0
      %7115 = vmatpush1.msra.mxu0 0.0
      %7116 = vmatprep.mubr.f32.mxu0 0.0
      %7117 = vmatmul.mubr.f32.gmra.mrb[0].mxu0 %v6980
      %v7118 = vpop.f32.mrb[0].mxu0
      %v7119 = vadd.f32 %v7049, %v7118
      %v7120 = vpop.f32.mrb[0].mxu0
      %7121 = vdwg.mxu0
      %v7122 = vadd.f32 %v2720, %v7119
      %v7125 = vrot.slane %v6976, 1
      %v7126 = vrot.slane %v6977, 1
      %v7127 = vrot.slane %v6978, 1
      %v7130 = vsel %vm3368, %v7127, 0
      %7132 = vmatprep.subr.mxu0 0.0
      %7133 = vmatpush1.msra.mxu0 %v2468
      %7134 = vmatprep.subr.mxu0 0.0
      %7135 = vmatpush1.msra.mxu0 %v2469
      %7136 = vmatprep.subr.mxu0 0.0
      %7137 = vmatpush1.msra.mxu0 %v2470
      %7138 = vmatprep.subr.mxu0 0.0
      %7139 = vmatpush1.msra.mxu0 %v2471
      %7140 = vmatprep.subr.mxu0 0.0
      %7141 = vmatpush1.msra.mxu0 %v2472
      %7142 = vmatprep.subr.mxu0 0.0
      %7143 = vmatpush1.msra.mxu0 %v2473
      %7144 = vmatprep.subr.mxu0 0.0
      %7145 = vmatpush1.msra.mxu0 %v2474
      %7146 = vmatprep.subr.mxu0 0.0
      %7147 = vmatpush1.msra.mxu0 %v2475
      %7148 = vmatprep.subr.mxu0 0.0
      %7149 = vmatpush1.msra.mxu0 %v2476
      %7150 = vmatprep.subr.mxu0 0.0
      %7151 = vmatpush1.msra.mxu0 %v2477
      %7152 = vmatprep.subr.mxu0 0.0
      %7153 = vmatpush1.msra.mxu0 %v2478
      %7154 = vmatprep.subr.mxu0 0.0
      %7155 = vmatpush1.msra.mxu0 %v2479
      %7156 = vmatprep.subr.mxu0 0.0
      %7157 = vmatpush1.msra.mxu0 %v2480
      %7158 = vmatprep.subr.mxu0 0.0
      %7159 = vmatpush1.msra.mxu0 %v2481
      %7160 = vmatprep.subr.mxu0 0.0
      %7161 = vmatpush1.msra.mxu0 %v2482
      %7162 = vmatprep.subr.mxu0 0.0
      %7163 = vmatpush1.msra.mxu0 %v2483
      %7164 = vmatprep.subr.mxu0 0.0
      %7165 = vmatpush1.msra.mxu0 %v2484
      %7166 = vmatprep.subr.mxu0 0.0
      %7167 = vmatpush1.msra.mxu0 %v2485
      %7168 = vmatprep.subr.mxu0 0.0
      %7169 = vmatpush1.msra.mxu0 %v2486
      %7170 = vmatprep.subr.mxu0 0.0
      %7171 = vmatpush1.msra.mxu0 %v2487
      %7172 = vmatprep.subr.mxu0 0.0
      %7173 = vmatpush1.msra.mxu0 %v2488
      %7174 = vmatprep.subr.mxu0 0.0
      %7175 = vmatpush1.msra.mxu0 %v2489
      %7176 = vmatprep.subr.mxu0 0.0
      %7177 = vmatpush1.msra.mxu0 %v2490
      %7178 = vmatprep.subr.mxu0 0.0
      %7179 = vmatpush1.msra.mxu0 %v2491
      %7180 = vmatprep.subr.mxu0 0.0
      %7181 = vmatpush1.msra.mxu0 %v2492
      %7182 = vmatprep.subr.mxu0 0.0
      %7183 = vmatpush1.msra.mxu0 %v2493
      %7184 = vmatprep.subr.mxu0 0.0
      %7185 = vmatpush1.msra.mxu0 %v2494
      %7186 = vmatprep.subr.mxu0 0.0
      %7187 = vmatpush1.msra.mxu0 %v2495
      %7188 = vmatprep.subr.mxu0 0.0
      %7189 = vmatpush1.msra.mxu0 %v2496
      %7190 = vmatprep.subr.mxu0 0.0
      %7191 = vmatpush1.msra.mxu0 %v2497
      %7192 = vmatprep.subr.mxu0 0.0
      %7193 = vmatpush1.msra.mxu0 %v2498
      %7194 = vmatprep.subr.mxu0 0.0
      %7195 = vmatpush1.msra.mxu0 %v2499
      %7196 = vmatprep.mubr.f32.mxu0 %v7126
      %7197 = vmatmul.mubr.f32.gmra.mrb[0].mxu0 %v7125
      %v7198 = vpop.f32.mrb[0].mxu0
      %v7199 = vadd.f32 0.0, %v7198
      %v7200 = vpop.f32.mrb[0].mxu0
      %7201 = vdwg.mxu0
      %7202 = vmatprep.subr.mxu0 0.0
      %7203 = vmatpush1.msra.mxu0 %v2500
      %7204 = vmatprep.subr.mxu0 0.0
      %7205 = vmatpush1.msra.mxu0 %v2501
      %7206 = vmatprep.subr.mxu0 0.0
      %7207 = vmatpush1.msra.mxu0 %v2502
      %7208 = vmatprep.subr.mxu0 0.0
      %7209 = vmatpush1.msra.mxu0 %v2503
      %7210 = vmatprep.subr.mxu0 0.0
      %7211 = vmatpush1.msra.mxu0 %v2504
      %7212 = vmatprep.subr.mxu0 0.0
      %7213 = vmatpush1.msra.mxu0 %v2505
      %7214 = vmatprep.subr.mxu0 0.0
      %7215 = vmatpush1.msra.mxu0 %v2506
      %7216 = vmatprep.subr.mxu0 0.0
      %7217 = vmatpush1.msra.mxu0 %v2507
      %7218 = vmatprep.subr.mxu0 0.0
      %7219 = vmatpush1.msra.mxu0 %v2508
      %7220 = vmatprep.subr.mxu0 0.0
      %7221 = vmatpush1.msra.mxu0 %v2509
      %7222 = vmatprep.subr.mxu0 0.0
      %7223 = vmatpush1.msra.mxu0 0.0
      %7224 = vmatprep.subr.mxu0 0.0
      %7225 = vmatpush1.msra.mxu0 0.0
      %7226 = vmatprep.subr.mxu0 0.0
      %7227 = vmatpush1.msra.mxu0 0.0
      %7228 = vmatprep.subr.mxu0 0.0
      %7229 = vmatpush1.msra.mxu0 0.0
      %7230 = vmatprep.subr.mxu0 0.0
      %7231 = vmatpush1.msra.mxu0 0.0
      %7232 = vmatprep.subr.mxu0 0.0
      %7233 = vmatpush1.msra.mxu0 0.0
      %7234 = vmatprep.subr.mxu0 0.0
      %7235 = vmatpush1.msra.mxu0 0.0
      %7236 = vmatprep.subr.mxu0 0.0
      %7237 = vmatpush1.msra.mxu0 0.0
      %7238 = vmatprep.subr.mxu0 0.0
      %7239 = vmatpush1.msra.mxu0 0.0
      %7240 = vmatprep.subr.mxu0 0.0
      %7241 = vmatpush1.msra.mxu0 0.0
      %7242 = vmatprep.subr.mxu0 0.0
      %7243 = vmatpush1.msra.mxu0 0.0
      %7244 = vmatprep.subr.mxu0 0.0
      %7245 = vmatpush1.msra.mxu0 0.0
      %7246 = vmatprep.subr.mxu0 0.0
      %7247 = vmatpush1.msra.mxu0 0.0
      %7248 = vmatprep.subr.mxu0 0.0
      %7249 = vmatpush1.msra.mxu0 0.0
      %7250 = vmatprep.subr.mxu0 0.0
      %7251 = vmatpush1.msra.mxu0 0.0
      %7252 = vmatprep.subr.mxu0 0.0
      %7253 = vmatpush1.msra.mxu0 0.0
      %7254 = vmatprep.subr.mxu0 0.0
      %7255 = vmatpush1.msra.mxu0 0.0
      %7256 = vmatprep.subr.mxu0 0.0
      %7257 = vmatpush1.msra.mxu0 0.0
      %7258 = vmatprep.subr.mxu0 0.0
      %7259 = vmatpush1.msra.mxu0 0.0
      %7260 = vmatprep.subr.mxu0 0.0
      %7261 = vmatpush1.msra.mxu0 0.0
      %7262 = vmatprep.subr.mxu0 0.0
      %7263 = vmatpush1.msra.mxu0 0.0
      %7264 = vmatprep.subr.mxu0 0.0
      %7265 = vmatpush1.msra.mxu0 0.0
      %7266 = vmatprep.mubr.f32.mxu0 0.0
      %7267 = vmatmul.mubr.f32.gmra.mrb[0].mxu0 %v7130
      %v7268 = vpop.f32.mrb[0].mxu0
      %v7269 = vadd.f32 %v7199, %v7268
      %v7270 = vpop.f32.mrb[0].mxu0
      %7271 = vdwg.mxu0
      %v7272 = vadd.f32 %v7122, %v7269
      %v7273 = vrot.slane %v6976, 2
      %v7274 = vrot.slane %v6977, 2
      %v7275 = vrot.slane %v6978, 2
      %v7278 = vsel %vm3368, %v7275, 0
      %7280 = vmatprep.subr.mxu0 0.0
      %7281 = vmatpush1.msra.mxu0 %v2510
      %7282 = vmatprep.subr.mxu0 0.0
      %7283 = vmatpush1.msra.mxu0 %v2511
      %7284 = vmatprep.subr.mxu0 0.0
      %7285 = vmatpush1.msra.mxu0 %v2512
      %7286 = vmatprep.subr.mxu0 0.0
      %7287 = vmatpush1.msra.mxu0 %v2513
      %7288 = vmatprep.subr.mxu0 0.0
      %7289 = vmatpush1.msra.mxu0 %v2514
      %7290 = vmatprep.subr.mxu0 0.0
      %7291 = vmatpush1.msra.mxu0 %v2515
      %7292 = vmatprep.subr.mxu0 0.0
      %7293 = vmatpush1.msra.mxu0 %v2516
      %7294 = vmatprep.subr.mxu0 0.0
      %7295 = vmatpush1.msra.mxu0 %v2517
      %7296 = vmatprep.subr.mxu0 0.0
      %7297 = vmatpush1.msra.mxu0 %v2518
      %7298 = vmatprep.subr.mxu0 0.0
      %7299 = vmatpush1.msra.mxu0 %v2519
      %7300 = vmatprep.subr.mxu0 0.0
      %7301 = vmatpush1.msra.mxu0 %v2520
      %7302 = vmatprep.subr.mxu0 0.0
      %7303 = vmatpush1.msra.mxu0 %v2521
      %7304 = vmatprep.subr.mxu0 0.0
      %7305 = vmatpush1.msra.mxu0 %v2522
      %7306 = vmatprep.subr.mxu0 0.0
      %7307 = vmatpush1.msra.mxu0 %v2523
      %7308 = vmatprep.subr.mxu0 0.0
      %7309 = vmatpush1.msra.mxu0 %v2524
      %7310 = vmatprep.subr.mxu0 0.0
      %7311 = vmatpush1.msra.mxu0 %v2525
      %7312 = vmatprep.subr.mxu0 0.0
      %7313 = vmatpush1.msra.mxu0 %v2526
      %7314 = vmatprep.subr.mxu0 0.0
      %7315 = vmatpush1.msra.mxu0 %v2527
      %7316 = vmatprep.subr.mxu0 0.0
      %7317 = vmatpush1.msra.mxu0 %v2528
      %7318 = vmatprep.subr.mxu0 0.0
      %7319 = vmatpush1.msra.mxu0 %v2529
      %7320 = vmatprep.subr.mxu0 0.0
      %7321 = vmatpush1.msra.mxu0 %v2530
      %7322 = vmatprep.subr.mxu0 0.0
      %7323 = vmatpush1.msra.mxu0 %v2531
      %7324 = vmatprep.subr.mxu0 0.0
      %7325 = vmatpush1.msra.mxu0 %v2532
      %7326 = vmatprep.subr.mxu0 0.0
      %7327 = vmatpush1.msra.mxu0 %v2533
      %7328 = vmatprep.subr.mxu0 0.0
      %7329 = vmatpush1.msra.mxu0 %v2534
      %7330 = vmatprep.subr.mxu0 0.0
      %7331 = vmatpush1.msra.mxu0 %v2535
      %7332 = vmatprep.subr.mxu0 0.0
      %7333 = vmatpush1.msra.mxu0 %v2536
      %7334 = vmatprep.subr.mxu0 0.0
      %7335 = vmatpush1.msra.mxu0 %v2537
      %7336 = vmatprep.subr.mxu0 0.0
      %7337 = vmatpush1.msra.mxu0 %v2538
      %7338 = vmatprep.subr.mxu0 0.0
      %7339 = vmatpush1.msra.mxu0 %v2539
      %7340 = vmatprep.subr.mxu0 0.0
      %7341 = vmatpush1.msra.mxu0 %v2540
      %7342 = vmatprep.subr.mxu0 0.0
      %7343 = vmatpush1.msra.mxu0 %v2541
      %7344 = vmatprep.mubr.f32.mxu0 %v7274
      %7345 = vmatmul.mubr.f32.gmra.mrb[0].mxu0 %v7273
      %v7346 = vpop.f32.mrb[0].mxu0
      %v7347 = vadd.f32 0.0, %v7346
      %v7348 = vpop.f32.mrb[0].mxu0
      %7349 = vdwg.mxu0
      %7350 = vmatprep.subr.mxu0 0.0
      %7351 = vmatpush1.msra.mxu0 %v2542
      %7352 = vmatprep.subr.mxu0 0.0
      %7353 = vmatpush1.msra.mxu0 %v2543
      %7354 = vmatprep.subr.mxu0 0.0
      %7355 = vmatpush1.msra.mxu0 %v2544
      %7356 = vmatprep.subr.mxu0 0.0
      %7357 = vmatpush1.msra.mxu0 %v2545
      %7358 = vmatprep.subr.mxu0 0.0
      %7359 = vmatpush1.msra.mxu0 %v2546
      %7360 = vmatprep.subr.mxu0 0.0
      %7361 = vmatpush1.msra.mxu0 %v2547
      %7362 = vmatprep.subr.mxu0 0.0
      %7363 = vmatpush1.msra.mxu0 %v2548
      %7364 = vmatprep.subr.mxu0 0.0
      %7365 = vmatpush1.msra.mxu0 %v2549
      %7366 = vmatprep.subr.mxu0 0.0
      %7367 = vmatpush1.msra.mxu0 %v2550
      %7368 = vmatprep.subr.mxu0 0.0
      %7369 = vmatpush1.msra.mxu0 %v2551
      %7370 = vmatprep.subr.mxu0 0.0
      %7371 = vmatpush1.msra.mxu0 0.0
      %7372 = vmatprep.subr.mxu0 0.0
      %7373 = vmatpush1.msra.mxu0 0.0
      %7374 = vmatprep.subr.mxu0 0.0
      %7375 = vmatpush1.msra.mxu0 0.0
      %7376 = vmatprep.subr.mxu0 0.0
      %7377 = vmatpush1.msra.mxu0 0.0
      %7378 = vmatprep.subr.mxu0 0.0
      %7379 = vmatpush1.msra.mxu0 0.0
      %7380 = vmatprep.subr.mxu0 0.0
      %7381 = vmatpush1.msra.mxu0 0.0
      %7382 = vmatprep.subr.mxu0 0.0
      %7383 = vmatpush1.msra.mxu0 0.0
      %7384 = vmatprep.subr.mxu0 0.0
      %7385 = vmatpush1.msra.mxu0 0.0
      %7386 = vmatprep.subr.mxu0 0.0
      %7387 = vmatpush1.msra.mxu0 0.0
      %7388 = vmatprep.subr.mxu0 0.0
      %7389 = vmatpush1.msra.mxu0 0.0
      %7390 = vmatprep.subr.mxu0 0.0
      %7391 = vmatpush1.msra.mxu0 0.0
      %7392 = vmatprep.subr.mxu0 0.0
      %7393 = vmatpush1.msra.mxu0 0.0
      %7394 = vmatprep.subr.mxu0 0.0
      %7395 = vmatpush1.msra.mxu0 0.0
      %7396 = vmatprep.subr.mxu0 0.0
      %7397 = vmatpush1.msra.mxu0 0.0
      %7398 = vmatprep.subr.mxu0 0.0
      %7399 = vmatpush1.msra.mxu0 0.0
      %7400 = vmatprep.subr.mxu0 0.0
      %7401 = vmatpush1.msra.mxu0 0.0
      %7402 = vmatprep.subr.mxu0 0.0
      %7403 = vmatpush1.msra.mxu0 0.0
      %7404 = vmatprep.subr.mxu0 0.0
      %7405 = vmatpush1.msra.mxu0 0.0
      %7406 = vmatprep.subr.mxu0 0.0
      %7407 = vmatpush1.msra.mxu0 0.0
      %7408 = vmatprep.subr.mxu0 0.0
      %7409 = vmatpush1.msra.mxu0 0.0
      %7410 = vmatprep.subr.mxu0 0.0
      %7411 = vmatpush1.msra.mxu0 0.0
      %7412 = vmatprep.subr.mxu0 0.0
      %7413 = vmatpush1.msra.mxu0 0.0
      %7414 = vmatprep.mubr.f32.mxu0 0.0
      %7415 = vmatmul.mubr.f32.gmra.mrb[0].mxu0 %v7278
      %v7416 = vpop.f32.mrb[0].mxu0
      %v7417 = vadd.f32 %v7347, %v7416
      %v7418 = vpop.f32.mrb[0].mxu0
      %7419 = vdwg.mxu0
      %v7420 = vadd.f32 %v7272, %v7417
      %v7421 = vrot.slane %v6976, 3
      %v7422 = vrot.slane %v6977, 3
      %v7423 = vrot.slane %v6978, 3
      %v7426 = vsel %vm3368, %v7423, 0
      %7428 = vmatprep.subr.mxu0 0.0
      %7429 = vmatpush1.msra.mxu0 %v2552
      %7430 = vmatprep.subr.mxu0 0.0
      %7431 = vmatpush1.msra.mxu0 %v2553
      %7432 = vmatprep.subr.mxu0 0.0
      %7433 = vmatpush1.msra.mxu0 %v2554
      %7434 = vmatprep.subr.mxu0 0.0
      %7435 = vmatpush1.msra.mxu0 %v2555
      %7436 = vmatprep.subr.mxu0 0.0
      %7437 = vmatpush1.msra.mxu0 %v2556
      %7438 = vmatprep.subr.mxu0 0.0
      %7439 = vmatpush1.msra.mxu0 %v2557
      %7440 = vmatprep.subr.mxu0 0.0
      %7441 = vmatpush1.msra.mxu0 %v2558
      %7442 = vmatprep.subr.mxu0 0.0
      %7443 = vmatpush1.msra.mxu0 %v2559
      %7444 = vmatprep.subr.mxu0 0.0
      %7445 = vmatpush1.msra.mxu0 %v2560
      %7446 = vmatprep.subr.mxu0 0.0
      %7447 = vmatpush1.msra.mxu0 %v2561
      %7448 = vmatprep.subr.mxu0 0.0
      %7449 = vmatpush1.msra.mxu0 %v2562
      %7450 = vmatprep.subr.mxu0 0.0
      %7451 = vmatpush1.msra.mxu0 %v2563
      %7452 = vmatprep.subr.mxu0 0.0
      %7453 = vmatpush1.msra.mxu0 %v2564
      %7454 = vmatprep.subr.mxu0 0.0
      %7455 = vmatpush1.msra.mxu0 %v2565
      %7456 = vmatprep.subr.mxu0 0.0
      %7457 = vmatpush1.msra.mxu0 %v2566
      %7458 = vmatprep.subr.mxu0 0.0
      %7459 = vmatpush1.msra.mxu0 %v2567
      %7460 = vmatprep.subr.mxu0 0.0
      %7461 = vmatpush1.msra.mxu0 %v2568
      %7462 = vmatprep.subr.mxu0 0.0
      %7463 = vmatpush1.msra.mxu0 %v2569
      %7464 = vmatprep.subr.mxu0 0.0
      %7465 = vmatpush1.msra.mxu0 %v2570
      %7466 = vmatprep.subr.mxu0 0.0
      %7467 = vmatpush1.msra.mxu0 %v2571
      %7468 = vmatprep.subr.mxu0 0.0
      %7469 = vmatpush1.msra.mxu0 %v2572
      %7470 = vmatprep.subr.mxu0 0.0
      %7471 = vmatpush1.msra.mxu0 %v2573
      %7472 = vmatprep.subr.mxu0 0.0
      %7473 = vmatpush1.msra.mxu0 %v2574
      %7474 = vmatprep.subr.mxu0 0.0
      %7475 = vmatpush1.msra.mxu0 %v2575
      %7476 = vmatprep.subr.mxu0 0.0
      %7477 = vmatpush1.msra.mxu0 %v2576
      %7478 = vmatprep.subr.mxu0 0.0
      %7479 = vmatpush1.msra.mxu0 %v2577
      %7480 = vmatprep.subr.mxu0 0.0
      %7481 = vmatpush1.msra.mxu0 %v2578
      %7482 = vmatprep.subr.mxu0 0.0
      %7483 = vmatpush1.msra.mxu0 %v2579
      %7484 = vmatprep.subr.mxu0 0.0
      %7485 = vmatpush1.msra.mxu0 %v2580
      %7486 = vmatprep.subr.mxu0 0.0
      %7487 = vmatpush1.msra.mxu0 %v2581
      %7488 = vmatprep.subr.mxu0 0.0
      %7489 = vmatpush1.msra.mxu0 %v2582
      %7490 = vmatprep.subr.mxu0 0.0
      %7491 = vmatpush1.msra.mxu0 %v2583
      %7492 = vmatprep.mubr.f32.mxu0 %v7422
      %7493 = vmatmul.mubr.f32.gmra.mrb[0].mxu0 %v7421
      %v7494 = vpop.f32.mrb[0].mxu0
      %v7495 = vadd.f32 0.0, %v7494
      %v7496 = vpop.f32.mrb[0].mxu0
      %7497 = vdwg.mxu0
      %7498 = vmatprep.subr.mxu0 0.0
      %7499 = vmatpush1.msra.mxu0 %v2584
      %7500 = vmatprep.subr.mxu0 0.0
      %7501 = vmatpush1.msra.mxu0 %v2585
      %7502 = vmatprep.subr.mxu0 0.0
      %7503 = vmatpush1.msra.mxu0 %v2586
      %7504 = vmatprep.subr.mxu0 0.0
      %7505 = vmatpush1.msra.mxu0 %v2587
      %7506 = vmatprep.subr.mxu0 0.0
      %7507 = vmatpush1.msra.mxu0 %v2588
      %7508 = vmatprep.subr.mxu0 0.0
      %7509 = vmatpush1.msra.mxu0 %v2589
      %7510 = vmatprep.subr.mxu0 0.0
      %7511 = vmatpush1.msra.mxu0 %v2590
      %7512 = vmatprep.subr.mxu0 0.0
      %7513 = vmatpush1.msra.mxu0 %v2591
      %7514 = vmatprep.subr.mxu0 0.0
      %7515 = vmatpush1.msra.mxu0 %v2592
      %7516 = vmatprep.subr.mxu0 0.0
      %7517 = vmatpush1.msra.mxu0 %v2593
      %7518 = vmatprep.subr.mxu0 0.0
      %7519 = vmatpush1.msra.mxu0 0.0
      %7520 = vmatprep.subr.mxu0 0.0
      %7521 = vmatpush1.msra.mxu0 0.0
      %7522 = vmatprep.subr.mxu0 0.0
      %7523 = vmatpush1.msra.mxu0 0.0
      %7524 = vmatprep.subr.mxu0 0.0
      %7525 = vmatpush1.msra.mxu0 0.0
      %7526 = vmatprep.subr.mxu0 0.0
      %7527 = vmatpush1.msra.mxu0 0.0
      %7528 = vmatprep.subr.mxu0 0.0
      %7529 = vmatpush1.msra.mxu0 0.0
      %7530 = vmatprep.subr.mxu0 0.0
      %7531 = vmatpush1.msra.mxu0 0.0
      %7532 = vmatprep.subr.mxu0 0.0
      %7533 = vmatpush1.msra.mxu0 0.0
      %7534 = vmatprep.subr.mxu0 0.0
      %7535 = vmatpush1.msra.mxu0 0.0
      %7536 = vmatprep.subr.mxu0 0.0
      %7537 = vmatpush1.msra.mxu0 0.0
      %7538 = vmatprep.subr.mxu0 0.0
      %7539 = vmatpush1.msra.mxu0 0.0
      %7540 = vmatprep.subr.mxu0 0.0
      %7541 = vmatpush1.msra.mxu0 0.0
      %7542 = vmatprep.subr.mxu0 0.0
      %7543 = vmatpush1.msra.mxu0 0.0
      %7544 = vmatprep.subr.mxu0 0.0
      %7545 = vmatpush1.msra.mxu0 0.0
      %7546 = vmatprep.subr.mxu0 0.0
      %7547 = vmatpush1.msra.mxu0 0.0
      %7548 = vmatprep.subr.mxu0 0.0
      %7549 = vmatpush1.msra.mxu0 0.0
      %7550 = vmatprep.subr.mxu0 0.0
      %7551 = vmatpush1.msra.mxu0 0.0
      %7552 = vmatprep.subr.mxu0 0.0
      %7553 = vmatpush1.msra.mxu0 0.0
      %7554 = vmatprep.subr.mxu0 0.0
      %7555 = vmatpush1.msra.mxu0 0.0
      %7556 = vmatprep.subr.mxu0 0.0
      %7557 = vmatpush1.msra.mxu0 0.0
      %7558 = vmatprep.subr.mxu0 0.0
      %7559 = vmatpush1.msra.mxu0 0.0
      %7560 = vmatprep.subr.mxu0 0.0
      %7561 = vmatpush1.msra.mxu0 0.0
      %7562 = vmatprep.mubr.f32.mxu0 0.0
      %7563 = vmatmul.mubr.f32.gmra.mrb[0].mxu0 %v7426
      %v7564 = vpop.f32.mrb[0].mxu0
      %v7565 = vadd.f32 %v7495, %v7564
      %v7566 = vpop.f32.mrb[0].mxu0
      %7567 = vdwg.mxu0
      %v7568 = vadd.f32 %v7420, %v7565
      %v7569 = vrot.slane %v6976, 4
      %v7570 = vrot.slane %v6977, 4
      %v7571 = vrot.slane %v6978, 4
      %v7574 = vsel %vm3368, %v7571, 0
      %7576 = vmatprep.subr.mxu0 0.0
      %7577 = vmatpush1.msra.mxu0 %v2594
      %7578 = vmatprep.subr.mxu0 0.0
      %7579 = vmatpush1.msra.mxu0 %v2595
      %7580 = vmatprep.subr.mxu0 0.0
      %7581 = vmatpush1.msra.mxu0 %v2596
      %7582 = vmatprep.subr.mxu0 0.0
      %7583 = vmatpush1.msra.mxu0 %v2597
      %7584 = vmatprep.subr.mxu0 0.0
      %7585 = vmatpush1.msra.mxu0 %v2598
      %7586 = vmatprep.subr.mxu0 0.0
      %7587 = vmatpush1.msra.mxu0 %v2599
      %7588 = vmatprep.subr.mxu0 0.0
      %7589 = vmatpush1.msra.mxu0 %v2600
      %7590 = vmatprep.subr.mxu0 0.0
      %7591 = vmatpush1.msra.mxu0 %v2601
      %7592 = vmatprep.subr.mxu0 0.0
      %7593 = vmatpush1.msra.mxu0 %v2602
      %7594 = vmatprep.subr.mxu0 0.0
      %7595 = vmatpush1.msra.mxu0 %v2603
      %7596 = vmatprep.subr.mxu0 0.0
      %7597 = vmatpush1.msra.mxu0 %v2604
      %7598 = vmatprep.subr.mxu0 0.0
      %7599 = vmatpush1.msra.mxu0 %v2605
      %7600 = vmatprep.subr.mxu0 0.0
      %7601 = vmatpush1.msra.mxu0 %v2606
      %7602 = vmatprep.subr.mxu0 0.0
      %7603 = vmatpush1.msra.mxu0 %v2607
      %7604 = vmatprep.subr.mxu0 0.0
      %7605 = vmatpush1.msra.mxu0 %v2608
      %7606 = vmatprep.subr.mxu0 0.0
      %7607 = vmatpush1.msra.mxu0 %v2609
      %7608 = vmatprep.subr.mxu0 0.0
      %7609 = vmatpush1.msra.mxu0 %v2610
      %7610 = vmatprep.subr.mxu0 0.0
      %7611 = vmatpush1.msra.mxu0 %v2611
      %7612 = vmatprep.subr.mxu0 0.0
      %7613 = vmatpush1.msra.mxu0 %v2612
      %7614 = vmatprep.subr.mxu0 0.0
      %7615 = vmatpush1.msra.mxu0 %v2613
      %7616 = vmatprep.subr.mxu0 0.0
      %7617 = vmatpush1.msra.mxu0 %v2614
      %7618 = vmatprep.subr.mxu0 0.0
      %7619 = vmatpush1.msra.mxu0 %v2615
      %7620 = vmatprep.subr.mxu0 0.0
      %7621 = vmatpush1.msra.mxu0 %v2616
      %7622 = vmatprep.subr.mxu0 0.0
      %7623 = vmatpush1.msra.mxu0 %v2617
      %7624 = vmatprep.subr.mxu0 0.0
      %7625 = vmatpush1.msra.mxu0 %v2618
      %7626 = vmatprep.subr.mxu0 0.0
      %7627 = vmatpush1.msra.mxu0 %v2619
      %7628 = vmatprep.subr.mxu0 0.0
      %7629 = vmatpush1.msra.mxu0 %v2620
      %7630 = vmatprep.subr.mxu0 0.0
      %7631 = vmatpush1.msra.mxu0 %v2621
      %7632 = vmatprep.subr.mxu0 0.0
      %7633 = vmatpush1.msra.mxu0 %v2622
      %7634 = vmatprep.subr.mxu0 0.0
      %7635 = vmatpush1.msra.mxu0 %v2623
      %7636 = vmatprep.subr.mxu0 0.0
      %7637 = vmatpush1.msra.mxu0 %v2624
      %7638 = vmatprep.subr.mxu0 0.0
      %7639 = vmatpush1.msra.mxu0 %v2625
      %7640 = vmatprep.mubr.f32.mxu0 %v7570
      %7641 = vmatmul.mubr.f32.gmra.mrb[0].mxu0 %v7569
      %v7642 = vpop.f32.mrb[0].mxu0
      %v7643 = vadd.f32 0.0, %v7642
      %v7644 = vpop.f32.mrb[0].mxu0
      %7645 = vdwg.mxu0
      %7646 = vmatprep.subr.mxu0 0.0
      %7647 = vmatpush1.msra.mxu0 %v2626
      %7648 = vmatprep.subr.mxu0 0.0
      %7649 = vmatpush1.msra.mxu0 %v2627
      %7650 = vmatprep.subr.mxu0 0.0
      %7651 = vmatpush1.msra.mxu0 %v2628
      %7652 = vmatprep.subr.mxu0 0.0
      %7653 = vmatpush1.msra.mxu0 %v2629
      %7654 = vmatprep.subr.mxu0 0.0
      %7655 = vmatpush1.msra.mxu0 %v2630
      %7656 = vmatprep.subr.mxu0 0.0
      %7657 = vmatpush1.msra.mxu0 %v2631
      %7658 = vmatprep.subr.mxu0 0.0
      %7659 = vmatpush1.msra.mxu0 %v2632
      %7660 = vmatprep.subr.mxu0 0.0
      %7661 = vmatpush1.msra.mxu0 %v2633
      %7662 = vmatprep.subr.mxu0 0.0
      %7663 = vmatpush1.msra.mxu0 %v2634
      %7664 = vmatprep.subr.mxu0 0.0
      %7665 = vmatpush1.msra.mxu0 %v2635
      %7666 = vmatprep.subr.mxu0 0.0
      %7667 = vmatpush1.msra.mxu0 0.0
      %7668 = vmatprep.subr.mxu0 0.0
      %7669 = vmatpush1.msra.mxu0 0.0
      %7670 = vmatprep.subr.mxu0 0.0
      %7671 = vmatpush1.msra.mxu0 0.0
      %7672 = vmatprep.subr.mxu0 0.0
      %7673 = vmatpush1.msra.mxu0 0.0
      %7674 = vmatprep.subr.mxu0 0.0
      %7675 = vmatpush1.msra.mxu0 0.0
      %7676 = vmatprep.subr.mxu0 0.0
      %7677 = vmatpush1.msra.mxu0 0.0
      %7678 = vmatprep.subr.mxu0 0.0
      %7679 = vmatpush1.msra.mxu0 0.0
      %7680 = vmatprep.subr.mxu0 0.0
      %7681 = vmatpush1.msra.mxu0 0.0
      %7682 = vmatprep.subr.mxu0 0.0
      %7683 = vmatpush1.msra.mxu0 0.0
      %7684 = vmatprep.subr.mxu0 0.0
      %7685 = vmatpush1.msra.mxu0 0.0
      %7686 = vmatprep.subr.mxu0 0.0
      %7687 = vmatpush1.msra.mxu0 0.0
      %7688 = vmatprep.subr.mxu0 0.0
      %7689 = vmatpush1.msra.mxu0 0.0
      %7690 = vmatprep.subr.mxu0 0.0
      %7691 = vmatpush1.msra.mxu0 0.0
      %7692 = vmatprep.subr.mxu0 0.0
      %7693 = vmatpush1.msra.mxu0 0.0
      %7694 = vmatprep.subr.mxu0 0.0
      %7695 = vmatpush1.msra.mxu0 0.0
      %7696 = vmatprep.subr.mxu0 0.0
      %7697 = vmatpush1.msra.mxu0 0.0
      %7698 = vmatprep.subr.mxu0 0.0
      %7699 = vmatpush1.msra.mxu0 0.0
      %7700 = vmatprep.subr.mxu0 0.0
      %7701 = vmatpush1.msra.mxu0 0.0
      %7702 = vmatprep.subr.mxu0 0.0
      %7703 = vmatpush1.msra.mxu0 0.0
      %7704 = vmatprep.subr.mxu0 0.0
      %7705 = vmatpush1.msra.mxu0 0.0
      %7706 = vmatprep.subr.mxu0 0.0
      %7707 = vmatpush1.msra.mxu0 0.0
      %7708 = vmatprep.subr.mxu0 0.0
      %7709 = vmatpush1.msra.mxu0 0.0
      %7710 = vmatprep.mubr.f32.mxu0 0.0
      %7711 = vmatmul.mubr.f32.gmra.mrb[0].mxu0 %v7574
      %v7712 = vpop.f32.mrb[0].mxu0
      %v7713 = vadd.f32 %v7643, %v7712
      %v7714 = vpop.f32.mrb[0].mxu0
      %7715 = vdwg.mxu0
      %v7716 = vadd.f32 %v7568, %v7713
      %v7717 = vrot.slane %v6976, 5
      %v7718 = vrot.slane %v6977, 5
      %v7719 = vrot.slane %v6978, 5
      %v7722 = vsel %vm3368, %v7719, 0
      %7724 = vmatprep.subr.mxu0 0.0
      %7725 = vmatpush1.msra.mxu0 %v2636
      %7726 = vmatprep.subr.mxu0 0.0
      %7727 = vmatpush1.msra.mxu0 %v2637
      %7728 = vmatprep.subr.mxu0 0.0
      %7729 = vmatpush1.msra.mxu0 %v2638
      %7730 = vmatprep.subr.mxu0 0.0
      %7731 = vmatpush1.msra.mxu0 %v2639
      %7732 = vmatprep.subr.mxu0 0.0
      %7733 = vmatpush1.msra.mxu0 %v2640
      %7734 = vmatprep.subr.mxu0 0.0
      %7735 = vmatpush1.msra.mxu0 %v2641
      %7736 = vmatprep.subr.mxu0 0.0
      %7737 = vmatpush1.msra.mxu0 %v2642
      %7738 = vmatprep.subr.mxu0 0.0
      %7739 = vmatpush1.msra.mxu0 %v2643
      %7740 = vmatprep.subr.mxu0 0.0
      %7741 = vmatpush1.msra.mxu0 %v2644
      %7742 = vmatprep.subr.mxu0 0.0
      %7743 = vmatpush1.msra.mxu0 %v2645
      %7744 = vmatprep.subr.mxu0 0.0
      %7745 = vmatpush1.msra.mxu0 %v2646
      %7746 = vmatprep.subr.mxu0 0.0
      %7747 = vmatpush1.msra.mxu0 %v2647
      %7748 = vmatprep.subr.mxu0 0.0
      %7749 = vmatpush1.msra.mxu0 %v2648
      %7750 = vmatprep.subr.mxu0 0.0
      %7751 = vmatpush1.msra.mxu0 %v2649
      %7752 = vmatprep.subr.mxu0 0.0
      %7753 = vmatpush1.msra.mxu0 %v2650
      %7754 = vmatprep.subr.mxu0 0.0
      %7755 = vmatpush1.msra.mxu0 %v2651
      %7756 = vmatprep.subr.mxu0 0.0
      %7757 = vmatpush1.msra.mxu0 %v2652
      %7758 = vmatprep.subr.mxu0 0.0
      %7759 = vmatpush1.msra.mxu0 %v2653
      %7760 = vmatprep.subr.mxu0 0.0
      %7761 = vmatpush1.msra.mxu0 %v2654
      %7762 = vmatprep.subr.mxu0 0.0
      %7763 = vmatpush1.msra.mxu0 %v2655
      %7764 = vmatprep.subr.mxu0 0.0
      %7765 = vmatpush1.msra.mxu0 %v2656
      %7766 = vmatprep.subr.mxu0 0.0
      %7767 = vmatpush1.msra.mxu0 %v2657
      %7768 = vmatprep.subr.mxu0 0.0
      %7769 = vmatpush1.msra.mxu0 %v2658
      %7770 = vmatprep.subr.mxu0 0.0
      %7771 = vmatpush1.msra.mxu0 %v2659
      %7772 = vmatprep.subr.mxu0 0.0
      %7773 = vmatpush1.msra.mxu0 %v2660
      %7774 = vmatprep.subr.mxu0 0.0
      %7775 = vmatpush1.msra.mxu0 %v2661
      %7776 = vmatprep.subr.mxu0 0.0
      %7777 = vmatpush1.msra.mxu0 %v2662
      %7778 = vmatprep.subr.mxu0 0.0
      %7779 = vmatpush1.msra.mxu0 %v2663
      %7780 = vmatprep.subr.mxu0 0.0
      %7781 = vmatpush1.msra.mxu0 %v2664
      %7782 = vmatprep.subr.mxu0 0.0
      %7783 = vmatpush1.msra.mxu0 %v2665
      %7784 = vmatprep.subr.mxu0 0.0
      %7785 = vmatpush1.msra.mxu0 %v2666
      %7786 = vmatprep.subr.mxu0 0.0
      %7787 = vmatpush1.msra.mxu0 %v2667
      %7788 = vmatprep.mubr.f32.mxu0 %v7718
      %7789 = vmatmul.mubr.f32.gmra.mrb[0].mxu0 %v7717
      %v7790 = vpop.f32.mrb[0].mxu0
      %v7791 = vadd.f32 0.0, %v7790
      %v7792 = vpop.f32.mrb[0].mxu0
      %7793 = vdwg.mxu0
      %7794 = vmatprep.subr.mxu0 0.0
      %7795 = vmatpush1.msra.mxu0 %v2668
      %7796 = vmatprep.subr.mxu0 0.0
      %7797 = vmatpush1.msra.mxu0 %v2669
      %7798 = vmatprep.subr.mxu0 0.0
      %7799 = vmatpush1.msra.mxu0 %v2670
      %7800 = vmatprep.subr.mxu0 0.0
      %7801 = vmatpush1.msra.mxu0 %v2671
      %7802 = vmatprep.subr.mxu0 0.0
      %7803 = vmatpush1.msra.mxu0 %v2672
      %7804 = vmatprep.subr.mxu0 0.0
      %7805 = vmatpush1.msra.mxu0 %v2673
      %7806 = vmatprep.subr.mxu0 0.0
      %7807 = vmatpush1.msra.mxu0 %v2674
      %7808 = vmatprep.subr.mxu0 0.0
      %7809 = vmatpush1.msra.mxu0 %v2675
      %7810 = vmatprep.subr.mxu0 0.0
      %7811 = vmatpush1.msra.mxu0 %v2676
      %7812 = vmatprep.subr.mxu0 0.0
      %7813 = vmatpush1.msra.mxu0 %v2677
      %7814 = vmatprep.subr.mxu0 0.0
      %7815 = vmatpush1.msra.mxu0 0.0
      %7816 = vmatprep.subr.mxu0 0.0
      %7817 = vmatpush1.msra.mxu0 0.0
      %7818 = vmatprep.subr.mxu0 0.0
      %7819 = vmatpush1.msra.mxu0 0.0
      %7820 = vmatprep.subr.mxu0 0.0
      %7821 = vmatpush1.msra.mxu0 0.0
      %7822 = vmatprep.subr.mxu0 0.0
      %7823 = vmatpush1.msra.mxu0 0.0
      %7824 = vmatprep.subr.mxu0 0.0
      %7825 = vmatpush1.msra.mxu0 0.0
      %7826 = vmatprep.subr.mxu0 0.0
      %7827 = vmatpush1.msra.mxu0 0.0
      %7828 = vmatprep.subr.mxu0 0.0
      %7829 = vmatpush1.msra.mxu0 0.0
      %7830 = vmatprep.subr.mxu0 0.0
      %7831 = vmatpush1.msra.mxu0 0.0
      %7832 = vmatprep.subr.mxu0 0.0
      %7833 = vmatpush1.msra.mxu0 0.0
      %7834 = vmatprep.subr.mxu0 0.0
      %7835 = vmatpush1.msra.mxu0 0.0
      %7836 = vmatprep.subr.mxu0 0.0
      %7837 = vmatpush1.msra.mxu0 0.0
      %7838 = vmatprep.subr.mxu0 0.0
      %7839 = vmatpush1.msra.mxu0 0.0
      %7840 = vmatprep.subr.mxu0 0.0
      %7841 = vmatpush1.msra.mxu0 0.0
      %7842 = vmatprep.subr.mxu0 0.0
      %7843 = vmatpush1.msra.mxu0 0.0
      %7844 = vmatprep.subr.mxu0 0.0
      %7845 = vmatpush1.msra.mxu0 0.0
      %7846 = vmatprep.subr.mxu0 0.0
      %7847 = vmatpush1.msra.mxu0 0.0
      %7848 = vmatprep.subr.mxu0 0.0
      %7849 = vmatpush1.msra.mxu0 0.0
      %7850 = vmatprep.subr.mxu0 0.0
      %7851 = vmatpush1.msra.mxu0 0.0
      %7852 = vmatprep.subr.mxu0 0.0
      %7853 = vmatpush1.msra.mxu0 0.0
      %7854 = vmatprep.subr.mxu0 0.0
      %7855 = vmatpush1.msra.mxu0 0.0
      %7856 = vmatprep.subr.mxu0 0.0
      %7857 = vmatpush1.msra.mxu0 0.0
      %7858 = vmatprep.mubr.f32.mxu0 0.0
      %7859 = vmatmul.mubr.f32.gmra.mrb[0].mxu0 %v7722
      %v7860 = vpop.f32.mrb[0].mxu0
      %v7861 = vadd.f32 %v7791, %v7860
      %v7862 = vpop.f32.mrb[0].mxu0
      %7863 = vdwg.mxu0
      %v7864 = vadd.f32 %v7716, %v7861
      %v7865 = vrot.slane %v6976, 6
      %v7866 = vrot.slane %v6977, 6
      %v7867 = vrot.slane %v6978, 6
      %v7870 = vsel %vm3368, %v7867, 0
      %7872 = vmatprep.subr.mxu0 0.0
      %7873 = vmatpush1.msra.mxu0 %v2678
      %7874 = vmatprep.subr.mxu0 0.0
      %7875 = vmatpush1.msra.mxu0 %v2679
      %7876 = vmatprep.subr.mxu0 0.0
      %7877 = vmatpush1.msra.mxu0 %v2680
      %7878 = vmatprep.subr.mxu0 0.0
      %7879 = vmatpush1.msra.mxu0 %v2681
      %7880 = vmatprep.subr.mxu0 0.0
      %7881 = vmatpush1.msra.mxu0 %v2682
      %7882 = vmatprep.subr.mxu0 0.0
      %7883 = vmatpush1.msra.mxu0 %v2683
      %7884 = vmatprep.subr.mxu0 0.0
      %7885 = vmatpush1.msra.mxu0 %v2684
      %7886 = vmatprep.subr.mxu0 0.0
      %7887 = vmatpush1.msra.mxu0 %v2685
      %7888 = vmatprep.subr.mxu0 0.0
      %7889 = vmatpush1.msra.mxu0 %v2686
      %7890 = vmatprep.subr.mxu0 0.0
      %7891 = vmatpush1.msra.mxu0 %v2687
      %7892 = vmatprep.subr.mxu0 0.0
      %7893 = vmatpush1.msra.mxu0 %v2688
      %7894 = vmatprep.subr.mxu0 0.0
      %7895 = vmatpush1.msra.mxu0 %v2689
      %7896 = vmatprep.subr.mxu0 0.0
      %7897 = vmatpush1.msra.mxu0 %v2690
      %7898 = vmatprep.subr.mxu0 0.0
      %7899 = vmatpush1.msra.mxu0 %v2691
      %7900 = vmatprep.subr.mxu0 0.0
      %7901 = vmatpush1.msra.mxu0 %v2692
      %7902 = vmatprep.subr.mxu0 0.0
      %7903 = vmatpush1.msra.mxu0 %v2693
      %7904 = vmatprep.subr.mxu0 0.0
      %7905 = vmatpush1.msra.mxu0 %v2694
      %7906 = vmatprep.subr.mxu0 0.0
      %7907 = vmatpush1.msra.mxu0 %v2695
      %7908 = vmatprep.subr.mxu0 0.0
      %7909 = vmatpush1.msra.mxu0 %v2696
      %7910 = vmatprep.subr.mxu0 0.0
      %7911 = vmatpush1.msra.mxu0 %v2697
      %7912 = vmatprep.subr.mxu0 0.0
      %7913 = vmatpush1.msra.mxu0 %v2698
      %7914 = vmatprep.subr.mxu0 0.0
      %7915 = vmatpush1.msra.mxu0 %v2699
      %7916 = vmatprep.subr.mxu0 0.0
      %7917 = vmatpush1.msra.mxu0 %v2700
      %7918 = vmatprep.subr.mxu0 0.0
      %7919 = vmatpush1.msra.mxu0 %v2701
      %7920 = vmatprep.subr.mxu0 0.0
      %7921 = vmatpush1.msra.mxu0 %v2702
      %7922 = vmatprep.subr.mxu0 0.0
      %7923 = vmatpush1.msra.mxu0 %v2703
      %7924 = vmatprep.subr.mxu0 0.0
      %7925 = vmatpush1.msra.mxu0 %v2704
      %7926 = vmatprep.subr.mxu0 0.0
      %7927 = vmatpush1.msra.mxu0 %v2705
      %7928 = vmatprep.subr.mxu0 0.0
      %7929 = vmatpush1.msra.mxu0 %v2706
      %7930 = vmatprep.subr.mxu0 0.0
      %7931 = vmatpush1.msra.mxu0 %v2707
      %7932 = vmatprep.subr.mxu0 0.0
      %7933 = vmatpush1.msra.mxu0 %v2708
      %7934 = vmatprep.subr.mxu0 0.0
      %7935 = vmatpush1.msra.mxu0 %v2709
      %7936 = vmatprep.mubr.f32.mxu0 %v7866
      %7937 = vmatmul.mubr.f32.gmra.mrb[0].mxu0 %v7865
      %v7938 = vpop.f32.mrb[0].mxu0
      %v7939 = vadd.f32 0.0, %v7938
      %v7940 = vpop.f32.mrb[0].mxu0
      %7941 = vdwg.mxu0
      %7942 = vmatprep.subr.mxu0 0.0
      %7943 = vmatpush1.msra.mxu0 %v2710
      %7944 = vmatprep.subr.mxu0 0.0
      %7945 = vmatpush1.msra.mxu0 %v2711
      %7946 = vmatprep.subr.mxu0 0.0
      %7947 = vmatpush1.msra.mxu0 %v2712
      %7948 = vmatprep.subr.mxu0 0.0
      %7949 = vmatpush1.msra.mxu0 %v2713
      %7950 = vmatprep.subr.mxu0 0.0
      %7951 = vmatpush1.msra.mxu0 %v2714
      %7952 = vmatprep.subr.mxu0 0.0
      %7953 = vmatpush1.msra.mxu0 %v2715
      %7954 = vmatprep.subr.mxu0 0.0
      %7955 = vmatpush1.msra.mxu0 %v2716
      %7956 = vmatprep.subr.mxu0 0.0
      %7957 = vmatpush1.msra.mxu0 %v2717
      %7958 = vmatprep.subr.mxu0 0.0
      %7959 = vmatpush1.msra.mxu0 %v2718
      %7960 = vmatprep.subr.mxu0 0.0
      %7961 = vmatpush1.msra.mxu0 %v2719
      %7962 = vmatprep.subr.mxu0 0.0
      %7963 = vmatpush1.msra.mxu0 0.0
      %7964 = vmatprep.subr.mxu0 0.0
      %7965 = vmatpush1.msra.mxu0 0.0
      %7966 = vmatprep.subr.mxu0 0.0
      %7967 = vmatpush1.msra.mxu0 0.0
      %7968 = vmatprep.subr.mxu0 0.0
      %7969 = vmatpush1.msra.mxu0 0.0
      %7970 = vmatprep.subr.mxu0 0.0
      %7971 = vmatpush1.msra.mxu0 0.0
      %7972 = vmatprep.subr.mxu0 0.0
      %7973 = vmatpush1.msra.mxu0 0.0
      %7974 = vmatprep.subr.mxu0 0.0
      %7975 = vmatpush1.msra.mxu0 0.0
      %7976 = vmatprep.subr.mxu0 0.0
      %7977 = vmatpush1.msra.mxu0 0.0
      %7978 = vmatprep.subr.mxu0 0.0
      %7979 = vmatpush1.msra.mxu0 0.0
      %7980 = vmatprep.subr.mxu0 0.0
      %7981 = vmatpush1.msra.mxu0 0.0
      %7982 = vmatprep.subr.mxu0 0.0
      %7983 = vmatpush1.msra.mxu0 0.0
      %7984 = vmatprep.subr.mxu0 0.0
      %7985 = vmatpush1.msra.mxu0 0.0
      %7986 = vmatprep.subr.mxu0 0.0
      %7987 = vmatpush1.msra.mxu0 0.0
      %7988 = vmatprep.subr.mxu0 0.0
      %7989 = vmatpush1.msra.mxu0 0.0
      %7990 = vmatprep.subr.mxu0 0.0
      %7991 = vmatpush1.msra.mxu0 0.0
      %7992 = vmatprep.subr.mxu0 0.0
      %7993 = vmatpush1.msra.mxu0 0.0
      %7994 = vmatprep.subr.mxu0 0.0
      %7995 = vmatpush1.msra.mxu0 0.0
      %7996 = vmatprep.subr.mxu0 0.0
      %7997 = vmatpush1.msra.mxu0 0.0
      %7998 = vmatprep.subr.mxu0 0.0
      %7999 = vmatpush1.msra.mxu0 0.0
      %8000 = vmatprep.subr.mxu0 0.0
      %8001 = vmatpush1.msra.mxu0 0.0
      %8002 = vmatprep.subr.mxu0 0.0
      %8003 = vmatpush1.msra.mxu0 0.0
      %8004 = vmatprep.subr.mxu0 0.0
      %8005 = vmatpush1.msra.mxu0 0.0
      %8006 = vmatprep.mubr.f32.mxu0 0.0
      %8007 = vmatmul.mubr.f32.gmra.mrb[0].mxu0 %v7870
      %v8008 = vpop.f32.mrb[0].mxu0
      %v8009 = vadd.f32 %v7939, %v8008
      %v8010 = vpop.f32.mrb[0].mxu0
      %8011 = vdwg.mxu0
      %v8012 = vadd.f32 %v7864, %v8009
      %v8013 = vsub.f32 0.0, %v8012
      %v8014 = vmul.f32 %v8013, 1.442695
      %v8015 = vpow.pop %v8014
      %v8016 = vadd.f32 %v8015, 1.0
      %v8017 = vrcp.pop %v8016
      %v8019 = vsel %vm4408, %v8017, 0
      %8021 = vmatprep.subr.mxu0 0.0
      %8022 = vmatpush1.msra.mxu0 %v2721
      %8023 = vmatprep.subr.mxu0 0.0
      %8024 = vmatpush1.msra.mxu0 %v2722
      %8025 = vmatprep.subr.mxu0 0.0
      %8026 = vmatpush1.msra.mxu0 %v2723
      %8027 = vmatprep.subr.mxu0 0.0
      %8028 = vmatpush1.msra.mxu0 %v2724
      %8029 = vmatprep.subr.mxu0 0.0
      %8030 = vmatpush1.msra.mxu0 %v2725
      %8031 = vmatprep.subr.mxu0 0.0
      %8032 = vmatpush1.msra.mxu0 %v2726
      %8033 = vmatprep.subr.mxu0 0.0
      %8034 = vmatpush1.msra.mxu0 %v2727
      %8035 = vmatprep.subr.mxu0 0.0
      %8036 = vmatpush1.msra.mxu0 %v2728
      %8037 = vmatprep.subr.mxu0 0.0
      %8038 = vmatpush1.msra.mxu0 %v2729
      %8039 = vmatprep.subr.mxu0 0.0
      %8040 = vmatpush1.msra.mxu0 %v2730
      %8041 = vmatprep.subr.mxu0 0.0
      %8042 = vmatpush1.msra.mxu0 %v2731
      %8043 = vmatprep.subr.mxu0 0.0
      %8044 = vmatpush1.msra.mxu0 %v2732
      %8045 = vmatprep.subr.mxu0 0.0
      %8046 = vmatpush1.msra.mxu0 0.0
      %8047 = vmatprep.subr.mxu0 0.0
      %8048 = vmatpush1.msra.mxu0 0.0
      %8049 = vmatprep.subr.mxu0 0.0
      %8050 = vmatpush1.msra.mxu0 0.0
      %8051 = vmatprep.subr.mxu0 0.0
      %8052 = vmatpush1.msra.mxu0 0.0
      %8053 = vmatprep.subr.mxu0 0.0
      %8054 = vmatpush1.msra.mxu0 0.0
      %8055 = vmatprep.subr.mxu0 0.0
      %8056 = vmatpush1.msra.mxu0 0.0
      %8057 = vmatprep.subr.mxu0 0.0
      %8058 = vmatpush1.msra.mxu0 0.0
      %8059 = vmatprep.subr.mxu0 0.0
      %8060 = vmatpush1.msra.mxu0 0.0
      %8061 = vmatprep.subr.mxu0 0.0
      %8062 = vmatpush1.msra.mxu0 0.0
      %8063 = vmatprep.subr.mxu0 0.0
      %8064 = vmatpush1.msra.mxu0 0.0
      %8065 = vmatprep.subr.mxu0 0.0
      %8066 = vmatpush1.msra.mxu0 0.0
      %8067 = vmatprep.subr.mxu0 0.0
      %8068 = vmatpush1.msra.mxu0 0.0
      %8069 = vmatprep.subr.mxu0 0.0
      %8070 = vmatpush1.msra.mxu0 0.0
      %8071 = vmatprep.subr.mxu0 0.0
      %8072 = vmatpush1.msra.mxu0 0.0
      %8073 = vmatprep.subr.mxu0 0.0
      %8074 = vmatpush1.msra.mxu0 0.0
      %8075 = vmatprep.subr.mxu0 0.0
      %8076 = vmatpush1.msra.mxu0 0.0
      %8077 = vmatprep.subr.mxu0 0.0
      %8078 = vmatpush1.msra.mxu0 0.0
      %8079 = vmatprep.subr.mxu0 0.0
      %8080 = vmatpush1.msra.mxu0 0.0
      %8081 = vmatprep.subr.mxu0 0.0
      %8082 = vmatpush1.msra.mxu0 0.0
      %8083 = vmatprep.subr.mxu0 0.0
      %8084 = vmatpush1.msra.mxu0 0.0
      %8085 = vmatprep.mubr.f32.mxu0 0.0
      %8086 = vmatmul.mubr.f32.gmra.mrb[0].mxu0 %v8019
      %v8087 = vpop.f32.mrb[0].mxu0
      %v8088 = vadd.f32 %v2733, %v8087
      %v8089 = vpop.f32.mrb[0].mxu0
      %8090 = vdwg.mxu0
      %v8091 = vmax.f32 %v8088, 0.0
      %v8093 = vsel %vm4483, %v8091, 0
      %8095 = vmatprep.subr.mxu0 0.0
      %8096 = vmatpush1.msra.mxu0 %v2734
      %8097 = vmatprep.subr.mxu0 0.0
      %8098 = vmatpush1.msra.mxu0 %v2735
      %8099 = vmatprep.subr.mxu0 0.0
      %8100 = vmatpush1.msra.mxu0 %v2736
      %8101 = vmatprep.subr.mxu0 0.0
      %8102 = vmatpush1.msra.mxu0 %v2737
      %8103 = vmatprep.subr.mxu0 0.0
      %8104 = vmatpush1.msra.mxu0 %v2738
      %8105 = vmatprep.subr.mxu0 0.0
      %8106 = vmatpush1.msra.mxu0 %v2739
      %8107 = vmatprep.subr.mxu0 0.0
      %8108 = vmatpush1.msra.mxu0 %v2740
      %8109 = vmatprep.subr.mxu0 0.0
      %8110 = vmatpush1.msra.mxu0 %v2741
      %8111 = vmatprep.subr.mxu0 0.0
      %8112 = vmatpush1.msra.mxu0 %v2742
      %8113 = vmatprep.subr.mxu0 0.0
      %8114 = vmatpush1.msra.mxu0 %v2743
      %8115 = vmatprep.subr.mxu0 0.0
      %8116 = vmatpush1.msra.mxu0 %v2744
      %8117 = vmatprep.subr.mxu0 0.0
      %8118 = vmatpush1.msra.mxu0 %v2745
      %8119 = vmatprep.subr.mxu0 0.0
      %8120 = vmatpush1.msra.mxu0 %v4489
      %8121 = vmatprep.subr.mxu0 0.0
      %8122 = vmatpush1.msra.mxu0 0.0
      %8123 = vmatprep.subr.mxu0 0.0
      %8124 = vmatpush1.msra.mxu0 0.0
      %8125 = vmatprep.subr.mxu0 0.0
      %8126 = vmatpush1.msra.mxu0 0.0
      %8127 = vmatprep.subr.mxu0 0.0
      %8128 = vmatpush1.msra.mxu0 0.0
      %8129 = vmatprep.subr.mxu0 0.0
      %8130 = vmatpush1.msra.mxu0 0.0
      %8131 = vmatprep.subr.mxu0 0.0
      %8132 = vmatpush1.msra.mxu0 0.0
      %8133 = vmatprep.subr.mxu0 0.0
      %8134 = vmatpush1.msra.mxu0 0.0
      %8135 = vmatprep.subr.mxu0 0.0
      %8136 = vmatpush1.msra.mxu0 0.0
      %8137 = vmatprep.subr.mxu0 0.0
      %8138 = vmatpush1.msra.mxu0 0.0
      %8139 = vmatprep.subr.mxu0 0.0
      %8140 = vmatpush1.msra.mxu0 0.0
      %8141 = vmatprep.subr.mxu0 0.0
      %8142 = vmatpush1.msra.mxu0 0.0
      %8143 = vmatprep.subr.mxu0 0.0
      %8144 = vmatpush1.msra.mxu0 0.0
      %8145 = vmatprep.subr.mxu0 0.0
      %8146 = vmatpush1.msra.mxu0 0.0
      %8147 = vmatprep.subr.mxu0 0.0
      %8148 = vmatpush1.msra.mxu0 0.0
      %8149 = vmatprep.subr.mxu0 0.0
      %8150 = vmatpush1.msra.mxu0 0.0
      %8151 = vmatprep.subr.mxu0 0.0
      %8152 = vmatpush1.msra.mxu0 0.0
      %8153 = vmatprep.subr.mxu0 0.0
      %8154 = vmatpush1.msra.mxu0 0.0
      %8155 = vmatprep.subr.mxu0 0.0
      %8156 = vmatpush1.msra.mxu0 0.0
      %8157 = vmatprep.subr.mxu0 0.0
      %8158 = vmatpush1.msra.mxu0 0.0
      %8159 = vmatprep.mubr.f32.mxu0 0.0
      %8160 = vmatmul.mubr.f32.gmra.mrb[0].mxu0 %v8093
      %v8161 = vpop.f32.mrb[0].mxu0
      %v8162 = vadd.f32 %v2747, %v8161
      %v8163 = vpop.f32.mrb[0].mxu0
      %8164 = vdwg.mxu0
      %v8165 = vsel %vm4561, %v8162, -inf
      %8166 = vmax.xlane.f32.xlu0 %v8165
      %v8167 = vpop.xlane.xlu0 %8166
      %v8168 = vsub.f32 %v8162, %v8167
      %v8169 = vmul.f32 %v8168, 1.442695
      %v8170 = vpow.pop %v8169
      %v8171 = vsel %vm4561, %v8170, 0.0
      %8172 = vadd.xlane.f32.xlu0 %v8171
      %v8173 = vpop.xlane.xlu0 %8172
      %v8174 = vrcp.pop %v8173
      %v8175 = vmul.f32 %v8170, %v8174
      %s8176 = scalar_lea.vmem %s545, 2
      %8177 = vst.msk [vmem:[%s8176] sm:$0x1] %vm4561, %v8175
      %v8179 = vsel %vm2764, %v2223, 0
      %8181 = vmatprep.subr.mxu0 %v2309
      %8182 = vmatpush1.msra.mxu0 %v2308
      %8183 = vmatprep.subr.mxu0 %v2312
      %8184 = vmatpush1.msra.mxu0 %v2311
      %8185 = vmatprep.subr.mxu0 %v2315
      %8186 = vmatpush1.msra.mxu0 %v2314
      %8187 = vmatprep.subr.mxu0 %v2318
      %8188 = vmatpush1.msra.mxu0 %v2317
      %8189 = vmatprep.subr.mxu0 %v2321
      %8190 = vmatpush1.msra.mxu0 %v2320
      %8191 = vmatprep.subr.mxu0 %v2324
      %8192 = vmatpush1.msra.mxu0 %v2323
      %8193 = vmatprep.subr.mxu0 %v2327
      %8194 = vmatpush1.msra.mxu0 %v2326
      %8195 = vmatprep.subr.mxu0 %v2330
      %8196 = vmatpush1.msra.mxu0 %v2329
      %8197 = vmatprep.subr.mxu0 %v2333
      %8198 = vmatpush1.msra.mxu0 %v2332
      %8199 = vmatprep.subr.mxu0 %v2336
      %8200 = vmatpush1.msra.mxu0 %v2335
      %8201 = vmatprep.subr.mxu0 %v2339
      %8202 = vmatpush1.msra.mxu0 %v2338
      %8203 = vmatprep.subr.mxu0 %v2342
      %8204 = vmatpush1.msra.mxu0 %v2341
      %8205 = vmatprep.subr.mxu0 %v2345
      %8206 = vmatpush1.msra.mxu0 %v2344
      %8207 = vmatprep.subr.mxu0 %v2348
      %8208 = vmatpush1.msra.mxu0 %v2347
      %8209 = vmatprep.subr.mxu0 %v2351
      %8210 = vmatpush1.msra.mxu0 %v2350
      %8211 = vmatprep.subr.mxu0 %v2354
      %8212 = vmatpush1.msra.mxu0 %v2353
      %8213 = vmatprep.subr.mxu0 %v2357
      %8214 = vmatpush1.msra.mxu0 %v2356
      %8215 = vmatprep.subr.mxu0 %v2360
      %8216 = vmatpush1.msra.mxu0 %v2359
      %8217 = vmatprep.subr.mxu0 %v2363
      %8218 = vmatpush1.msra.mxu0 %v2362
      %8219 = vmatprep.subr.mxu0 %v2366
      %8220 = vmatpush1.msra.mxu0 %v2365
      %8221 = vmatprep.subr.mxu0 %v2369
      %8222 = vmatpush1.msra.mxu0 %v2368
      %8223 = vmatprep.subr.mxu0 %v2372
      %8224 = vmatpush1.msra.mxu0 %v2371
      %8225 = vmatprep.subr.mxu0 %v2375
      %8226 = vmatpush1.msra.mxu0 %v2374
      %8227 = vmatprep.subr.mxu0 %v2378
      %8228 = vmatpush1.msra.mxu0 %v2377
      %8229 = vmatprep.subr.mxu0 %v2381
      %8230 = vmatpush1.msra.mxu0 %v2380
      %8231 = vmatprep.subr.mxu0 %v2384
      %8232 = vmatpush1.msra.mxu0 %v2383
      %8233 = vmatprep.subr.mxu0 %v2387
      %8234 = vmatpush1.msra.mxu0 %v2386
      %8235 = vmatprep.subr.mxu0 %v2390
      %8236 = vmatpush1.msra.mxu0 %v2389
      %8237 = vmatprep.subr.mxu0 %v2393
      %8238 = vmatpush1.msra.mxu0 %v2392
      %8239 = vmatprep.subr.mxu0 %v2396
      %8240 = vmatpush1.msra.mxu0 %v2395
      %8241 = vmatprep.subr.mxu0 %v2399
      %8242 = vmatpush1.msra.mxu0 %v2398
      %8243 = vmatprep.subr.mxu0 %v2402
      %8244 = vmatpush1.msra.mxu0 %v2401
      %8245 = vmatprep.mubr.f32.mxu0 %v2222
      %8246 = vmatmul.mubr.f32.gmra.mrb[0].mxu0 %v2221
      %v8247 = vpop.f32.mrb[0].mxu0
      %v8248 = vadd.f32 %v2752, %v8247
      %v8249 = vpop.f32.mrb[0].mxu0
      %v8250 = vadd.f32 %v2756, %v8249
      %8251 = vdwg.mxu0
      %8252 = vmatprep.subr.mxu0 %v2405
      %8253 = vmatpush1.msra.mxu0 %v2404
      %8254 = vmatprep.subr.mxu0 %v2408
      %8255 = vmatpush1.msra.mxu0 %v2407
      %8256 = vmatprep.subr.mxu0 %v2411
      %8257 = vmatpush1.msra.mxu0 %v2410
      %8258 = vmatprep.subr.mxu0 %v2414
      %8259 = vmatpush1.msra.mxu0 %v2413
      %8260 = vmatprep.subr.mxu0 %v2417
      %8261 = vmatpush1.msra.mxu0 %v2416
      %8262 = vmatprep.subr.mxu0 %v2420
      %8263 = vmatpush1.msra.mxu0 %v2419
      %8264 = vmatprep.subr.mxu0 %v2423
      %8265 = vmatpush1.msra.mxu0 %v2422
      %8266 = vmatprep.subr.mxu0 0.0
      %8267 = vmatpush1.msra.mxu0 0.0
      %8268 = vmatprep.subr.mxu0 0.0
      %8269 = vmatpush1.msra.mxu0 0.0
      %8270 = vmatprep.subr.mxu0 0.0
      %8271 = vmatpush1.msra.mxu0 0.0
      %8272 = vmatprep.subr.mxu0 0.0
      %8273 = vmatpush1.msra.mxu0 0.0
      %8274 = vmatprep.subr.mxu0 0.0
      %8275 = vmatpush1.msra.mxu0 0.0
      %8276 = vmatprep.subr.mxu0 0.0
      %8277 = vmatpush1.msra.mxu0 0.0
      %8278 = vmatprep.subr.mxu0 0.0
      %8279 = vmatpush1.msra.mxu0 0.0
      %8280 = vmatprep.subr.mxu0 0.0
      %8281 = vmatpush1.msra.mxu0 0.0
      %8282 = vmatprep.subr.mxu0 0.0
      %8283 = vmatpush1.msra.mxu0 0.0
      %8284 = vmatprep.subr.mxu0 0.0
      %8285 = vmatpush1.msra.mxu0 0.0
      %8286 = vmatprep.subr.mxu0 0.0
      %8287 = vmatpush1.msra.mxu0 0.0
      %8288 = vmatprep.subr.mxu0 0.0
      %8289 = vmatpush1.msra.mxu0 0.0
      %8290 = vmatprep.subr.mxu0 0.0
      %8291 = vmatpush1.msra.mxu0 0.0
      %8292 = vmatprep.subr.mxu0 0.0
      %8293 = vmatpush1.msra.mxu0 0.0
      %8294 = vmatprep.subr.mxu0 0.0
      %8295 = vmatpush1.msra.mxu0 0.0
      %8296 = vmatprep.subr.mxu0 0.0
      %8297 = vmatpush1.msra.mxu0 0.0
      %8298 = vmatprep.subr.mxu0 0.0
      %8299 = vmatpush1.msra.mxu0 0.0
      %8300 = vmatprep.subr.mxu0 0.0
      %8301 = vmatpush1.msra.mxu0 0.0
      %8302 = vmatprep.subr.mxu0 0.0
      %8303 = vmatpush1.msra.mxu0 0.0
      %8304 = vmatprep.subr.mxu0 0.0
      %8305 = vmatpush1.msra.mxu0 0.0
      %8306 = vmatprep.subr.mxu0 0.0
      %8307 = vmatpush1.msra.mxu0 0.0
      %8308 = vmatprep.subr.mxu0 0.0
      %8309 = vmatpush1.msra.mxu0 0.0
      %8310 = vmatprep.subr.mxu0 0.0
      %8311 = vmatpush1.msra.mxu0 0.0
      %8312 = vmatprep.subr.mxu0 0.0
      %8313 = vmatpush1.msra.mxu0 0.0
      %8314 = vmatprep.subr.mxu0 0.0
      %8315 = vmatpush1.msra.mxu0 0.0
      %8316 = vmatprep.mubr.f32.mxu0 0.0
      %8317 = vmatmul.mubr.f32.gmra.mrb[0].mxu0 %v8179
      %v8318 = vpop.f32.mrb[0].mxu0
      %v8319 = vadd.f32 %v8248, %v8318
      %v8320 = vpop.f32.mrb[0].mxu0
      %v8321 = vadd.f32 %v8250, %v8320
      %8322 = vdwg.mxu0
      %8323 = vmatprep.subr.mxu0 0.0
      %8324 = vmatpush1.msra.mxu0 %v2310
      %8325 = vmatprep.subr.mxu0 0.0
      %8326 = vmatpush1.msra.mxu0 %v2313
      %8327 = vmatprep.subr.mxu0 0.0
      %8328 = vmatpush1.msra.mxu0 %v2316
      %8329 = vmatprep.subr.mxu0 0.0
      %8330 = vmatpush1.msra.mxu0 %v2319
      %8331 = vmatprep.subr.mxu0 0.0
      %8332 = vmatpush1.msra.mxu0 %v2322
      %8333 = vmatprep.subr.mxu0 0.0
      %8334 = vmatpush1.msra.mxu0 %v2325
      %8335 = vmatprep.subr.mxu0 0.0
      %8336 = vmatpush1.msra.mxu0 %v2328
      %8337 = vmatprep.subr.mxu0 0.0
      %8338 = vmatpush1.msra.mxu0 %v2331
      %8339 = vmatprep.subr.mxu0 0.0
      %8340 = vmatpush1.msra.mxu0 %v2334
      %8341 = vmatprep.subr.mxu0 0.0
      %8342 = vmatpush1.msra.mxu0 %v2337
      %8343 = vmatprep.subr.mxu0 0.0
      %8344 = vmatpush1.msra.mxu0 %v2340
      %8345 = vmatprep.subr.mxu0 0.0
      %8346 = vmatpush1.msra.mxu0 %v2343
      %8347 = vmatprep.subr.mxu0 0.0
      %8348 = vmatpush1.msra.mxu0 %v2346
      %8349 = vmatprep.subr.mxu0 0.0
      %8350 = vmatpush1.msra.mxu0 %v2349
      %8351 = vmatprep.subr.mxu0 0.0
      %8352 = vmatpush1.msra.mxu0 %v2352
      %8353 = vmatprep.subr.mxu0 0.0
      %8354 = vmatpush1.msra.mxu0 %v2355
      %8355 = vmatprep.subr.mxu0 0.0
      %8356 = vmatpush1.msra.mxu0 %v2358
      %8357 = vmatprep.subr.mxu0 0.0
      %8358 = vmatpush1.msra.mxu0 %v2361
      %8359 = vmatprep.subr.mxu0 0.0
      %8360 = vmatpush1.msra.mxu0 %v2364
      %8361 = vmatprep.subr.mxu0 0.0
      %8362 = vmatpush1.msra.mxu0 %v2367
      %8363 = vmatprep.subr.mxu0 0.0
      %8364 = vmatpush1.msra.mxu0 %v2370
      %8365 = vmatprep.subr.mxu0 0.0
      %8366 = vmatpush1.msra.mxu0 %v2373
      %8367 = vmatprep.subr.mxu0 0.0
      %8368 = vmatpush1.msra.mxu0 %v2376
      %8369 = vmatprep.subr.mxu0 0.0
      %8370 = vmatpush1.msra.mxu0 %v2379
      %8371 = vmatprep.subr.mxu0 0.0
      %8372 = vmatpush1.msra.mxu0 %v2382
      %8373 = vmatprep.subr.mxu0 0.0
      %8374 = vmatpush1.msra.mxu0 %v2385
      %8375 = vmatprep.subr.mxu0 0.0
      %8376 = vmatpush1.msra.mxu0 %v2388
      %8377 = vmatprep.subr.mxu0 0.0
      %8378 = vmatpush1.msra.mxu0 %v2391
      %8379 = vmatprep.subr.mxu0 0.0
      %8380 = vmatpush1.msra.mxu0 %v2394
      %8381 = vmatprep.subr.mxu0 0.0
      %8382 = vmatpush1.msra.mxu0 %v2397
      %8383 = vmatprep.subr.mxu0 0.0
      %8384 = vmatpush1.msra.mxu0 %v2400
      %8385 = vmatprep.subr.mxu0 0.0
      %8386 = vmatpush1.msra.mxu0 %v2403
      %8387 = vmatprep.mubr.f32.mxu0 %v2222
      %8388 = vmatmul.mubr.f32.gmra.mrb[0].mxu0 %v2221
      %v8389 = vpop.f32.mrb[0].mxu0
      %v8390 = vadd.f32 %v2760, %v8389
      %v8391 = vpop.f32.mrb[0].mxu0
      %8392 = vdwg.mxu0
      %8393 = vmatprep.subr.mxu0 0.0
      %8394 = vmatpush1.msra.mxu0 %v2406
      %8395 = vmatprep.subr.mxu0 0.0
      %8396 = vmatpush1.msra.mxu0 %v2409
      %8397 = vmatprep.subr.mxu0 0.0
      %8398 = vmatpush1.msra.mxu0 %v2412
      %8399 = vmatprep.subr.mxu0 0.0
      %8400 = vmatpush1.msra.mxu0 %v2415
      %8401 = vmatprep.subr.mxu0 0.0
      %8402 = vmatpush1.msra.mxu0 %v2418
      %8403 = vmatprep.subr.mxu0 0.0
      %8404 = vmatpush1.msra.mxu0 %v2421
      %8405 = vmatprep.subr.mxu0 0.0
      %8406 = vmatpush1.msra.mxu0 %v2424
      %8407 = vmatprep.subr.mxu0 0.0
      %8408 = vmatpush1.msra.mxu0 0.0
      %8409 = vmatprep.subr.mxu0 0.0
      %8410 = vmatpush1.msra.mxu0 0.0
      %8411 = vmatprep.subr.mxu0 0.0
      %8412 = vmatpush1.msra.mxu0 0.0
      %8413 = vmatprep.subr.mxu0 0.0
      %8414 = vmatpush1.msra.mxu0 0.0
      %8415 = vmatprep.subr.mxu0 0.0
      %8416 = vmatpush1.msra.mxu0 0.0
      %8417 = vmatprep.subr.mxu0 0.0
      %8418 = vmatpush1.msra.mxu0 0.0
      %8419 = vmatprep.subr.mxu0 0.0
      %8420 = vmatpush1.msra.mxu0 0.0
      %8421 = vmatprep.subr.mxu0 0.0
      %8422 = vmatpush1.msra.mxu0 0.0
      %8423 = vmatprep.subr.mxu0 0.0
      %8424 = vmatpush1.msra.mxu0 0.0
      %8425 = vmatprep.subr.mxu0 0.0
      %8426 = vmatpush1.msra.mxu0 0.0
      %8427 = vmatprep.subr.mxu0 0.0
      %8428 = vmatpush1.msra.mxu0 0.0
      %8429 = vmatprep.subr.mxu0 0.0
      %8430 = vmatpush1.msra.mxu0 0.0
      %8431 = vmatprep.subr.mxu0 0.0
      %8432 = vmatpush1.msra.mxu0 0.0
      %8433 = vmatprep.subr.mxu0 0.0
      %8434 = vmatpush1.msra.mxu0 0.0
      %8435 = vmatprep.subr.mxu0 0.0
      %8436 = vmatpush1.msra.mxu0 0.0
      %8437 = vmatprep.subr.mxu0 0.0
      %8438 = vmatpush1.msra.mxu0 0.0
      %8439 = vmatprep.subr.mxu0 0.0
      %8440 = vmatpush1.msra.mxu0 0.0
      %8441 = vmatprep.subr.mxu0 0.0
      %8442 = vmatpush1.msra.mxu0 0.0
      %8443 = vmatprep.subr.mxu0 0.0
      %8444 = vmatpush1.msra.mxu0 0.0
      %8445 = vmatprep.subr.mxu0 0.0
      %8446 = vmatpush1.msra.mxu0 0.0
      %8447 = vmatprep.subr.mxu0 0.0
      %8448 = vmatpush1.msra.mxu0 0.0
      %8449 = vmatprep.subr.mxu0 0.0
      %8450 = vmatpush1.msra.mxu0 0.0
      %8451 = vmatprep.subr.mxu0 0.0
      %8452 = vmatpush1.msra.mxu0 0.0
      %8453 = vmatprep.subr.mxu0 0.0
      %8454 = vmatpush1.msra.mxu0 0.0
      %8455 = vmatprep.subr.mxu0 0.0
      %8456 = vmatpush1.msra.mxu0 0.0
      %8457 = vmatprep.mubr.f32.mxu0 0.0
      %8458 = vmatmul.mubr.f32.gmra.mrb[0].mxu0 %v8179
      %v8459 = vpop.f32.mrb[0].mxu0
      %v8460 = vadd.f32 %v8390, %v8459
      %v8461 = vpop.f32.mrb[0].mxu0
      %8462 = vdwg.mxu0
      %v8463 = vsub.f32 0.0, %v8319
      %v8464 = vsub.f32 0.0, %v8321
      %v8465 = vsub.f32 0.0, %v8460
      %v8466 = vmul.f32 %v8463, 1.442695
      %v8467 = vpow.pop %v8466
      %v8468 = vmul.f32 %v8464, 1.442695
      %v8469 = vpow.pop %v8468
      %v8470 = vmul.f32 %v8465, 1.442695
      %v8471 = vpow.pop %v8470
      %v8472 = vadd.f32 %v8467, 1.0
      %v8473 = vadd.f32 %v8469, 1.0
      %v8474 = vadd.f32 %v8471, 1.0
      %v8475 = vrcp.pop %v8472
      %v8476 = vrcp.pop %v8473
      %v8477 = vrcp.pop %v8474
      %v8479 = vsel %vm2764, %v2307, 0
      %8481 = vmatprep.subr.mxu0 %v2309
      %8482 = vmatpush1.msra.mxu0 %v2308
      %8483 = vmatprep.subr.mxu0 %v2312
      %8484 = vmatpush1.msra.mxu0 %v2311
      %8485 = vmatprep.subr.mxu0 %v2315
      %8486 = vmatpush1.msra.mxu0 %v2314
      %8487 = vmatprep.subr.mxu0 %v2318
      %8488 = vmatpush1.msra.mxu0 %v2317
      %8489 = vmatprep.subr.mxu0 %v2321
      %8490 = vmatpush1.msra.mxu0 %v2320
      %8491 = vmatprep.subr.mxu0 %v2324
      %8492 = vmatpush1.msra.mxu0 %v2323
      %8493 = vmatprep.subr.mxu0 %v2327
      %8494 = vmatpush1.msra.mxu0 %v2326
      %8495 = vmatprep.subr.mxu0 %v2330
      %8496 = vmatpush1.msra.mxu0 %v2329
      %8497 = vmatprep.subr.mxu0 %v2333
      %8498 = vmatpush1.msra.mxu0 %v2332
      %8499 = vmatprep.subr.mxu0 %v2336
      %8500 = vmatpush1.msra.mxu0 %v2335
      %8501 = vmatprep.subr.mxu0 %v2339
      %8502 = vmatpush1.msra.mxu0 %v2338
      %8503 = vmatprep.subr.mxu0 %v2342
      %8504 = vmatpush1.msra.mxu0 %v2341
      %8505 = vmatprep.subr.mxu0 %v2345
      %8506 = vmatpush1.msra.mxu0 %v2344
      %8507 = vmatprep.subr.mxu0 %v2348
      %8508 = vmatpush1.msra.mxu0 %v2347
      %8509 = vmatprep.subr.mxu0 %v2351
      %8510 = vmatpush1.msra.mxu0 %v2350
      %8511 = vmatprep.subr.mxu0 %v2354
      %8512 = vmatpush1.msra.mxu0 %v2353
      %8513 = vmatprep.subr.mxu0 %v2357
      %8514 = vmatpush1.msra.mxu0 %v2356
      %8515 = vmatprep.subr.mxu0 %v2360
      %8516 = vmatpush1.msra.mxu0 %v2359
      %8517 = vmatprep.subr.mxu0 %v2363
      %8518 = vmatpush1.msra.mxu0 %v2362
      %8519 = vmatprep.subr.mxu0 %v2366
      %8520 = vmatpush1.msra.mxu0 %v2365
      %8521 = vmatprep.subr.mxu0 %v2369
      %8522 = vmatpush1.msra.mxu0 %v2368
      %8523 = vmatprep.subr.mxu0 %v2372
      %8524 = vmatpush1.msra.mxu0 %v2371
      %8525 = vmatprep.subr.mxu0 %v2375
      %8526 = vmatpush1.msra.mxu0 %v2374
      %8527 = vmatprep.subr.mxu0 %v2378
      %8528 = vmatpush1.msra.mxu0 %v2377
      %8529 = vmatprep.subr.mxu0 %v2381
      %8530 = vmatpush1.msra.mxu0 %v2380
      %8531 = vmatprep.subr.mxu0 %v2384
      %8532 = vmatpush1.msra.mxu0 %v2383
      %8533 = vmatprep.subr.mxu0 %v2387
      %8534 = vmatpush1.msra.mxu0 %v2386
      %8535 = vmatprep.subr.mxu0 %v2390
      %8536 = vmatpush1.msra.mxu0 %v2389
      %8537 = vmatprep.subr.mxu0 %v2393
      %8538 = vmatpush1.msra.mxu0 %v2392
      %8539 = vmatprep.subr.mxu0 %v2396
      %8540 = vmatpush1.msra.mxu0 %v2395
      %8541 = vmatprep.subr.mxu0 %v2399
      %8542 = vmatpush1.msra.mxu0 %v2398
      %8543 = vmatprep.subr.mxu0 %v2402
      %8544 = vmatpush1.msra.mxu0 %v2401
      %8545 = vmatprep.mubr.f32.mxu0 %v2306
      %8546 = vmatmul.mubr.f32.gmra.mrb[0].mxu0 %v2305
      %v8547 = vpop.f32.mrb[0].mxu0
      %v8548 = vadd.f32 %v2752, %v8547
      %v8549 = vpop.f32.mrb[0].mxu0
      %v8550 = vadd.f32 %v2756, %v8549
      %8551 = vdwg.mxu0
      %8552 = vmatprep.subr.mxu0 %v2405
      %8553 = vmatpush1.msra.mxu0 %v2404
      %8554 = vmatprep.subr.mxu0 %v2408
      %8555 = vmatpush1.msra.mxu0 %v2407
      %8556 = vmatprep.subr.mxu0 %v2411
      %8557 = vmatpush1.msra.mxu0 %v2410
      %8558 = vmatprep.subr.mxu0 %v2414
      %8559 = vmatpush1.msra.mxu0 %v2413
      %8560 = vmatprep.subr.mxu0 %v2417
      %8561 = vmatpush1.msra.mxu0 %v2416
      %8562 = vmatprep.subr.mxu0 %v2420
      %8563 = vmatpush1.msra.mxu0 %v2419
      %8564 = vmatprep.subr.mxu0 %v2423
      %8565 = vmatpush1.msra.mxu0 %v2422
      %8566 = vmatprep.subr.mxu0 0.0
      %8567 = vmatpush1.msra.mxu0 0.0
      %8568 = vmatprep.subr.mxu0 0.0
      %8569 = vmatpush1.msra.mxu0 0.0
      %8570 = vmatprep.subr.mxu0 0.0
      %8571 = vmatpush1.msra.mxu0 0.0
      %8572 = vmatprep.subr.mxu0 0.0
      %8573 = vmatpush1.msra.mxu0 0.0
      %8574 = vmatprep.subr.mxu0 0.0
      %8575 = vmatpush1.msra.mxu0 0.0
      %8576 = vmatprep.subr.mxu0 0.0
      %8577 = vmatpush1.msra.mxu0 0.0
      %8578 = vmatprep.subr.mxu0 0.0
      %8579 = vmatpush1.msra.mxu0 0.0
      %8580 = vmatprep.subr.mxu0 0.0
      %8581 = vmatpush1.msra.mxu0 0.0
      %8582 = vmatprep.subr.mxu0 0.0
      %8583 = vmatpush1.msra.mxu0 0.0
      %8584 = vmatprep.subr.mxu0 0.0
      %8585 = vmatpush1.msra.mxu0 0.0
      %8586 = vmatprep.subr.mxu0 0.0
      %8587 = vmatpush1.msra.mxu0 0.0
      %8588 = vmatprep.subr.mxu0 0.0
      %8589 = vmatpush1.msra.mxu0 0.0
      %8590 = vmatprep.subr.mxu0 0.0
      %8591 = vmatpush1.msra.mxu0 0.0
      %8592 = vmatprep.subr.mxu0 0.0
      %8593 = vmatpush1.msra.mxu0 0.0
      %8594 = vmatprep.subr.mxu0 0.0
      %8595 = vmatpush1.msra.mxu0 0.0
      %8596 = vmatprep.subr.mxu0 0.0
      %8597 = vmatpush1.msra.mxu0 0.0
      %8598 = vmatprep.subr.mxu0 0.0
      %8599 = vmatpush1.msra.mxu0 0.0
      %8600 = vmatprep.subr.mxu0 0.0
      %8601 = vmatpush1.msra.mxu0 0.0
      %8602 = vmatprep.subr.mxu0 0.0
      %8603 = vmatpush1.msra.mxu0 0.0
      %8604 = vmatprep.subr.mxu0 0.0
      %8605 = vmatpush1.msra.mxu0 0.0
      %8606 = vmatprep.subr.mxu0 0.0
      %8607 = vmatpush1.msra.mxu0 0.0
      %8608 = vmatprep.subr.mxu0 0.0
      %8609 = vmatpush1.msra.mxu0 0.0
      %8610 = vmatprep.subr.mxu0 0.0
      %8611 = vmatpush1.msra.mxu0 0.0
      %8612 = vmatprep.subr.mxu0 0.0
      %8613 = vmatpush1.msra.mxu0 0.0
      %8614 = vmatprep.subr.mxu0 0.0
      %8615 = vmatpush1.msra.mxu0 0.0
      %8616 = vmatprep.mubr.f32.mxu0 0.0
      %8617 = vmatmul.mubr.f32.gmra.mrb[0].mxu0 %v8479
      %v8618 = vpop.f32.mrb[0].mxu0
      %v8619 = vadd.f32 %v8548, %v8618
      %v8620 = vpop.f32.mrb[0].mxu0
      %v8621 = vadd.f32 %v8550, %v8620
      %8622 = vdwg.mxu0
      %8623 = vmatprep.subr.mxu0 0.0
      %8624 = vmatpush1.msra.mxu0 %v2310
      %8625 = vmatprep.subr.mxu0 0.0
      %8626 = vmatpush1.msra.mxu0 %v2313
      %8627 = vmatprep.subr.mxu0 0.0
      %8628 = vmatpush1.msra.mxu0 %v2316
      %8629 = vmatprep.subr.mxu0 0.0
      %8630 = vmatpush1.msra.mxu0 %v2319
      %8631 = vmatprep.subr.mxu0 0.0
      %8632 = vmatpush1.msra.mxu0 %v2322
      %8633 = vmatprep.subr.mxu0 0.0
      %8634 = vmatpush1.msra.mxu0 %v2325
      %8635 = vmatprep.subr.mxu0 0.0
      %8636 = vmatpush1.msra.mxu0 %v2328
      %8637 = vmatprep.subr.mxu0 0.0
      %8638 = vmatpush1.msra.mxu0 %v2331
      %8639 = vmatprep.subr.mxu0 0.0
      %8640 = vmatpush1.msra.mxu0 %v2334
      %8641 = vmatprep.subr.mxu0 0.0
      %8642 = vmatpush1.msra.mxu0 %v2337
      %8643 = vmatprep.subr.mxu0 0.0
      %8644 = vmatpush1.msra.mxu0 %v2340
      %8645 = vmatprep.subr.mxu0 0.0
      %8646 = vmatpush1.msra.mxu0 %v2343
      %8647 = vmatprep.subr.mxu0 0.0
      %8648 = vmatpush1.msra.mxu0 %v2346
      %8649 = vmatprep.subr.mxu0 0.0
      %8650 = vmatpush1.msra.mxu0 %v2349
      %8651 = vmatprep.subr.mxu0 0.0
      %8652 = vmatpush1.msra.mxu0 %v2352
      %8653 = vmatprep.subr.mxu0 0.0
      %8654 = vmatpush1.msra.mxu0 %v2355
      %8655 = vmatprep.subr.mxu0 0.0
      %8656 = vmatpush1.msra.mxu0 %v2358
      %8657 = vmatprep.subr.mxu0 0.0
      %8658 = vmatpush1.msra.mxu0 %v2361
      %8659 = vmatprep.subr.mxu0 0.0
      %8660 = vmatpush1.msra.mxu0 %v2364
      %8661 = vmatprep.subr.mxu0 0.0
      %8662 = vmatpush1.msra.mxu0 %v2367
      %8663 = vmatprep.subr.mxu0 0.0
      %8664 = vmatpush1.msra.mxu0 %v2370
      %8665 = vmatprep.subr.mxu0 0.0
      %8666 = vmatpush1.msra.mxu0 %v2373
      %8667 = vmatprep.subr.mxu0 0.0
      %8668 = vmatpush1.msra.mxu0 %v2376
      %8669 = vmatprep.subr.mxu0 0.0
      %8670 = vmatpush1.msra.mxu0 %v2379
      %8671 = vmatprep.subr.mxu0 0.0
      %8672 = vmatpush1.msra.mxu0 %v2382
      %8673 = vmatprep.subr.mxu0 0.0
      %8674 = vmatpush1.msra.mxu0 %v2385
      %8675 = vmatprep.subr.mxu0 0.0
      %8676 = vmatpush1.msra.mxu0 %v2388
      %8677 = vmatprep.subr.mxu0 0.0
      %8678 = vmatpush1.msra.mxu0 %v2391
      %8679 = vmatprep.subr.mxu0 0.0
      %8680 = vmatpush1.msra.mxu0 %v2394
      %8681 = vmatprep.subr.mxu0 0.0
      %8682 = vmatpush1.msra.mxu0 %v2397
      %8683 = vmatprep.subr.mxu0 0.0
      %8684 = vmatpush1.msra.mxu0 %v2400
      %8685 = vmatprep.subr.mxu0 0.0
      %8686 = vmatpush1.msra.mxu0 %v2403
      %8687 = vmatprep.mubr.f32.mxu0 %v2306
      %8688 = vmatmul.mubr.f32.gmra.mrb[0].mxu0 %v2305
      %v8689 = vpop.f32.mrb[0].mxu0
      %v8690 = vadd.f32 %v2760, %v8689
      %v8691 = vpop.f32.mrb[0].mxu0
      %8692 = vdwg.mxu0
      %8693 = vmatprep.subr.mxu0 0.0
      %8694 = vmatpush1.msra.mxu0 %v2406
      %8695 = vmatprep.subr.mxu0 0.0
      %8696 = vmatpush1.msra.mxu0 %v2409
      %8697 = vmatprep.subr.mxu0 0.0
      %8698 = vmatpush1.msra.mxu0 %v2412
      %8699 = vmatprep.subr.mxu0 0.0
      %8700 = vmatpush1.msra.mxu0 %v2415
      %8701 = vmatprep.subr.mxu0 0.0
      %8702 = vmatpush1.msra.mxu0 %v2418
      %8703 = vmatprep.subr.mxu0 0.0
      %8704 = vmatpush1.msra.mxu0 %v2421
      %8705 = vmatprep.subr.mxu0 0.0
      %8706 = vmatpush1.msra.mxu0 %v2424
      %8707 = vmatprep.subr.mxu0 0.0
      %8708 = vmatpush1.msra.mxu0 0.0
      %8709 = vmatprep.subr.mxu0 0.0
      %8710 = vmatpush1.msra.mxu0 0.0
      %8711 = vmatprep.subr.mxu0 0.0
      %8712 = vmatpush1.msra.mxu0 0.0
      %8713 = vmatprep.subr.mxu0 0.0
      %8714 = vmatpush1.msra.mxu0 0.0
      %8715 = vmatprep.subr.mxu0 0.0
      %8716 = vmatpush1.msra.mxu0 0.0
      %8717 = vmatprep.subr.mxu0 0.0
      %8718 = vmatpush1.msra.mxu0 0.0
      %8719 = vmatprep.subr.mxu0 0.0
      %8720 = vmatpush1.msra.mxu0 0.0
      %8721 = vmatprep.subr.mxu0 0.0
      %8722 = vmatpush1.msra.mxu0 0.0
      %8723 = vmatprep.subr.mxu0 0.0
      %8724 = vmatpush1.msra.mxu0 0.0
      %8725 = vmatprep.subr.mxu0 0.0
      %8726 = vmatpush1.msra.mxu0 0.0
      %8727 = vmatprep.subr.mxu0 0.0
      %8728 = vmatpush1.msra.mxu0 0.0
      %8729 = vmatprep.subr.mxu0 0.0
      %8730 = vmatpush1.msra.mxu0 0.0
      %8731 = vmatprep.subr.mxu0 0.0
      %8732 = vmatpush1.msra.mxu0 0.0
      %8733 = vmatprep.subr.mxu0 0.0
      %8734 = vmatpush1.msra.mxu0 0.0
      %8735 = vmatprep.subr.mxu0 0.0
      %8736 = vmatpush1.msra.mxu0 0.0
      %8737 = vmatprep.subr.mxu0 0.0
      %8738 = vmatpush1.msra.mxu0 0.0
      %8739 = vmatprep.subr.mxu0 0.0
      %8740 = vmatpush1.msra.mxu0 0.0
      %8741 = vmatprep.subr.mxu0 0.0
      %8742 = vmatpush1.msra.mxu0 0.0
      %8743 = vmatprep.subr.mxu0 0.0
      %8744 = vmatpush1.msra.mxu0 0.0
      %8745 = vmatprep.subr.mxu0 0.0
      %8746 = vmatpush1.msra.mxu0 0.0
      %8747 = vmatprep.subr.mxu0 0.0
      %8748 = vmatpush1.msra.mxu0 0.0
      %8749 = vmatprep.subr.mxu0 0.0
      %8750 = vmatpush1.msra.mxu0 0.0
      %8751 = vmatprep.subr.mxu0 0.0
      %8752 = vmatpush1.msra.mxu0 0.0
      %8753 = vmatprep.subr.mxu0 0.0
      %8754 = vmatpush1.msra.mxu0 0.0
      %8755 = vmatprep.subr.mxu0 0.0
      %8756 = vmatpush1.msra.mxu0 0.0
      %8757 = vmatprep.mubr.f32.mxu0 0.0
      %8758 = vmatmul.mubr.f32.gmra.mrb[0].mxu0 %v8479
      %v8759 = vpop.f32.mrb[0].mxu0
      %v8760 = vadd.f32 %v8690, %v8759
      %v8761 = vpop.f32.mrb[0].mxu0
      %8762 = vdwg.mxu0
      %v8763 = vsub.f32 0.0, %v8619
      %v8764 = vsub.f32 0.0, %v8621
      %v8765 = vsub.f32 0.0, %v8760
      %v8766 = vmul.f32 %v8763, 1.442695
      %v8767 = vpow.pop %v8766
      %v8768 = vmul.f32 %v8764, 1.442695
      %v8769 = vpow.pop %v8768
      %v8770 = vmul.f32 %v8765, 1.442695
      %v8771 = vpow.pop %v8770
      %v8772 = vadd.f32 %v8767, 1.0
      %v8773 = vadd.f32 %v8769, 1.0
      %v8774 = vadd.f32 %v8771, 1.0
      %v8775 = vrcp.pop %v8772
      %v8776 = vrcp.pop %v8773
      %v8777 = vrcp.pop %v8774
      %v8778 = vmax.f32 %v8475, %v8775
      %v8779 = vmax.f32 %v8476, %v8776
      %v8780 = vmax.f32 %v8477, %v8777
      %v8782 = vsel %vm3368, %v8780, 0
      %8784 = vmatprep.subr.mxu0 0.0
      %8785 = vmatpush1.msra.mxu0 %v2426
      %8786 = vmatprep.subr.mxu0 0.0
      %8787 = vmatpush1.msra.mxu0 %v2427
      %8788 = vmatprep.subr.mxu0 0.0
      %8789 = vmatpush1.msra.mxu0 %v2428
      %8790 = vmatprep.subr.mxu0 0.0
      %8791 = vmatpush1.msra.mxu0 %v2429
      %8792 = vmatprep.subr.mxu0 0.0
      %8793 = vmatpush1.msra.mxu0 %v2430
      %8794 = vmatprep.subr.mxu0 0.0
      %8795 = vmatpush1.msra.mxu0 %v2431
      %8796 = vmatprep.subr.mxu0 0.0
      %8797 = vmatpush1.msra.mxu0 %v2432
      %8798 = vmatprep.subr.mxu0 0.0
      %8799 = vmatpush1.msra.mxu0 %v2433
      %8800 = vmatprep.subr.mxu0 0.0
      %8801 = vmatpush1.msra.mxu0 %v2434
      %8802 = vmatprep.subr.mxu0 0.0
      %8803 = vmatpush1.msra.mxu0 %v2435
      %8804 = vmatprep.subr.mxu0 0.0
      %8805 = vmatpush1.msra.mxu0 %v2436
      %8806 = vmatprep.subr.mxu0 0.0
      %8807 = vmatpush1.msra.mxu0 %v2437
      %8808 = vmatprep.subr.mxu0 0.0
      %8809 = vmatpush1.msra.mxu0 %v2438
      %8810 = vmatprep.subr.mxu0 0.0
      %8811 = vmatpush1.msra.mxu0 %v2439
      %8812 = vmatprep.subr.mxu0 0.0
      %8813 = vmatpush1.msra.mxu0 %v2440
      %8814 = vmatprep.subr.mxu0 0.0
      %8815 = vmatpush1.msra.mxu0 %v2441
      %8816 = vmatprep.subr.mxu0 0.0
      %8817 = vmatpush1.msra.mxu0 %v2442
      %8818 = vmatprep.subr.mxu0 0.0
      %8819 = vmatpush1.msra.mxu0 %v2443
      %8820 = vmatprep.subr.mxu0 0.0
      %8821 = vmatpush1.msra.mxu0 %v2444
      %8822 = vmatprep.subr.mxu0 0.0
      %8823 = vmatpush1.msra.mxu0 %v2445
      %8824 = vmatprep.subr.mxu0 0.0
      %8825 = vmatpush1.msra.mxu0 %v2446
      %8826 = vmatprep.subr.mxu0 0.0
      %8827 = vmatpush1.msra.mxu0 %v2447
      %8828 = vmatprep.subr.mxu0 0.0
      %8829 = vmatpush1.msra.mxu0 %v2448
      %8830 = vmatprep.subr.mxu0 0.0
      %8831 = vmatpush1.msra.mxu0 %v2449
      %8832 = vmatprep.subr.mxu0 0.0
      %8833 = vmatpush1.msra.mxu0 %v2450
      %8834 = vmatprep.subr.mxu0 0.0
      %8835 = vmatpush1.msra.mxu0 %v2451
      %8836 = vmatprep.subr.mxu0 0.0
      %8837 = vmatpush1.msra.mxu0 %v2452
      %8838 = vmatprep.subr.mxu0 0.0
      %8839 = vmatpush1.msra.mxu0 %v2453
      %8840 = vmatprep.subr.mxu0 0.0
      %8841 = vmatpush1.msra.mxu0 %v2454
      %8842 = vmatprep.subr.mxu0 0.0
      %8843 = vmatpush1.msra.mxu0 %v2455
      %8844 = vmatprep.subr.mxu0 0.0
      %8845 = vmatpush1.msra.mxu0 %v2456
      %8846 = vmatprep.subr.mxu0 0.0
      %8847 = vmatpush1.msra.mxu0 %v2457
      %8848 = vmatprep.mubr.f32.mxu0 %v8779
      %8849 = vmatmul.mubr.f32.gmra.mrb[0].mxu0 %v8778
      %v8850 = vpop.f32.mrb[0].mxu0
      %v8851 = vadd.f32 0.0, %v8850
      %v8852 = vpop.f32.mrb[0].mxu0
      %8853 = vdwg.mxu0
      %8854 = vmatprep.subr.mxu0 0.0
      %8855 = vmatpush1.msra.mxu0 %v2458
      %8856 = vmatprep.subr.mxu0 0.0
      %8857 = vmatpush1.msra.mxu0 %v2459
      %8858 = vmatprep.subr.mxu0 0.0
      %8859 = vmatpush1.msra.mxu0 %v2460
      %8860 = vmatprep.subr.mxu0 0.0
      %8861 = vmatpush1.msra.mxu0 %v2461
      %8862 = vmatprep.subr.mxu0 0.0
      %8863 = vmatpush1.msra.mxu0 %v2462
      %8864 = vmatprep.subr.mxu0 0.0
      %8865 = vmatpush1.msra.mxu0 %v2463
      %8866 = vmatprep.subr.mxu0 0.0
      %8867 = vmatpush1.msra.mxu0 %v2464
      %8868 = vmatprep.subr.mxu0 0.0
      %8869 = vmatpush1.msra.mxu0 %v2465
      %8870 = vmatprep.subr.mxu0 0.0
      %8871 = vmatpush1.msra.mxu0 %v2466
      %8872 = vmatprep.subr.mxu0 0.0
      %8873 = vmatpush1.msra.mxu0 %v2467
      %8874 = vmatprep.subr.mxu0 0.0
      %8875 = vmatpush1.msra.mxu0 0.0
      %8876 = vmatprep.subr.mxu0 0.0
      %8877 = vmatpush1.msra.mxu0 0.0
      %8878 = vmatprep.subr.mxu0 0.0
      %8879 = vmatpush1.msra.mxu0 0.0
      %8880 = vmatprep.subr.mxu0 0.0
      %8881 = vmatpush1.msra.mxu0 0.0
      %8882 = vmatprep.subr.mxu0 0.0
      %8883 = vmatpush1.msra.mxu0 0.0
      %8884 = vmatprep.subr.mxu0 0.0
      %8885 = vmatpush1.msra.mxu0 0.0
      %8886 = vmatprep.subr.mxu0 0.0
      %8887 = vmatpush1.msra.mxu0 0.0
      %8888 = vmatprep.subr.mxu0 0.0
      %8889 = vmatpush1.msra.mxu0 0.0
      %8890 = vmatprep.subr.mxu0 0.0
      %8891 = vmatpush1.msra.mxu0 0.0
      %8892 = vmatprep.subr.mxu0 0.0
      %8893 = vmatpush1.msra.mxu0 0.0
      %8894 = vmatprep.subr.mxu0 0.0
      %8895 = vmatpush1.msra.mxu0 0.0
      %8896 = vmatprep.subr.mxu0 0.0
      %8897 = vmatpush1.msra.mxu0 0.0
      %8898 = vmatprep.subr.mxu0 0.0
      %8899 = vmatpush1.msra.mxu0 0.0
      %8900 = vmatprep.subr.mxu0 0.0
      %8901 = vmatpush1.msra.mxu0 0.0
      %8902 = vmatprep.subr.mxu0 0.0
      %8903 = vmatpush1.msra.mxu0 0.0
      %8904 = vmatprep.subr.mxu0 0.0
      %8905 = vmatpush1.msra.mxu0 0.0
      %8906 = vmatprep.subr.mxu0 0.0
      %8907 = vmatpush1.msra.mxu0 0.0
      %8908 = vmatprep.subr.mxu0 0.0
      %8909 = vmatpush1.msra.mxu0 0.0
      %8910 = vmatprep.subr.mxu0 0.0
      %8911 = vmatpush1.msra.mxu0 0.0
      %8912 = vmatprep.subr.mxu0 0.0
      %8913 = vmatpush1.msra.mxu0 0.0
      %8914 = vmatprep.subr.mxu0 0.0
      %8915 = vmatpush1.msra.mxu0 0.0
      %8916 = vmatprep.subr.mxu0 0.0
      %8917 = vmatpush1.msra.mxu0 0.0
      %8918 = vmatprep.mubr.f32.mxu0 0.0
      %8919 = vmatmul.mubr.f32.gmra.mrb[0].mxu0 %v8782
      %v8920 = vpop.f32.mrb[0].mxu0
      %v8921 = vadd.f32 %v8851, %v8920
      %v8922 = vpop.f32.mrb[0].mxu0
      %8923 = vdwg.mxu0
      %v8924 = vadd.f32 %v2720, %v8921
      %v8927 = vrot.slane %v8778, 1
      %v8928 = vrot.slane %v8779, 1
      %v8929 = vrot.slane %v8780, 1
      %v8932 = vsel %vm3368, %v8929, 0
      %8934 = vmatprep.subr.mxu0 0.0
      %8935 = vmatpush1.msra.mxu0 %v2468
      %8936 = vmatprep.subr.mxu0 0.0
      %8937 = vmatpush1.msra.mxu0 %v2469
      %8938 = vmatprep.subr.mxu0 0.0
      %8939 = vmatpush1.msra.mxu0 %v2470
      %8940 = vmatprep.subr.mxu0 0.0
      %8941 = vmatpush1.msra.mxu0 %v2471
      %8942 = vmatprep.subr.mxu0 0.0
      %8943 = vmatpush1.msra.mxu0 %v2472
      %8944 = vmatprep.subr.mxu0 0.0
      %8945 = vmatpush1.msra.mxu0 %v2473
      %8946 = vmatprep.subr.mxu0 0.0
      %8947 = vmatpush1.msra.mxu0 %v2474
      %8948 = vmatprep.subr.mxu0 0.0
      %8949 = vmatpush1.msra.mxu0 %v2475
      %8950 = vmatprep.subr.mxu0 0.0
      %8951 = vmatpush1.msra.mxu0 %v2476
      %8952 = vmatprep.subr.mxu0 0.0
      %8953 = vmatpush1.msra.mxu0 %v2477
      %8954 = vmatprep.subr.mxu0 0.0
      %8955 = vmatpush1.msra.mxu0 %v2478
      %8956 = vmatprep.subr.mxu0 0.0
      %8957 = vmatpush1.msra.mxu0 %v2479
      %8958 = vmatprep.subr.mxu0 0.0
      %8959 = vmatpush1.msra.mxu0 %v2480
      %8960 = vmatprep.subr.mxu0 0.0
      %8961 = vmatpush1.msra.mxu0 %v2481
      %8962 = vmatprep.subr.mxu0 0.0
      %8963 = vmatpush1.msra.mxu0 %v2482
      %8964 = vmatprep.subr.mxu0 0.0
      %8965 = vmatpush1.msra.mxu0 %v2483
      %8966 = vmatprep.subr.mxu0 0.0
      %8967 = vmatpush1.msra.mxu0 %v2484
      %8968 = vmatprep.subr.mxu0 0.0
      %8969 = vmatpush1.msra.mxu0 %v2485
      %8970 = vmatprep.subr.mxu0 0.0
      %8971 = vmatpush1.msra.mxu0 %v2486
      %8972 = vmatprep.subr.mxu0 0.0
      %8973 = vmatpush1.msra.mxu0 %v2487
      %8974 = vmatprep.subr.mxu0 0.0
      %8975 = vmatpush1.msra.mxu0 %v2488
      %8976 = vmatprep.subr.mxu0 0.0
      %8977 = vmatpush1.msra.mxu0 %v2489
      %8978 = vmatprep.subr.mxu0 0.0
      %8979 = vmatpush1.msra.mxu0 %v2490
      %8980 = vmatprep.subr.mxu0 0.0
      %8981 = vmatpush1.msra.mxu0 %v2491
      %8982 = vmatprep.subr.mxu0 0.0
      %8983 = vmatpush1.msra.mxu0 %v2492
      %8984 = vmatprep.subr.mxu0 0.0
      %8985 = vmatpush1.msra.mxu0 %v2493
      %8986 = vmatprep.subr.mxu0 0.0
      %8987 = vmatpush1.msra.mxu0 %v2494
      %8988 = vmatprep.subr.mxu0 0.0
      %8989 = vmatpush1.msra.mxu0 %v2495
      %8990 = vmatprep.subr.mxu0 0.0
      %8991 = vmatpush1.msra.mxu0 %v2496
      %8992 = vmatprep.subr.mxu0 0.0
      %8993 = vmatpush1.msra.mxu0 %v2497
      %8994 = vmatprep.subr.mxu0 0.0
      %8995 = vmatpush1.msra.mxu0 %v2498
      %8996 = vmatprep.subr.mxu0 0.0
      %8997 = vmatpush1.msra.mxu0 %v2499
      %8998 = vmatprep.mubr.f32.mxu0 %v8928
      %8999 = vmatmul.mubr.f32.gmra.mrb[0].mxu0 %v8927
      %v9000 = vpop.f32.mrb[0].mxu0
      %v9001 = vadd.f32 0.0, %v9000
      %v9002 = vpop.f32.mrb[0].mxu0
      %9003 = vdwg.mxu0
      %9004 = vmatprep.subr.mxu0 0.0
      %9005 = vmatpush1.msra.mxu0 %v2500
      %9006 = vmatprep.subr.mxu0 0.0
      %9007 = vmatpush1.msra.mxu0 %v2501
      %9008 = vmatprep.subr.mxu0 0.0
      %9009 = vmatpush1.msra.mxu0 %v2502
      %9010 = vmatprep.subr.mxu0 0.0
      %9011 = vmatpush1.msra.mxu0 %v2503
      %9012 = vmatprep.subr.mxu0 0.0
      %9013 = vmatpush1.msra.mxu0 %v2504
      %9014 = vmatprep.subr.mxu0 0.0
      %9015 = vmatpush1.msra.mxu0 %v2505
      %9016 = vmatprep.subr.mxu0 0.0
      %9017 = vmatpush1.msra.mxu0 %v2506
      %9018 = vmatprep.subr.mxu0 0.0
      %9019 = vmatpush1.msra.mxu0 %v2507
      %9020 = vmatprep.subr.mxu0 0.0
      %9021 = vmatpush1.msra.mxu0 %v2508
      %9022 = vmatprep.subr.mxu0 0.0
      %9023 = vmatpush1.msra.mxu0 %v2509
      %9024 = vmatprep.subr.mxu0 0.0
      %9025 = vmatpush1.msra.mxu0 0.0
      %9026 = vmatprep.subr.mxu0 0.0
      %9027 = vmatpush1.msra.mxu0 0.0
      %9028 = vmatprep.subr.mxu0 0.0
      %9029 = vmatpush1.msra.mxu0 0.0
      %9030 = vmatprep.subr.mxu0 0.0
      %9031 = vmatpush1.msra.mxu0 0.0
      %9032 = vmatprep.subr.mxu0 0.0
      %9033 = vmatpush1.msra.mxu0 0.0
      %9034 = vmatprep.subr.mxu0 0.0
      %9035 = vmatpush1.msra.mxu0 0.0
      %9036 = vmatprep.subr.mxu0 0.0
      %9037 = vmatpush1.msra.mxu0 0.0
      %9038 = vmatprep.subr.mxu0 0.0
      %9039 = vmatpush1.msra.mxu0 0.0
      %9040 = vmatprep.subr.mxu0 0.0
      %9041 = vmatpush1.msra.mxu0 0.0
      %9042 = vmatprep.subr.mxu0 0.0
      %9043 = vmatpush1.msra.mxu0 0.0
      %9044 = vmatprep.subr.mxu0 0.0
      %9045 = vmatpush1.msra.mxu0 0.0
      %9046 = vmatprep.subr.mxu0 0.0
      %9047 = vmatpush1.msra.mxu0 0.0
      %9048 = vmatprep.subr.mxu0 0.0
      %9049 = vmatpush1.msra.mxu0 0.0
      %9050 = vmatprep.subr.mxu0 0.0
      %9051 = vmatpush1.msra.mxu0 0.0
      %9052 = vmatprep.subr.mxu0 0.0
      %9053 = vmatpush1.msra.mxu0 0.0
      %9054 = vmatprep.subr.mxu0 0.0
      %9055 = vmatpush1.msra.mxu0 0.0
      %9056 = vmatprep.subr.mxu0 0.0
      %9057 = vmatpush1.msra.mxu0 0.0
      %9058 = vmatprep.subr.mxu0 0.0
      %9059 = vmatpush1.msra.mxu0 0.0
      %9060 = vmatprep.subr.mxu0 0.0
      %9061 = vmatpush1.msra.mxu0 0.0
      %9062 = vmatprep.subr.mxu0 0.0
      %9063 = vmatpush1.msra.mxu0 0.0
      %9064 = vmatprep.subr.mxu0 0.0
      %9065 = vmatpush1.msra.mxu0 0.0
      %9066 = vmatprep.subr.mxu0 0.0
      %9067 = vmatpush1.msra.mxu0 0.0
      %9068 = vmatprep.mubr.f32.mxu0 0.0
      %9069 = vmatmul.mubr.f32.gmra.mrb[0].mxu0 %v8932
      %v9070 = vpop.f32.mrb[0].mxu0
      %v9071 = vadd.f32 %v9001, %v9070
      %v9072 = vpop.f32.mrb[0].mxu0
      %9073 = vdwg.mxu0
      %v9074 = vadd.f32 %v8924, %v9071
      %v9075 = vrot.slane %v8778, 2
      %v9076 = vrot.slane %v8779, 2
      %v9077 = vrot.slane %v8780, 2
      %v9080 = vsel %vm3368, %v9077, 0
      %9082 = vmatprep.subr.mxu0 0.0
      %9083 = vmatpush1.msra.mxu0 %v2510
      %9084 = vmatprep.subr.mxu0 0.0
      %9085 = vmatpush1.msra.mxu0 %v2511
      %9086 = vmatprep.subr.mxu0 0.0
      %9087 = vmatpush1.msra.mxu0 %v2512
      %9088 = vmatprep.subr.mxu0 0.0
      %9089 = vmatpush1.msra.mxu0 %v2513
      %9090 = vmatprep.subr.mxu0 0.0
      %9091 = vmatpush1.msra.mxu0 %v2514
      %9092 = vmatprep.subr.mxu0 0.0
      %9093 = vmatpush1.msra.mxu0 %v2515
      %9094 = vmatprep.subr.mxu0 0.0
      %9095 = vmatpush1.msra.mxu0 %v2516
      %9096 = vmatprep.subr.mxu0 0.0
      %9097 = vmatpush1.msra.mxu0 %v2517
      %9098 = vmatprep.subr.mxu0 0.0
      %9099 = vmatpush1.msra.mxu0 %v2518
      %9100 = vmatprep.subr.mxu0 0.0
      %9101 = vmatpush1.msra.mxu0 %v2519
      %9102 = vmatprep.subr.mxu0 0.0
      %9103 = vmatpush1.msra.mxu0 %v2520
      %9104 = vmatprep.subr.mxu0 0.0
      %9105 = vmatpush1.msra.mxu0 %v2521
      %9106 = vmatprep.subr.mxu0 0.0
      %9107 = vmatpush1.msra.mxu0 %v2522
      %9108 = vmatprep.subr.mxu0 0.0
      %9109 = vmatpush1.msra.mxu0 %v2523
      %9110 = vmatprep.subr.mxu0 0.0
      %9111 = vmatpush1.msra.mxu0 %v2524
      %9112 = vmatprep.subr.mxu0 0.0
      %9113 = vmatpush1.msra.mxu0 %v2525
      %9114 = vmatprep.subr.mxu0 0.0
      %9115 = vmatpush1.msra.mxu0 %v2526
      %9116 = vmatprep.subr.mxu0 0.0
      %9117 = vmatpush1.msra.mxu0 %v2527
      %9118 = vmatprep.subr.mxu0 0.0
      %9119 = vmatpush1.msra.mxu0 %v2528
      %9120 = vmatprep.subr.mxu0 0.0
      %9121 = vmatpush1.msra.mxu0 %v2529
      %9122 = vmatprep.subr.mxu0 0.0
      %9123 = vmatpush1.msra.mxu0 %v2530
      %9124 = vmatprep.subr.mxu0 0.0
      %9125 = vmatpush1.msra.mxu0 %v2531
      %9126 = vmatprep.subr.mxu0 0.0
      %9127 = vmatpush1.msra.mxu0 %v2532
      %9128 = vmatprep.subr.mxu0 0.0
      %9129 = vmatpush1.msra.mxu0 %v2533
      %9130 = vmatprep.subr.mxu0 0.0
      %9131 = vmatpush1.msra.mxu0 %v2534
      %9132 = vmatprep.subr.mxu0 0.0
      %9133 = vmatpush1.msra.mxu0 %v2535
      %9134 = vmatprep.subr.mxu0 0.0
      %9135 = vmatpush1.msra.mxu0 %v2536
      %9136 = vmatprep.subr.mxu0 0.0
      %9137 = vmatpush1.msra.mxu0 %v2537
      %9138 = vmatprep.subr.mxu0 0.0
      %9139 = vmatpush1.msra.mxu0 %v2538
      %9140 = vmatprep.subr.mxu0 0.0
      %9141 = vmatpush1.msra.mxu0 %v2539
      %9142 = vmatprep.subr.mxu0 0.0
      %9143 = vmatpush1.msra.mxu0 %v2540
      %9144 = vmatprep.subr.mxu0 0.0
      %9145 = vmatpush1.msra.mxu0 %v2541
      %9146 = vmatprep.mubr.f32.mxu0 %v9076
      %9147 = vmatmul.mubr.f32.gmra.mrb[0].mxu0 %v9075
      %v9148 = vpop.f32.mrb[0].mxu0
      %v9149 = vadd.f32 0.0, %v9148
      %v9150 = vpop.f32.mrb[0].mxu0
      %9151 = vdwg.mxu0
      %9152 = vmatprep.subr.mxu0 0.0
      %9153 = vmatpush1.msra.mxu0 %v2542
      %9154 = vmatprep.subr.mxu0 0.0
      %9155 = vmatpush1.msra.mxu0 %v2543
      %9156 = vmatprep.subr.mxu0 0.0
      %9157 = vmatpush1.msra.mxu0 %v2544
      %9158 = vmatprep.subr.mxu0 0.0
      %9159 = vmatpush1.msra.mxu0 %v2545
      %9160 = vmatprep.subr.mxu0 0.0
      %9161 = vmatpush1.msra.mxu0 %v2546
      %9162 = vmatprep.subr.mxu0 0.0
      %9163 = vmatpush1.msra.mxu0 %v2547
      %9164 = vmatprep.subr.mxu0 0.0
      %9165 = vmatpush1.msra.mxu0 %v2548
      %9166 = vmatprep.subr.mxu0 0.0
      %9167 = vmatpush1.msra.mxu0 %v2549
      %9168 = vmatprep.subr.mxu0 0.0
      %9169 = vmatpush1.msra.mxu0 %v2550
      %9170 = vmatprep.subr.mxu0 0.0
      %9171 = vmatpush1.msra.mxu0 %v2551
      %9172 = vmatprep.subr.mxu0 0.0
      %9173 = vmatpush1.msra.mxu0 0.0
      %9174 = vmatprep.subr.mxu0 0.0
      %9175 = vmatpush1.msra.mxu0 0.0
      %9176 = vmatprep.subr.mxu0 0.0
      %9177 = vmatpush1.msra.mxu0 0.0
      %9178 = vmatprep.subr.mxu0 0.0
      %9179 = vmatpush1.msra.mxu0 0.0
      %9180 = vmatprep.subr.mxu0 0.0
      %9181 = vmatpush1.msra.mxu0 0.0
      %9182 = vmatprep.subr.mxu0 0.0
      %9183 = vmatpush1.msra.mxu0 0.0
      %9184 = vmatprep.subr.mxu0 0.0
      %9185 = vmatpush1.msra.mxu0 0.0
      %9186 = vmatprep.subr.mxu0 0.0
      %9187 = vmatpush1.msra.mxu0 0.0
      %9188 = vmatprep.subr.mxu0 0.0
      %9189 = vmatpush1.msra.mxu0 0.0
      %9190 = vmatprep.subr.mxu0 0.0
      %9191 = vmatpush1.msra.mxu0 0.0
      %9192 = vmatprep.subr.mxu0 0.0
      %9193 = vmatpush1.msra.mxu0 0.0
      %9194 = vmatprep.subr.mxu0 0.0
      %9195 = vmatpush1.msra.mxu0 0.0
      %9196 = vmatprep.subr.mxu0 0.0
      %9197 = vmatpush1.msra.mxu0 0.0
      %9198 = vmatprep.subr.mxu0 0.0
      %9199 = vmatpush1.msra.mxu0 0.0
      %9200 = vmatprep.subr.mxu0 0.0
      %9201 = vmatpush1.msra.mxu0 0.0
      %9202 = vmatprep.subr.mxu0 0.0
      %9203 = vmatpush1.msra.mxu0 0.0
      %9204 = vmatprep.subr.mxu0 0.0
      %9205 = vmatpush1.msra.mxu0 0.0
      %9206 = vmatprep.subr.mxu0 0.0
      %9207 = vmatpush1.msra.mxu0 0.0
      %9208 = vmatprep.subr.mxu0 0.0
      %9209 = vmatpush1.msra.mxu0 0.0
      %9210 = vmatprep.subr.mxu0 0.0
      %9211 = vmatpush1.msra.mxu0 0.0
      %9212 = vmatprep.subr.mxu0 0.0
      %9213 = vmatpush1.msra.mxu0 0.0
      %9214 = vmatprep.subr.mxu0 0.0
      %9215 = vmatpush1.msra.mxu0 0.0
      %9216 = vmatprep.mubr.f32.mxu0 0.0
      %9217 = vmatmul.mubr.f32.gmra.mrb[0].mxu0 %v9080
      %v9218 = vpop.f32.mrb[0].mxu0
      %v9219 = vadd.f32 %v9149, %v9218
      %v9220 = vpop.f32.mrb[0].mxu0
      %9221 = vdwg.mxu0
      %v9222 = vadd.f32 %v9074, %v9219
      %v9223 = vrot.slane %v8778, 3
      %v9224 = vrot.slane %v8779, 3
      %v9225 = vrot.slane %v8780, 3
      %v9228 = vsel %vm3368, %v9225, 0
      %9230 = vmatprep.subr.mxu0 0.0
      %9231 = vmatpush1.msra.mxu0 %v2552
      %9232 = vmatprep.subr.mxu0 0.0
      %9233 = vmatpush1.msra.mxu0 %v2553
      %9234 = vmatprep.subr.mxu0 0.0
      %9235 = vmatpush1.msra.mxu0 %v2554
      %9236 = vmatprep.subr.mxu0 0.0
      %9237 = vmatpush1.msra.mxu0 %v2555
      %9238 = vmatprep.subr.mxu0 0.0
      %9239 = vmatpush1.msra.mxu0 %v2556
      %9240 = vmatprep.subr.mxu0 0.0
      %9241 = vmatpush1.msra.mxu0 %v2557
      %9242 = vmatprep.subr.mxu0 0.0
      %9243 = vmatpush1.msra.mxu0 %v2558
      %9244 = vmatprep.subr.mxu0 0.0
      %9245 = vmatpush1.msra.mxu0 %v2559
      %9246 = vmatprep.subr.mxu0 0.0
      %9247 = vmatpush1.msra.mxu0 %v2560
      %9248 = vmatprep.subr.mxu0 0.0
      %9249 = vmatpush1.msra.mxu0 %v2561
      %9250 = vmatprep.subr.mxu0 0.0
      %9251 = vmatpush1.msra.mxu0 %v2562
      %9252 = vmatprep.subr.mxu0 0.0
      %9253 = vmatpush1.msra.mxu0 %v2563
      %9254 = vmatprep.subr.mxu0 0.0
      %9255 = vmatpush1.msra.mxu0 %v2564
      %9256 = vmatprep.subr.mxu0 0.0
      %9257 = vmatpush1.msra.mxu0 %v2565
      %9258 = vmatprep.subr.mxu0 0.0
      %9259 = vmatpush1.msra.mxu0 %v2566
      %9260 = vmatprep.subr.mxu0 0.0
      %9261 = vmatpush1.msra.mxu0 %v2567
      %9262 = vmatprep.subr.mxu0 0.0
      %9263 = vmatpush1.msra.mxu0 %v2568
      %9264 = vmatprep.subr.mxu0 0.0
      %9265 = vmatpush1.msra.mxu0 %v2569
      %9266 = vmatprep.subr.mxu0 0.0
      %9267 = vmatpush1.msra.mxu0 %v2570
      %9268 = vmatprep.subr.mxu0 0.0
      %9269 = vmatpush1.msra.mxu0 %v2571
      %9270 = vmatprep.subr.mxu0 0.0
      %9271 = vmatpush1.msra.mxu0 %v2572
      %9272 = vmatprep.subr.mxu0 0.0
      %9273 = vmatpush1.msra.mxu0 %v2573
      %9274 = vmatprep.subr.mxu0 0.0
      %9275 = vmatpush1.msra.mxu0 %v2574
      %9276 = vmatprep.subr.mxu0 0.0
      %9277 = vmatpush1.msra.mxu0 %v2575
      %9278 = vmatprep.subr.mxu0 0.0
      %9279 = vmatpush1.msra.mxu0 %v2576
      %9280 = vmatprep.subr.mxu0 0.0
      %9281 = vmatpush1.msra.mxu0 %v2577
      %9282 = vmatprep.subr.mxu0 0.0
      %9283 = vmatpush1.msra.mxu0 %v2578
      %9284 = vmatprep.subr.mxu0 0.0
      %9285 = vmatpush1.msra.mxu0 %v2579
      %9286 = vmatprep.subr.mxu0 0.0
      %9287 = vmatpush1.msra.mxu0 %v2580
      %9288 = vmatprep.subr.mxu0 0.0
      %9289 = vmatpush1.msra.mxu0 %v2581
      %9290 = vmatprep.subr.mxu0 0.0
      %9291 = vmatpush1.msra.mxu0 %v2582
      %9292 = vmatprep.subr.mxu0 0.0
      %9293 = vmatpush1.msra.mxu0 %v2583
      %9294 = vmatprep.mubr.f32.mxu0 %v9224
      %9295 = vmatmul.mubr.f32.gmra.mrb[0].mxu0 %v9223
      %v9296 = vpop.f32.mrb[0].mxu0
      %v9297 = vadd.f32 0.0, %v9296
      %v9298 = vpop.f32.mrb[0].mxu0
      %9299 = vdwg.mxu0
      %9300 = vmatprep.subr.mxu0 0.0
      %9301 = vmatpush1.msra.mxu0 %v2584
      %9302 = vmatprep.subr.mxu0 0.0
      %9303 = vmatpush1.msra.mxu0 %v2585
      %9304 = vmatprep.subr.mxu0 0.0
      %9305 = vmatpush1.msra.mxu0 %v2586
      %9306 = vmatprep.subr.mxu0 0.0
      %9307 = vmatpush1.msra.mxu0 %v2587
      %9308 = vmatprep.subr.mxu0 0.0
      %9309 = vmatpush1.msra.mxu0 %v2588
      %9310 = vmatprep.subr.mxu0 0.0
      %9311 = vmatpush1.msra.mxu0 %v2589
      %9312 = vmatprep.subr.mxu0 0.0
      %9313 = vmatpush1.msra.mxu0 %v2590
      %9314 = vmatprep.subr.mxu0 0.0
      %9315 = vmatpush1.msra.mxu0 %v2591
      %9316 = vmatprep.subr.mxu0 0.0
      %9317 = vmatpush1.msra.mxu0 %v2592
      %9318 = vmatprep.subr.mxu0 0.0
      %9319 = vmatpush1.msra.mxu0 %v2593
      %9320 = vmatprep.subr.mxu0 0.0
      %9321 = vmatpush1.msra.mxu0 0.0
      %9322 = vmatprep.subr.mxu0 0.0
      %9323 = vmatpush1.msra.mxu0 0.0
      %9324 = vmatprep.subr.mxu0 0.0
      %9325 = vmatpush1.msra.mxu0 0.0
      %9326 = vmatprep.subr.mxu0 0.0
      %9327 = vmatpush1.msra.mxu0 0.0
      %9328 = vmatprep.subr.mxu0 0.0
      %9329 = vmatpush1.msra.mxu0 0.0
      %9330 = vmatprep.subr.mxu0 0.0
      %9331 = vmatpush1.msra.mxu0 0.0
      %9332 = vmatprep.subr.mxu0 0.0
      %9333 = vmatpush1.msra.mxu0 0.0
      %9334 = vmatprep.subr.mxu0 0.0
      %9335 = vmatpush1.msra.mxu0 0.0
      %9336 = vmatprep.subr.mxu0 0.0
      %9337 = vmatpush1.msra.mxu0 0.0
      %9338 = vmatprep.subr.mxu0 0.0
      %9339 = vmatpush1.msra.mxu0 0.0
      %9340 = vmatprep.subr.mxu0 0.0
      %9341 = vmatpush1.msra.mxu0 0.0
      %9342 = vmatprep.subr.mxu0 0.0
      %9343 = vmatpush1.msra.mxu0 0.0
      %9344 = vmatprep.subr.mxu0 0.0
      %9345 = vmatpush1.msra.mxu0 0.0
      %9346 = vmatprep.subr.mxu0 0.0
      %9347 = vmatpush1.msra.mxu0 0.0
      %9348 = vmatprep.subr.mxu0 0.0
      %9349 = vmatpush1.msra.mxu0 0.0
      %9350 = vmatprep.subr.mxu0 0.0
      %9351 = vmatpush1.msra.mxu0 0.0
      %9352 = vmatprep.subr.mxu0 0.0
      %9353 = vmatpush1.msra.mxu0 0.0
      %9354 = vmatprep.subr.mxu0 0.0
      %9355 = vmatpush1.msra.mxu0 0.0
      %9356 = vmatprep.subr.mxu0 0.0
      %9357 = vmatpush1.msra.mxu0 0.0
      %9358 = vmatprep.subr.mxu0 0.0
      %9359 = vmatpush1.msra.mxu0 0.0
      %9360 = vmatprep.subr.mxu0 0.0
      %9361 = vmatpush1.msra.mxu0 0.0
      %9362 = vmatprep.subr.mxu0 0.0
      %9363 = vmatpush1.msra.mxu0 0.0
      %9364 = vmatprep.mubr.f32.mxu0 0.0
      %9365 = vmatmul.mubr.f32.gmra.mrb[0].mxu0 %v9228
      %v9366 = vpop.f32.mrb[0].mxu0
      %v9367 = vadd.f32 %v9297, %v9366
      %v9368 = vpop.f32.mrb[0].mxu0
      %9369 = vdwg.mxu0
      %v9370 = vadd.f32 %v9222, %v9367
      %v9371 = vrot.slane %v8778, 4
      %v9372 = vrot.slane %v8779, 4
      %v9373 = vrot.slane %v8780, 4
      %v9376 = vsel %vm3368, %v9373, 0
      %9378 = vmatprep.subr.mxu0 0.0
      %9379 = vmatpush1.msra.mxu0 %v2594
      %9380 = vmatprep.subr.mxu0 0.0
      %9381 = vmatpush1.msra.mxu0 %v2595
      %9382 = vmatprep.subr.mxu0 0.0
      %9383 = vmatpush1.msra.mxu0 %v2596
      %9384 = vmatprep.subr.mxu0 0.0
      %9385 = vmatpush1.msra.mxu0 %v2597
      %9386 = vmatprep.subr.mxu0 0.0
      %9387 = vmatpush1.msra.mxu0 %v2598
      %9388 = vmatprep.subr.mxu0 0.0
      %9389 = vmatpush1.msra.mxu0 %v2599
      %9390 = vmatprep.subr.mxu0 0.0
      %9391 = vmatpush1.msra.mxu0 %v2600
      %9392 = vmatprep.subr.mxu0 0.0
      %9393 = vmatpush1.msra.mxu0 %v2601
      %9394 = vmatprep.subr.mxu0 0.0
      %9395 = vmatpush1.msra.mxu0 %v2602
      %9396 = vmatprep.subr.mxu0 0.0
      %9397 = vmatpush1.msra.mxu0 %v2603
      %9398 = vmatprep.subr.mxu0 0.0
      %9399 = vmatpush1.msra.mxu0 %v2604
      %9400 = vmatprep.subr.mxu0 0.0
      %9401 = vmatpush1.msra.mxu0 %v2605
      %9402 = vmatprep.subr.mxu0 0.0
      %9403 = vmatpush1.msra.mxu0 %v2606
      %9404 = vmatprep.subr.mxu0 0.0
      %9405 = vmatpush1.msra.mxu0 %v2607
      %9406 = vmatprep.subr.mxu0 0.0
      %9407 = vmatpush1.msra.mxu0 %v2608
      %9408 = vmatprep.subr.mxu0 0.0
      %9409 = vmatpush1.msra.mxu0 %v2609
      %9410 = vmatprep.subr.mxu0 0.0
      %9411 = vmatpush1.msra.mxu0 %v2610
      %9412 = vmatprep.subr.mxu0 0.0
      %9413 = vmatpush1.msra.mxu0 %v2611
      %9414 = vmatprep.subr.mxu0 0.0
      %9415 = vmatpush1.msra.mxu0 %v2612
      %9416 = vmatprep.subr.mxu0 0.0
      %9417 = vmatpush1.msra.mxu0 %v2613
      %9418 = vmatprep.subr.mxu0 0.0
      %9419 = vmatpush1.msra.mxu0 %v2614
      %9420 = vmatprep.subr.mxu0 0.0
      %9421 = vmatpush1.msra.mxu0 %v2615
      %9422 = vmatprep.subr.mxu0 0.0
      %9423 = vmatpush1.msra.mxu0 %v2616
      %9424 = vmatprep.subr.mxu0 0.0
      %9425 = vmatpush1.msra.mxu0 %v2617
      %9426 = vmatprep.subr.mxu0 0.0
      %9427 = vmatpush1.msra.mxu0 %v2618
      %9428 = vmatprep.subr.mxu0 0.0
      %9429 = vmatpush1.msra.mxu0 %v2619
      %9430 = vmatprep.subr.mxu0 0.0
      %9431 = vmatpush1.msra.mxu0 %v2620
      %9432 = vmatprep.subr.mxu0 0.0
      %9433 = vmatpush1.msra.mxu0 %v2621
      %9434 = vmatprep.subr.mxu0 0.0
      %9435 = vmatpush1.msra.mxu0 %v2622
      %9436 = vmatprep.subr.mxu0 0.0
      %9437 = vmatpush1.msra.mxu0 %v2623
      %9438 = vmatprep.subr.mxu0 0.0
      %9439 = vmatpush1.msra.mxu0 %v2624
      %9440 = vmatprep.subr.mxu0 0.0
      %9441 = vmatpush1.msra.mxu0 %v2625
      %9442 = vmatprep.mubr.f32.mxu0 %v9372
      %9443 = vmatmul.mubr.f32.gmra.mrb[0].mxu0 %v9371
      %v9444 = vpop.f32.mrb[0].mxu0
      %v9445 = vadd.f32 0.0, %v9444
      %v9446 = vpop.f32.mrb[0].mxu0
      %9447 = vdwg.mxu0
      %9448 = vmatprep.subr.mxu0 0.0
      %9449 = vmatpush1.msra.mxu0 %v2626
      %9450 = vmatprep.subr.mxu0 0.0
      %9451 = vmatpush1.msra.mxu0 %v2627
      %9452 = vmatprep.subr.mxu0 0.0
      %9453 = vmatpush1.msra.mxu0 %v2628
      %9454 = vmatprep.subr.mxu0 0.0
      %9455 = vmatpush1.msra.mxu0 %v2629
      %9456 = vmatprep.subr.mxu0 0.0
      %9457 = vmatpush1.msra.mxu0 %v2630
      %9458 = vmatprep.subr.mxu0 0.0
      %9459 = vmatpush1.msra.mxu0 %v2631
      %9460 = vmatprep.subr.mxu0 0.0
      %9461 = vmatpush1.msra.mxu0 %v2632
      %9462 = vmatprep.subr.mxu0 0.0
      %9463 = vmatpush1.msra.mxu0 %v2633
      %9464 = vmatprep.subr.mxu0 0.0
      %9465 = vmatpush1.msra.mxu0 %v2634
      %9466 = vmatprep.subr.mxu0 0.0
      %9467 = vmatpush1.msra.mxu0 %v2635
      %9468 = vmatprep.subr.mxu0 0.0
      %9469 = vmatpush1.msra.mxu0 0.0
      %9470 = vmatprep.subr.mxu0 0.0
      %9471 = vmatpush1.msra.mxu0 0.0
      %9472 = vmatprep.subr.mxu0 0.0
      %9473 = vmatpush1.msra.mxu0 0.0
      %9474 = vmatprep.subr.mxu0 0.0
      %9475 = vmatpush1.msra.mxu0 0.0
      %9476 = vmatprep.subr.mxu0 0.0
      %9477 = vmatpush1.msra.mxu0 0.0
      %9478 = vmatprep.subr.mxu0 0.0
      %9479 = vmatpush1.msra.mxu0 0.0
      %9480 = vmatprep.subr.mxu0 0.0
      %9481 = vmatpush1.msra.mxu0 0.0
      %9482 = vmatprep.subr.mxu0 0.0
      %9483 = vmatpush1.msra.mxu0 0.0
      %9484 = vmatprep.subr.mxu0 0.0
      %9485 = vmatpush1.msra.mxu0 0.0
      %9486 = vmatprep.subr.mxu0 0.0
      %9487 = vmatpush1.msra.mxu0 0.0
      %9488 = vmatprep.subr.mxu0 0.0
      %9489 = vmatpush1.msra.mxu0 0.0
      %9490 = vmatprep.subr.mxu0 0.0
      %9491 = vmatpush1.msra.mxu0 0.0
      %9492 = vmatprep.subr.mxu0 0.0
      %9493 = vmatpush1.msra.mxu0 0.0
      %9494 = vmatprep.subr.mxu0 0.0
      %9495 = vmatpush1.msra.mxu0 0.0
      %9496 = vmatprep.subr.mxu0 0.0
      %9497 = vmatpush1.msra.mxu0 0.0
      %9498 = vmatprep.subr.mxu0 0.0
      %9499 = vmatpush1.msra.mxu0 0.0
      %9500 = vmatprep.subr.mxu0 0.0
      %9501 = vmatpush1.msra.mxu0 0.0
      %9502 = vmatprep.subr.mxu0 0.0
      %9503 = vmatpush1.msra.mxu0 0.0
      %9504 = vmatprep.subr.mxu0 0.0
      %9505 = vmatpush1.msra.mxu0 0.0
      %9506 = vmatprep.subr.mxu0 0.0
      %9507 = vmatpush1.msra.mxu0 0.0
      %9508 = vmatprep.subr.mxu0 0.0
      %9509 = vmatpush1.msra.mxu0 0.0
      %9510 = vmatprep.subr.mxu0 0.0
      %9511 = vmatpush1.msra.mxu0 0.0
      %9512 = vmatprep.mubr.f32.mxu0 0.0
      %9513 = vmatmul.mubr.f32.gmra.mrb[0].mxu0 %v9376
      %v9514 = vpop.f32.mrb[0].mxu0
      %v9515 = vadd.f32 %v9445, %v9514
      %v9516 = vpop.f32.mrb[0].mxu0
      %9517 = vdwg.mxu0
      %v9518 = vadd.f32 %v9370, %v9515
      %v9519 = vrot.slane %v8778, 5
      %v9520 = vrot.slane %v8779, 5
      %v9521 = vrot.slane %v8780, 5
      %v9524 = vsel %vm3368, %v9521, 0
      %9526 = vmatprep.subr.mxu0 0.0
      %9527 = vmatpush1.msra.mxu0 %v2636
      %9528 = vmatprep.subr.mxu0 0.0
      %9529 = vmatpush1.msra.mxu0 %v2637
      %9530 = vmatprep.subr.mxu0 0.0
      %9531 = vmatpush1.msra.mxu0 %v2638
      %9532 = vmatprep.subr.mxu0 0.0
      %9533 = vmatpush1.msra.mxu0 %v2639
      %9534 = vmatprep.subr.mxu0 0.0
      %9535 = vmatpush1.msra.mxu0 %v2640
      %9536 = vmatprep.subr.mxu0 0.0
      %9537 = vmatpush1.msra.mxu0 %v2641
      %9538 = vmatprep.subr.mxu0 0.0
      %9539 = vmatpush1.msra.mxu0 %v2642
      %9540 = vmatprep.subr.mxu0 0.0
      %9541 = vmatpush1.msra.mxu0 %v2643
      %9542 = vmatprep.subr.mxu0 0.0
      %9543 = vmatpush1.msra.mxu0 %v2644
      %9544 = vmatprep.subr.mxu0 0.0
      %9545 = vmatpush1.msra.mxu0 %v2645
      %9546 = vmatprep.subr.mxu0 0.0
      %9547 = vmatpush1.msra.mxu0 %v2646
      %9548 = vmatprep.subr.mxu0 0.0
      %9549 = vmatpush1.msra.mxu0 %v2647
      %9550 = vmatprep.subr.mxu0 0.0
      %9551 = vmatpush1.msra.mxu0 %v2648
      %9552 = vmatprep.subr.mxu0 0.0
      %9553 = vmatpush1.msra.mxu0 %v2649
      %9554 = vmatprep.subr.mxu0 0.0
      %9555 = vmatpush1.msra.mxu0 %v2650
      %9556 = vmatprep.subr.mxu0 0.0
      %9557 = vmatpush1.msra.mxu0 %v2651
      %9558 = vmatprep.subr.mxu0 0.0
      %9559 = vmatpush1.msra.mxu0 %v2652
      %9560 = vmatprep.subr.mxu0 0.0
      %9561 = vmatpush1.msra.mxu0 %v2653
      %9562 = vmatprep.subr.mxu0 0.0
      %9563 = vmatpush1.msra.mxu0 %v2654
      %9564 = vmatprep.subr.mxu0 0.0
      %9565 = vmatpush1.msra.mxu0 %v2655
      %9566 = vmatprep.subr.mxu0 0.0
      %9567 = vmatpush1.msra.mxu0 %v2656
      %9568 = vmatprep.subr.mxu0 0.0
      %9569 = vmatpush1.msra.mxu0 %v2657
      %9570 = vmatprep.subr.mxu0 0.0
      %9571 = vmatpush1.msra.mxu0 %v2658
      %9572 = vmatprep.subr.mxu0 0.0
      %9573 = vmatpush1.msra.mxu0 %v2659
      %9574 = vmatprep.subr.mxu0 0.0
      %9575 = vmatpush1.msra.mxu0 %v2660
      %9576 = vmatprep.subr.mxu0 0.0
      %9577 = vmatpush1.msra.mxu0 %v2661
      %9578 = vmatprep.subr.mxu0 0.0
      %9579 = vmatpush1.msra.mxu0 %v2662
      %9580 = vmatprep.subr.mxu0 0.0
      %9581 = vmatpush1.msra.mxu0 %v2663
      %9582 = vmatprep.subr.mxu0 0.0
      %9583 = vmatpush1.msra.mxu0 %v2664
      %9584 = vmatprep.subr.mxu0 0.0
      %9585 = vmatpush1.msra.mxu0 %v2665
      %9586 = vmatprep.subr.mxu0 0.0
      %9587 = vmatpush1.msra.mxu0 %v2666
      %9588 = vmatprep.subr.mxu0 0.0
      %9589 = vmatpush1.msra.mxu0 %v2667
      %9590 = vmatprep.mubr.f32.mxu0 %v9520
      %9591 = vmatmul.mubr.f32.gmra.mrb[0].mxu0 %v9519
      %v9592 = vpop.f32.mrb[0].mxu0
      %v9593 = vadd.f32 0.0, %v9592
      %v9594 = vpop.f32.mrb[0].mxu0
      %9595 = vdwg.mxu0
      %9596 = vmatprep.subr.mxu0 0.0
      %9597 = vmatpush1.msra.mxu0 %v2668
      %9598 = vmatprep.subr.mxu0 0.0
      %9599 = vmatpush1.msra.mxu0 %v2669
      %9600 = vmatprep.subr.mxu0 0.0
      %9601 = vmatpush1.msra.mxu0 %v2670
      %9602 = vmatprep.subr.mxu0 0.0
      %9603 = vmatpush1.msra.mxu0 %v2671
      %9604 = vmatprep.subr.mxu0 0.0
      %9605 = vmatpush1.msra.mxu0 %v2672
      %9606 = vmatprep.subr.mxu0 0.0
      %9607 = vmatpush1.msra.mxu0 %v2673
      %9608 = vmatprep.subr.mxu0 0.0
      %9609 = vmatpush1.msra.mxu0 %v2674
      %9610 = vmatprep.subr.mxu0 0.0
      %9611 = vmatpush1.msra.mxu0 %v2675
      %9612 = vmatprep.subr.mxu0 0.0
      %9613 = vmatpush1.msra.mxu0 %v2676
      %9614 = vmatprep.subr.mxu0 0.0
      %9615 = vmatpush1.msra.mxu0 %v2677
      %9616 = vmatprep.subr.mxu0 0.0
      %9617 = vmatpush1.msra.mxu0 0.0
      %9618 = vmatprep.subr.mxu0 0.0
      %9619 = vmatpush1.msra.mxu0 0.0
      %9620 = vmatprep.subr.mxu0 0.0
      %9621 = vmatpush1.msra.mxu0 0.0
      %9622 = vmatprep.subr.mxu0 0.0
      %9623 = vmatpush1.msra.mxu0 0.0
      %9624 = vmatprep.subr.mxu0 0.0
      %9625 = vmatpush1.msra.mxu0 0.0
      %9626 = vmatprep.subr.mxu0 0.0
      %9627 = vmatpush1.msra.mxu0 0.0
      %9628 = vmatprep.subr.mxu0 0.0
      %9629 = vmatpush1.msra.mxu0 0.0
      %9630 = vmatprep.subr.mxu0 0.0
      %9631 = vmatpush1.msra.mxu0 0.0
      %9632 = vmatprep.subr.mxu0 0.0
      %9633 = vmatpush1.msra.mxu0 0.0
      %9634 = vmatprep.subr.mxu0 0.0
      %9635 = vmatpush1.msra.mxu0 0.0
      %9636 = vmatprep.subr.mxu0 0.0
      %9637 = vmatpush1.msra.mxu0 0.0
      %9638 = vmatprep.subr.mxu0 0.0
      %9639 = vmatpush1.msra.mxu0 0.0
      %9640 = vmatprep.subr.mxu0 0.0
      %9641 = vmatpush1.msra.mxu0 0.0
      %9642 = vmatprep.subr.mxu0 0.0
      %9643 = vmatpush1.msra.mxu0 0.0
      %9644 = vmatprep.subr.mxu0 0.0
      %9645 = vmatpush1.msra.mxu0 0.0
      %9646 = vmatprep.subr.mxu0 0.0
      %9647 = vmatpush1.msra.mxu0 0.0
      %9648 = vmatprep.subr.mxu0 0.0
      %9649 = vmatpush1.msra.mxu0 0.0
      %9650 = vmatprep.subr.mxu0 0.0
      %9651 = vmatpush1.msra.mxu0 0.0
      %9652 = vmatprep.subr.mxu0 0.0
      %9653 = vmatpush1.msra.mxu0 0.0
      %9654 = vmatprep.subr.mxu0 0.0
      %9655 = vmatpush1.msra.mxu0 0.0
      %9656 = vmatprep.subr.mxu0 0.0
      %9657 = vmatpush1.msra.mxu0 0.0
      %9658 = vmatprep.subr.mxu0 0.0
      %9659 = vmatpush1.msra.mxu0 0.0
      %9660 = vmatprep.mubr.f32.mxu0 0.0
      %9661 = vmatmul.mubr.f32.gmra.mrb[0].mxu0 %v9524
      %v9662 = vpop.f32.mrb[0].mxu0
      %v9663 = vadd.f32 %v9593, %v9662
      %v9664 = vpop.f32.mrb[0].mxu0
      %9665 = vdwg.mxu0
      %v9666 = vadd.f32 %v9518, %v9663
      %v9667 = vrot.slane %v8778, 6
      %v9668 = vrot.slane %v8779, 6
      %v9669 = vrot.slane %v8780, 6
      %v9672 = vsel %vm3368, %v9669, 0
      %9674 = vmatprep.subr.mxu0 0.0
      %9675 = vmatpush1.msra.mxu0 %v2678
      %9676 = vmatprep.subr.mxu0 0.0
      %9677 = vmatpush1.msra.mxu0 %v2679
      %9678 = vmatprep.subr.mxu0 0.0
      %9679 = vmatpush1.msra.mxu0 %v2680
      %9680 = vmatprep.subr.mxu0 0.0
      %9681 = vmatpush1.msra.mxu0 %v2681
      %9682 = vmatprep.subr.mxu0 0.0
      %9683 = vmatpush1.msra.mxu0 %v2682
      %9684 = vmatprep.subr.mxu0 0.0
      %9685 = vmatpush1.msra.mxu0 %v2683
      %9686 = vmatprep.subr.mxu0 0.0
      %9687 = vmatpush1.msra.mxu0 %v2684
      %9688 = vmatprep.subr.mxu0 0.0
      %9689 = vmatpush1.msra.mxu0 %v2685
      %9690 = vmatprep.subr.mxu0 0.0
      %9691 = vmatpush1.msra.mxu0 %v2686
      %9692 = vmatprep.subr.mxu0 0.0
      %9693 = vmatpush1.msra.mxu0 %v2687
      %9694 = vmatprep.subr.mxu0 0.0
      %9695 = vmatpush1.msra.mxu0 %v2688
      %9696 = vmatprep.subr.mxu0 0.0
      %9697 = vmatpush1.msra.mxu0 %v2689
      %9698 = vmatprep.subr.mxu0 0.0
      %9699 = vmatpush1.msra.mxu0 %v2690
      %9700 = vmatprep.subr.mxu0 0.0
      %9701 = vmatpush1.msra.mxu0 %v2691
      %9702 = vmatprep.subr.mxu0 0.0
      %9703 = vmatpush1.msra.mxu0 %v2692
      %9704 = vmatprep.subr.mxu0 0.0
      %9705 = vmatpush1.msra.mxu0 %v2693
      %9706 = vmatprep.subr.mxu0 0.0
      %9707 = vmatpush1.msra.mxu0 %v2694
      %9708 = vmatprep.subr.mxu0 0.0
      %9709 = vmatpush1.msra.mxu0 %v2695
      %9710 = vmatprep.subr.mxu0 0.0
      %9711 = vmatpush1.msra.mxu0 %v2696
      %9712 = vmatprep.subr.mxu0 0.0
      %9713 = vmatpush1.msra.mxu0 %v2697
      %9714 = vmatprep.subr.mxu0 0.0
      %9715 = vmatpush1.msra.mxu0 %v2698
      %9716 = vmatprep.subr.mxu0 0.0
      %9717 = vmatpush1.msra.mxu0 %v2699
      %9718 = vmatprep.subr.mxu0 0.0
      %9719 = vmatpush1.msra.mxu0 %v2700
      %9720 = vmatprep.subr.mxu0 0.0
      %9721 = vmatpush1.msra.mxu0 %v2701
      %9722 = vmatprep.subr.mxu0 0.0
      %9723 = vmatpush1.msra.mxu0 %v2702
      %9724 = vmatprep.subr.mxu0 0.0
      %9725 = vmatpush1.msra.mxu0 %v2703
      %9726 = vmatprep.subr.mxu0 0.0
      %9727 = vmatpush1.msra.mxu0 %v2704
      %9728 = vmatprep.subr.mxu0 0.0
      %9729 = vmatpush1.msra.mxu0 %v2705
      %9730 = vmatprep.subr.mxu0 0.0
      %9731 = vmatpush1.msra.mxu0 %v2706
      %9732 = vmatprep.subr.mxu0 0.0
      %9733 = vmatpush1.msra.mxu0 %v2707
      %9734 = vmatprep.subr.mxu0 0.0
      %9735 = vmatpush1.msra.mxu0 %v2708
      %9736 = vmatprep.subr.mxu0 0.0
      %9737 = vmatpush1.msra.mxu0 %v2709
      %9738 = vmatprep.mubr.f32.mxu0 %v9668
      %9739 = vmatmul.mubr.f32.gmra.mrb[0].mxu0 %v9667
      %v9740 = vpop.f32.mrb[0].mxu0
      %v9741 = vadd.f32 0.0, %v9740
      %v9742 = vpop.f32.mrb[0].mxu0
      %9743 = vdwg.mxu0
      %9744 = vmatprep.subr.mxu0 0.0
      %9745 = vmatpush1.msra.mxu0 %v2710
      %9746 = vmatprep.subr.mxu0 0.0
      %9747 = vmatpush1.msra.mxu0 %v2711
      %9748 = vmatprep.subr.mxu0 0.0
      %9749 = vmatpush1.msra.mxu0 %v2712
      %9750 = vmatprep.subr.mxu0 0.0
      %9751 = vmatpush1.msra.mxu0 %v2713
      %9752 = vmatprep.subr.mxu0 0.0
      %9753 = vmatpush1.msra.mxu0 %v2714
      %9754 = vmatprep.subr.mxu0 0.0
      %9755 = vmatpush1.msra.mxu0 %v2715
      %9756 = vmatprep.subr.mxu0 0.0
      %9757 = vmatpush1.msra.mxu0 %v2716
      %9758 = vmatprep.subr.mxu0 0.0
      %9759 = vmatpush1.msra.mxu0 %v2717
      %9760 = vmatprep.subr.mxu0 0.0
      %9761 = vmatpush1.msra.mxu0 %v2718
      %9762 = vmatprep.subr.mxu0 0.0
      %9763 = vmatpush1.msra.mxu0 %v2719
      %9764 = vmatprep.subr.mxu0 0.0
      %9765 = vmatpush1.msra.mxu0 0.0
      %9766 = vmatprep.subr.mxu0 0.0
      %9767 = vmatpush1.msra.mxu0 0.0
      %9768 = vmatprep.subr.mxu0 0.0
      %9769 = vmatpush1.msra.mxu0 0.0
      %9770 = vmatprep.subr.mxu0 0.0
      %9771 = vmatpush1.msra.mxu0 0.0
      %9772 = vmatprep.subr.mxu0 0.0
      %9773 = vmatpush1.msra.mxu0 0.0
      %9774 = vmatprep.subr.mxu0 0.0
      %9775 = vmatpush1.msra.mxu0 0.0
      %9776 = vmatprep.subr.mxu0 0.0
      %9777 = vmatpush1.msra.mxu0 0.0
      %9778 = vmatprep.subr.mxu0 0.0
      %9779 = vmatpush1.msra.mxu0 0.0
      %9780 = vmatprep.subr.mxu0 0.0
      %9781 = vmatpush1.msra.mxu0 0.0
      %9782 = vmatprep.subr.mxu0 0.0
      %9783 = vmatpush1.msra.mxu0 0.0
      %9784 = vmatprep.subr.mxu0 0.0
      %9785 = vmatpush1.msra.mxu0 0.0
      %9786 = vmatprep.subr.mxu0 0.0
      %9787 = vmatpush1.msra.mxu0 0.0
      %9788 = vmatprep.subr.mxu0 0.0
      %9789 = vmatpush1.msra.mxu0 0.0
      %9790 = vmatprep.subr.mxu0 0.0
      %9791 = vmatpush1.msra.mxu0 0.0
      %9792 = vmatprep.subr.mxu0 0.0
      %9793 = vmatpush1.msra.mxu0 0.0
      %9794 = vmatprep.subr.mxu0 0.0
      %9795 = vmatpush1.msra.mxu0 0.0
      %9796 = vmatprep.subr.mxu0 0.0
      %9797 = vmatpush1.msra.mxu0 0.0
      %9798 = vmatprep.subr.mxu0 0.0
      %9799 = vmatpush1.msra.mxu0 0.0
      %9800 = vmatprep.subr.mxu0 0.0
      %9801 = vmatpush1.msra.mxu0 0.0
      %9802 = vmatprep.subr.mxu0 0.0
      %9803 = vmatpush1.msra.mxu0 0.0
      %9804 = vmatprep.subr.mxu0 0.0
      %9805 = vmatpush1.msra.mxu0 0.0
      %9806 = vmatprep.subr.mxu0 0.0
      %9807 = vmatpush1.msra.mxu0 0.0
      %9808 = vmatprep.mubr.f32.mxu0 0.0
      %9809 = vmatmul.mubr.f32.gmra.mrb[0].mxu0 %v9672
      %v9810 = vpop.f32.mrb[0].mxu0
      %v9811 = vadd.f32 %v9741, %v9810
      %v9812 = vpop.f32.mrb[0].mxu0
      %9813 = vdwg.mxu0
      %v9814 = vadd.f32 %v9666, %v9811
      %v9815 = vsub.f32 0.0, %v9814
      %v9816 = vmul.f32 %v9815, 1.442695
      %v9817 = vpow.pop %v9816
      %v9818 = vadd.f32 %v9817, 1.0
      %v9819 = vrcp.pop %v9818
      %v9821 = vsel %vm4408, %v9819, 0
      %9823 = vmatprep.subr.mxu0 0.0
      %9824 = vmatpush1.msra.mxu0 %v2721
      %9825 = vmatprep.subr.mxu0 0.0
      %9826 = vmatpush1.msra.mxu0 %v2722
      %9827 = vmatprep.subr.mxu0 0.0
      %9828 = vmatpush1.msra.mxu0 %v2723
      %9829 = vmatprep.subr.mxu0 0.0
      %9830 = vmatpush1.msra.mxu0 %v2724
      %9831 = vmatprep.subr.mxu0 0.0
      %9832 = vmatpush1.msra.mxu0 %v2725
      %9833 = vmatprep.subr.mxu0 0.0
      %9834 = vmatpush1.msra.mxu0 %v2726
      %9835 = vmatprep.subr.mxu0 0.0
      %9836 = vmatpush1.msra.mxu0 %v2727
      %9837 = vmatprep.subr.mxu0 0.0
      %9838 = vmatpush1.msra.mxu0 %v2728
      %9839 = vmatprep.subr.mxu0 0.0
      %9840 = vmatpush1.msra.mxu0 %v2729
      %9841 = vmatprep.subr.mxu0 0.0
      %9842 = vmatpush1.msra.mxu0 %v2730
      %9843 = vmatprep.subr.mxu0 0.0
      %9844 = vmatpush1.msra.mxu0 %v2731
      %9845 = vmatprep.subr.mxu0 0.0
      %9846 = vmatpush1.msra.mxu0 %v2732
      %9847 = vmatprep.subr.mxu0 0.0
      %9848 = vmatpush1.msra.mxu0 0.0
      %9849 = vmatprep.subr.mxu0 0.0
      %9850 = vmatpush1.msra.mxu0 0.0
      %9851 = vmatprep.subr.mxu0 0.0
      %9852 = vmatpush1.msra.mxu0 0.0
      %9853 = vmatprep.subr.mxu0 0.0
      %9854 = vmatpush1.msra.mxu0 0.0
      %9855 = vmatprep.subr.mxu0 0.0
      %9856 = vmatpush1.msra.mxu0 0.0
      %9857 = vmatprep.subr.mxu0 0.0
      %9858 = vmatpush1.msra.mxu0 0.0
      %9859 = vmatprep.subr.mxu0 0.0
      %9860 = vmatpush1.msra.mxu0 0.0
      %9861 = vmatprep.subr.mxu0 0.0
      %9862 = vmatpush1.msra.mxu0 0.0
      %9863 = vmatprep.subr.mxu0 0.0
      %9864 = vmatpush1.msra.mxu0 0.0
      %9865 = vmatprep.subr.mxu0 0.0
      %9866 = vmatpush1.msra.mxu0 0.0
      %9867 = vmatprep.subr.mxu0 0.0
      %9868 = vmatpush1.msra.mxu0 0.0
      %9869 = vmatprep.subr.mxu0 0.0
      %9870 = vmatpush1.msra.mxu0 0.0
      %9871 = vmatprep.subr.mxu0 0.0
      %9872 = vmatpush1.msra.mxu0 0.0
      %9873 = vmatprep.subr.mxu0 0.0
      %9874 = vmatpush1.msra.mxu0 0.0
      %9875 = vmatprep.subr.mxu0 0.0
      %9876 = vmatpush1.msra.mxu0 0.0
      %9877 = vmatprep.subr.mxu0 0.0
      %9878 = vmatpush1.msra.mxu0 0.0
      %9879 = vmatprep.subr.mxu0 0.0
      %9880 = vmatpush1.msra.mxu0 0.0
      %9881 = vmatprep.subr.mxu0 0.0
      %9882 = vmatpush1.msra.mxu0 0.0
      %9883 = vmatprep.subr.mxu0 0.0
      %9884 = vmatpush1.msra.mxu0 0.0
      %9885 = vmatprep.subr.mxu0 0.0
      %9886 = vmatpush1.msra.mxu0 0.0
      %9887 = vmatprep.mubr.f32.mxu0 0.0
      %9888 = vmatmul.mubr.f32.gmra.mrb[0].mxu0 %v9821
      %v9889 = vpop.f32.mrb[0].mxu0
      %v9890 = vadd.f32 %v2733, %v9889
      %v9891 = vpop.f32.mrb[0].mxu0
      %9892 = vdwg.mxu0
      %v9893 = vmax.f32 %v9890, 0.0
      %v9895 = vsel %vm4483, %v9893, 0
      %9897 = vmatprep.subr.mxu0 0.0
      %9898 = vmatpush1.msra.mxu0 %v2734
      %9899 = vmatprep.subr.mxu0 0.0
      %9900 = vmatpush1.msra.mxu0 %v2735
      %9901 = vmatprep.subr.mxu0 0.0
      %9902 = vmatpush1.msra.mxu0 %v2736
      %9903 = vmatprep.subr.mxu0 0.0
      %9904 = vmatpush1.msra.mxu0 %v2737
      %9905 = vmatprep.subr.mxu0 0.0
      %9906 = vmatpush1.msra.mxu0 %v2738
      %9907 = vmatprep.subr.mxu0 0.0
      %9908 = vmatpush1.msra.mxu0 %v2739
      %9909 = vmatprep.subr.mxu0 0.0
      %9910 = vmatpush1.msra.mxu0 %v2740
      %9911 = vmatprep.subr.mxu0 0.0
      %9912 = vmatpush1.msra.mxu0 %v2741
      %9913 = vmatprep.subr.mxu0 0.0
      %9914 = vmatpush1.msra.mxu0 %v2742
      %9915 = vmatprep.subr.mxu0 0.0
      %9916 = vmatpush1.msra.mxu0 %v2743
      %9917 = vmatprep.subr.mxu0 0.0
      %9918 = vmatpush1.msra.mxu0 %v2744
      %9919 = vmatprep.subr.mxu0 0.0
      %9920 = vmatpush1.msra.mxu0 %v2745
      %9921 = vmatprep.subr.mxu0 0.0
      %9922 = vmatpush1.msra.mxu0 %v4489
      %9923 = vmatprep.subr.mxu0 0.0
      %9924 = vmatpush1.msra.mxu0 0.0
      %9925 = vmatprep.subr.mxu0 0.0
      %9926 = vmatpush1.msra.mxu0 0.0
      %9927 = vmatprep.subr.mxu0 0.0
      %9928 = vmatpush1.msra.mxu0 0.0
      %9929 = vmatprep.subr.mxu0 0.0
      %9930 = vmatpush1.msra.mxu0 0.0
      %9931 = vmatprep.subr.mxu0 0.0
      %9932 = vmatpush1.msra.mxu0 0.0
      %9933 = vmatprep.subr.mxu0 0.0
      %9934 = vmatpush1.msra.mxu0 0.0
      %9935 = vmatprep.subr.mxu0 0.0
      %9936 = vmatpush1.msra.mxu0 0.0
      %9937 = vmatprep.subr.mxu0 0.0
      %9938 = vmatpush1.msra.mxu0 0.0
      %9939 = vmatprep.subr.mxu0 0.0
      %9940 = vmatpush1.msra.mxu0 0.0
      %9941 = vmatprep.subr.mxu0 0.0
      %9942 = vmatpush1.msra.mxu0 0.0
      %9943 = vmatprep.subr.mxu0 0.0
      %9944 = vmatpush1.msra.mxu0 0.0
      %9945 = vmatprep.subr.mxu0 0.0
      %9946 = vmatpush1.msra.mxu0 0.0
      %9947 = vmatprep.subr.mxu0 0.0
      %9948 = vmatpush1.msra.mxu0 0.0
      %9949 = vmatprep.subr.mxu0 0.0
      %9950 = vmatpush1.msra.mxu0 0.0
      %9951 = vmatprep.subr.mxu0 0.0
      %9952 = vmatpush1.msra.mxu0 0.0
      %9953 = vmatprep.subr.mxu0 0.0
      %9954 = vmatpush1.msra.mxu0 0.0
      %9955 = vmatprep.subr.mxu0 0.0
      %9956 = vmatpush1.msra.mxu0 0.0
      %9957 = vmatprep.subr.mxu0 0.0
      %9958 = vmatpush1.msra.mxu0 0.0
      %9959 = vmatprep.subr.mxu0 0.0
      %9960 = vmatpush1.msra.mxu0 0.0
      %9961 = vmatprep.mubr.f32.mxu0 0.0
      %9962 = vmatmul.mubr.f32.gmra.mrb[0].mxu0 %v9895
      %v9963 = vpop.f32.mrb[0].mxu0
      %v9964 = vadd.f32 %v2747, %v9963
      %v9965 = vpop.f32.mrb[0].mxu0
      %9966 = vdwg.mxu0
      %v9967 = vsel %vm4561, %v9964, -inf
      %9968 = vmax.xlane.f32.xlu0 %v9967
      %v9969 = vpop.xlane.xlu0 %9968
      %v9970 = vsub.f32 %v9964, %v9969
      %v9971 = vmul.f32 %v9970, 1.442695
      %v9972 = vpow.pop %v9971
      %v9973 = vsel %vm4561, %v9972, 0.0
      %9974 = vadd.xlane.f32.xlu0 %v9973
      %v9975 = vpop.xlane.xlu0 %9974
      %v9976 = vrcp.pop %v9975
      %v9977 = vmul.f32 %v9972, %v9976
      %s9978 = scalar_lea.vmem %s545, 3
      %9979 = vst.msk [vmem:[%s9978] sm:$0x1] %vm4561, %v9977
      %s9980 = smul.u32 4, %s25
      %p9981 = scmp.lt.s32.totalorder %s9980, 7
      %s9982 = scalar_select %p9981, %s9980, 7
      %s9983 = scalar_lea.vmem %s14, %s9982
      // Predicated region
      $region77: #{net_forward.1} parent=75 // pred_check
        %p9984 = pneg %p357
      $region78: #{net_forward.1} parent=75 // pred_check_branch
        %9986 = sbr.rel (%p9984) target = $region80
      $region79: #{net_forward.1} parent=75 // pred_region
        %s9987 = smul.u32 4, %s25
      $region80: #{net_forward.1} parent=75 // pred_fallthru
        _
    $region76: #{net_forward.1} parent=5 // pred_fallthru
      _
    %p9988 = scmp.le.s32.totalorder 2, %s20
    // Predicated region
    $region81: #{net_forward.1} parent=5 // pred_check
      %p9989 = pneg %p9988
    $region82: #{net_forward.1} parent=5 // pred_check_branch
      %9991 = sbr.rel (%p9989) target = $region84
    $region83: #{net_forward.1} parent=5 // pred_region
      %s9992 = ssub.s32 %s20, 2
      // Predicated region
      $region85: #{net_forward.1} parent=83 // pred_check
        %p9993 = pneg %p363
      $region86: #{net_forward.1} parent=83 // pred_check_branch
        %9995 = sbr.rel (%p9993) target = $region88
      $region87: #{net_forward.1} parent=83 // pred_region
        %s9996 = smul.u32 4, %s26
        %p9997 = scmp.lt.s32.totalorder %s9996, 7
        %s9998 = scalar_select %p9997, %s9996, 7
        %s9999 = scalar_lea.vmem %s14, %s9998
      $region88: #{net_forward.1} parent=83 // pred_fallthru
        _
    $region84: #{net_forward.1} parent=5 // pred_fallthru
      _
  $region6: #{net_forward.1} parent=0 // loop_footer
    %s24 = sadd.s32 1, %s20
  $region7: #{net_forward.1} parent=0 // loop_footer_branch
    %19 = sbr.rel target = $region3
  $region8: #{net_forward.1} parent=0 // loop_exit
    _

</llo_original>
